<compile_context>
chip_gen: v6e
topology: v6e:2x2x1
jax: 0.10.0
libtpu: 0.0.40
codegen_flags: <defaults>
</compile_context>

<pallas_src>
import functools

import jax
import jax.numpy as jnp
from jax.experimental import pallas as pl
from jax.experimental.pallas import tpu as pltpu

KSIZE = 3  # 3x3 conv
EPS = 1e-5


def _residual_kernel(x_ref, w1_ref, b1_ref, w2_ref, b2_ref, mask_ref,
                     o_ref, ypad_ref, *, H, W):
    """One grid step: Bt images, conv1+BN1+ReLU -> conv2+BN2 -> +residual -> ReLU.

    x_ref   : (Bt, PADR, C) bf16  row-flattened zero-padded input (row = h*Wp + w)
    w*_ref  : (3, 3C, C)    bf16  kw-fused conv weights (BN scale folded in)
    b*_ref  : (1, C)        f32   folded conv bias + BN shift
    mask_ref: (Bt*H*Wp, 1)  f32   1.0 for valid rows, 0.0 for wrap-garbage rows
    o_ref   : (Bt, H*Wp, C) f32   row-flattened output (wrap rows dropped on host)
    ypad_ref: (Bt, R2, C)   bf16  scratch: conv1 output with zero margins
    """
    Wp = W + 2
    HWp = H * Wp
    bt, _, C = o_ref.shape
    M = bt * HWp
    K3 = KSIZE * C
    margin = (ypad_ref.shape[1] - HWp) // 2   # 16-row-aligned zero margin

    # Zero only the head/tail margins of the bf16 intermediate; the interior is
    # fully overwritten below, so every row conv2 reads is written this step.
    ypad_ref[:, 0:margin, :] = jnp.zeros((bt, margin, C), ypad_ref.dtype)
    ypad_ref[:, margin + HWp:margin + HWp + margin, :] = jnp.zeros(
        (bt, margin, C), ypad_ref.dtype)

    def conv3x3(src_ref, base, w_ref):
        # One MXU matmul per kh: the 3 kw taps are contiguous row-slices that are
        # concatenated along lanes (lane-tile aligned, C=256) into a K=3C operand.
        acc = None
        for kh in range(KSIZE):
            off = base + kh * Wp
            lhs = jnp.concatenate(
                [src_ref[:, off + kw:off + kw + HWp, :] for kw in range(KSIZE)],
                axis=-1).reshape(M, K3)                          # (M, 3C) bf16
            part = jnp.dot(lhs, w_ref[kh], preferred_element_type=jnp.float32)
            acc = part if acc is None else acc + part
        return acc                                               # (M, C) f32

    # conv1 -> +bias(BN1) -> ReLU ; zero wrap rows ; stage bf16 conv2 input.
    y = jnp.maximum(conv3x3(x_ref, 0, w1_ref) + b1_ref[...], 0.0) * mask_ref[...]
    ypad_ref[:, margin:margin + HWp, :] = (
        y.reshape(bt, HWp, C).astype(ypad_ref.dtype))

    # conv2 -> +bias(BN2) -> +residual (read here, not carried) -> ReLU.
    acc2 = conv3x3(ypad_ref, margin - (Wp + 1), w2_ref)
    resid = x_ref[:, Wp + 1:Wp + 1 + HWp, :].reshape(M, C).astype(jnp.float32)
    z = jnp.maximum(acc2 + b2_ref[...] + resid, 0.0)
    o_ref[...] = z.reshape(bt, HWp, C).astype(o_ref.dtype)


def _fold_bn(conv_bias, gamma, beta, mean, var, eps=EPS):
    scale = gamma / jnp.sqrt(var + eps)          # folded into conv weights
    bias = scale * (conv_bias - mean) + beta     # stays as per-channel f32 add
    return scale, bias


@jax.jit
def residual_layer(x, w1, b1c, g1, be1, m1, v1, w2, b2c, g2, be2, m2, v2):
    """x: (N, H, W, C) float32 NHWC, conv weights HWIO. Returns (N, H, W, C)."""
    N, H, W, C = x.shape
    Wp = W + 2
    HWp = H * Wp
    PADR = (H + 4) * Wp          # flat rows per image; covers max tap offset + H*Wp
    # Grid of 2 parallel steps: balances v7x's two TensorCores and gives one step of
    # input-DMA/compute overlap; on single-TC v5e/v6e the extra step costs ~0.35us.
    # Larger Bt would also grow the f32 accumulator (register/VMEM pressure).
    bt = 2 if N % 2 == 0 else 1
    M = bt * HWp
    margin = -(-(Wp + 1) // 16) * 16             # >= Wp+1, 16-row aligned (bf16)
    R2 = margin + HWp + margin

    # Fold eval-mode BN into the convs; reshape weights to (3, 3C, C) for the
    # kw-fused K=3C matmuls and cast to bf16 (halves the weight DMA).
    s1, bb1 = _fold_bn(b1c, g1, be1, m1, v1)
    s2, bb2 = _fold_bn(b2c, g2, be2, m2, v2)
    w1k = (w1 * s1.reshape(1, 1, 1, C)).astype(jnp.bfloat16).reshape(
        KSIZE, KSIZE * C, C)
    w2k = (w2 * s2.reshape(1, 1, 1, C)).astype(jnp.bfloat16).reshape(
        KSIZE, KSIZE * C, C)
    bb1 = bb1.reshape(1, C)
    bb2 = bb2.reshape(1, C)

    # Zero-pad, cast to bf16 and flatten (h, w) -> row h*Wp + w; the extra bottom
    # rows (all zero) keep every static tap slice in bounds.
    xflat = jnp.pad(x, ((0, 0), (1, 3), (1, 1), (0, 0))).astype(
        jnp.bfloat16).reshape(N, PADR, C)

    # f32 {0,1} mask of valid rows (wrap columns j in [W, Wp) are garbage).
    mask = (jnp.arange(M) % Wp < W).astype(jnp.float32).reshape(M, 1)

    out_flat = pl.pallas_call(
        functools.partial(_residual_kernel, H=H, W=W),
        out_shape=jax.ShapeDtypeStruct((N, HWp, C), x.dtype),
        grid_spec=pltpu.PrefetchScalarGridSpec(
            num_scalar_prefetch=0,
            grid=(N // bt,),
            in_specs=[
                pl.BlockSpec((bt, PADR, C), lambda n: (n, 0, 0)),
                pl.BlockSpec((KSIZE, KSIZE * C, C), lambda n: (0, 0, 0)),
                pl.BlockSpec((1, C), lambda n: (0, 0)),
                pl.BlockSpec((KSIZE, KSIZE * C, C), lambda n: (0, 0, 0)),
                pl.BlockSpec((1, C), lambda n: (0, 0)),
                pl.BlockSpec((M, 1), lambda n: (0, 0)),
            ],
            out_specs=pl.BlockSpec((bt, HWp, C), lambda n: (n, 0, 0)),
            scratch_shapes=[pltpu.VMEM((bt, R2, C), jnp.bfloat16)],
        ),
        compiler_params=pltpu.CompilerParams(
            dimension_semantics=("parallel",),
            # ~7 MiB actual footprint; 32 MiB leaves headroom on v7x's 64 MiB/TC.
            vmem_limit_bytes=32 << 20,
        ),
    )(xflat, w1k, bb1, w2k, bb2, mask)

    # Drop the 2 wrap columns per row and restore NHWC.
    return out_flat.reshape(N, H, Wp, C)[:, :, :W, :]


def _reference(x, w1, b1c, g1, be1, m1, v1, w2, b2c, g2, be2, m2, v2):
    """Pure-JAX f32 reference (eval-mode BN), NHWC / HWIO."""
    def conv(a, w, b):
        y = jax.lax.conv_general_dilated(
            a, w, window_strides=(1, 1), padding="SAME",
            dimension_numbers=("NHWC", "HWIO", "NHWC"),
            precision=jax.lax.Precision.HIGHEST)
        return y + b

    def bn(a, g, be, m, v):
        return (a - m) / jnp.sqrt(v + EPS) * g + be

    y = jax.nn.relu(bn(conv(x, w1, b1c), g1, be1, m1, v1))
    z = bn(conv(y, w2, b2c), g2, be2, m2, v2) + x
    return jax.nn.relu(z)


if __name__ == "__main__":
    # Module hardcodes 256 channels; keep spatial/batch small. N=4 with Bt=2 gives
    # a 2-step parallel grid (both v7x cores get work) and M = 2*H*(W+2) = 160.
    N, H, W, C = 4, 8, 8, 256
    key = jax.random.PRNGKey(0)
    ks = jax.random.split(key, 8)

    x = jax.random.normal(ks[0], (N, H, W, C), jnp.float32)

    # conv weights (HWIO) + biases, deterministic init
    w1 = jax.random.normal(ks[1], (KSIZE, KSIZE, C, C), jnp.float32) * 0.02
    b1c = jax.random.normal(ks[2], (C,), jnp.float32) * 0.1
    w2 = jax.random.normal(ks[3], (KSIZE, KSIZE, C, C), jnp.float32) * 0.02
    b2c = jax.random.normal(ks[4], (C,), jnp.float32) * 0.1

    # BatchNorm parameters (affine randomized, running stats at defaults)
    g1 = 1.0 + 0.1 * jax.random.normal(ks[5], (C,), jnp.float32)
    be1 = 0.1 * jax.random.normal(ks[6], (C,), jnp.float32)
    m1 = jnp.zeros((C,), jnp.float32)
    v1 = jnp.ones((C,), jnp.float32)
    g2 = 1.0 + 0.1 * jax.random.normal(ks[7], (C,), jnp.float32)
    be2 = jnp.zeros((C,), jnp.float32)
    m2 = jnp.zeros((C,), jnp.float32)
    v2 = jnp.ones((C,), jnp.float32)

    args = (x, w1, b1c, g1, be1, m1, v1, w2, b2c, g2, be2, m2, v2)

    out = jax.block_until_ready(residual_layer(*args))
    ref = jax.block_until_ready(_reference(*args))

    assert out.shape == (N, H, W, C)
    # bf16 matmul operands / bf16 activations (f32 accumulation) vs f32 reference.
    err = float(jnp.max(jnp.abs(out - ref)))
    assert jnp.allclose(out, ref, atol=5e-2, rtol=5e-2), err

    print("KERNEL_OK")
</pallas_src>

<mosaic_0001>
module attributes {stable_mosaic.version = 11 : i64} {
  func.func @_residual_kernel(%arg0: i32, %arg1: memref<2x120x256xbf16, #tpu.memory_space<vmem>>, %arg2: memref<3x768x256xbf16, #tpu.memory_space<vmem>>, %arg3: memref<1x256xf32, #tpu.memory_space<vmem>>, %arg4: memref<3x768x256xbf16, #tpu.memory_space<vmem>>, %arg5: memref<1x256xf32, #tpu.memory_space<vmem>>, %arg6: memref<160x1xf32, #tpu.memory_space<vmem>>, %arg7: memref<2x80x256xf32, #tpu.memory_space<vmem>>, %arg8: memref<2x112x256xbf16, #tpu.memory_space<vmem>>) attributes {dimension_semantics = [#tpu.dimension_semantics<parallel>], iteration_bounds = array<i64: 2>, scalar_prefetch = 0 : i64, scratch_operands = 1 : i64, tpu.core_type = #tpu.core_type<tc>, window_params = [{transform_indices = @transform_0, window_bounds = array<i64: 2, 120, 256>}, {pipeline_mode = #tpu.pipeline_mode<synchronous>, transform_indices = @transform_1, window_bounds = array<i64: 3, 768, 256>}, {pipeline_mode = #tpu.pipeline_mode<synchronous>, transform_indices = @transform_2, window_bounds = array<i64: 1, 256>}, {pipeline_mode = #tpu.pipeline_mode<synchronous>, transform_indices = @transform_3, window_bounds = array<i64: 3, 768, 256>}, {pipeline_mode = #tpu.pipeline_mode<synchronous>, transform_indices = @transform_4, window_bounds = array<i64: 1, 256>}, {pipeline_mode = #tpu.pipeline_mode<synchronous>, transform_indices = @transform_5, window_bounds = array<i64: 160, 1>}, {transform_indices = @transform_6, window_bounds = array<i64: 2, 80, 256>}]} {
    %cst = arith.constant 0.000000e+00 : bf16
    %0 = vector.broadcast %cst : bf16 to vector<2x16x256xbf16>
    %c0 = arith.constant 0 : index
    %c0_0 = arith.constant 0 : index
    %c0_1 = arith.constant 0 : index
    %1 = vector.load %arg8[%c0, %c0_0, %c0_1] : memref<2x112x256xbf16, #tpu.memory_space<vmem>>, vector<2x16x256xbf16>
    tpu.vector_store %arg8[%c0, %c0_0, %c0_1], %0 {strides = array<i32>} : memref<2x112x256xbf16, #tpu.memory_space<vmem>>, vector<2x16x256xbf16>,
    %cst_2 = arith.constant 0.000000e+00 : bf16
    %2 = vector.broadcast %cst_2 : bf16 to vector<2x16x256xbf16>
    %c0_3 = arith.constant 0 : index
    %c96 = arith.constant 96 : index
    %c0_4 = arith.constant 0 : index
    %3 = vector.load %arg8[%c0_3, %c96, %c0_4] : memref<2x112x256xbf16, #tpu.memory_space<vmem>>, vector<2x16x256xbf16>
    tpu.vector_store %arg8[%c0_3, %c96, %c0_4], %2 {strides = array<i32>} : memref<2x112x256xbf16, #tpu.memory_space<vmem>>, vector<2x16x256xbf16>,
    %c0_5 = arith.constant 0 : index
    %c0_6 = arith.constant 0 : index
    %c0_7 = arith.constant 0 : index
    %4 = vector.load %arg1[%c0_5, %c0_6, %c0_7] : memref<2x120x256xbf16, #tpu.memory_space<vmem>>, vector<2x80x256xbf16>
    %c0_8 = arith.constant 0 : index
    %c1 = arith.constant 1 : index
    %c0_9 = arith.constant 0 : index
    %5 = vector.load %arg1[%c0_8, %c1, %c0_9] : memref<2x120x256xbf16, #tpu.memory_space<vmem>>, vector<2x80x256xbf16>
    %c0_10 = arith.constant 0 : index
    %c2 = arith.constant 2 : index
    %c0_11 = arith.constant 0 : index
    %6 = vector.load %arg1[%c0_10, %c2, %c0_11] : memref<2x120x256xbf16, #tpu.memory_space<vmem>>, vector<2x80x256xbf16>
    %7 = tpu.concatenate %4, %5, %6 in 2 : vector<2x80x256xbf16>, vector<2x80x256xbf16>, vector<2x80x256xbf16> -> vector<2x80x768xbf16>
    %8 = vector.shape_cast %7 : vector<2x80x768xbf16> to vector<160x768xbf16>
    %c0_12 = arith.constant 0 : index
    %c0_13 = arith.constant 0 : index
    %c0_14 = arith.constant 0 : index
    %9 = vector.load %arg2[%c0_12, %c0_13, %c0_14] : memref<3x768x256xbf16, #tpu.memory_space<vmem>>, vector<1x768x256xbf16>
    %10 = vector.shape_cast %9 : vector<1x768x256xbf16> to vector<768x256xbf16>
    %cst_15 = arith.constant dense<0.000000e+00> : vector<160x256xf32>
    %11 = tpu.matmul %8, %10, %cst_15 {dimension_numbers = #tpu.dot_dimension_numbers<[1], [0], [0], [1], [0, 0, 1, 1], [], []>} : vector<160x768xbf16>, vector<768x256xbf16>, vector<160x256xf32> -> vector<160x256xf32>
    %c0_16 = arith.constant 0 : index
    %c10 = arith.constant 10 : index
    %c0_17 = arith.constant 0 : index
    %12 = vector.load %arg1[%c0_16, %c10, %c0_17] : memref<2x120x256xbf16, #tpu.memory_space<vmem>>, vector<2x80x256xbf16>
    %c0_18 = arith.constant 0 : index
    %c11 = arith.constant 11 : index
    %c0_19 = arith.constant 0 : index
    %13 = vector.load %arg1[%c0_18, %c11, %c0_19] : memref<2x120x256xbf16, #tpu.memory_space<vmem>>, vector<2x80x256xbf16>
    %c0_20 = arith.constant 0 : index
    %c12 = arith.constant 12 : index
    %c0_21 = arith.constant 0 : index
    %14 = vector.load %arg1[%c0_20, %c12, %c0_21] : memref<2x120x256xbf16, #tpu.memory_space<vmem>>, vector<2x80x256xbf16>
    %15 = tpu.concatenate %12, %13, %14 in 2 : vector<2x80x256xbf16>, vector<2x80x256xbf16>, vector<2x80x256xbf16> -> vector<2x80x768xbf16>
    %16 = vector.shape_cast %15 : vector<2x80x768xbf16> to vector<160x768xbf16>
    %c1_22 = arith.constant 1 : index
    %c0_23 = arith.constant 0 : index
    %c0_24 = arith.constant 0 : index
    %17 = vector.load %arg2[%c1_22, %c0_23, %c0_24] : memref<3x768x256xbf16, #tpu.memory_space<vmem>>, vector<1x768x256xbf16>
    %18 = vector.shape_cast %17 : vector<1x768x256xbf16> to vector<768x256xbf16>
    %cst_25 = arith.constant dense<0.000000e+00> : vector<160x256xf32>
    %19 = tpu.matmul %16, %18, %cst_25 {dimension_numbers = #tpu.dot_dimension_numbers<[1], [0], [0], [1], [0, 0, 1, 1], [], []>} : vector<160x768xbf16>, vector<768x256xbf16>, vector<160x256xf32> -> vector<160x256xf32>
    %20 = arith.addf %11, %19 : vector<160x256xf32>
    %c0_26 = arith.constant 0 : index
    %c20 = arith.constant 20 : index
    %c0_27 = arith.constant 0 : index
    %21 = vector.load %arg1[%c0_26, %c20, %c0_27] : memref<2x120x256xbf16, #tpu.memory_space<vmem>>, vector<2x80x256xbf16>
    %c0_28 = arith.constant 0 : index
    %c21 = arith.constant 21 : index
    %c0_29 = arith.constant 0 : index
    %22 = vector.load %arg1[%c0_28, %c21, %c0_29] : memref<2x120x256xbf16, #tpu.memory_space<vmem>>, vector<2x80x256xbf16>
    %c0_30 = arith.constant 0 : index
    %c22 = arith.constant 22 : index
    %c0_31 = arith.constant 0 : index
    %23 = vector.load %arg1[%c0_30, %c22, %c0_31] : memref<2x120x256xbf16, #tpu.memory_space<vmem>>, vector<2x80x256xbf16>
    %24 = tpu.concatenate %21, %22, %23 in 2 : vector<2x80x256xbf16>, vector<2x80x256xbf16>, vector<2x80x256xbf16> -> vector<2x80x768xbf16>
    %25 = vector.shape_cast %24 : vector<2x80x768xbf16> to vector<160x768xbf16>
    %c2_32 = arith.constant 2 : index
    %c0_33 = arith.constant 0 : index
    %c0_34 = arith.constant 0 : index
    %26 = vector.load %arg2[%c2_32, %c0_33, %c0_34] : memref<3x768x256xbf16, #tpu.memory_space<vmem>>, vector<1x768x256xbf16>
    %27 = vector.shape_cast %26 : vector<1x768x256xbf16> to vector<768x256xbf16>
    %cst_35 = arith.constant dense<0.000000e+00> : vector<160x256xf32>
    %28 = tpu.matmul %25, %27, %cst_35 {dimension_numbers = #tpu.dot_dimension_numbers<[1], [0], [0], [1], [0, 0, 1, 1], [], []>} : vector<160x768xbf16>, vector<768x256xbf16>, vector<160x256xf32> -> vector<160x256xf32>
    %29 = arith.addf %20, %28 : vector<160x256xf32>
    %c0_36 = arith.constant 0 : index
    %c0_37 = arith.constant 0 : index
    %30 = vector.load %arg3[%c0_36, %c0_37] : memref<1x256xf32, #tpu.memory_space<vmem>>, vector<1x256xf32>
    %31 = vector.broadcast %30 : vector<1x256xf32> to vector<160x256xf32>
    %32 = arith.addf %29, %31 : vector<160x256xf32>
    %cst_38 = arith.constant 0.000000e+00 : f32
    %33 = vector.broadcast %cst_38 : f32 to vector<160x256xf32>
    %34 = arith.maximumf %32, %33 : vector<160x256xf32>
    %c0_39 = arith.constant 0 : index
    %c0_40 = arith.constant 0 : index
    %35 = vector.load %arg6[%c0_39, %c0_40] : memref<160x1xf32, #tpu.memory_space<vmem>>, vector<160x1xf32>
    %36 = vector.broadcast %35 : vector<160x1xf32> to vector<160x256xf32>
    %37 = arith.mulf %34, %36 : vector<160x256xf32>
    %38 = vector.shape_cast %37 : vector<160x256xf32> to vector<2x80x256xf32>
    %39 = arith.truncf %38 : vector<2x80x256xf32> to vector<2x80x256xbf16>
    %c0_41 = arith.constant 0 : index
    %c16 = arith.constant 16 : index
    %c0_42 = arith.constant 0 : index
    %40 = vector.load %arg8[%c0_41, %c16, %c0_42] : memref<2x112x256xbf16, #tpu.memory_space<vmem>>, vector<2x80x256xbf16>
    tpu.vector_store %arg8[%c0_41, %c16, %c0_42], %39 {strides = array<i32>} : memref<2x112x256xbf16, #tpu.memory_space<vmem>>, vector<2x80x256xbf16>,
    %c0_43 = arith.constant 0 : index
    %c5 = arith.constant 5 : index
    %c0_44 = arith.constant 0 : index
    %41 = vector.load %arg8[%c0_43, %c5, %c0_44] : memref<2x112x256xbf16, #tpu.memory_space<vmem>>, vector<2x80x256xbf16>
    %c0_45 = arith.constant 0 : index
    %c6 = arith.constant 6 : index
    %c0_46 = arith.constant 0 : index
    %42 = vector.load %arg8[%c0_45, %c6, %c0_46] : memref<2x112x256xbf16, #tpu.memory_space<vmem>>, vector<2x80x256xbf16>
    %c0_47 = arith.constant 0 : index
    %c7 = arith.constant 7 : index
    %c0_48 = arith.constant 0 : index
    %43 = vector.load %arg8[%c0_47, %c7, %c0_48] : memref<2x112x256xbf16, #tpu.memory_space<vmem>>, vector<2x80x256xbf16>
    %44 = tpu.concatenate %41, %42, %43 in 2 : vector<2x80x256xbf16>, vector<2x80x256xbf16>, vector<2x80x256xbf16> -> vector<2x80x768xbf16>
    %45 = vector.shape_cast %44 : vector<2x80x768xbf16> to vector<160x768xbf16>
    %c0_49 = arith.constant 0 : index
    %c0_50 = arith.constant 0 : index
    %c0_51 = arith.constant 0 : index
    %46 = vector.load %arg4[%c0_49, %c0_50, %c0_51] : memref<3x768x256xbf16, #tpu.memory_space<vmem>>, vector<1x768x256xbf16>
    %47 = vector.shape_cast %46 : vector<1x768x256xbf16> to vector<768x256xbf16>
    %cst_52 = arith.constant dense<0.000000e+00> : vector<160x256xf32>
    %48 = tpu.matmul %45, %47, %cst_52 {dimension_numbers = #tpu.dot_dimension_numbers<[1], [0], [0], [1], [0, 0, 1, 1], [], []>} : vector<160x768xbf16>, vector<768x256xbf16>, vector<160x256xf32> -> vector<160x256xf32>
    %c0_53 = arith.constant 0 : index
    %c15 = arith.constant 15 : index
    %c0_54 = arith.constant 0 : index
    %49 = vector.load %arg8[%c0_53, %c15, %c0_54] : memref<2x112x256xbf16, #tpu.memory_space<vmem>>, vector<2x80x256xbf16>
    %c0_55 = arith.constant 0 : index
    %c16_56 = arith.constant 16 : index
    %c0_57 = arith.constant 0 : index
    %50 = vector.load %arg8[%c0_55, %c16_56, %c0_57] : memref<2x112x256xbf16, #tpu.memory_space<vmem>>, vector<2x80x256xbf16>
    %c0_58 = arith.constant 0 : index
    %c17 = arith.constant 17 : index
    %c0_59 = arith.constant 0 : index
    %51 = vector.load %arg8[%c0_58, %c17, %c0_59] : memref<2x112x256xbf16, #tpu.memory_space<vmem>>, vector<2x80x256xbf16>
    %52 = tpu.concatenate %49, %50, %51 in 2 : vector<2x80x256xbf16>, vector<2x80x256xbf16>, vector<2x80x256xbf16> -> vector<2x80x768xbf16>
    %53 = vector.shape_cast %52 : vector<2x80x768xbf16> to vector<160x768xbf16>
    %c1_60 = arith.constant 1 : index
    %c0_61 = arith.constant 0 : index
    %c0_62 = arith.constant 0 : index
    %54 = vector.load %arg4[%c1_60, %c0_61, %c0_62] : memref<3x768x256xbf16, #tpu.memory_space<vmem>>, vector<1x768x256xbf16>
    %55 = vector.shape_cast %54 : vector<1x768x256xbf16> to vector<768x256xbf16>
    %cst_63 = arith.constant dense<0.000000e+00> : vector<160x256xf32>
    %56 = tpu.matmul %53, %55, %cst_63 {dimension_numbers = #tpu.dot_dimension_numbers<[1], [0], [0], [1], [0, 0, 1, 1], [], []>} : vector<160x768xbf16>, vector<768x256xbf16>, vector<160x256xf32> -> vector<160x256xf32>
    %57 = arith.addf %48, %56 : vector<160x256xf32>
    %c0_64 = arith.constant 0 : index
    %c25 = arith.constant 25 : index
    %c0_65 = arith.constant 0 : index
    %58 = vector.load %arg8[%c0_64, %c25, %c0_65] : memref<2x112x256xbf16, #tpu.memory_space<vmem>>, vector<2x80x256xbf16>
    %c0_66 = arith.constant 0 : index
    %c26 = arith.constant 26 : index
    %c0_67 = arith.constant 0 : index
    %59 = vector.load %arg8[%c0_66, %c26, %c0_67] : memref<2x112x256xbf16, #tpu.memory_space<vmem>>, vector<2x80x256xbf16>
    %c0_68 = arith.constant 0 : index
    %c27 = arith.constant 27 : index
    %c0_69 = arith.constant 0 : index
    %60 = vector.load %arg8[%c0_68, %c27, %c0_69] : memref<2x112x256xbf16, #tpu.memory_space<vmem>>, vector<2x80x256xbf16>
    %61 = tpu.concatenate %58, %59, %60 in 2 : vector<2x80x256xbf16>, vector<2x80x256xbf16>, vector<2x80x256xbf16> -> vector<2x80x768xbf16>
    %62 = vector.shape_cast %61 : vector<2x80x768xbf16> to vector<160x768xbf16>
    %c2_70 = arith.constant 2 : index
    %c0_71 = arith.constant 0 : index
    %c0_72 = arith.constant 0 : index
    %63 = vector.load %arg4[%c2_70, %c0_71, %c0_72] : memref<3x768x256xbf16, #tpu.memory_space<vmem>>, vector<1x768x256xbf16>
    %64 = vector.shape_cast %63 : vector<1x768x256xbf16> to vector<768x256xbf16>
    %cst_73 = arith.constant dense<0.000000e+00> : vector<160x256xf32>
    %65 = tpu.matmul %62, %64, %cst_73 {dimension_numbers = #tpu.dot_dimension_numbers<[1], [0], [0], [1], [0, 0, 1, 1], [], []>} : vector<160x768xbf16>, vector<768x256xbf16>, vector<160x256xf32> -> vector<160x256xf32>
    %66 = arith.addf %57, %65 : vector<160x256xf32>
    %c0_74 = arith.constant 0 : index
    %c11_75 = arith.constant 11 : index
    %c0_76 = arith.constant 0 : index
    %67 = vector.load %arg1[%c0_74, %c11_75, %c0_76] : memref<2x120x256xbf16, #tpu.memory_space<vmem>>, vector<2x80x256xbf16>
    %68 = vector.shape_cast %67 : vector<2x80x256xbf16> to vector<160x256xbf16>
    %69 = arith.extf %68 : vector<160x256xbf16> to vector<160x256xf32>
    %c0_77 = arith.constant 0 : index
    %c0_78 = arith.constant 0 : index
    %70 = vector.load %arg5[%c0_77, %c0_78] : memref<1x256xf32, #tpu.memory_space<vmem>>, vector<1x256xf32>
    %71 = vector.broadcast %70 : vector<1x256xf32> to vector<160x256xf32>
    %72 = arith.addf %66, %71 : vector<160x256xf32>
    %73 = arith.addf %72, %69 : vector<160x256xf32>
    %cst_79 = arith.constant 0.000000e+00 : f32
    %74 = vector.broadcast %cst_79 : f32 to vector<160x256xf32>
    %75 = arith.maximumf %73, %74 : vector<160x256xf32>
    %76 = vector.shape_cast %75 : vector<160x256xf32> to vector<2x80x256xf32>
    %c0_80 = arith.constant 0 : index
    %c0_81 = arith.constant 0 : index
    %c0_82 = arith.constant 0 : index
    %77 = vector.load %arg7[%c0_80, %c0_81, %c0_82] : memref<2x80x256xf32, #tpu.memory_space<vmem>>, vector<2x80x256xf32>
    tpu.vector_store %arg7[%c0_80, %c0_81, %c0_82], %76 {strides = array<i32>} : memref<2x80x256xf32, #tpu.memory_space<vmem>>, vector<2x80x256xf32>,
    return
  }
  func.func @transform_0(%arg0: i32) -> (i32, i32, i32) {
    %c0_i32 = arith.constant 0 : i32
    %c0_i32_0 = arith.constant 0 : i32
    %c0_i32_1 = arith.constant 0 : i32
    return %arg0, %c0_i32, %c0_i32_0 : i32, i32, i32
  }
  func.func @transform_1(%arg0: i32) -> (i32, i32, i32) {
    %c0_i32 = arith.constant 0 : i32
    %c0_i32_0 = arith.constant 0 : i32
    %c0_i32_1 = arith.constant 0 : i32
    %c0_i32_2 = arith.constant 0 : i32
    return %c0_i32, %c0_i32_0, %c0_i32_1 : i32, i32, i32
  }
  func.func @transform_2(%arg0: i32) -> (i32, i32) {
    %c0_i32 = arith.constant 0 : i32
    %c0_i32_0 = arith.constant 0 : i32
    %c0_i32_1 = arith.constant 0 : i32
    return %c0_i32, %c0_i32_0 : i32, i32
  }
  func.func @transform_3(%arg0: i32) -> (i32, i32, i32) {
    %c0_i32 = arith.constant 0 : i32
    %c0_i32_0 = arith.constant 0 : i32
    %c0_i32_1 = arith.constant 0 : i32
    %c0_i32_2 = arith.constant 0 : i32
    return %c0_i32, %c0_i32_0, %c0_i32_1 : i32, i32, i32
  }
  func.func @transform_4(%arg0: i32) -> (i32, i32) {
    %c0_i32 = arith.constant 0 : i32
    %c0_i32_0 = arith.constant 0 : i32
    %c0_i32_1 = arith.constant 0 : i32
    return %c0_i32, %c0_i32_0 : i32, i32
  }
  func.func @transform_5(%arg0: i32) -> (i32, i32) {
    %c0_i32 = arith.constant 0 : i32
    %c0_i32_0 = arith.constant 0 : i32
    %c0_i32_1 = arith.constant 0 : i32
    return %c0_i32, %c0_i32_0 : i32, i32
  }
  func.func @transform_6(%arg0: i32) -> (i32, i32, i32) {
    %c0_i32 = arith.constant 0 : i32
    %c0_i32_0 = arith.constant 0 : i32
    %c0_i32_1 = arith.constant 0 : i32
    return %arg0, %c0_i32, %c0_i32_0 : i32, i32, i32
  }
}

</mosaic_0001>

<llo_original>
// kernel: residual_layer.1
$region0: #{residual_layer.1}
  #allocation0 [shape = 'u32[]', space=smem, size = 0x4, offset = 0x4, fixed_abs, tag = 'smem constant byte address 0x4 - core index']
  #allocation1 [shape = 'u32[144,128]{1,0:T(1,128)}', space=vmem, size = 0x12000, scoped, tag = 'internal scratch']
  #allocation2 [shape = 'bf16[2,112,256]{2,1,0:T(8,128)(2,1)}', space=vmem, size = 0x1c000, scoped, tag = 'scratch operand']
  %s0 = inlined_call_operand.vmem [shape: bf16[4,120,256], index: 0, kind: input, shape index: {}]
  %s1 = inlined_call_operand.vmem [shape: bf16[3,768,256], index: 1, kind: input, shape index: {}]
  %s2 = inlined_call_operand.vmem [shape: f32[1,256], index: 2, kind: input, shape index: {}]
  %s3 = inlined_call_operand.vmem [shape: bf16[3,768,256], index: 3, kind: input, shape index: {}]
  %s4 = inlined_call_operand.vmem [shape: f32[1,256], index: 4, kind: input, shape index: {}]
  %s5 = inlined_call_operand.vmem [shape: f32[160,1], index: 5, kind: input, shape index: {}]
  %s6 = inlined_call_operand.vmem [shape: f32[4,80,256], index: 6, kind: output, shape index: {}]
  %s7 = sld [smem:[#allocation0]]
  $region57: #{residual_layer.1} parent=0
    _
  %s9 = ssub.s32 1, %s7
  %s10 = scalar_select 0, %s9, %s7
  loop: start=0, step=1, limit=4
  $region2: #{residual_layer.1} parent=0 // loop_pre_header
    _
  $region3: #{residual_layer.1} parent=0 // loop_header
    %s12 = sphi 0, %s16
    %p13 = scmp.ge.s32.totalorder %s12, 4
    %s22 = sphi 0, %s24
    %s25 = sphi 0, %s22
    %s26 = sphi 0, %s25
    %s42 = sphi 0, %s26
    %s46 = sphi 0, %s46
    %s48 = sphi 0, %s46
    %s49 = sphi 0, %s48
    %s63 = sphi 0, %s49
    %s67 = sphi 0, %s67
    %s69 = sphi 0, %s67
    %s70 = sphi 0, %s69
    %s84 = sphi 0, %s70
    %s88 = sphi 0, %s88
    %s90 = sphi 0, %s88
    %s91 = sphi 0, %s90
    %s105 = sphi 0, %s91
    %s109 = sphi 0, %s109
    %s111 = sphi 0, %s109
    %s112 = sphi 0, %s111
    %s126 = sphi 0, %s112
    %s130 = sphi 0, %s130
    %s132 = sphi 0, %s130
    %s133 = sphi 0, %s132
    %s147 = sphi 0, %s133
    %s153 = sphi 0, %s155
    %s156 = sphi 0, %s153
    %s157 = sphi 0, %s156
    %s173 = sphi 0, %s157
  $region4: #{residual_layer.1} parent=0 // loop_header_branch
    %15 = sbr.rel (%p13) target = $region8
  $region5: #{residual_layer.1} parent=0 // loop_body
    %s17 = ssub.s32 %s12, 1
    %s18 = ssub.s32 %s12, 2
    %s19 = sadd.s32 %s12, 1
    %s20 = ssub.s32 %s12, %s19
    %p21 = scmp.eq.s32.totalorder %s20, 0
    %s23 = sadd.s32 %s22, 1
    %s24 = scalar_select %p21, %s22, %s23
    %p27 = pneg %p21
    %p28 = scmp.eq.s32.totalorder %s12, 1
    %p29 = por %p27, %p28
    %p30 = scmp.ne.s32.totalorder %s22, %s25
    %p31 = scmp.eq.s32.totalorder %s12, 0
    %p32 = por %p30, %p31
    %p33 = scmp.ne.s32.totalorder %s22, %s25
    %p34 = scmp.eq.s32.totalorder %s17, 1
    %p35 = por %p33, %p34
    %p36 = scmp.ne.s32.totalorder %s25, %s26
    %p37 = scmp.eq.s32.totalorder %s17, 0
    %p38 = por %p36, %p37
    %p39 = scmp.ne.s32.totalorder %s25, %s26
    %p40 = scmp.eq.s32.totalorder %s18, 1
    %p41 = por %p39, %p40
    %p43 = scmp.ne.s32.totalorder %s26, %s42
    %p44 = scmp.eq.s32.totalorder %s18, 0
    %p45 = por %p43, %p44
    %s47 = sadd.s32 %s46, 1
    %p50 = scmp.eq.s32.totalorder %s12, 1
    %p51 = scmp.ne.s32.totalorder %s46, %s48
    %p52 = scmp.eq.s32.totalorder %s12, 0
    %p53 = por %p51, %p52
    %p54 = scmp.ne.s32.totalorder %s46, %s48
    %p55 = scmp.eq.s32.totalorder %s17, 1
    %p56 = por %p54, %p55
    %p57 = scmp.ne.s32.totalorder %s48, %s49
    %p58 = scmp.eq.s32.totalorder %s17, 0
    %p59 = por %p57, %p58
    %p60 = scmp.ne.s32.totalorder %s48, %s49
    %p61 = scmp.eq.s32.totalorder %s18, 1
    %p62 = por %p60, %p61
    %p64 = scmp.ne.s32.totalorder %s49, %s63
    %p65 = scmp.eq.s32.totalorder %s18, 0
    %p66 = por %p64, %p65
    %s68 = sadd.s32 %s67, 1
    %p71 = scmp.eq.s32.totalorder %s12, 1
    %p72 = scmp.ne.s32.totalorder %s67, %s69
    %p73 = scmp.eq.s32.totalorder %s12, 0
    %p74 = por %p72, %p73
    %p75 = scmp.ne.s32.totalorder %s67, %s69
    %p76 = scmp.eq.s32.totalorder %s17, 1
    %p77 = por %p75, %p76
    %p78 = scmp.ne.s32.totalorder %s69, %s70
    %p79 = scmp.eq.s32.totalorder %s17, 0
    %p80 = por %p78, %p79
    %p81 = scmp.ne.s32.totalorder %s69, %s70
    %p82 = scmp.eq.s32.totalorder %s18, 1
    %p83 = por %p81, %p82
    %p85 = scmp.ne.s32.totalorder %s70, %s84
    %p86 = scmp.eq.s32.totalorder %s18, 0
    %p87 = por %p85, %p86
    %s89 = sadd.s32 %s88, 1
    %p92 = scmp.eq.s32.totalorder %s12, 1
    %p93 = scmp.ne.s32.totalorder %s88, %s90
    %p94 = scmp.eq.s32.totalorder %s12, 0
    %p95 = por %p93, %p94
    %p96 = scmp.ne.s32.totalorder %s88, %s90
    %p97 = scmp.eq.s32.totalorder %s17, 1
    %p98 = por %p96, %p97
    %p99 = scmp.ne.s32.totalorder %s90, %s91
    %p100 = scmp.eq.s32.totalorder %s17, 0
    %p101 = por %p99, %p100
    %p102 = scmp.ne.s32.totalorder %s90, %s91
    %p103 = scmp.eq.s32.totalorder %s18, 1
    %p104 = por %p102, %p103
    %p106 = scmp.ne.s32.totalorder %s91, %s105
    %p107 = scmp.eq.s32.totalorder %s18, 0
    %p108 = por %p106, %p107
    %s110 = sadd.s32 %s109, 1
    %p113 = scmp.eq.s32.totalorder %s12, 1
    %p114 = scmp.ne.s32.totalorder %s109, %s111
    %p115 = scmp.eq.s32.totalorder %s12, 0
    %p116 = por %p114, %p115
    %p117 = scmp.ne.s32.totalorder %s109, %s111
    %p118 = scmp.eq.s32.totalorder %s17, 1
    %p119 = por %p117, %p118
    %p120 = scmp.ne.s32.totalorder %s111, %s112
    %p121 = scmp.eq.s32.totalorder %s17, 0
    %p122 = por %p120, %p121
    %p123 = scmp.ne.s32.totalorder %s111, %s112
    %p124 = scmp.eq.s32.totalorder %s18, 1
    %p125 = por %p123, %p124
    %p127 = scmp.ne.s32.totalorder %s112, %s126
    %p128 = scmp.eq.s32.totalorder %s18, 0
    %p129 = por %p127, %p128
    %s131 = sadd.s32 %s130, 1
    %p134 = scmp.eq.s32.totalorder %s12, 1
    %p135 = scmp.ne.s32.totalorder %s130, %s132
    %p136 = scmp.eq.s32.totalorder %s12, 0
    %p137 = por %p135, %p136
    %p138 = scmp.ne.s32.totalorder %s130, %s132
    %p139 = scmp.eq.s32.totalorder %s17, 1
    %p140 = por %p138, %p139
    %p141 = scmp.ne.s32.totalorder %s132, %s133
    %p142 = scmp.eq.s32.totalorder %s17, 0
    %p143 = por %p141, %p142
    %p144 = scmp.ne.s32.totalorder %s132, %s133
    %p145 = scmp.eq.s32.totalorder %s18, 1
    %p146 = por %p144, %p145
    %p148 = scmp.ne.s32.totalorder %s133, %s147
    %p149 = scmp.eq.s32.totalorder %s18, 0
    %p150 = por %p148, %p149
    %s151 = ssub.s32 %s12, %s19
    %p152 = scmp.eq.s32.totalorder %s151, 0
    %s154 = sadd.s32 %s153, 1
    %s155 = scalar_select %p152, %s153, %s154
    %p158 = pneg %p152
    %p159 = scmp.eq.s32.totalorder %s12, 1
    %p160 = por %p158, %p159
    %p161 = scmp.ne.s32.totalorder %s153, %s156
    %p162 = scmp.eq.s32.totalorder %s12, 0
    %p163 = por %p161, %p162
    %p164 = scmp.ne.s32.totalorder %s153, %s156
    %p165 = scmp.eq.s32.totalorder %s17, 1
    %p166 = por %p164, %p165
    %p167 = scmp.ne.s32.totalorder %s156, %s157
    %p168 = scmp.eq.s32.totalorder %s17, 0
    %p169 = por %p167, %p168
    %p170 = scmp.ne.s32.totalorder %s156, %s157
    %p171 = scmp.eq.s32.totalorder %s18, 1
    %p172 = por %p170, %p171
    %p174 = scmp.ne.s32.totalorder %s157, %s173
    %p175 = scmp.eq.s32.totalorder %s18, 0
    %p176 = por %p174, %p175
    %p177 = scmp.le.s32.totalorder 1, %s12
    %p178 = scmp.lt.s32.totalorder %s12, 3
    %p179 = pnand %p177, %p178
    %p180 = pneg %p179
    // Predicated region
    $region9: #{residual_layer.1} parent=5 // pred_check
      _
    $region10: #{residual_layer.1} parent=5 // pred_check_branch
      %182 = sbr.rel (%p179) target = $region12
    $region11: #{residual_layer.1} parent=5 // pred_region
      %s183 = ssub.s32 %s12, 1
      // Predicated region
      $region13: #{residual_layer.1} parent=11 // pred_check
        %p184 = pneg %p59
      $region14: #{residual_layer.1} parent=11 // pred_check_branch
        %186 = sbr.rel (%p184) target = $region16
      $region15: #{residual_layer.1} parent=11 // pred_region
        _
      $region16: #{residual_layer.1} parent=11 // pred_fallthru
        _
      // Predicated region
      $region17: #{residual_layer.1} parent=11 // pred_check
        %p187 = pneg %p80
      $region18: #{residual_layer.1} parent=11 // pred_check_branch
        %189 = sbr.rel (%p187) target = $region20
      $region19: #{residual_layer.1} parent=11 // pred_region
        _
      $region20: #{residual_layer.1} parent=11 // pred_fallthru
        _
      // Predicated region
      $region21: #{residual_layer.1} parent=11 // pred_check
        %p190 = pneg %p101
      $region22: #{residual_layer.1} parent=11 // pred_check_branch
        %192 = sbr.rel (%p190) target = $region24
      $region23: #{residual_layer.1} parent=11 // pred_region
        _
      $region24: #{residual_layer.1} parent=11 // pred_fallthru
        _
      // Predicated region
      $region25: #{residual_layer.1} parent=11 // pred_check
        %p193 = pneg %p122
      $region26: #{residual_layer.1} parent=11 // pred_check_branch
        %195 = sbr.rel (%p193) target = $region28
      $region27: #{residual_layer.1} parent=11 // pred_region
        _
      $region28: #{residual_layer.1} parent=11 // pred_fallthru
        _
      // Predicated region
      $region29: #{residual_layer.1} parent=11 // pred_check
        %p196 = pneg %p143
      $region30: #{residual_layer.1} parent=11 // pred_check_branch
        %198 = sbr.rel (%p196) target = $region32
      $region31: #{residual_layer.1} parent=11 // pred_region
        _
      $region32: #{residual_layer.1} parent=11 // pred_fallthru
        _
    $region12: #{residual_layer.1} parent=5 // pred_fallthru
      _
    %p199 = scmp.lt.s32.totalorder %s12, 2
    // Predicated region
    $region33: #{residual_layer.1} parent=5 // pred_check
      %p200 = pneg %p199
    $region34: #{residual_layer.1} parent=5 // pred_check_branch
      %202 = sbr.rel (%p200) target = $region36
    $region35: #{residual_layer.1} parent=5 // pred_region
      // Predicated region
      $region37: #{residual_layer.1} parent=35 // pred_check
        %p203 = pneg %p32
      $region38: #{residual_layer.1} parent=35 // pred_check_branch
        %205 = sbr.rel (%p203) target = $region40
      $region39: #{residual_layer.1} parent=35 // pred_region
        %s206 = smul.u32 2, %s12
        %p207 = scmp.lt.s32.totalorder %s206, 3
        %s208 = scalar_select %p207, %s206, 3
        %s209 = smul.addr %s208, 30
        %s210 = smul.addr %s209, 4
        %s211 = scalar_lea.vmem %s0, %s210
        %s212 = smul.u32 2, %s12
      $region40: #{residual_layer.1} parent=35 // pred_fallthru
        _
    $region36: #{residual_layer.1} parent=5 // pred_fallthru
      _
    %p213 = scmp.le.s32.totalorder 1, %s12
    %p214 = scmp.lt.s32.totalorder %s12, 3
    %p215 = pnand %p213, %p214
    %p216 = pneg %p215
    // Predicated region
    $region41: #{residual_layer.1} parent=5 // pred_check
      _
    $region42: #{residual_layer.1} parent=5 // pred_check_branch
      %218 = sbr.rel (%p215) target = $region44
    $region43: #{residual_layer.1} parent=5 // pred_region
      %s219 = ssub.s32 %s12, 1
      %s220 = smul.u32 2, %s17
      %p221 = scmp.lt.s32.totalorder %s220, 3
      %s222 = scalar_select %p221, %s220, 3
      %s223 = smul.addr %s222, 30
      %s224 = smul.addr %s223, 4
      %s225 = scalar_lea.vmem %s0, %s224
      %p226 = pneg %p38
      %p227 = pneg %p35
      %p228 = pneg %p59
      %p229 = pneg %p56
      %p230 = pneg %p80
      %p231 = pneg %p77
      %p232 = pneg %p101
      %p233 = pneg %p98
      %p234 = pneg %p122
      %p235 = pneg %p119
      %p236 = pneg %p143
      %p237 = pneg %p140
      %p238 = pneg %p169
      %p239 = pneg %p166
      %s240 = smul.u32 2, %s17
      %p241 = scmp.lt.s32.totalorder %s240, 3
      %s242 = scalar_select %p241, %s240, 3
      %s243 = smul.addr %s242, 20
      %s244 = smul.addr %s243, 8
      %s245 = scalar_lea.vmem %s6, %s244
      %s246 = smul.u32 2, %s17
      %p247 = scmp.lt.s32.totalorder %s246, 3
      %s248 = scalar_select %p247, %s246, 3
      %s249 = smul.addr %s248, 30
      %s250 = smul.addr %s249, 4
      %s251 = scalar_lea.vmem %s0, %s250
      %s252 = smul.u32 2, %s17
      %s253 = smul.u32 2, %s17
      %p254 = scmp.lt.s32.totalorder %s253, 3
      %s255 = scalar_select %p254, %s253, 3
      %s256 = smul.addr %s255, 20
      %s257 = smul.addr %s256, 8
      %s258 = scalar_lea.vmem %s6, %s257
      %s259 = smul.u32 2, %s17
      %261 = vst [vmem:[#allocation2] sm:$0xff] 0
      %262 = vst [vmem:[#allocation2 + $0x8] sm:$0xff] 0
      %263 = vst [vmem:[#allocation2 + $0x70] sm:$0xff] 0
      %264 = vst [vmem:[#allocation2 + $0x78] sm:$0xff] 0
      %265 = vst [vmem:[#allocation2 + $0x60] sm:$0xff] 0
      %266 = vst [vmem:[#allocation2 + $0x68] sm:$0xff] 0
      %267 = vst [vmem:[#allocation2 + $0xd0] sm:$0xff] 0
      %268 = vst [vmem:[#allocation2 + $0xd8] sm:$0xff] 0
      %v269 = vld [vmem:[%s251] sm:$0xff]
      %v270 = vld [vmem:[%s251 + $0x8] sm:$0xff]
      %v271 = vld [vmem:[%s251 + $0x10] sm:$0xff]
      %v272 = vld [vmem:[%s251 + $0x18] sm:$0xff]
      %v273 = vld [vmem:[%s251 + $0x20] sm:$0xff]
      %v274 = vld [vmem:[%s251 + $0x28] sm:$0xff]
      %v275 = vld [vmem:[%s251 + $0x30] sm:$0xff]
      %v276 = vld [vmem:[%s251 + $0x38] sm:$0xff]
      %v277 = vld [vmem:[%s251 + $0x40] sm:$0xff]
      %v278 = vld [vmem:[%s251 + $0x48] sm:$0xff]
      %v279 = vld [vmem:[%s251 + $0x78] sm:$0xff]
      %v280 = vld [vmem:[%s251 + $0x80] sm:$0xff]
      %v281 = vld [vmem:[%s251 + $0x88] sm:$0xff]
      %v282 = vld [vmem:[%s251 + $0x90] sm:$0xff]
      %v283 = vld [vmem:[%s251 + $0x98] sm:$0xff]
      %v284 = vld [vmem:[%s251 + $0xa0] sm:$0xff]
      %v285 = vld [vmem:[%s251 + $0xa8] sm:$0xff]
      %v286 = vld [vmem:[%s251 + $0xb0] sm:$0xff]
      %v287 = vld [vmem:[%s251 + $0xb8] sm:$0xff]
      %v288 = vld [vmem:[%s251 + $0xc0] sm:$0xff]
      %v289 = vld [vmem:[%s251 + $0x50] sm:$0x11]
      %v290 = vld [vmem:[%s251 + $0xc8] sm:$0x11]
      %v291 = vld [vmem:[%s251] sm:$0xee]
      %v292 = vld [vmem:[%s251 + $0x78] sm:$0xee]
      %v313 = vunpack.c.l.b16 %v269
      %v314 = vunpack.c.h.b16 %v269
      %v315 = vunpack.c.l.b16 %v270
      %v316 = vunpack.c.h.b16 %v270
      %v317 = vunpack.c.l.b16 %v271
      %v318 = vunpack.c.h.b16 %v271
      %v319 = vunpack.c.l.b16 %v272
      %v320 = vunpack.c.h.b16 %v272
      %v321 = vunpack.c.l.b16 %v273
      %v322 = vunpack.c.h.b16 %v273
      %v323 = vunpack.c.l.b16 %v274
      %v324 = vunpack.c.h.b16 %v274
      %v325 = vunpack.c.l.b16 %v275
      %v326 = vunpack.c.h.b16 %v275
      %v327 = vunpack.c.l.b16 %v276
      %v328 = vunpack.c.h.b16 %v276
      %v329 = vunpack.c.l.b16 %v277
      %v330 = vunpack.c.h.b16 %v277
      %v331 = vunpack.c.l.b16 %v278
      %v332 = vunpack.c.h.b16 %v278
      %v333 = vunpack.c.l.b16 %v279
      %v334 = vunpack.c.h.b16 %v279
      %v335 = vunpack.c.l.b16 %v280
      %v336 = vunpack.c.h.b16 %v280
      %v337 = vunpack.c.l.b16 %v281
      %v338 = vunpack.c.h.b16 %v281
      %v339 = vunpack.c.l.b16 %v282
      %v340 = vunpack.c.h.b16 %v282
      %v341 = vunpack.c.l.b16 %v283
      %v342 = vunpack.c.h.b16 %v283
      %v343 = vunpack.c.l.b16 %v284
      %v344 = vunpack.c.h.b16 %v284
      %v345 = vunpack.c.l.b16 %v285
      %v346 = vunpack.c.h.b16 %v285
      %v347 = vunpack.c.l.b16 %v286
      %v348 = vunpack.c.h.b16 %v286
      %v349 = vunpack.c.l.b16 %v287
      %v350 = vunpack.c.h.b16 %v287
      %v351 = vunpack.c.l.b16 %v288
      %v352 = vunpack.c.h.b16 %v288
      %v353 = vpack.c.b16 %v315, %v313
      %v354 = vpack.c.b16 %v316, %v314
      %v355 = vpack.c.b16 %v319, %v317
      %v356 = vpack.c.b16 %v320, %v318
      %v357 = vpack.c.b16 %v323, %v321
      %v358 = vpack.c.b16 %v324, %v322
      %v359 = vpack.c.b16 %v327, %v325
      %v360 = vpack.c.b16 %v328, %v326
      %v361 = vpack.c.b16 %v331, %v329
      %v362 = vpack.c.b16 %v332, %v330
      %v363 = vpack.c.b16 %v335, %v333
      %v364 = vpack.c.b16 %v336, %v334
      %v365 = vpack.c.b16 %v339, %v337
      %v366 = vpack.c.b16 %v340, %v338
      %v367 = vpack.c.b16 %v343, %v341
      %v368 = vpack.c.b16 %v344, %v342
      %v369 = vpack.c.b16 %v347, %v345
      %v370 = vpack.c.b16 %v348, %v346
      %v371 = vpack.c.b16 %v351, %v349
      %v372 = vpack.c.b16 %v352, %v350
      %v395 = vunpack.c.l.b16 %v289
      %v396 = vunpack.c.h.b16 %v289
      %v397 = vunpack.c.l.b16 %v290
      %v398 = vunpack.c.h.b16 %v290
      %v399 = vpack.c.b16 %v395, %v395
      %v400 = vpack.c.b16 %v396, %v396
      %v401 = vpack.c.b16 %v397, %v397
      %v402 = vpack.c.b16 %v398, %v398
      %vm403 = vsmask.f32 7424
      %v405 = vshrl.u32 %v353, 16
      %v407 = vshll.u32 %v353, 16
      %v409 = vrot.slane %v407, 1
      %v410 = vor.u32 %v405, %v409
      %v412 = vshll.u32 %v355, 16
      %v414 = vrot.slane %v412, 1
      %v415 = vsel %vm403, %v410, %v414
      %v417 = vshrl.u32 %v354, 16
      %v419 = vshll.u32 %v354, 16
      %v421 = vrot.slane %v419, 1
      %v422 = vor.u32 %v417, %v421
      %v424 = vshll.u32 %v356, 16
      %v426 = vrot.slane %v424, 1
      %v427 = vsel %vm403, %v422, %v426
      %v428 = vshrl.u32 %v355, 16
      %v430 = vor.u32 %v428, %v414
      %v432 = vshll.u32 %v357, 16
      %v434 = vrot.slane %v432, 1
      %v435 = vsel %vm403, %v430, %v434
      %v436 = vshrl.u32 %v356, 16
      %v438 = vor.u32 %v436, %v426
      %v440 = vshll.u32 %v358, 16
      %v442 = vrot.slane %v440, 1
      %v443 = vsel %vm403, %v438, %v442
      %v444 = vshrl.u32 %v357, 16
      %v446 = vor.u32 %v444, %v434
      %v448 = vshll.u32 %v359, 16
      %v450 = vrot.slane %v448, 1
      %v451 = vsel %vm403, %v446, %v450
      %v452 = vshrl.u32 %v358, 16
      %v454 = vor.u32 %v452, %v442
      %v456 = vshll.u32 %v360, 16
      %v458 = vrot.slane %v456, 1
      %v459 = vsel %vm403, %v454, %v458
      %v460 = vshrl.u32 %v359, 16
      %v462 = vor.u32 %v460, %v450
      %v464 = vshll.u32 %v361, 16
      %v466 = vrot.slane %v464, 1
      %v467 = vsel %vm403, %v462, %v466
      %v468 = vshrl.u32 %v360, 16
      %v470 = vor.u32 %v468, %v458
      %v472 = vshll.u32 %v362, 16
      %v474 = vrot.slane %v472, 1
      %v475 = vsel %vm403, %v470, %v474
      %v476 = vshrl.u32 %v361, 16
      %v478 = vor.u32 %v476, %v466
      %v480 = vshll.u32 %v399, 16
      %v482 = vrot.slane %v480, 1
      %v483 = vsel %vm403, %v478, %v482
      %v484 = vshrl.u32 %v362, 16
      %v486 = vor.u32 %v484, %v474
      %v488 = vshll.u32 %v400, 16
      %v490 = vrot.slane %v488, 1
      %v491 = vsel %vm403, %v486, %v490
      %v493 = vshrl.u32 %v363, 16
      %v495 = vshll.u32 %v363, 16
      %v497 = vrot.slane %v495, 1
      %v498 = vor.u32 %v493, %v497
      %v500 = vshll.u32 %v365, 16
      %v502 = vrot.slane %v500, 1
      %v503 = vsel %vm403, %v498, %v502
      %v505 = vshrl.u32 %v364, 16
      %v507 = vshll.u32 %v364, 16
      %v509 = vrot.slane %v507, 1
      %v510 = vor.u32 %v505, %v509
      %v512 = vshll.u32 %v366, 16
      %v514 = vrot.slane %v512, 1
      %v515 = vsel %vm403, %v510, %v514
      %v516 = vshrl.u32 %v365, 16
      %v518 = vor.u32 %v516, %v502
      %v520 = vshll.u32 %v367, 16
      %v522 = vrot.slane %v520, 1
      %v523 = vsel %vm403, %v518, %v522
      %v524 = vshrl.u32 %v366, 16
      %v526 = vor.u32 %v524, %v514
      %v528 = vshll.u32 %v368, 16
      %v530 = vrot.slane %v528, 1
      %v531 = vsel %vm403, %v526, %v530
      %v532 = vshrl.u32 %v367, 16
      %v534 = vor.u32 %v532, %v522
      %v536 = vshll.u32 %v369, 16
      %v538 = vrot.slane %v536, 1
      %v539 = vsel %vm403, %v534, %v538
      %v540 = vshrl.u32 %v368, 16
      %v542 = vor.u32 %v540, %v530
      %v544 = vshll.u32 %v370, 16
      %v546 = vrot.slane %v544, 1
      %v547 = vsel %vm403, %v542, %v546
      %v548 = vshrl.u32 %v369, 16
      %v550 = vor.u32 %v548, %v538
      %v552 = vshll.u32 %v371, 16
      %v554 = vrot.slane %v552, 1
      %v555 = vsel %vm403, %v550, %v554
      %v556 = vshrl.u32 %v370, 16
      %v558 = vor.u32 %v556, %v546
      %v560 = vshll.u32 %v372, 16
      %v562 = vrot.slane %v560, 1
      %v563 = vsel %vm403, %v558, %v562
      %v564 = vshrl.u32 %v371, 16
      %v566 = vor.u32 %v564, %v554
      %v568 = vshll.u32 %v401, 16
      %v570 = vrot.slane %v568, 1
      %v571 = vsel %vm403, %v566, %v570
      %v572 = vshrl.u32 %v372, 16
      %v574 = vor.u32 %v572, %v562
      %v576 = vshll.u32 %v402, 16
      %v578 = vrot.slane %v576, 1
      %v579 = vsel %vm403, %v574, %v578
      %v602 = vunpack.c.l.b16 %v291
      %v603 = vunpack.c.h.b16 %v291
      %v604 = vunpack.c.l.b16 %v292
      %v605 = vunpack.c.h.b16 %v292
      %v606 = vpack.c.b16 %v315, %v602
      %v607 = vpack.c.b16 %v316, %v603
      %v608 = vpack.c.b16 %v335, %v604
      %v609 = vpack.c.b16 %v336, %v605
      %vm610 = vcmask 1046528
      %v611 = vrot.slane %v606, 1
      %v612 = vrot.slane %v355, 1
      %v613 = vsel %vm610, %v611, %v612
      %v614 = vrot.slane %v607, 1
      %v615 = vrot.slane %v356, 1
      %v616 = vsel %vm610, %v614, %v615
      %v617 = vrot.slane %v357, 1
      %v618 = vsel %vm610, %v612, %v617
      %v619 = vrot.slane %v358, 1
      %v620 = vsel %vm610, %v615, %v619
      %v621 = vrot.slane %v359, 1
      %v622 = vsel %vm610, %v617, %v621
      %v623 = vrot.slane %v360, 1
      %v624 = vsel %vm610, %v619, %v623
      %v625 = vrot.slane %v361, 1
      %v626 = vsel %vm610, %v621, %v625
      %v627 = vrot.slane %v362, 1
      %v628 = vsel %vm610, %v623, %v627
      %v629 = vrot.slane %v399, 1
      %v630 = vsel %vm610, %v625, %v629
      %v631 = vrot.slane %v400, 1
      %v632 = vsel %vm610, %v627, %v631
      %v633 = vrot.slane %v608, 1
      %v634 = vrot.slane %v365, 1
      %v635 = vsel %vm610, %v633, %v634
      %v636 = vrot.slane %v609, 1
      %v637 = vrot.slane %v366, 1
      %v638 = vsel %vm610, %v636, %v637
      %v639 = vrot.slane %v367, 1
      %v640 = vsel %vm610, %v634, %v639
      %v641 = vrot.slane %v368, 1
      %v642 = vsel %vm610, %v637, %v641
      %v643 = vrot.slane %v369, 1
      %v644 = vsel %vm610, %v639, %v643
      %v645 = vrot.slane %v370, 1
      %v646 = vsel %vm610, %v641, %v645
      %v647 = vrot.slane %v371, 1
      %v648 = vsel %vm610, %v643, %v647
      %v649 = vrot.slane %v372, 1
      %v650 = vsel %vm610, %v645, %v649
      %v651 = vrot.slane %v401, 1
      %v652 = vsel %vm610, %v647, %v651
      %v653 = vrot.slane %v402, 1
      %v654 = vsel %vm610, %v649, %v653
      %v675 = vld [vmem:[%s1] sm:$0xff]
      %v676 = vld [vmem:[%s1 + $0x8] sm:$0xff]
      %v677 = vld [vmem:[%s1 + $0x10] sm:$0xff]
      %v678 = vld [vmem:[%s1 + $0x18] sm:$0xff]
      %v679 = vld [vmem:[%s1 + $0x20] sm:$0xff]
      %v680 = vld [vmem:[%s1 + $0x28] sm:$0xff]
      %v681 = vld [vmem:[%s1 + $0x30] sm:$0xff]
      %v682 = vld [vmem:[%s1 + $0x38] sm:$0xff]
      %v683 = vld [vmem:[%s1 + $0x40] sm:$0xff]
      %v684 = vld [vmem:[%s1 + $0x48] sm:$0xff]
      %v685 = vld [vmem:[%s1 + $0x50] sm:$0xff]
      %v686 = vld [vmem:[%s1 + $0x58] sm:$0xff]
      %v687 = vld [vmem:[%s1 + $0x60] sm:$0xff]
      %v688 = vld [vmem:[%s1 + $0x68] sm:$0xff]
      %v689 = vld [vmem:[%s1 + $0x70] sm:$0xff]
      %v690 = vld [vmem:[%s1 + $0x78] sm:$0xff]
      %v691 = vld [vmem:[%s1 + $0x80] sm:$0xff]
      %v692 = vld [vmem:[%s1 + $0x88] sm:$0xff]
      %v693 = vld [vmem:[%s1 + $0x90] sm:$0xff]
      %v694 = vld [vmem:[%s1 + $0x98] sm:$0xff]
      %v695 = vld [vmem:[%s1 + $0xa0] sm:$0xff]
      %v696 = vld [vmem:[%s1 + $0xa8] sm:$0xff]
      %v697 = vld [vmem:[%s1 + $0xb0] sm:$0xff]
      %v698 = vld [vmem:[%s1 + $0xb8] sm:$0xff]
      %v699 = vld [vmem:[%s1 + $0xc0] sm:$0xff]
      %v700 = vld [vmem:[%s1 + $0xc8] sm:$0xff]
      %v701 = vld [vmem:[%s1 + $0xd0] sm:$0xff]
      %v702 = vld [vmem:[%s1 + $0xd8] sm:$0xff]
      %v703 = vld [vmem:[%s1 + $0xe0] sm:$0xff]
      %v704 = vld [vmem:[%s1 + $0xe8] sm:$0xff]
      %v705 = vld [vmem:[%s1 + $0xf0] sm:$0xff]
      %v706 = vld [vmem:[%s1 + $0xf8] sm:$0xff]
      %v707 = vld [vmem:[%s1 + $0x100] sm:$0xff]
      %v708 = vld [vmem:[%s1 + $0x108] sm:$0xff]
      %v709 = vld [vmem:[%s1 + $0x110] sm:$0xff]
      %v710 = vld [vmem:[%s1 + $0x118] sm:$0xff]
      %v711 = vld [vmem:[%s1 + $0x120] sm:$0xff]
      %v712 = vld [vmem:[%s1 + $0x128] sm:$0xff]
      %v713 = vld [vmem:[%s1 + $0x130] sm:$0xff]
      %v714 = vld [vmem:[%s1 + $0x138] sm:$0xff]
      %v715 = vld [vmem:[%s1 + $0x140] sm:$0xff]
      %v716 = vld [vmem:[%s1 + $0x148] sm:$0xff]
      %v717 = vld [vmem:[%s1 + $0x150] sm:$0xff]
      %v718 = vld [vmem:[%s1 + $0x158] sm:$0xff]
      %v719 = vld [vmem:[%s1 + $0x160] sm:$0xff]
      %v720 = vld [vmem:[%s1 + $0x168] sm:$0xff]
      %v721 = vld [vmem:[%s1 + $0x170] sm:$0xff]
      %v722 = vld [vmem:[%s1 + $0x178] sm:$0xff]
      %v723 = vld [vmem:[%s1 + $0x180] sm:$0xff]
      %v724 = vld [vmem:[%s1 + $0x188] sm:$0xff]
      %v725 = vld [vmem:[%s1 + $0x190] sm:$0xff]
      %v726 = vld [vmem:[%s1 + $0x198] sm:$0xff]
      %v727 = vld [vmem:[%s1 + $0x1a0] sm:$0xff]
      %v728 = vld [vmem:[%s1 + $0x1a8] sm:$0xff]
      %v729 = vld [vmem:[%s1 + $0x1b0] sm:$0xff]
      %v730 = vld [vmem:[%s1 + $0x1b8] sm:$0xff]
      %v731 = vld [vmem:[%s1 + $0x1c0] sm:$0xff]
      %v732 = vld [vmem:[%s1 + $0x1c8] sm:$0xff]
      %v733 = vld [vmem:[%s1 + $0x1d0] sm:$0xff]
      %v734 = vld [vmem:[%s1 + $0x1d8] sm:$0xff]
      %v735 = vld [vmem:[%s1 + $0x1e0] sm:$0xff]
      %v736 = vld [vmem:[%s1 + $0x1e8] sm:$0xff]
      %v737 = vld [vmem:[%s1 + $0x1f0] sm:$0xff]
      %v738 = vld [vmem:[%s1 + $0x1f8] sm:$0xff]
      %v739 = vld [vmem:[%s1 + $0x200] sm:$0xff]
      %v740 = vld [vmem:[%s1 + $0x208] sm:$0xff]
      %v741 = vld [vmem:[%s1 + $0x210] sm:$0xff]
      %v742 = vld [vmem:[%s1 + $0x218] sm:$0xff]
      %v743 = vld [vmem:[%s1 + $0x220] sm:$0xff]
      %v744 = vld [vmem:[%s1 + $0x228] sm:$0xff]
      %v745 = vld [vmem:[%s1 + $0x230] sm:$0xff]
      %v746 = vld [vmem:[%s1 + $0x238] sm:$0xff]
      %v747 = vld [vmem:[%s1 + $0x240] sm:$0xff]
      %v748 = vld [vmem:[%s1 + $0x248] sm:$0xff]
      %v749 = vld [vmem:[%s1 + $0x250] sm:$0xff]
      %v750 = vld [vmem:[%s1 + $0x258] sm:$0xff]
      %v751 = vld [vmem:[%s1 + $0x260] sm:$0xff]
      %v752 = vld [vmem:[%s1 + $0x268] sm:$0xff]
      %v753 = vld [vmem:[%s1 + $0x270] sm:$0xff]
      %v754 = vld [vmem:[%s1 + $0x278] sm:$0xff]
      %v755 = vld [vmem:[%s1 + $0x280] sm:$0xff]
      %v756 = vld [vmem:[%s1 + $0x288] sm:$0xff]
      %v757 = vld [vmem:[%s1 + $0x290] sm:$0xff]
      %v758 = vld [vmem:[%s1 + $0x298] sm:$0xff]
      %v759 = vld [vmem:[%s1 + $0x2a0] sm:$0xff]
      %v760 = vld [vmem:[%s1 + $0x2a8] sm:$0xff]
      %v761 = vld [vmem:[%s1 + $0x2b0] sm:$0xff]
      %v762 = vld [vmem:[%s1 + $0x2b8] sm:$0xff]
      %v763 = vld [vmem:[%s1 + $0x2c0] sm:$0xff]
      %v764 = vld [vmem:[%s1 + $0x2c8] sm:$0xff]
      %v765 = vld [vmem:[%s1 + $0x2d0] sm:$0xff]
      %v766 = vld [vmem:[%s1 + $0x2d8] sm:$0xff]
      %v767 = vld [vmem:[%s1 + $0x2e0] sm:$0xff]
      %v768 = vld [vmem:[%s1 + $0x2e8] sm:$0xff]
      %v769 = vld [vmem:[%s1 + $0x2f0] sm:$0xff]
      %v770 = vld [vmem:[%s1 + $0x2f8] sm:$0xff]
      %v771 = vld [vmem:[%s251 + $0x8] sm:$0xee]
      %v772 = vld [vmem:[%s251 + $0x50] sm:$0xff]
      %v773 = vld [vmem:[%s251 + $0x58] sm:$0x11]
      %v774 = vld [vmem:[%s251 + $0x80] sm:$0xee]
      %v775 = vld [vmem:[%s251 + $0xc8] sm:$0xff]
      %v776 = vld [vmem:[%s251 + $0xd0] sm:$0x11]
      %v777 = vld [vmem:[%s251 + $0x58] sm:$0x33]
      %v778 = vld [vmem:[%s251 + $0xd0] sm:$0x33]
      %v779 = vld [vmem:[%s251 + $0x8] sm:$0xcc]
      %v780 = vld [vmem:[%s251 + $0x80] sm:$0xcc]
      %v787 = vunpack.c.l.b16 %v771
      %v788 = vunpack.c.h.b16 %v771
      %v789 = vunpack.c.l.b16 %v772
      %v790 = vunpack.c.h.b16 %v772
      %v791 = vunpack.c.l.b16 %v773
      %v792 = vunpack.c.h.b16 %v773
      %v793 = vunpack.c.l.b16 %v774
      %v794 = vunpack.c.h.b16 %v774
      %v795 = vunpack.c.l.b16 %v775
      %v796 = vunpack.c.h.b16 %v775
      %v797 = vunpack.c.l.b16 %v776
      %v798 = vunpack.c.h.b16 %v776
      %v799 = vpack.c.b16 %v317, %v787
      %v800 = vpack.c.b16 %v318, %v788
      %v801 = vpack.c.b16 %v321, %v319
      %v802 = vpack.c.b16 %v322, %v320
      %v803 = vpack.c.b16 %v325, %v323
      %v804 = vpack.c.b16 %v326, %v324
      %v805 = vpack.c.b16 %v329, %v327
      %v806 = vpack.c.b16 %v330, %v328
      %v807 = vpack.c.b16 %v789, %v331
      %v808 = vpack.c.b16 %v790, %v332
      %v809 = vpack.c.b16 %v791, %v791
      %v810 = vpack.c.b16 %v792, %v792
      %v811 = vpack.c.b16 %v337, %v793
      %v812 = vpack.c.b16 %v338, %v794
      %v813 = vpack.c.b16 %v341, %v339
      %v814 = vpack.c.b16 %v342, %v340
      %v815 = vpack.c.b16 %v345, %v343
      %v816 = vpack.c.b16 %v346, %v344
      %v817 = vpack.c.b16 %v349, %v347
      %v818 = vpack.c.b16 %v350, %v348
      %v819 = vpack.c.b16 %v795, %v351
      %v820 = vpack.c.b16 %v796, %v352
      %v821 = vpack.c.b16 %v797, %v797
      %v822 = vpack.c.b16 %v798, %v798
      %v825 = vunpack.c.l.b16 %v777
      %v826 = vunpack.c.h.b16 %v777
      %v827 = vunpack.c.l.b16 %v778
      %v828 = vunpack.c.h.b16 %v778
      %v829 = vpack.c.b16 %v825, %v825
      %v830 = vpack.c.b16 %v826, %v826
      %v831 = vpack.c.b16 %v827, %v827
      %v832 = vpack.c.b16 %v828, %v828
      %v834 = vshrl.u32 %v799, 16
      %v836 = vshll.u32 %v799, 16
      %v838 = vrot.slane %v836, 1
      %v839 = vor.u32 %v834, %v838
      %v841 = vshll.u32 %v801, 16
      %v843 = vrot.slane %v841, 1
      %v844 = vsel %vm403, %v839, %v843
      %v846 = vshrl.u32 %v800, 16
      %v848 = vshll.u32 %v800, 16
      %v850 = vrot.slane %v848, 1
      %v851 = vor.u32 %v846, %v850
      %v853 = vshll.u32 %v802, 16
      %v855 = vrot.slane %v853, 1
      %v856 = vsel %vm403, %v851, %v855
      %v857 = vshrl.u32 %v801, 16
      %v859 = vor.u32 %v857, %v843
      %v861 = vshll.u32 %v803, 16
      %v863 = vrot.slane %v861, 1
      %v864 = vsel %vm403, %v859, %v863
      %v865 = vshrl.u32 %v802, 16
      %v867 = vor.u32 %v865, %v855
      %v869 = vshll.u32 %v804, 16
      %v871 = vrot.slane %v869, 1
      %v872 = vsel %vm403, %v867, %v871
      %v873 = vshrl.u32 %v803, 16
      %v875 = vor.u32 %v873, %v863
      %v877 = vshll.u32 %v805, 16
      %v879 = vrot.slane %v877, 1
      %v880 = vsel %vm403, %v875, %v879
      %v881 = vshrl.u32 %v804, 16
      %v883 = vor.u32 %v881, %v871
      %v885 = vshll.u32 %v806, 16
      %v887 = vrot.slane %v885, 1
      %v888 = vsel %vm403, %v883, %v887
      %v889 = vshrl.u32 %v805, 16
      %v891 = vor.u32 %v889, %v879
      %v893 = vshll.u32 %v807, 16
      %v895 = vrot.slane %v893, 1
      %v896 = vsel %vm403, %v891, %v895
      %v897 = vshrl.u32 %v806, 16
      %v899 = vor.u32 %v897, %v887
      %v901 = vshll.u32 %v808, 16
      %v903 = vrot.slane %v901, 1
      %v904 = vsel %vm403, %v899, %v903
      %v905 = vshrl.u32 %v807, 16
      %v907 = vor.u32 %v905, %v895
      %v909 = vshll.u32 %v829, 16
      %v911 = vrot.slane %v909, 1
      %v912 = vsel %vm403, %v907, %v911
      %v913 = vshrl.u32 %v808, 16
      %v915 = vor.u32 %v913, %v903
      %v917 = vshll.u32 %v830, 16
      %v919 = vrot.slane %v917, 1
      %v920 = vsel %vm403, %v915, %v919
      %v921 = vshrl.u32 %v829, 16
      %v923 = vor.u32 %v921, %v911
      %v924 = vshrl.u32 %v830, 16
      %v926 = vor.u32 %v924, %v919
      %v928 = vshrl.u32 %v811, 16
      %v930 = vshll.u32 %v811, 16
      %v932 = vrot.slane %v930, 1
      %v933 = vor.u32 %v928, %v932
      %v935 = vshll.u32 %v813, 16
      %v937 = vrot.slane %v935, 1
      %v938 = vsel %vm403, %v933, %v937
      %v940 = vshrl.u32 %v812, 16
      %v942 = vshll.u32 %v812, 16
      %v944 = vrot.slane %v942, 1
      %v945 = vor.u32 %v940, %v944
      %v947 = vshll.u32 %v814, 16
      %v949 = vrot.slane %v947, 1
      %v950 = vsel %vm403, %v945, %v949
      %v951 = vshrl.u32 %v813, 16
      %v953 = vor.u32 %v951, %v937
      %v955 = vshll.u32 %v815, 16
      %v957 = vrot.slane %v955, 1
      %v958 = vsel %vm403, %v953, %v957
      %v959 = vshrl.u32 %v814, 16
      %v961 = vor.u32 %v959, %v949
      %v963 = vshll.u32 %v816, 16
      %v965 = vrot.slane %v963, 1
      %v966 = vsel %vm403, %v961, %v965
      %v967 = vshrl.u32 %v815, 16
      %v969 = vor.u32 %v967, %v957
      %v971 = vshll.u32 %v817, 16
      %v973 = vrot.slane %v971, 1
      %v974 = vsel %vm403, %v969, %v973
      %v975 = vshrl.u32 %v816, 16
      %v977 = vor.u32 %v975, %v965
      %v979 = vshll.u32 %v818, 16
      %v981 = vrot.slane %v979, 1
      %v982 = vsel %vm403, %v977, %v981
      %v983 = vshrl.u32 %v817, 16
      %v985 = vor.u32 %v983, %v973
      %v987 = vshll.u32 %v819, 16
      %v989 = vrot.slane %v987, 1
      %v990 = vsel %vm403, %v985, %v989
      %v991 = vshrl.u32 %v818, 16
      %v993 = vor.u32 %v991, %v981
      %v995 = vshll.u32 %v820, 16
      %v997 = vrot.slane %v995, 1
      %v998 = vsel %vm403, %v993, %v997
      %v999 = vshrl.u32 %v819, 16
      %v1001 = vor.u32 %v999, %v989
      %v1003 = vshll.u32 %v831, 16
      %v1005 = vrot.slane %v1003, 1
      %v1006 = vsel %vm403, %v1001, %v1005
      %v1007 = vshrl.u32 %v820, 16
      %v1009 = vor.u32 %v1007, %v997
      %v1011 = vshll.u32 %v832, 16
      %v1013 = vrot.slane %v1011, 1
      %v1014 = vsel %vm403, %v1009, %v1013
      %v1015 = vshrl.u32 %v831, 16
      %v1017 = vor.u32 %v1015, %v1005
      %v1018 = vshrl.u32 %v832, 16
      %v1020 = vor.u32 %v1018, %v1013
      %v1023 = vunpack.c.l.b16 %v779
      %v1024 = vunpack.c.h.b16 %v779
      %v1025 = vunpack.c.l.b16 %v780
      %v1026 = vunpack.c.h.b16 %v780
      %v1027 = vpack.c.b16 %v317, %v1023
      %v1028 = vpack.c.b16 %v318, %v1024
      %v1029 = vpack.c.b16 %v337, %v1025
      %v1030 = vpack.c.b16 %v338, %v1026
      %v1031 = vrot.slane %v1027, 1
      %v1032 = vrot.slane %v801, 1
      %v1033 = vsel %vm610, %v1031, %v1032
      %v1034 = vrot.slane %v1028, 1
      %v1035 = vrot.slane %v802, 1
      %v1036 = vsel %vm610, %v1034, %v1035
      %v1037 = vrot.slane %v803, 1
      %v1038 = vsel %vm610, %v1032, %v1037
      %v1039 = vrot.slane %v804, 1
      %v1040 = vsel %vm610, %v1035, %v1039
      %v1041 = vrot.slane %v805, 1
      %v1042 = vsel %vm610, %v1037, %v1041
      %v1043 = vrot.slane %v806, 1
      %v1044 = vsel %vm610, %v1039, %v1043
      %v1045 = vrot.slane %v807, 1
      %v1046 = vsel %vm610, %v1041, %v1045
      %v1047 = vrot.slane %v808, 1
      %v1048 = vsel %vm610, %v1043, %v1047
      %v1049 = vrot.slane %v829, 1
      %v1050 = vsel %vm610, %v1045, %v1049
      %v1051 = vrot.slane %v830, 1
      %v1052 = vsel %vm610, %v1047, %v1051
      %v1053 = vrot.slane %v1029, 1
      %v1054 = vrot.slane %v813, 1
      %v1055 = vsel %vm610, %v1053, %v1054
      %v1056 = vrot.slane %v1030, 1
      %v1057 = vrot.slane %v814, 1
      %v1058 = vsel %vm610, %v1056, %v1057
      %v1059 = vrot.slane %v815, 1
      %v1060 = vsel %vm610, %v1054, %v1059
      %v1061 = vrot.slane %v816, 1
      %v1062 = vsel %vm610, %v1057, %v1061
      %v1063 = vrot.slane %v817, 1
      %v1064 = vsel %vm610, %v1059, %v1063
      %v1065 = vrot.slane %v818, 1
      %v1066 = vsel %vm610, %v1061, %v1065
      %v1067 = vrot.slane %v819, 1
      %v1068 = vsel %vm610, %v1063, %v1067
      %v1069 = vrot.slane %v820, 1
      %v1070 = vsel %vm610, %v1065, %v1069
      %v1071 = vrot.slane %v831, 1
      %v1072 = vsel %vm610, %v1067, %v1071
      %v1073 = vrot.slane %v832, 1
      %v1074 = vsel %vm610, %v1069, %v1073
      %v1075 = vrot.slane %v799, 1
      %v1076 = vsel %vm610, %v1075, %v1032
      %v1077 = vrot.slane %v800, 1
      %v1078 = vsel %vm610, %v1077, %v1035
      %v1079 = vrot.slane %v844, 1
      %v1080 = vrot.slane %v864, 1
      %v1081 = vsel %vm610, %v1079, %v1080
      %v1082 = vrot.slane %v856, 1
      %v1083 = vrot.slane %v872, 1
      %v1084 = vsel %vm610, %v1082, %v1083
      %v1085 = vrot.slane %v1033, 1
      %v1086 = vrot.slane %v1038, 1
      %v1087 = vsel %vm610, %v1085, %v1086
      %v1088 = vrot.slane %v1036, 1
      %v1089 = vrot.slane %v1040, 1
      %v1090 = vsel %vm610, %v1088, %v1089
      %v1091 = vrot.slane %v880, 1
      %v1092 = vsel %vm610, %v1080, %v1091
      %v1093 = vrot.slane %v888, 1
      %v1094 = vsel %vm610, %v1083, %v1093
      %v1095 = vrot.slane %v1042, 1
      %v1096 = vsel %vm610, %v1086, %v1095
      %v1097 = vrot.slane %v1044, 1
      %v1098 = vsel %vm610, %v1089, %v1097
      %v1099 = vrot.slane %v896, 1
      %v1100 = vsel %vm610, %v1091, %v1099
      %v1101 = vrot.slane %v904, 1
      %v1102 = vsel %vm610, %v1093, %v1101
      %v1103 = vrot.slane %v1046, 1
      %v1104 = vsel %vm610, %v1095, %v1103
      %v1105 = vrot.slane %v1048, 1
      %v1106 = vsel %vm610, %v1097, %v1105
      %v1107 = vrot.slane %v912, 1
      %v1108 = vsel %vm610, %v1099, %v1107
      %v1109 = vrot.slane %v920, 1
      %v1110 = vsel %vm610, %v1101, %v1109
      %v1111 = vrot.slane %v1050, 1
      %v1112 = vsel %vm610, %v1103, %v1111
      %v1113 = vrot.slane %v1052, 1
      %v1114 = vsel %vm610, %v1105, %v1113
      %v1115 = vrot.slane %v809, 1
      %v1116 = vsel %vm610, %v1045, %v1115
      %v1117 = vrot.slane %v810, 1
      %v1118 = vsel %vm610, %v1047, %v1117
      %v1119 = vrot.slane %v923, 1
      %v1120 = vsel %vm610, %v1107, %v1119
      %v1121 = vrot.slane %v926, 1
      %v1122 = vsel %vm610, %v1109, %v1121
      %v1123 = vrot.slane %v1049, 1
      %v1124 = vsel %vm610, %v1111, %v1123
      %v1125 = vrot.slane %v1051, 1
      %v1126 = vsel %vm610, %v1113, %v1125
      %v1127 = vrot.slane %v811, 1
      %v1128 = vsel %vm610, %v1127, %v1054
      %v1129 = vrot.slane %v812, 1
      %v1130 = vsel %vm610, %v1129, %v1057
      %v1131 = vrot.slane %v938, 1
      %v1132 = vrot.slane %v958, 1
      %v1133 = vsel %vm610, %v1131, %v1132
      %v1134 = vrot.slane %v950, 1
      %v1135 = vrot.slane %v966, 1
      %v1136 = vsel %vm610, %v1134, %v1135
      %v1137 = vrot.slane %v1055, 1
      %v1138 = vrot.slane %v1060, 1
      %v1139 = vsel %vm610, %v1137, %v1138
      %v1140 = vrot.slane %v1058, 1
      %v1141 = vrot.slane %v1062, 1
      %v1142 = vsel %vm610, %v1140, %v1141
      %v1143 = vrot.slane %v974, 1
      %v1144 = vsel %vm610, %v1132, %v1143
      %v1145 = vrot.slane %v982, 1
      %v1146 = vsel %vm610, %v1135, %v1145
      %v1147 = vrot.slane %v1064, 1
      %v1148 = vsel %vm610, %v1138, %v1147
      %v1149 = vrot.slane %v1066, 1
      %v1150 = vsel %vm610, %v1141, %v1149
      %v1151 = vrot.slane %v990, 1
      %v1152 = vsel %vm610, %v1143, %v1151
      %v1153 = vrot.slane %v998, 1
      %v1154 = vsel %vm610, %v1145, %v1153
      %v1155 = vrot.slane %v1068, 1
      %v1156 = vsel %vm610, %v1147, %v1155
      %v1157 = vrot.slane %v1070, 1
      %v1158 = vsel %vm610, %v1149, %v1157
      %v1159 = vrot.slane %v1006, 1
      %v1160 = vsel %vm610, %v1151, %v1159
      %v1161 = vrot.slane %v1014, 1
      %v1162 = vsel %vm610, %v1153, %v1161
      %v1163 = vrot.slane %v1072, 1
      %v1164 = vsel %vm610, %v1155, %v1163
      %v1165 = vrot.slane %v1074, 1
      %v1166 = vsel %vm610, %v1157, %v1165
      %v1167 = vrot.slane %v821, 1
      %v1168 = vsel %vm610, %v1067, %v1167
      %v1169 = vrot.slane %v822, 1
      %v1170 = vsel %vm610, %v1069, %v1169
      %v1171 = vrot.slane %v1017, 1
      %v1172 = vsel %vm610, %v1159, %v1171
      %v1173 = vrot.slane %v1020, 1
      %v1174 = vsel %vm610, %v1161, %v1173
      %v1175 = vrot.slane %v1071, 1
      %v1176 = vsel %vm610, %v1163, %v1175
      %v1177 = vrot.slane %v1073, 1
      %v1178 = vsel %vm610, %v1165, %v1177
      %s1239 = scalar_lea.vmem %s1, 768
      %v1240 = vld [vmem:[%s1239] sm:$0xff]
      %v1241 = vld [vmem:[%s1239 + $0x8] sm:$0xff]
      %v1242 = vld [vmem:[%s1239 + $0x10] sm:$0xff]
      %v1243 = vld [vmem:[%s1239 + $0x18] sm:$0xff]
      %v1244 = vld [vmem:[%s1239 + $0x20] sm:$0xff]
      %v1245 = vld [vmem:[%s1239 + $0x28] sm:$0xff]
      %v1246 = vld [vmem:[%s1239 + $0x30] sm:$0xff]
      %v1247 = vld [vmem:[%s1239 + $0x38] sm:$0xff]
      %v1248 = vld [vmem:[%s1239 + $0x40] sm:$0xff]
      %v1249 = vld [vmem:[%s1239 + $0x48] sm:$0xff]
      %v1250 = vld [vmem:[%s1239 + $0x50] sm:$0xff]
      %v1251 = vld [vmem:[%s1239 + $0x58] sm:$0xff]
      %v1252 = vld [vmem:[%s1239 + $0x60] sm:$0xff]
      %v1253 = vld [vmem:[%s1239 + $0x68] sm:$0xff]
      %v1254 = vld [vmem:[%s1239 + $0x70] sm:$0xff]
      %v1255 = vld [vmem:[%s1239 + $0x78] sm:$0xff]
      %v1256 = vld [vmem:[%s1239 + $0x80] sm:$0xff]
      %v1257 = vld [vmem:[%s1239 + $0x88] sm:$0xff]
      %v1258 = vld [vmem:[%s1239 + $0x90] sm:$0xff]
      %v1259 = vld [vmem:[%s1239 + $0x98] sm:$0xff]
      %v1260 = vld [vmem:[%s1239 + $0xa0] sm:$0xff]
      %v1261 = vld [vmem:[%s1239 + $0xa8] sm:$0xff]
      %v1262 = vld [vmem:[%s1239 + $0xb0] sm:$0xff]
      %v1263 = vld [vmem:[%s1239 + $0xb8] sm:$0xff]
      %v1264 = vld [vmem:[%s1239 + $0xc0] sm:$0xff]
      %v1265 = vld [vmem:[%s1239 + $0xc8] sm:$0xff]
      %v1266 = vld [vmem:[%s1239 + $0xd0] sm:$0xff]
      %v1267 = vld [vmem:[%s1239 + $0xd8] sm:$0xff]
      %v1268 = vld [vmem:[%s1239 + $0xe0] sm:$0xff]
      %v1269 = vld [vmem:[%s1239 + $0xe8] sm:$0xff]
      %v1270 = vld [vmem:[%s1239 + $0xf0] sm:$0xff]
      %v1271 = vld [vmem:[%s1239 + $0xf8] sm:$0xff]
      %v1272 = vld [vmem:[%s1239 + $0x100] sm:$0xff]
      %v1273 = vld [vmem:[%s1239 + $0x108] sm:$0xff]
      %v1274 = vld [vmem:[%s1239 + $0x110] sm:$0xff]
      %v1275 = vld [vmem:[%s1239 + $0x118] sm:$0xff]
      %v1276 = vld [vmem:[%s1239 + $0x120] sm:$0xff]
      %v1277 = vld [vmem:[%s1239 + $0x128] sm:$0xff]
      %v1278 = vld [vmem:[%s1239 + $0x130] sm:$0xff]
      %v1279 = vld [vmem:[%s1239 + $0x138] sm:$0xff]
      %v1280 = vld [vmem:[%s1239 + $0x140] sm:$0xff]
      %v1281 = vld [vmem:[%s1239 + $0x148] sm:$0xff]
      %v1282 = vld [vmem:[%s1239 + $0x150] sm:$0xff]
      %v1283 = vld [vmem:[%s1239 + $0x158] sm:$0xff]
      %v1284 = vld [vmem:[%s1239 + $0x160] sm:$0xff]
      %v1285 = vld [vmem:[%s1239 + $0x168] sm:$0xff]
      %v1286 = vld [vmem:[%s1239 + $0x170] sm:$0xff]
      %v1287 = vld [vmem:[%s1239 + $0x178] sm:$0xff]
      %v1288 = vld [vmem:[%s1239 + $0x180] sm:$0xff]
      %v1289 = vld [vmem:[%s1239 + $0x188] sm:$0xff]
      %v1290 = vld [vmem:[%s1239 + $0x190] sm:$0xff]
      %v1291 = vld [vmem:[%s1239 + $0x198] sm:$0xff]
      %v1292 = vld [vmem:[%s1239 + $0x1a0] sm:$0xff]
      %v1293 = vld [vmem:[%s1239 + $0x1a8] sm:$0xff]
      %v1294 = vld [vmem:[%s1239 + $0x1b0] sm:$0xff]
      %v1295 = vld [vmem:[%s1239 + $0x1b8] sm:$0xff]
      %v1296 = vld [vmem:[%s1239 + $0x1c0] sm:$0xff]
      %v1297 = vld [vmem:[%s1239 + $0x1c8] sm:$0xff]
      %v1298 = vld [vmem:[%s1239 + $0x1d0] sm:$0xff]
      %v1299 = vld [vmem:[%s1239 + $0x1d8] sm:$0xff]
      %v1300 = vld [vmem:[%s1239 + $0x1e0] sm:$0xff]
      %v1301 = vld [vmem:[%s1239 + $0x1e8] sm:$0xff]
      %v1302 = vld [vmem:[%s1239 + $0x1f0] sm:$0xff]
      %v1303 = vld [vmem:[%s1239 + $0x1f8] sm:$0xff]
      %v1304 = vld [vmem:[%s1239 + $0x200] sm:$0xff]
      %v1305 = vld [vmem:[%s1239 + $0x208] sm:$0xff]
      %v1306 = vld [vmem:[%s1239 + $0x210] sm:$0xff]
      %v1307 = vld [vmem:[%s1239 + $0x218] sm:$0xff]
      %v1308 = vld [vmem:[%s1239 + $0x220] sm:$0xff]
      %v1309 = vld [vmem:[%s1239 + $0x228] sm:$0xff]
      %v1310 = vld [vmem:[%s1239 + $0x230] sm:$0xff]
      %v1311 = vld [vmem:[%s1239 + $0x238] sm:$0xff]
      %v1312 = vld [vmem:[%s1239 + $0x240] sm:$0xff]
      %v1313 = vld [vmem:[%s1239 + $0x248] sm:$0xff]
      %v1314 = vld [vmem:[%s1239 + $0x250] sm:$0xff]
      %v1315 = vld [vmem:[%s1239 + $0x258] sm:$0xff]
      %v1316 = vld [vmem:[%s1239 + $0x260] sm:$0xff]
      %v1317 = vld [vmem:[%s1239 + $0x268] sm:$0xff]
      %v1318 = vld [vmem:[%s1239 + $0x270] sm:$0xff]
      %v1319 = vld [vmem:[%s1239 + $0x278] sm:$0xff]
      %v1320 = vld [vmem:[%s1239 + $0x280] sm:$0xff]
      %v1321 = vld [vmem:[%s1239 + $0x288] sm:$0xff]
      %v1322 = vld [vmem:[%s1239 + $0x290] sm:$0xff]
      %v1323 = vld [vmem:[%s1239 + $0x298] sm:$0xff]
      %v1324 = vld [vmem:[%s1239 + $0x2a0] sm:$0xff]
      %v1325 = vld [vmem:[%s1239 + $0x2a8] sm:$0xff]
      %v1326 = vld [vmem:[%s1239 + $0x2b0] sm:$0xff]
      %v1327 = vld [vmem:[%s1239 + $0x2b8] sm:$0xff]
      %v1328 = vld [vmem:[%s1239 + $0x2c0] sm:$0xff]
      %v1329 = vld [vmem:[%s1239 + $0x2c8] sm:$0xff]
      %v1330 = vld [vmem:[%s1239 + $0x2d0] sm:$0xff]
      %v1331 = vld [vmem:[%s1239 + $0x2d8] sm:$0xff]
      %v1332 = vld [vmem:[%s1239 + $0x2e0] sm:$0xff]
      %v1333 = vld [vmem:[%s1239 + $0x2e8] sm:$0xff]
      %v1334 = vld [vmem:[%s1239 + $0x2f0] sm:$0xff]
      %v1335 = vld [vmem:[%s1239 + $0x2f8] sm:$0xff]
      %v1432 = vunpack.c.l.b16 %v1240
      %v1433 = vunpack.c.h.b16 %v1240
      %v1434 = vunpack.c.l.b16 %v1241
      %v1435 = vunpack.c.h.b16 %v1241
      %v1436 = vunpack.c.l.b16 %v1242
      %v1437 = vunpack.c.h.b16 %v1242
      %v1438 = vunpack.c.l.b16 %v1243
      %v1439 = vunpack.c.h.b16 %v1243
      %v1440 = vunpack.c.l.b16 %v1244
      %v1441 = vunpack.c.h.b16 %v1244
      %v1442 = vunpack.c.l.b16 %v1245
      %v1443 = vunpack.c.h.b16 %v1245
      %v1444 = vunpack.c.l.b16 %v1246
      %v1445 = vunpack.c.h.b16 %v1246
      %v1446 = vunpack.c.l.b16 %v1247
      %v1447 = vunpack.c.h.b16 %v1247
      %v1448 = vunpack.c.l.b16 %v1248
      %v1449 = vunpack.c.h.b16 %v1248
      %v1450 = vunpack.c.l.b16 %v1249
      %v1451 = vunpack.c.h.b16 %v1249
      %v1452 = vunpack.c.l.b16 %v1250
      %v1453 = vunpack.c.h.b16 %v1250
      %v1454 = vunpack.c.l.b16 %v1251
      %v1455 = vunpack.c.h.b16 %v1251
      %v1456 = vunpack.c.l.b16 %v1252
      %v1457 = vunpack.c.h.b16 %v1252
      %v1458 = vunpack.c.l.b16 %v1253
      %v1459 = vunpack.c.h.b16 %v1253
      %v1460 = vunpack.c.l.b16 %v1254
      %v1461 = vunpack.c.h.b16 %v1254
      %v1462 = vunpack.c.l.b16 %v1255
      %v1463 = vunpack.c.h.b16 %v1255
      %v1464 = vunpack.c.l.b16 %v1256
      %v1465 = vunpack.c.h.b16 %v1256
      %v1466 = vunpack.c.l.b16 %v1257
      %v1467 = vunpack.c.h.b16 %v1257
      %v1468 = vunpack.c.l.b16 %v1258
      %v1469 = vunpack.c.h.b16 %v1258
      %v1470 = vunpack.c.l.b16 %v1259
      %v1471 = vunpack.c.h.b16 %v1259
      %v1472 = vunpack.c.l.b16 %v1260
      %v1473 = vunpack.c.h.b16 %v1260
      %v1474 = vunpack.c.l.b16 %v1261
      %v1475 = vunpack.c.h.b16 %v1261
      %v1476 = vunpack.c.l.b16 %v1262
      %v1477 = vunpack.c.h.b16 %v1262
      %v1478 = vunpack.c.l.b16 %v1263
      %v1479 = vunpack.c.h.b16 %v1263
      %v1480 = vunpack.c.l.b16 %v1264
      %v1481 = vunpack.c.h.b16 %v1264
      %v1482 = vunpack.c.l.b16 %v1265
      %v1483 = vunpack.c.h.b16 %v1265
      %v1484 = vunpack.c.l.b16 %v1266
      %v1485 = vunpack.c.h.b16 %v1266
      %v1486 = vunpack.c.l.b16 %v1267
      %v1487 = vunpack.c.h.b16 %v1267
      %v1488 = vunpack.c.l.b16 %v1268
      %v1489 = vunpack.c.h.b16 %v1268
      %v1490 = vunpack.c.l.b16 %v1269
      %v1491 = vunpack.c.h.b16 %v1269
      %v1492 = vunpack.c.l.b16 %v1270
      %v1493 = vunpack.c.h.b16 %v1270
      %v1494 = vunpack.c.l.b16 %v1271
      %v1495 = vunpack.c.h.b16 %v1271
      %v1496 = vunpack.c.l.b16 %v1272
      %v1497 = vunpack.c.h.b16 %v1272
      %v1498 = vunpack.c.l.b16 %v1273
      %v1499 = vunpack.c.h.b16 %v1273
      %v1500 = vunpack.c.l.b16 %v1274
      %v1501 = vunpack.c.h.b16 %v1274
      %v1502 = vunpack.c.l.b16 %v1275
      %v1503 = vunpack.c.h.b16 %v1275
      %v1504 = vunpack.c.l.b16 %v1276
      %v1505 = vunpack.c.h.b16 %v1276
      %v1506 = vunpack.c.l.b16 %v1277
      %v1507 = vunpack.c.h.b16 %v1277
      %v1508 = vunpack.c.l.b16 %v1278
      %v1509 = vunpack.c.h.b16 %v1278
      %v1510 = vunpack.c.l.b16 %v1279
      %v1511 = vunpack.c.h.b16 %v1279
      %v1512 = vunpack.c.l.b16 %v1280
      %v1513 = vunpack.c.h.b16 %v1280
      %v1514 = vunpack.c.l.b16 %v1281
      %v1515 = vunpack.c.h.b16 %v1281
      %v1516 = vunpack.c.l.b16 %v1282
      %v1517 = vunpack.c.h.b16 %v1282
      %v1518 = vunpack.c.l.b16 %v1283
      %v1519 = vunpack.c.h.b16 %v1283
      %v1520 = vunpack.c.l.b16 %v1284
      %v1521 = vunpack.c.h.b16 %v1284
      %v1522 = vunpack.c.l.b16 %v1285
      %v1523 = vunpack.c.h.b16 %v1285
      %v1524 = vunpack.c.l.b16 %v1286
      %v1525 = vunpack.c.h.b16 %v1286
      %v1526 = vunpack.c.l.b16 %v1287
      %v1527 = vunpack.c.h.b16 %v1287
      %v1528 = vunpack.c.l.b16 %v1288
      %v1529 = vunpack.c.h.b16 %v1288
      %v1530 = vunpack.c.l.b16 %v1289
      %v1531 = vunpack.c.h.b16 %v1289
      %v1532 = vunpack.c.l.b16 %v1290
      %v1533 = vunpack.c.h.b16 %v1290
      %v1534 = vunpack.c.l.b16 %v1291
      %v1535 = vunpack.c.h.b16 %v1291
      %v1536 = vunpack.c.l.b16 %v1292
      %v1537 = vunpack.c.h.b16 %v1292
      %v1538 = vunpack.c.l.b16 %v1293
      %v1539 = vunpack.c.h.b16 %v1293
      %v1540 = vunpack.c.l.b16 %v1294
      %v1541 = vunpack.c.h.b16 %v1294
      %v1542 = vunpack.c.l.b16 %v1295
      %v1543 = vunpack.c.h.b16 %v1295
      %v1544 = vunpack.c.l.b16 %v1296
      %v1545 = vunpack.c.h.b16 %v1296
      %v1546 = vunpack.c.l.b16 %v1297
      %v1547 = vunpack.c.h.b16 %v1297
      %v1548 = vunpack.c.l.b16 %v1298
      %v1549 = vunpack.c.h.b16 %v1298
      %v1550 = vunpack.c.l.b16 %v1299
      %v1551 = vunpack.c.h.b16 %v1299
      %v1552 = vunpack.c.l.b16 %v1300
      %v1553 = vunpack.c.h.b16 %v1300
      %v1554 = vunpack.c.l.b16 %v1301
      %v1555 = vunpack.c.h.b16 %v1301
      %v1556 = vunpack.c.l.b16 %v1302
      %v1557 = vunpack.c.h.b16 %v1302
      %v1558 = vunpack.c.l.b16 %v1303
      %v1559 = vunpack.c.h.b16 %v1303
      %v1560 = vunpack.c.l.b16 %v1304
      %v1561 = vunpack.c.h.b16 %v1304
      %v1562 = vunpack.c.l.b16 %v1305
      %v1563 = vunpack.c.h.b16 %v1305
      %v1564 = vunpack.c.l.b16 %v1306
      %v1565 = vunpack.c.h.b16 %v1306
      %v1566 = vunpack.c.l.b16 %v1307
      %v1567 = vunpack.c.h.b16 %v1307
      %v1568 = vunpack.c.l.b16 %v1308
      %v1569 = vunpack.c.h.b16 %v1308
      %v1570 = vunpack.c.l.b16 %v1309
      %v1571 = vunpack.c.h.b16 %v1309
      %v1572 = vunpack.c.l.b16 %v1310
      %v1573 = vunpack.c.h.b16 %v1310
      %v1574 = vunpack.c.l.b16 %v1311
      %v1575 = vunpack.c.h.b16 %v1311
      %v1576 = vunpack.c.l.b16 %v1312
      %v1577 = vunpack.c.h.b16 %v1312
      %v1578 = vunpack.c.l.b16 %v1313
      %v1579 = vunpack.c.h.b16 %v1313
      %v1580 = vunpack.c.l.b16 %v1314
      %v1581 = vunpack.c.h.b16 %v1314
      %v1582 = vunpack.c.l.b16 %v1315
      %v1583 = vunpack.c.h.b16 %v1315
      %v1584 = vunpack.c.l.b16 %v1316
      %v1585 = vunpack.c.h.b16 %v1316
      %v1586 = vunpack.c.l.b16 %v1317
      %v1587 = vunpack.c.h.b16 %v1317
      %v1588 = vunpack.c.l.b16 %v1318
      %v1589 = vunpack.c.h.b16 %v1318
      %v1590 = vunpack.c.l.b16 %v1319
      %v1591 = vunpack.c.h.b16 %v1319
      %v1592 = vunpack.c.l.b16 %v1320
      %v1593 = vunpack.c.h.b16 %v1320
      %v1594 = vunpack.c.l.b16 %v1321
      %v1595 = vunpack.c.h.b16 %v1321
      %v1596 = vunpack.c.l.b16 %v1322
      %v1597 = vunpack.c.h.b16 %v1322
      %v1598 = vunpack.c.l.b16 %v1323
      %v1599 = vunpack.c.h.b16 %v1323
      %v1600 = vunpack.c.l.b16 %v1324
      %v1601 = vunpack.c.h.b16 %v1324
      %v1602 = vunpack.c.l.b16 %v1325
      %v1603 = vunpack.c.h.b16 %v1325
      %v1604 = vunpack.c.l.b16 %v1326
      %v1605 = vunpack.c.h.b16 %v1326
      %v1606 = vunpack.c.l.b16 %v1327
      %v1607 = vunpack.c.h.b16 %v1327
      %v1608 = vunpack.c.l.b16 %v1328
      %v1609 = vunpack.c.h.b16 %v1328
      %v1610 = vunpack.c.l.b16 %v1329
      %v1611 = vunpack.c.h.b16 %v1329
      %v1612 = vunpack.c.l.b16 %v1330
      %v1613 = vunpack.c.h.b16 %v1330
      %v1614 = vunpack.c.l.b16 %v1331
      %v1615 = vunpack.c.h.b16 %v1331
      %v1616 = vunpack.c.l.b16 %v1332
      %v1617 = vunpack.c.h.b16 %v1332
      %v1618 = vunpack.c.l.b16 %v1333
      %v1619 = vunpack.c.h.b16 %v1333
      %v1620 = vunpack.c.l.b16 %v1334
      %v1621 = vunpack.c.h.b16 %v1334
      %v1622 = vunpack.c.l.b16 %v1335
      %v1623 = vunpack.c.h.b16 %v1335
      %v1624 = vpack.c.b16 %v1434, %v1432
      %v1625 = vpack.c.b16 %v1435, %v1433
      %v1626 = vpack.c.b16 %v1438, %v1436
      %v1627 = vpack.c.b16 %v1439, %v1437
      %v1628 = vpack.c.b16 %v1442, %v1440
      %v1629 = vpack.c.b16 %v1443, %v1441
      %v1630 = vpack.c.b16 %v1446, %v1444
      %v1631 = vpack.c.b16 %v1447, %v1445
      %v1632 = vpack.c.b16 %v1450, %v1448
      %v1633 = vpack.c.b16 %v1451, %v1449
      %v1634 = vpack.c.b16 %v1454, %v1452
      %v1635 = vpack.c.b16 %v1455, %v1453
      %v1636 = vpack.c.b16 %v1458, %v1456
      %v1637 = vpack.c.b16 %v1459, %v1457
      %v1638 = vpack.c.b16 %v1462, %v1460
      %v1639 = vpack.c.b16 %v1463, %v1461
      %v1640 = vpack.c.b16 %v1466, %v1464
      %v1641 = vpack.c.b16 %v1467, %v1465
      %v1642 = vpack.c.b16 %v1470, %v1468
      %v1643 = vpack.c.b16 %v1471, %v1469
      %v1644 = vpack.c.b16 %v1474, %v1472
      %v1645 = vpack.c.b16 %v1475, %v1473
      %v1646 = vpack.c.b16 %v1478, %v1476
      %v1647 = vpack.c.b16 %v1479, %v1477
      %v1648 = vpack.c.b16 %v1482, %v1480
      %v1649 = vpack.c.b16 %v1483, %v1481
      %v1650 = vpack.c.b16 %v1486, %v1484
      %v1651 = vpack.c.b16 %v1487, %v1485
      %v1652 = vpack.c.b16 %v1490, %v1488
      %v1653 = vpack.c.b16 %v1491, %v1489
      %v1654 = vpack.c.b16 %v1494, %v1492
      %v1655 = vpack.c.b16 %v1495, %v1493
      %v1656 = vpack.c.b16 %v1498, %v1496
      %v1657 = vpack.c.b16 %v1499, %v1497
      %v1658 = vpack.c.b16 %v1502, %v1500
      %v1659 = vpack.c.b16 %v1503, %v1501
      %v1660 = vpack.c.b16 %v1506, %v1504
      %v1661 = vpack.c.b16 %v1507, %v1505
      %v1662 = vpack.c.b16 %v1510, %v1508
      %v1663 = vpack.c.b16 %v1511, %v1509
      %v1664 = vpack.c.b16 %v1514, %v1512
      %v1665 = vpack.c.b16 %v1515, %v1513
      %v1666 = vpack.c.b16 %v1518, %v1516
      %v1667 = vpack.c.b16 %v1519, %v1517
      %v1668 = vpack.c.b16 %v1522, %v1520
      %v1669 = vpack.c.b16 %v1523, %v1521
      %v1670 = vpack.c.b16 %v1526, %v1524
      %v1671 = vpack.c.b16 %v1527, %v1525
      %v1672 = vpack.c.b16 %v1530, %v1528
      %v1673 = vpack.c.b16 %v1531, %v1529
      %v1674 = vpack.c.b16 %v1534, %v1532
      %v1675 = vpack.c.b16 %v1535, %v1533
      %v1676 = vpack.c.b16 %v1538, %v1536
      %v1677 = vpack.c.b16 %v1539, %v1537
      %v1678 = vpack.c.b16 %v1542, %v1540
      %v1679 = vpack.c.b16 %v1543, %v1541
      %v1680 = vpack.c.b16 %v1546, %v1544
      %v1681 = vpack.c.b16 %v1547, %v1545
      %v1682 = vpack.c.b16 %v1550, %v1548
      %v1683 = vpack.c.b16 %v1551, %v1549
      %v1684 = vpack.c.b16 %v1554, %v1552
      %v1685 = vpack.c.b16 %v1555, %v1553
      %v1686 = vpack.c.b16 %v1558, %v1556
      %v1687 = vpack.c.b16 %v1559, %v1557
      %v1688 = vpack.c.b16 %v1562, %v1560
      %v1689 = vpack.c.b16 %v1563, %v1561
      %v1690 = vpack.c.b16 %v1566, %v1564
      %v1691 = vpack.c.b16 %v1567, %v1565
      %v1692 = vpack.c.b16 %v1570, %v1568
      %v1693 = vpack.c.b16 %v1571, %v1569
      %v1694 = vpack.c.b16 %v1574, %v1572
      %v1695 = vpack.c.b16 %v1575, %v1573
      %v1696 = vpack.c.b16 %v1578, %v1576
      %v1697 = vpack.c.b16 %v1579, %v1577
      %v1698 = vpack.c.b16 %v1582, %v1580
      %v1699 = vpack.c.b16 %v1583, %v1581
      %v1700 = vpack.c.b16 %v1586, %v1584
      %v1701 = vpack.c.b16 %v1587, %v1585
      %v1702 = vpack.c.b16 %v1590, %v1588
      %v1703 = vpack.c.b16 %v1591, %v1589
      %v1704 = vpack.c.b16 %v1594, %v1592
      %v1705 = vpack.c.b16 %v1595, %v1593
      %v1706 = vpack.c.b16 %v1598, %v1596
      %v1707 = vpack.c.b16 %v1599, %v1597
      %v1708 = vpack.c.b16 %v1602, %v1600
      %v1709 = vpack.c.b16 %v1603, %v1601
      %v1710 = vpack.c.b16 %v1606, %v1604
      %v1711 = vpack.c.b16 %v1607, %v1605
      %v1712 = vpack.c.b16 %v1610, %v1608
      %v1713 = vpack.c.b16 %v1611, %v1609
      %v1714 = vpack.c.b16 %v1614, %v1612
      %v1715 = vpack.c.b16 %v1615, %v1613
      %v1716 = vpack.c.b16 %v1618, %v1616
      %v1717 = vpack.c.b16 %v1619, %v1617
      %v1718 = vpack.c.b16 %v1622, %v1620
      %v1719 = vpack.c.b16 %v1623, %v1621
      %1816 = vmatprep.subr.bf16.mxu0 %v1639
      %1817 = vmatpush1.bf16.msra.mxu0 %v1638
      %1818 = vmatprep.subr.bf16.mxu0 %v1637
      %1819 = vmatpush1.bf16.msra.mxu0 %v1636
      %1820 = vmatprep.subr.bf16.mxu0 %v1635
      %1821 = vmatpush1.bf16.msra.mxu0 %v1634
      %1822 = vmatprep.subr.bf16.mxu0 %v1633
      %1823 = vmatpush1.bf16.msra.mxu0 %v1632
      %1824 = vmatprep.subr.bf16.mxu0 %v1631
      %1825 = vmatpush1.bf16.msra.mxu0 %v1630
      %1826 = vmatprep.subr.bf16.mxu0 %v1629
      %1827 = vmatpush1.bf16.msra.mxu0 %v1628
      %1828 = vmatprep.subr.bf16.mxu0 %v1627
      %1829 = vmatpush1.bf16.msra.mxu0 %v1626
      %1830 = vmatprep.subr.bf16.mxu0 %v1625
      %1831 = vmatpush1.bf16.msra.mxu0 %v1624
      %1832 = vmatprep.subr.bf16.mxu0 %v1655
      %1833 = vmatpush2.bf16.msra.mxu0 %v1654
      %1834 = vmatprep.subr.bf16.mxu0 %v1653
      %1835 = vmatpush2.bf16.msra.mxu0 %v1652
      %1836 = vmatprep.subr.bf16.mxu0 %v1651
      %1837 = vmatpush2.bf16.msra.mxu0 %v1650
      %1838 = vmatprep.subr.bf16.mxu0 %v1649
      %1839 = vmatpush2.bf16.msra.mxu0 %v1648
      %1840 = vmatprep.subr.bf16.mxu0 %v1647
      %1841 = vmatpush2.bf16.msra.mxu0 %v1646
      %1842 = vmatprep.subr.bf16.mxu0 %v1645
      %1843 = vmatpush2.bf16.msra.mxu0 %v1644
      %1844 = vmatprep.subr.bf16.mxu0 %v1643
      %1845 = vmatpush2.bf16.msra.mxu0 %v1642
      %1846 = vmatprep.subr.bf16.mxu0 %v1641
      %1847 = vmatpush2.bf16.msra.mxu0 %v1640
      %1848 = vmatprep.mubr.bf16.mxu0 %v1078
      %1849 = vmatmul.mubr.bf16.gmra.mxu0 %v1076
      %v1850 = vpop.f32.mrf.mxu0
      %v1851 = vadd.f32 0.0, %v1850
      %v1852 = vpop.f32.mrf.mxu0
      %v1853 = vadd.f32 0.0, %v1852
      %v1854 = vpop.f32.mrf.mxu0
      %v1855 = vadd.f32 0.0, %v1854
      %v1856 = vpop.f32.mrf.mxu0
      %v1857 = vadd.f32 0.0, %v1856
      %1858 = vmatprep.mubr.bf16.mxu0 %v1040
      %1859 = vmatmul.mubr.bf16.gmra.mxu0 %v1038
      %v1860 = vpop.f32.mrf.mxu0
      %v1861 = vadd.f32 0.0, %v1860
      %v1862 = vpop.f32.mrf.mxu0
      %v1863 = vadd.f32 0.0, %v1862
      %v1864 = vpop.f32.mrf.mxu0
      %v1865 = vadd.f32 0.0, %v1864
      %v1866 = vpop.f32.mrf.mxu0
      %v1867 = vadd.f32 0.0, %v1866
      %1868 = vmatprep.mubr.bf16.mxu0 %v1044
      %1869 = vmatmul.mubr.bf16.gmra.mxu0 %v1042
      %v1870 = vpop.f32.mrf.mxu0
      %v1871 = vadd.f32 0.0, %v1870
      %v1872 = vpop.f32.mrf.mxu0
      %v1873 = vadd.f32 0.0, %v1872
      %v1874 = vpop.f32.mrf.mxu0
      %v1875 = vadd.f32 0.0, %v1874
      %v1876 = vpop.f32.mrf.mxu0
      %v1877 = vadd.f32 0.0, %v1876
      %1878 = vmatprep.mubr.bf16.mxu0 %v1048
      %1879 = vmatmul.mubr.bf16.gmra.mxu0 %v1046
      %v1880 = vpop.f32.mrf.mxu0
      %v1881 = vadd.f32 0.0, %v1880
      %v1882 = vpop.f32.mrf.mxu0
      %v1883 = vadd.f32 0.0, %v1882
      %v1884 = vpop.f32.mrf.mxu0
      %v1885 = vadd.f32 0.0, %v1884
      %v1886 = vpop.f32.mrf.mxu0
      %v1887 = vadd.f32 0.0, %v1886
      %1888 = vmatprep.mubr.bf16.mxu0 %v1118
      %1889 = vmatmul.mubr.bf16.gmra.mxu0 %v1116
      %v1890 = vpop.f32.mrf.mxu0
      %v1891 = vadd.f32 0.0, %v1890
      %v1892 = vpop.f32.mrf.mxu0
      %v1893 = vadd.f32 0.0, %v1892
      %v1894 = vpop.f32.mrf.mxu0
      %v1895 = vadd.f32 0.0, %v1894
      %v1896 = vpop.f32.mrf.mxu0
      %v1897 = vadd.f32 0.0, %v1896
      %1898 = vmatprep.mubr.bf16.mxu0 %v1130
      %1899 = vmatmul.mubr.bf16.gmra.mxu0 %v1128
      %v1900 = vpop.f32.mrf.mxu0
      %v1901 = vadd.f32 0.0, %v1900
      %v1902 = vpop.f32.mrf.mxu0
      %v1903 = vadd.f32 0.0, %v1902
      %v1904 = vpop.f32.mrf.mxu0
      %v1905 = vadd.f32 0.0, %v1904
      %v1906 = vpop.f32.mrf.mxu0
      %v1907 = vadd.f32 0.0, %v1906
      %1908 = vmatprep.mubr.bf16.mxu0 %v1062
      %1909 = vmatmul.mubr.bf16.gmra.mxu0 %v1060
      %v1910 = vpop.f32.mrf.mxu0
      %v1911 = vadd.f32 0.0, %v1910
      %v1912 = vpop.f32.mrf.mxu0
      %v1913 = vadd.f32 0.0, %v1912
      %v1914 = vpop.f32.mrf.mxu0
      %v1915 = vadd.f32 0.0, %v1914
      %v1916 = vpop.f32.mrf.mxu0
      %v1917 = vadd.f32 0.0, %v1916
      %1918 = vmatprep.mubr.bf16.mxu0 %v1066
      %1919 = vmatmul.mubr.bf16.gmra.mxu0 %v1064
      %v1920 = vpop.f32.mrf.mxu0
      %v1921 = vadd.f32 0.0, %v1920
      %v1922 = vpop.f32.mrf.mxu0
      %v1923 = vadd.f32 0.0, %v1922
      %v1924 = vpop.f32.mrf.mxu0
      %v1925 = vadd.f32 0.0, %v1924
      %v1926 = vpop.f32.mrf.mxu0
      %v1927 = vadd.f32 0.0, %v1926
      %1928 = vmatprep.mubr.bf16.mxu0 %v1070
      %1929 = vmatmul.mubr.bf16.gmra.mxu0 %v1068
      %v1930 = vpop.f32.mrf.mxu0
      %v1931 = vadd.f32 0.0, %v1930
      %v1932 = vpop.f32.mrf.mxu0
      %v1933 = vadd.f32 0.0, %v1932
      %v1934 = vpop.f32.mrf.mxu0
      %v1935 = vadd.f32 0.0, %v1934
      %v1936 = vpop.f32.mrf.mxu0
      %v1937 = vadd.f32 0.0, %v1936
      %1938 = vmatprep.mubr.bf16.mxu0 %v1170
      %1939 = vmatmul.mubr.bf16.gmra.mxu0 %v1168
      %v1940 = vpop.f32.mrf.mxu0
      %v1941 = vadd.f32 0.0, %v1940
      %v1942 = vpop.f32.mrf.mxu0
      %v1943 = vadd.f32 0.0, %v1942
      %v1944 = vpop.f32.mrf.mxu0
      %v1945 = vadd.f32 0.0, %v1944
      %v1946 = vpop.f32.mrf.mxu0
      %v1947 = vadd.f32 0.0, %v1946
      %1948 = vdwg.mxu0
      %1949 = vmatprep.subr.bf16.mxu0 %v1671
      %1950 = vmatpush1.bf16.msra.mxu0 %v1670
      %1951 = vmatprep.subr.bf16.mxu0 %v1669
      %1952 = vmatpush1.bf16.msra.mxu0 %v1668
      %1953 = vmatprep.subr.bf16.mxu0 %v1667
      %1954 = vmatpush1.bf16.msra.mxu0 %v1666
      %1955 = vmatprep.subr.bf16.mxu0 %v1665
      %1956 = vmatpush1.bf16.msra.mxu0 %v1664
      %1957 = vmatprep.subr.bf16.mxu0 %v1663
      %1958 = vmatpush1.bf16.msra.mxu0 %v1662
      %1959 = vmatprep.subr.bf16.mxu0 %v1661
      %1960 = vmatpush1.bf16.msra.mxu0 %v1660
      %1961 = vmatprep.subr.bf16.mxu0 %v1659
      %1962 = vmatpush1.bf16.msra.mxu0 %v1658
      %1963 = vmatprep.subr.bf16.mxu0 %v1657
      %1964 = vmatpush1.bf16.msra.mxu0 %v1656
      %1965 = vmatprep.subr.bf16.mxu0 %v1687
      %1966 = vmatpush2.bf16.msra.mxu0 %v1686
      %1967 = vmatprep.subr.bf16.mxu0 %v1685
      %1968 = vmatpush2.bf16.msra.mxu0 %v1684
      %1969 = vmatprep.subr.bf16.mxu0 %v1683
      %1970 = vmatpush2.bf16.msra.mxu0 %v1682
      %1971 = vmatprep.subr.bf16.mxu0 %v1681
      %1972 = vmatpush2.bf16.msra.mxu0 %v1680
      %1973 = vmatprep.subr.bf16.mxu0 %v1679
      %1974 = vmatpush2.bf16.msra.mxu0 %v1678
      %1975 = vmatprep.subr.bf16.mxu0 %v1677
      %1976 = vmatpush2.bf16.msra.mxu0 %v1676
      %1977 = vmatprep.subr.bf16.mxu0 %v1675
      %1978 = vmatpush2.bf16.msra.mxu0 %v1674
      %1979 = vmatprep.subr.bf16.mxu0 %v1673
      %1980 = vmatpush2.bf16.msra.mxu0 %v1672
      %1981 = vmatprep.mubr.bf16.mxu0 %v1084
      %1982 = vmatmul.mubr.bf16.gmra.mxu0 %v1081
      %v1983 = vpop.f32.mrf.mxu0
      %v1984 = vadd.f32 %v1851, %v1983
      %v1985 = vpop.f32.mrf.mxu0
      %v1986 = vadd.f32 %v1853, %v1985
      %v1987 = vpop.f32.mrf.mxu0
      %v1988 = vadd.f32 %v1855, %v1987
      %v1989 = vpop.f32.mrf.mxu0
      %v1990 = vadd.f32 %v1857, %v1989
      %1991 = vmatprep.mubr.bf16.mxu0 %v1094
      %1992 = vmatmul.mubr.bf16.gmra.mxu0 %v1092
      %v1993 = vpop.f32.mrf.mxu0
      %v1994 = vadd.f32 %v1861, %v1993
      %v1995 = vpop.f32.mrf.mxu0
      %v1996 = vadd.f32 %v1863, %v1995
      %v1997 = vpop.f32.mrf.mxu0
      %v1998 = vadd.f32 %v1865, %v1997
      %v1999 = vpop.f32.mrf.mxu0
      %v2000 = vadd.f32 %v1867, %v1999
      %2001 = vmatprep.mubr.bf16.mxu0 %v1102
      %2002 = vmatmul.mubr.bf16.gmra.mxu0 %v1100
      %v2003 = vpop.f32.mrf.mxu0
      %v2004 = vadd.f32 %v1871, %v2003
      %v2005 = vpop.f32.mrf.mxu0
      %v2006 = vadd.f32 %v1873, %v2005
      %v2007 = vpop.f32.mrf.mxu0
      %v2008 = vadd.f32 %v1875, %v2007
      %v2009 = vpop.f32.mrf.mxu0
      %v2010 = vadd.f32 %v1877, %v2009
      %2011 = vmatprep.mubr.bf16.mxu0 %v1110
      %2012 = vmatmul.mubr.bf16.gmra.mxu0 %v1108
      %v2013 = vpop.f32.mrf.mxu0
      %v2014 = vadd.f32 %v1881, %v2013
      %v2015 = vpop.f32.mrf.mxu0
      %v2016 = vadd.f32 %v1883, %v2015
      %v2017 = vpop.f32.mrf.mxu0
      %v2018 = vadd.f32 %v1885, %v2017
      %v2019 = vpop.f32.mrf.mxu0
      %v2020 = vadd.f32 %v1887, %v2019
      %2021 = vmatprep.mubr.bf16.mxu0 %v1122
      %2022 = vmatmul.mubr.bf16.gmra.mxu0 %v1120
      %v2023 = vpop.f32.mrf.mxu0
      %v2024 = vadd.f32 %v1891, %v2023
      %v2025 = vpop.f32.mrf.mxu0
      %v2026 = vadd.f32 %v1893, %v2025
      %v2027 = vpop.f32.mrf.mxu0
      %v2028 = vadd.f32 %v1895, %v2027
      %v2029 = vpop.f32.mrf.mxu0
      %v2030 = vadd.f32 %v1897, %v2029
      %2031 = vmatprep.mubr.bf16.mxu0 %v1136
      %2032 = vmatmul.mubr.bf16.gmra.mxu0 %v1133
      %v2033 = vpop.f32.mrf.mxu0
      %v2034 = vadd.f32 %v1901, %v2033
      %v2035 = vpop.f32.mrf.mxu0
      %v2036 = vadd.f32 %v1903, %v2035
      %v2037 = vpop.f32.mrf.mxu0
      %v2038 = vadd.f32 %v1905, %v2037
      %v2039 = vpop.f32.mrf.mxu0
      %v2040 = vadd.f32 %v1907, %v2039
      %2041 = vmatprep.mubr.bf16.mxu0 %v1146
      %2042 = vmatmul.mubr.bf16.gmra.mxu0 %v1144
      %v2043 = vpop.f32.mrf.mxu0
      %v2044 = vadd.f32 %v1911, %v2043
      %v2045 = vpop.f32.mrf.mxu0
      %v2046 = vadd.f32 %v1913, %v2045
      %v2047 = vpop.f32.mrf.mxu0
      %v2048 = vadd.f32 %v1915, %v2047
      %v2049 = vpop.f32.mrf.mxu0
      %v2050 = vadd.f32 %v1917, %v2049
      %2051 = vmatprep.mubr.bf16.mxu0 %v1154
      %2052 = vmatmul.mubr.bf16.gmra.mxu0 %v1152
      %v2053 = vpop.f32.mrf.mxu0
      %v2054 = vadd.f32 %v1921, %v2053
      %v2055 = vpop.f32.mrf.mxu0
      %v2056 = vadd.f32 %v1923, %v2055
      %v2057 = vpop.f32.mrf.mxu0
      %v2058 = vadd.f32 %v1925, %v2057
      %v2059 = vpop.f32.mrf.mxu0
      %v2060 = vadd.f32 %v1927, %v2059
      %2061 = vmatprep.mubr.bf16.mxu0 %v1162
      %2062 = vmatmul.mubr.bf16.gmra.mxu0 %v1160
      %v2063 = vpop.f32.mrf.mxu0
      %v2064 = vadd.f32 %v1931, %v2063
      %v2065 = vpop.f32.mrf.mxu0
      %v2066 = vadd.f32 %v1933, %v2065
      %v2067 = vpop.f32.mrf.mxu0
      %v2068 = vadd.f32 %v1935, %v2067
      %v2069 = vpop.f32.mrf.mxu0
      %v2070 = vadd.f32 %v1937, %v2069
      %2071 = vmatprep.mubr.bf16.mxu0 %v1174
      %2072 = vmatmul.mubr.bf16.gmra.mxu0 %v1172
      %v2073 = vpop.f32.mrf.mxu0
      %v2074 = vadd.f32 %v1941, %v2073
      %v2075 = vpop.f32.mrf.mxu0
      %v2076 = vadd.f32 %v1943, %v2075
      %v2077 = vpop.f32.mrf.mxu0
      %v2078 = vadd.f32 %v1945, %v2077
      %v2079 = vpop.f32.mrf.mxu0
      %v2080 = vadd.f32 %v1947, %v2079
      %2081 = vdwg.mxu0
      %2082 = vmatprep.subr.bf16.mxu0 %v1703
      %2083 = vmatpush1.bf16.msra.mxu0 %v1702
      %2084 = vmatprep.subr.bf16.mxu0 %v1701
      %2085 = vmatpush1.bf16.msra.mxu0 %v1700
      %2086 = vmatprep.subr.bf16.mxu0 %v1699
      %2087 = vmatpush1.bf16.msra.mxu0 %v1698
      %2088 = vmatprep.subr.bf16.mxu0 %v1697
      %2089 = vmatpush1.bf16.msra.mxu0 %v1696
      %2090 = vmatprep.subr.bf16.mxu0 %v1695
      %2091 = vmatpush1.bf16.msra.mxu0 %v1694
      %2092 = vmatprep.subr.bf16.mxu0 %v1693
      %2093 = vmatpush1.bf16.msra.mxu0 %v1692
      %2094 = vmatprep.subr.bf16.mxu0 %v1691
      %2095 = vmatpush1.bf16.msra.mxu0 %v1690
      %2096 = vmatprep.subr.bf16.mxu0 %v1689
      %2097 = vmatpush1.bf16.msra.mxu0 %v1688
      %2098 = vmatprep.subr.bf16.mxu0 %v1719
      %2099 = vmatpush2.bf16.msra.mxu0 %v1718
      %2100 = vmatprep.subr.bf16.mxu0 %v1717
      %2101 = vmatpush2.bf16.msra.mxu0 %v1716
      %2102 = vmatprep.subr.bf16.mxu0 %v1715
      %2103 = vmatpush2.bf16.msra.mxu0 %v1714
      %2104 = vmatprep.subr.bf16.mxu0 %v1713
      %2105 = vmatpush2.bf16.msra.mxu0 %v1712
      %2106 = vmatprep.subr.bf16.mxu0 %v1711
      %2107 = vmatpush2.bf16.msra.mxu0 %v1710
      %2108 = vmatprep.subr.bf16.mxu0 %v1709
      %2109 = vmatpush2.bf16.msra.mxu0 %v1708
      %2110 = vmatprep.subr.bf16.mxu0 %v1707
      %2111 = vmatpush2.bf16.msra.mxu0 %v1706
      %2112 = vmatprep.subr.bf16.mxu0 %v1705
      %2113 = vmatpush2.bf16.msra.mxu0 %v1704
      %2114 = vmatprep.mubr.bf16.mxu0 %v1090
      %2115 = vmatmul.mubr.bf16.gmra.mxu0 %v1087
      %v2116 = vpop.f32.mrf.mxu0
      %v2117 = vadd.f32 %v1984, %v2116
      %v2118 = vpop.f32.mrf.mxu0
      %v2119 = vadd.f32 %v1986, %v2118
      %v2120 = vpop.f32.mrf.mxu0
      %v2121 = vadd.f32 %v1988, %v2120
      %v2122 = vpop.f32.mrf.mxu0
      %v2123 = vadd.f32 %v1990, %v2122
      %2124 = vmatprep.mubr.bf16.mxu0 %v1098
      %2125 = vmatmul.mubr.bf16.gmra.mxu0 %v1096
      %v2126 = vpop.f32.mrf.mxu0
      %v2127 = vadd.f32 %v1994, %v2126
      %v2128 = vpop.f32.mrf.mxu0
      %v2129 = vadd.f32 %v1996, %v2128
      %v2130 = vpop.f32.mrf.mxu0
      %v2131 = vadd.f32 %v1998, %v2130
      %v2132 = vpop.f32.mrf.mxu0
      %v2133 = vadd.f32 %v2000, %v2132
      %2134 = vmatprep.mubr.bf16.mxu0 %v1106
      %2135 = vmatmul.mubr.bf16.gmra.mxu0 %v1104
      %v2136 = vpop.f32.mrf.mxu0
      %v2137 = vadd.f32 %v2004, %v2136
      %v2138 = vpop.f32.mrf.mxu0
      %v2139 = vadd.f32 %v2006, %v2138
      %v2140 = vpop.f32.mrf.mxu0
      %v2141 = vadd.f32 %v2008, %v2140
      %v2142 = vpop.f32.mrf.mxu0
      %v2143 = vadd.f32 %v2010, %v2142
      %2144 = vmatprep.mubr.bf16.mxu0 %v1114
      %2145 = vmatmul.mubr.bf16.gmra.mxu0 %v1112
      %v2146 = vpop.f32.mrf.mxu0
      %v2147 = vadd.f32 %v2014, %v2146
      %v2148 = vpop.f32.mrf.mxu0
      %v2149 = vadd.f32 %v2016, %v2148
      %v2150 = vpop.f32.mrf.mxu0
      %v2151 = vadd.f32 %v2018, %v2150
      %v2152 = vpop.f32.mrf.mxu0
      %v2153 = vadd.f32 %v2020, %v2152
      %2154 = vmatprep.mubr.bf16.mxu0 %v1126
      %2155 = vmatmul.mubr.bf16.gmra.mxu0 %v1124
      %v2156 = vpop.f32.mrf.mxu0
      %v2157 = vadd.f32 %v2024, %v2156
      %v2158 = vpop.f32.mrf.mxu0
      %v2159 = vadd.f32 %v2026, %v2158
      %v2160 = vpop.f32.mrf.mxu0
      %v2161 = vadd.f32 %v2028, %v2160
      %v2162 = vpop.f32.mrf.mxu0
      %v2163 = vadd.f32 %v2030, %v2162
      %2164 = vmatprep.mubr.bf16.mxu0 %v1142
      %2165 = vmatmul.mubr.bf16.gmra.mxu0 %v1139
      %v2166 = vpop.f32.mrf.mxu0
      %v2167 = vadd.f32 %v2034, %v2166
      %v2168 = vpop.f32.mrf.mxu0
      %v2169 = vadd.f32 %v2036, %v2168
      %v2170 = vpop.f32.mrf.mxu0
      %v2171 = vadd.f32 %v2038, %v2170
      %v2172 = vpop.f32.mrf.mxu0
      %v2173 = vadd.f32 %v2040, %v2172
      %2174 = vmatprep.mubr.bf16.mxu0 %v1150
      %2175 = vmatmul.mubr.bf16.gmra.mxu0 %v1148
      %v2176 = vpop.f32.mrf.mxu0
      %v2177 = vadd.f32 %v2044, %v2176
      %v2178 = vpop.f32.mrf.mxu0
      %v2179 = vadd.f32 %v2046, %v2178
      %v2180 = vpop.f32.mrf.mxu0
      %v2181 = vadd.f32 %v2048, %v2180
      %v2182 = vpop.f32.mrf.mxu0
      %v2183 = vadd.f32 %v2050, %v2182
      %2184 = vmatprep.mubr.bf16.mxu0 %v1158
      %2185 = vmatmul.mubr.bf16.gmra.mxu0 %v1156
      %v2186 = vpop.f32.mrf.mxu0
      %v2187 = vadd.f32 %v2054, %v2186
      %v2188 = vpop.f32.mrf.mxu0
      %v2189 = vadd.f32 %v2056, %v2188
      %v2190 = vpop.f32.mrf.mxu0
      %v2191 = vadd.f32 %v2058, %v2190
      %v2192 = vpop.f32.mrf.mxu0
      %v2193 = vadd.f32 %v2060, %v2192
      %2194 = vmatprep.mubr.bf16.mxu0 %v1166
      %2195 = vmatmul.mubr.bf16.gmra.mxu0 %v1164
      %v2196 = vpop.f32.mrf.mxu0
      %v2197 = vadd.f32 %v2064, %v2196
      %v2198 = vpop.f32.mrf.mxu0
      %v2199 = vadd.f32 %v2066, %v2198
      %v2200 = vpop.f32.mrf.mxu0
      %v2201 = vadd.f32 %v2068, %v2200
      %v2202 = vpop.f32.mrf.mxu0
      %v2203 = vadd.f32 %v2070, %v2202
      %2204 = vmatprep.mubr.bf16.mxu0 %v1178
      %2205 = vmatmul.mubr.bf16.gmra.mxu0 %v1176
      %v2206 = vpop.f32.mrf.mxu0
      %v2207 = vadd.f32 %v2074, %v2206
      %v2208 = vpop.f32.mrf.mxu0
      %v2209 = vadd.f32 %v2076, %v2208
      %v2210 = vpop.f32.mrf.mxu0
      %v2211 = vadd.f32 %v2078, %v2210
      %v2212 = vpop.f32.mrf.mxu0
      %v2213 = vadd.f32 %v2080, %v2212
      %2214 = vdwg.mxu0
      %v2311 = vunpack.c.l.b16 %v675
      %v2312 = vunpack.c.h.b16 %v675
      %v2313 = vunpack.c.l.b16 %v676
      %v2314 = vunpack.c.h.b16 %v676
      %v2315 = vunpack.c.l.b16 %v677
      %v2316 = vunpack.c.h.b16 %v677
      %v2317 = vunpack.c.l.b16 %v678
      %v2318 = vunpack.c.h.b16 %v678
      %v2319 = vunpack.c.l.b16 %v679
      %v2320 = vunpack.c.h.b16 %v679
      %v2321 = vunpack.c.l.b16 %v680
      %v2322 = vunpack.c.h.b16 %v680
      %v2323 = vunpack.c.l.b16 %v681
      %v2324 = vunpack.c.h.b16 %v681
      %v2325 = vunpack.c.l.b16 %v682
      %v2326 = vunpack.c.h.b16 %v682
      %v2327 = vunpack.c.l.b16 %v683
      %v2328 = vunpack.c.h.b16 %v683
      %v2329 = vunpack.c.l.b16 %v684
      %v2330 = vunpack.c.h.b16 %v684
      %v2331 = vunpack.c.l.b16 %v685
      %v2332 = vunpack.c.h.b16 %v685
      %v2333 = vunpack.c.l.b16 %v686
      %v2334 = vunpack.c.h.b16 %v686
      %v2335 = vunpack.c.l.b16 %v687
      %v2336 = vunpack.c.h.b16 %v687
      %v2337 = vunpack.c.l.b16 %v688
      %v2338 = vunpack.c.h.b16 %v688
      %v2339 = vunpack.c.l.b16 %v689
      %v2340 = vunpack.c.h.b16 %v689
      %v2341 = vunpack.c.l.b16 %v690
      %v2342 = vunpack.c.h.b16 %v690
      %v2343 = vunpack.c.l.b16 %v691
      %v2344 = vunpack.c.h.b16 %v691
      %v2345 = vunpack.c.l.b16 %v692
      %v2346 = vunpack.c.h.b16 %v692
      %v2347 = vunpack.c.l.b16 %v693
      %v2348 = vunpack.c.h.b16 %v693
      %v2349 = vunpack.c.l.b16 %v694
      %v2350 = vunpack.c.h.b16 %v694
      %v2351 = vunpack.c.l.b16 %v695
      %v2352 = vunpack.c.h.b16 %v695
      %v2353 = vunpack.c.l.b16 %v696
      %v2354 = vunpack.c.h.b16 %v696
      %v2355 = vunpack.c.l.b16 %v697
      %v2356 = vunpack.c.h.b16 %v697
      %v2357 = vunpack.c.l.b16 %v698
      %v2358 = vunpack.c.h.b16 %v698
      %v2359 = vunpack.c.l.b16 %v699
      %v2360 = vunpack.c.h.b16 %v699
      %v2361 = vunpack.c.l.b16 %v700
      %v2362 = vunpack.c.h.b16 %v700
      %v2363 = vunpack.c.l.b16 %v701
      %v2364 = vunpack.c.h.b16 %v701
      %v2365 = vunpack.c.l.b16 %v702
      %v2366 = vunpack.c.h.b16 %v702
      %v2367 = vunpack.c.l.b16 %v703
      %v2368 = vunpack.c.h.b16 %v703
      %v2369 = vunpack.c.l.b16 %v704
      %v2370 = vunpack.c.h.b16 %v704
      %v2371 = vunpack.c.l.b16 %v705
      %v2372 = vunpack.c.h.b16 %v705
      %v2373 = vunpack.c.l.b16 %v706
      %v2374 = vunpack.c.h.b16 %v706
      %v2375 = vunpack.c.l.b16 %v707
      %v2376 = vunpack.c.h.b16 %v707
      %v2377 = vunpack.c.l.b16 %v708
      %v2378 = vunpack.c.h.b16 %v708
      %v2379 = vunpack.c.l.b16 %v709
      %v2380 = vunpack.c.h.b16 %v709
      %v2381 = vunpack.c.l.b16 %v710
      %v2382 = vunpack.c.h.b16 %v710
      %v2383 = vunpack.c.l.b16 %v711
      %v2384 = vunpack.c.h.b16 %v711
      %v2385 = vunpack.c.l.b16 %v712
      %v2386 = vunpack.c.h.b16 %v712
      %v2387 = vunpack.c.l.b16 %v713
      %v2388 = vunpack.c.h.b16 %v713
      %v2389 = vunpack.c.l.b16 %v714
      %v2390 = vunpack.c.h.b16 %v714
      %v2391 = vunpack.c.l.b16 %v715
      %v2392 = vunpack.c.h.b16 %v715
      %v2393 = vunpack.c.l.b16 %v716
      %v2394 = vunpack.c.h.b16 %v716
      %v2395 = vunpack.c.l.b16 %v717
      %v2396 = vunpack.c.h.b16 %v717
      %v2397 = vunpack.c.l.b16 %v718
      %v2398 = vunpack.c.h.b16 %v718
      %v2399 = vunpack.c.l.b16 %v719
      %v2400 = vunpack.c.h.b16 %v719
      %v2401 = vunpack.c.l.b16 %v720
      %v2402 = vunpack.c.h.b16 %v720
      %v2403 = vunpack.c.l.b16 %v721
      %v2404 = vunpack.c.h.b16 %v721
      %v2405 = vunpack.c.l.b16 %v722
      %v2406 = vunpack.c.h.b16 %v722
      %v2407 = vunpack.c.l.b16 %v723
      %v2408 = vunpack.c.h.b16 %v723
      %v2409 = vunpack.c.l.b16 %v724
      %v2410 = vunpack.c.h.b16 %v724
      %v2411 = vunpack.c.l.b16 %v725
      %v2412 = vunpack.c.h.b16 %v725
      %v2413 = vunpack.c.l.b16 %v726
      %v2414 = vunpack.c.h.b16 %v726
      %v2415 = vunpack.c.l.b16 %v727
      %v2416 = vunpack.c.h.b16 %v727
      %v2417 = vunpack.c.l.b16 %v728
      %v2418 = vunpack.c.h.b16 %v728
      %v2419 = vunpack.c.l.b16 %v729
      %v2420 = vunpack.c.h.b16 %v729
      %v2421 = vunpack.c.l.b16 %v730
      %v2422 = vunpack.c.h.b16 %v730
      %v2423 = vunpack.c.l.b16 %v731
      %v2424 = vunpack.c.h.b16 %v731
      %v2425 = vunpack.c.l.b16 %v732
      %v2426 = vunpack.c.h.b16 %v732
      %v2427 = vunpack.c.l.b16 %v733
      %v2428 = vunpack.c.h.b16 %v733
      %v2429 = vunpack.c.l.b16 %v734
      %v2430 = vunpack.c.h.b16 %v734
      %v2431 = vunpack.c.l.b16 %v735
      %v2432 = vunpack.c.h.b16 %v735
      %v2433 = vunpack.c.l.b16 %v736
      %v2434 = vunpack.c.h.b16 %v736
      %v2435 = vunpack.c.l.b16 %v737
      %v2436 = vunpack.c.h.b16 %v737
      %v2437 = vunpack.c.l.b16 %v738
      %v2438 = vunpack.c.h.b16 %v738
      %v2439 = vunpack.c.l.b16 %v739
      %v2440 = vunpack.c.h.b16 %v739
      %v2441 = vunpack.c.l.b16 %v740
      %v2442 = vunpack.c.h.b16 %v740
      %v2443 = vunpack.c.l.b16 %v741
      %v2444 = vunpack.c.h.b16 %v741
      %v2445 = vunpack.c.l.b16 %v742
      %v2446 = vunpack.c.h.b16 %v742
      %v2447 = vunpack.c.l.b16 %v743
      %v2448 = vunpack.c.h.b16 %v743
      %v2449 = vunpack.c.l.b16 %v744
      %v2450 = vunpack.c.h.b16 %v744
      %v2451 = vunpack.c.l.b16 %v745
      %v2452 = vunpack.c.h.b16 %v745
      %v2453 = vunpack.c.l.b16 %v746
      %v2454 = vunpack.c.h.b16 %v746
      %v2455 = vunpack.c.l.b16 %v747
      %v2456 = vunpack.c.h.b16 %v747
      %v2457 = vunpack.c.l.b16 %v748
      %v2458 = vunpack.c.h.b16 %v748
      %v2459 = vunpack.c.l.b16 %v749
      %v2460 = vunpack.c.h.b16 %v749
      %v2461 = vunpack.c.l.b16 %v750
      %v2462 = vunpack.c.h.b16 %v750
      %v2463 = vunpack.c.l.b16 %v751
      %v2464 = vunpack.c.h.b16 %v751
      %v2465 = vunpack.c.l.b16 %v752
      %v2466 = vunpack.c.h.b16 %v752
      %v2467 = vunpack.c.l.b16 %v753
      %v2468 = vunpack.c.h.b16 %v753
      %v2469 = vunpack.c.l.b16 %v754
      %v2470 = vunpack.c.h.b16 %v754
      %v2471 = vunpack.c.l.b16 %v755
      %v2472 = vunpack.c.h.b16 %v755
      %v2473 = vunpack.c.l.b16 %v756
      %v2474 = vunpack.c.h.b16 %v756
      %v2475 = vunpack.c.l.b16 %v757
      %v2476 = vunpack.c.h.b16 %v757
      %v2477 = vunpack.c.l.b16 %v758
      %v2478 = vunpack.c.h.b16 %v758
      %v2479 = vunpack.c.l.b16 %v759
      %v2480 = vunpack.c.h.b16 %v759
      %v2481 = vunpack.c.l.b16 %v760
      %v2482 = vunpack.c.h.b16 %v760
      %v2483 = vunpack.c.l.b16 %v761
      %v2484 = vunpack.c.h.b16 %v761
      %v2485 = vunpack.c.l.b16 %v762
      %v2486 = vunpack.c.h.b16 %v762
      %v2487 = vunpack.c.l.b16 %v763
      %v2488 = vunpack.c.h.b16 %v763
      %v2489 = vunpack.c.l.b16 %v764
      %v2490 = vunpack.c.h.b16 %v764
      %v2491 = vunpack.c.l.b16 %v765
      %v2492 = vunpack.c.h.b16 %v765
      %v2493 = vunpack.c.l.b16 %v766
      %v2494 = vunpack.c.h.b16 %v766
      %v2495 = vunpack.c.l.b16 %v767
      %v2496 = vunpack.c.h.b16 %v767
      %v2497 = vunpack.c.l.b16 %v768
      %v2498 = vunpack.c.h.b16 %v768
      %v2499 = vunpack.c.l.b16 %v769
      %v2500 = vunpack.c.h.b16 %v769
      %v2501 = vunpack.c.l.b16 %v770
      %v2502 = vunpack.c.h.b16 %v770
      %v2503 = vpack.c.b16 %v2313, %v2311
      %v2504 = vpack.c.b16 %v2314, %v2312
      %v2505 = vpack.c.b16 %v2317, %v2315
      %v2506 = vpack.c.b16 %v2318, %v2316
      %v2507 = vpack.c.b16 %v2321, %v2319
      %v2508 = vpack.c.b16 %v2322, %v2320
      %v2509 = vpack.c.b16 %v2325, %v2323
      %v2510 = vpack.c.b16 %v2326, %v2324
      %v2511 = vpack.c.b16 %v2329, %v2327
      %v2512 = vpack.c.b16 %v2330, %v2328
      %v2513 = vpack.c.b16 %v2333, %v2331
      %v2514 = vpack.c.b16 %v2334, %v2332
      %v2515 = vpack.c.b16 %v2337, %v2335
      %v2516 = vpack.c.b16 %v2338, %v2336
      %v2517 = vpack.c.b16 %v2341, %v2339
      %v2518 = vpack.c.b16 %v2342, %v2340
      %v2519 = vpack.c.b16 %v2345, %v2343
      %v2520 = vpack.c.b16 %v2346, %v2344
      %v2521 = vpack.c.b16 %v2349, %v2347
      %v2522 = vpack.c.b16 %v2350, %v2348
      %v2523 = vpack.c.b16 %v2353, %v2351
      %v2524 = vpack.c.b16 %v2354, %v2352
      %v2525 = vpack.c.b16 %v2357, %v2355
      %v2526 = vpack.c.b16 %v2358, %v2356
      %v2527 = vpack.c.b16 %v2361, %v2359
      %v2528 = vpack.c.b16 %v2362, %v2360
      %v2529 = vpack.c.b16 %v2365, %v2363
      %v2530 = vpack.c.b16 %v2366, %v2364
      %v2531 = vpack.c.b16 %v2369, %v2367
      %v2532 = vpack.c.b16 %v2370, %v2368
      %v2533 = vpack.c.b16 %v2373, %v2371
      %v2534 = vpack.c.b16 %v2374, %v2372
      %v2535 = vpack.c.b16 %v2377, %v2375
      %v2536 = vpack.c.b16 %v2378, %v2376
      %v2537 = vpack.c.b16 %v2381, %v2379
      %v2538 = vpack.c.b16 %v2382, %v2380
      %v2539 = vpack.c.b16 %v2385, %v2383
      %v2540 = vpack.c.b16 %v2386, %v2384
      %v2541 = vpack.c.b16 %v2389, %v2387
      %v2542 = vpack.c.b16 %v2390, %v2388
      %v2543 = vpack.c.b16 %v2393, %v2391
      %v2544 = vpack.c.b16 %v2394, %v2392
      %v2545 = vpack.c.b16 %v2397, %v2395
      %v2546 = vpack.c.b16 %v2398, %v2396
      %v2547 = vpack.c.b16 %v2401, %v2399
      %v2548 = vpack.c.b16 %v2402, %v2400
      %v2549 = vpack.c.b16 %v2405, %v2403
      %v2550 = vpack.c.b16 %v2406, %v2404
      %v2551 = vpack.c.b16 %v2409, %v2407
      %v2552 = vpack.c.b16 %v2410, %v2408
      %v2553 = vpack.c.b16 %v2413, %v2411
      %v2554 = vpack.c.b16 %v2414, %v2412
      %v2555 = vpack.c.b16 %v2417, %v2415
      %v2556 = vpack.c.b16 %v2418, %v2416
      %v2557 = vpack.c.b16 %v2421, %v2419
      %v2558 = vpack.c.b16 %v2422, %v2420
      %v2559 = vpack.c.b16 %v2425, %v2423
      %v2560 = vpack.c.b16 %v2426, %v2424
      %v2561 = vpack.c.b16 %v2429, %v2427
      %v2562 = vpack.c.b16 %v2430, %v2428
      %v2563 = vpack.c.b16 %v2433, %v2431
      %v2564 = vpack.c.b16 %v2434, %v2432
      %v2565 = vpack.c.b16 %v2437, %v2435
      %v2566 = vpack.c.b16 %v2438, %v2436
      %v2567 = vpack.c.b16 %v2441, %v2439
      %v2568 = vpack.c.b16 %v2442, %v2440
      %v2569 = vpack.c.b16 %v2445, %v2443
      %v2570 = vpack.c.b16 %v2446, %v2444
      %v2571 = vpack.c.b16 %v2449, %v2447
      %v2572 = vpack.c.b16 %v2450, %v2448
      %v2573 = vpack.c.b16 %v2453, %v2451
      %v2574 = vpack.c.b16 %v2454, %v2452
      %v2575 = vpack.c.b16 %v2457, %v2455
      %v2576 = vpack.c.b16 %v2458, %v2456
      %v2577 = vpack.c.b16 %v2461, %v2459
      %v2578 = vpack.c.b16 %v2462, %v2460
      %v2579 = vpack.c.b16 %v2465, %v2463
      %v2580 = vpack.c.b16 %v2466, %v2464
      %v2581 = vpack.c.b16 %v2469, %v2467
      %v2582 = vpack.c.b16 %v2470, %v2468
      %v2583 = vpack.c.b16 %v2473, %v2471
      %v2584 = vpack.c.b16 %v2474, %v2472
      %v2585 = vpack.c.b16 %v2477, %v2475
      %v2586 = vpack.c.b16 %v2478, %v2476
      %v2587 = vpack.c.b16 %v2481, %v2479
      %v2588 = vpack.c.b16 %v2482, %v2480
      %v2589 = vpack.c.b16 %v2485, %v2483
      %v2590 = vpack.c.b16 %v2486, %v2484
      %v2591 = vpack.c.b16 %v2489, %v2487
      %v2592 = vpack.c.b16 %v2490, %v2488
      %v2593 = vpack.c.b16 %v2493, %v2491
      %v2594 = vpack.c.b16 %v2494, %v2492
      %v2595 = vpack.c.b16 %v2497, %v2495
      %v2596 = vpack.c.b16 %v2498, %v2496
      %v2597 = vpack.c.b16 %v2501, %v2499
      %v2598 = vpack.c.b16 %v2502, %v2500
      %2695 = vmatprep.subr.bf16.mxu0 %v2518
      %2696 = vmatpush1.bf16.msra.mxu0 %v2517
      %2697 = vmatprep.subr.bf16.mxu0 %v2516
      %2698 = vmatpush1.bf16.msra.mxu0 %v2515
      %2699 = vmatprep.subr.bf16.mxu0 %v2514
      %2700 = vmatpush1.bf16.msra.mxu0 %v2513
      %2701 = vmatprep.subr.bf16.mxu0 %v2512
      %2702 = vmatpush1.bf16.msra.mxu0 %v2511
      %2703 = vmatprep.subr.bf16.mxu0 %v2510
      %2704 = vmatpush1.bf16.msra.mxu0 %v2509
      %2705 = vmatprep.subr.bf16.mxu0 %v2508
      %2706 = vmatpush1.bf16.msra.mxu0 %v2507
      %2707 = vmatprep.subr.bf16.mxu0 %v2506
      %2708 = vmatpush1.bf16.msra.mxu0 %v2505
      %2709 = vmatprep.subr.bf16.mxu0 %v2504
      %2710 = vmatpush1.bf16.msra.mxu0 %v2503
      %2711 = vmatprep.subr.bf16.mxu0 %v2534
      %2712 = vmatpush2.bf16.msra.mxu0 %v2533
      %2713 = vmatprep.subr.bf16.mxu0 %v2532
      %2714 = vmatpush2.bf16.msra.mxu0 %v2531
      %2715 = vmatprep.subr.bf16.mxu0 %v2530
      %2716 = vmatpush2.bf16.msra.mxu0 %v2529
      %2717 = vmatprep.subr.bf16.mxu0 %v2528
      %2718 = vmatpush2.bf16.msra.mxu0 %v2527
      %2719 = vmatprep.subr.bf16.mxu0 %v2526
      %2720 = vmatpush2.bf16.msra.mxu0 %v2525
      %2721 = vmatprep.subr.bf16.mxu0 %v2524
      %2722 = vmatpush2.bf16.msra.mxu0 %v2523
      %2723 = vmatprep.subr.bf16.mxu0 %v2522
      %2724 = vmatpush2.bf16.msra.mxu0 %v2521
      %2725 = vmatprep.subr.bf16.mxu0 %v2520
      %2726 = vmatpush2.bf16.msra.mxu0 %v2519
      %2727 = vmatprep.mubr.bf16.mxu0 %v354
      %2728 = vmatmul.mubr.bf16.gmra.mxu0 %v353
      %v2729 = vpop.f32.mrf.mxu0
      %v2730 = vadd.f32 %v2117, %v2729
      %v2731 = vpop.f32.mrf.mxu0
      %v2732 = vadd.f32 %v2119, %v2731
      %v2733 = vpop.f32.mrf.mxu0
      %v2734 = vadd.f32 %v2121, %v2733
      %v2735 = vpop.f32.mrf.mxu0
      %v2736 = vadd.f32 %v2123, %v2735
      %2737 = vmatprep.mubr.bf16.mxu0 %v356
      %2738 = vmatmul.mubr.bf16.gmra.mxu0 %v355
      %v2739 = vpop.f32.mrf.mxu0
      %v2740 = vadd.f32 %v2127, %v2739
      %v2741 = vpop.f32.mrf.mxu0
      %v2742 = vadd.f32 %v2129, %v2741
      %v2743 = vpop.f32.mrf.mxu0
      %v2744 = vadd.f32 %v2131, %v2743
      %v2745 = vpop.f32.mrf.mxu0
      %v2746 = vadd.f32 %v2133, %v2745
      %2747 = vmatprep.mubr.bf16.mxu0 %v358
      %2748 = vmatmul.mubr.bf16.gmra.mxu0 %v357
      %v2749 = vpop.f32.mrf.mxu0
      %v2750 = vadd.f32 %v2137, %v2749
      %v2751 = vpop.f32.mrf.mxu0
      %v2752 = vadd.f32 %v2139, %v2751
      %v2753 = vpop.f32.mrf.mxu0
      %v2754 = vadd.f32 %v2141, %v2753
      %v2755 = vpop.f32.mrf.mxu0
      %v2756 = vadd.f32 %v2143, %v2755
      %2757 = vmatprep.mubr.bf16.mxu0 %v360
      %2758 = vmatmul.mubr.bf16.gmra.mxu0 %v359
      %v2759 = vpop.f32.mrf.mxu0
      %v2760 = vadd.f32 %v2147, %v2759
      %v2761 = vpop.f32.mrf.mxu0
      %v2762 = vadd.f32 %v2149, %v2761
      %v2763 = vpop.f32.mrf.mxu0
      %v2764 = vadd.f32 %v2151, %v2763
      %v2765 = vpop.f32.mrf.mxu0
      %v2766 = vadd.f32 %v2153, %v2765
      %2767 = vmatprep.mubr.bf16.mxu0 %v362
      %2768 = vmatmul.mubr.bf16.gmra.mxu0 %v361
      %v2769 = vpop.f32.mrf.mxu0
      %v2770 = vadd.f32 %v2157, %v2769
      %v2771 = vpop.f32.mrf.mxu0
      %v2772 = vadd.f32 %v2159, %v2771
      %v2773 = vpop.f32.mrf.mxu0
      %v2774 = vadd.f32 %v2161, %v2773
      %v2775 = vpop.f32.mrf.mxu0
      %v2776 = vadd.f32 %v2163, %v2775
      %2777 = vmatprep.mubr.bf16.mxu0 %v364
      %2778 = vmatmul.mubr.bf16.gmra.mxu0 %v363
      %v2779 = vpop.f32.mrf.mxu0
      %v2780 = vadd.f32 %v2167, %v2779
      %v2781 = vpop.f32.mrf.mxu0
      %v2782 = vadd.f32 %v2169, %v2781
      %v2783 = vpop.f32.mrf.mxu0
      %v2784 = vadd.f32 %v2171, %v2783
      %v2785 = vpop.f32.mrf.mxu0
      %v2786 = vadd.f32 %v2173, %v2785
      %2787 = vmatprep.mubr.bf16.mxu0 %v366
      %2788 = vmatmul.mubr.bf16.gmra.mxu0 %v365
      %v2789 = vpop.f32.mrf.mxu0
      %v2790 = vadd.f32 %v2177, %v2789
      %v2791 = vpop.f32.mrf.mxu0
      %v2792 = vadd.f32 %v2179, %v2791
      %v2793 = vpop.f32.mrf.mxu0
      %v2794 = vadd.f32 %v2181, %v2793
      %v2795 = vpop.f32.mrf.mxu0
      %v2796 = vadd.f32 %v2183, %v2795
      %2797 = vmatprep.mubr.bf16.mxu0 %v368
      %2798 = vmatmul.mubr.bf16.gmra.mxu0 %v367
      %v2799 = vpop.f32.mrf.mxu0
      %v2800 = vadd.f32 %v2187, %v2799
      %v2801 = vpop.f32.mrf.mxu0
      %v2802 = vadd.f32 %v2189, %v2801
      %v2803 = vpop.f32.mrf.mxu0
      %v2804 = vadd.f32 %v2191, %v2803
      %v2805 = vpop.f32.mrf.mxu0
      %v2806 = vadd.f32 %v2193, %v2805
      %2807 = vmatprep.mubr.bf16.mxu0 %v370
      %2808 = vmatmul.mubr.bf16.gmra.mxu0 %v369
      %v2809 = vpop.f32.mrf.mxu0
      %v2810 = vadd.f32 %v2197, %v2809
      %v2811 = vpop.f32.mrf.mxu0
      %v2812 = vadd.f32 %v2199, %v2811
      %v2813 = vpop.f32.mrf.mxu0
      %v2814 = vadd.f32 %v2201, %v2813
      %v2815 = vpop.f32.mrf.mxu0
      %v2816 = vadd.f32 %v2203, %v2815
      %2817 = vmatprep.mubr.bf16.mxu0 %v372
      %2818 = vmatmul.mubr.bf16.gmra.mxu0 %v371
      %v2819 = vpop.f32.mrf.mxu0
      %v2820 = vadd.f32 %v2207, %v2819
      %v2821 = vpop.f32.mrf.mxu0
      %v2822 = vadd.f32 %v2209, %v2821
      %v2823 = vpop.f32.mrf.mxu0
      %v2824 = vadd.f32 %v2211, %v2823
      %v2825 = vpop.f32.mrf.mxu0
      %v2826 = vadd.f32 %v2213, %v2825
      %2827 = vdwg.mxu0
      %2828 = vmatprep.subr.bf16.mxu0 %v2550
      %2829 = vmatpush1.bf16.msra.mxu0 %v2549
      %2830 = vmatprep.subr.bf16.mxu0 %v2548
      %2831 = vmatpush1.bf16.msra.mxu0 %v2547
      %2832 = vmatprep.subr.bf16.mxu0 %v2546
      %2833 = vmatpush1.bf16.msra.mxu0 %v2545
      %2834 = vmatprep.subr.bf16.mxu0 %v2544
      %2835 = vmatpush1.bf16.msra.mxu0 %v2543
      %2836 = vmatprep.subr.bf16.mxu0 %v2542
      %2837 = vmatpush1.bf16.msra.mxu0 %v2541
      %2838 = vmatprep.subr.bf16.mxu0 %v2540
      %2839 = vmatpush1.bf16.msra.mxu0 %v2539
      %2840 = vmatprep.subr.bf16.mxu0 %v2538
      %2841 = vmatpush1.bf16.msra.mxu0 %v2537
      %2842 = vmatprep.subr.bf16.mxu0 %v2536
      %2843 = vmatpush1.bf16.msra.mxu0 %v2535
      %2844 = vmatprep.subr.bf16.mxu0 %v2566
      %2845 = vmatpush2.bf16.msra.mxu0 %v2565
      %2846 = vmatprep.subr.bf16.mxu0 %v2564
      %2847 = vmatpush2.bf16.msra.mxu0 %v2563
      %2848 = vmatprep.subr.bf16.mxu0 %v2562
      %2849 = vmatpush2.bf16.msra.mxu0 %v2561
      %2850 = vmatprep.subr.bf16.mxu0 %v2560
      %2851 = vmatpush2.bf16.msra.mxu0 %v2559
      %2852 = vmatprep.subr.bf16.mxu0 %v2558
      %2853 = vmatpush2.bf16.msra.mxu0 %v2557
      %2854 = vmatprep.subr.bf16.mxu0 %v2556
      %2855 = vmatpush2.bf16.msra.mxu0 %v2555
      %2856 = vmatprep.subr.bf16.mxu0 %v2554
      %2857 = vmatpush2.bf16.msra.mxu0 %v2553
      %2858 = vmatprep.subr.bf16.mxu0 %v2552
      %2859 = vmatpush2.bf16.msra.mxu0 %v2551
      %2860 = vmatprep.mubr.bf16.mxu0 %v427
      %2861 = vmatmul.mubr.bf16.gmra.mxu0 %v415
      %v2862 = vpop.f32.mrf.mxu0
      %v2863 = vadd.f32 %v2730, %v2862
      %v2864 = vpop.f32.mrf.mxu0
      %v2865 = vadd.f32 %v2732, %v2864
      %v2866 = vpop.f32.mrf.mxu0
      %v2867 = vadd.f32 %v2734, %v2866
      %v2868 = vpop.f32.mrf.mxu0
      %v2869 = vadd.f32 %v2736, %v2868
      %2870 = vmatprep.mubr.bf16.mxu0 %v443
      %2871 = vmatmul.mubr.bf16.gmra.mxu0 %v435
      %v2872 = vpop.f32.mrf.mxu0
      %v2873 = vadd.f32 %v2740, %v2872
      %v2874 = vpop.f32.mrf.mxu0
      %v2875 = vadd.f32 %v2742, %v2874
      %v2876 = vpop.f32.mrf.mxu0
      %v2877 = vadd.f32 %v2744, %v2876
      %v2878 = vpop.f32.mrf.mxu0
      %v2879 = vadd.f32 %v2746, %v2878
      %2880 = vmatprep.mubr.bf16.mxu0 %v459
      %2881 = vmatmul.mubr.bf16.gmra.mxu0 %v451
      %v2882 = vpop.f32.mrf.mxu0
      %v2883 = vadd.f32 %v2750, %v2882
      %v2884 = vpop.f32.mrf.mxu0
      %v2885 = vadd.f32 %v2752, %v2884
      %v2886 = vpop.f32.mrf.mxu0
      %v2887 = vadd.f32 %v2754, %v2886
      %v2888 = vpop.f32.mrf.mxu0
      %v2889 = vadd.f32 %v2756, %v2888
      %2890 = vmatprep.mubr.bf16.mxu0 %v475
      %2891 = vmatmul.mubr.bf16.gmra.mxu0 %v467
      %v2892 = vpop.f32.mrf.mxu0
      %v2893 = vadd.f32 %v2760, %v2892
      %v2894 = vpop.f32.mrf.mxu0
      %v2895 = vadd.f32 %v2762, %v2894
      %v2896 = vpop.f32.mrf.mxu0
      %v2897 = vadd.f32 %v2764, %v2896
      %v2898 = vpop.f32.mrf.mxu0
      %v2899 = vadd.f32 %v2766, %v2898
      %2900 = vmatprep.mubr.bf16.mxu0 %v491
      %2901 = vmatmul.mubr.bf16.gmra.mxu0 %v483
      %v2902 = vpop.f32.mrf.mxu0
      %v2903 = vadd.f32 %v2770, %v2902
      %v2904 = vpop.f32.mrf.mxu0
      %v2905 = vadd.f32 %v2772, %v2904
      %v2906 = vpop.f32.mrf.mxu0
      %v2907 = vadd.f32 %v2774, %v2906
      %v2908 = vpop.f32.mrf.mxu0
      %v2909 = vadd.f32 %v2776, %v2908
      %2910 = vmatprep.mubr.bf16.mxu0 %v515
      %2911 = vmatmul.mubr.bf16.gmra.mxu0 %v503
      %v2912 = vpop.f32.mrf.mxu0
      %v2913 = vadd.f32 %v2780, %v2912
      %v2914 = vpop.f32.mrf.mxu0
      %v2915 = vadd.f32 %v2782, %v2914
      %v2916 = vpop.f32.mrf.mxu0
      %v2917 = vadd.f32 %v2784, %v2916
      %v2918 = vpop.f32.mrf.mxu0
      %v2919 = vadd.f32 %v2786, %v2918
      %2920 = vmatprep.mubr.bf16.mxu0 %v531
      %2921 = vmatmul.mubr.bf16.gmra.mxu0 %v523
      %v2922 = vpop.f32.mrf.mxu0
      %v2923 = vadd.f32 %v2790, %v2922
      %v2924 = vpop.f32.mrf.mxu0
      %v2925 = vadd.f32 %v2792, %v2924
      %v2926 = vpop.f32.mrf.mxu0
      %v2927 = vadd.f32 %v2794, %v2926
      %v2928 = vpop.f32.mrf.mxu0
      %v2929 = vadd.f32 %v2796, %v2928
      %2930 = vmatprep.mubr.bf16.mxu0 %v547
      %2931 = vmatmul.mubr.bf16.gmra.mxu0 %v539
      %v2932 = vpop.f32.mrf.mxu0
      %v2933 = vadd.f32 %v2800, %v2932
      %v2934 = vpop.f32.mrf.mxu0
      %v2935 = vadd.f32 %v2802, %v2934
      %v2936 = vpop.f32.mrf.mxu0
      %v2937 = vadd.f32 %v2804, %v2936
      %v2938 = vpop.f32.mrf.mxu0
      %v2939 = vadd.f32 %v2806, %v2938
      %2940 = vmatprep.mubr.bf16.mxu0 %v563
      %2941 = vmatmul.mubr.bf16.gmra.mxu0 %v555
      %v2942 = vpop.f32.mrf.mxu0
      %v2943 = vadd.f32 %v2810, %v2942
      %v2944 = vpop.f32.mrf.mxu0
      %v2945 = vadd.f32 %v2812, %v2944
      %v2946 = vpop.f32.mrf.mxu0
      %v2947 = vadd.f32 %v2814, %v2946
      %v2948 = vpop.f32.mrf.mxu0
      %v2949 = vadd.f32 %v2816, %v2948
      %2950 = vmatprep.mubr.bf16.mxu0 %v579
      %2951 = vmatmul.mubr.bf16.gmra.mxu0 %v571
      %v2952 = vpop.f32.mrf.mxu0
      %v2953 = vadd.f32 %v2820, %v2952
      %v2954 = vpop.f32.mrf.mxu0
      %v2955 = vadd.f32 %v2822, %v2954
      %v2956 = vpop.f32.mrf.mxu0
      %v2957 = vadd.f32 %v2824, %v2956
      %v2958 = vpop.f32.mrf.mxu0
      %v2959 = vadd.f32 %v2826, %v2958
      %2960 = vdwg.mxu0
      %2961 = vmatprep.subr.bf16.mxu0 %v2582
      %2962 = vmatpush1.bf16.msra.mxu0 %v2581
      %2963 = vmatprep.subr.bf16.mxu0 %v2580
      %2964 = vmatpush1.bf16.msra.mxu0 %v2579
      %2965 = vmatprep.subr.bf16.mxu0 %v2578
      %2966 = vmatpush1.bf16.msra.mxu0 %v2577
      %2967 = vmatprep.subr.bf16.mxu0 %v2576
      %2968 = vmatpush1.bf16.msra.mxu0 %v2575
      %2969 = vmatprep.subr.bf16.mxu0 %v2574
      %2970 = vmatpush1.bf16.msra.mxu0 %v2573
      %2971 = vmatprep.subr.bf16.mxu0 %v2572
      %2972 = vmatpush1.bf16.msra.mxu0 %v2571
      %2973 = vmatprep.subr.bf16.mxu0 %v2570
      %2974 = vmatpush1.bf16.msra.mxu0 %v2569
      %2975 = vmatprep.subr.bf16.mxu0 %v2568
      %2976 = vmatpush1.bf16.msra.mxu0 %v2567
      %2977 = vmatprep.subr.bf16.mxu0 %v2598
      %2978 = vmatpush2.bf16.msra.mxu0 %v2597
      %2979 = vmatprep.subr.bf16.mxu0 %v2596
      %2980 = vmatpush2.bf16.msra.mxu0 %v2595
      %2981 = vmatprep.subr.bf16.mxu0 %v2594
      %2982 = vmatpush2.bf16.msra.mxu0 %v2593
      %2983 = vmatprep.subr.bf16.mxu0 %v2592
      %2984 = vmatpush2.bf16.msra.mxu0 %v2591
      %2985 = vmatprep.subr.bf16.mxu0 %v2590
      %2986 = vmatpush2.bf16.msra.mxu0 %v2589
      %2987 = vmatprep.subr.bf16.mxu0 %v2588
      %2988 = vmatpush2.bf16.msra.mxu0 %v2587
      %2989 = vmatprep.subr.bf16.mxu0 %v2586
      %2990 = vmatpush2.bf16.msra.mxu0 %v2585
      %2991 = vmatprep.subr.bf16.mxu0 %v2584
      %2992 = vmatpush2.bf16.msra.mxu0 %v2583
      %2993 = vmatprep.mubr.bf16.mxu0 %v616
      %2994 = vmatmul.mubr.bf16.gmra.mxu0 %v613
      %v2995 = vpop.f32.mrf.mxu0
      %v2996 = vadd.f32 %v2863, %v2995
      %v2997 = vpop.f32.mrf.mxu0
      %v2998 = vadd.f32 %v2865, %v2997
      %v2999 = vpop.f32.mrf.mxu0
      %v3000 = vadd.f32 %v2867, %v2999
      %v3001 = vpop.f32.mrf.mxu0
      %v3002 = vadd.f32 %v2869, %v3001
      %3003 = vmatprep.mubr.bf16.mxu0 %v620
      %3004 = vmatmul.mubr.bf16.gmra.mxu0 %v618
      %v3005 = vpop.f32.mrf.mxu0
      %v3006 = vadd.f32 %v2873, %v3005
      %v3007 = vpop.f32.mrf.mxu0
      %v3008 = vadd.f32 %v2875, %v3007
      %v3009 = vpop.f32.mrf.mxu0
      %v3010 = vadd.f32 %v2877, %v3009
      %v3011 = vpop.f32.mrf.mxu0
      %v3012 = vadd.f32 %v2879, %v3011
      %3013 = vmatprep.mubr.bf16.mxu0 %v624
      %3014 = vmatmul.mubr.bf16.gmra.mxu0 %v622
      %v3015 = vpop.f32.mrf.mxu0
      %v3016 = vadd.f32 %v2883, %v3015
      %v3017 = vpop.f32.mrf.mxu0
      %v3018 = vadd.f32 %v2885, %v3017
      %v3019 = vpop.f32.mrf.mxu0
      %v3020 = vadd.f32 %v2887, %v3019
      %v3021 = vpop.f32.mrf.mxu0
      %v3022 = vadd.f32 %v2889, %v3021
      %3023 = vmatprep.mubr.bf16.mxu0 %v628
      %3024 = vmatmul.mubr.bf16.gmra.mxu0 %v626
      %v3025 = vpop.f32.mrf.mxu0
      %v3026 = vadd.f32 %v2893, %v3025
      %v3027 = vpop.f32.mrf.mxu0
      %v3028 = vadd.f32 %v2895, %v3027
      %v3029 = vpop.f32.mrf.mxu0
      %v3030 = vadd.f32 %v2897, %v3029
      %v3031 = vpop.f32.mrf.mxu0
      %v3032 = vadd.f32 %v2899, %v3031
      %3033 = vmatprep.mubr.bf16.mxu0 %v632
      %3034 = vmatmul.mubr.bf16.gmra.mxu0 %v630
      %v3035 = vpop.f32.mrf.mxu0
      %v3036 = vadd.f32 %v2903, %v3035
      %v3037 = vpop.f32.mrf.mxu0
      %v3038 = vadd.f32 %v2905, %v3037
      %v3039 = vpop.f32.mrf.mxu0
      %v3040 = vadd.f32 %v2907, %v3039
      %v3041 = vpop.f32.mrf.mxu0
      %v3042 = vadd.f32 %v2909, %v3041
      %3043 = vmatprep.mubr.bf16.mxu0 %v638
      %3044 = vmatmul.mubr.bf16.gmra.mxu0 %v635
      %v3045 = vpop.f32.mrf.mxu0
      %v3046 = vadd.f32 %v2913, %v3045
      %v3047 = vpop.f32.mrf.mxu0
      %v3048 = vadd.f32 %v2915, %v3047
      %v3049 = vpop.f32.mrf.mxu0
      %v3050 = vadd.f32 %v2917, %v3049
      %v3051 = vpop.f32.mrf.mxu0
      %v3052 = vadd.f32 %v2919, %v3051
      %3053 = vmatprep.mubr.bf16.mxu0 %v642
      %3054 = vmatmul.mubr.bf16.gmra.mxu0 %v640
      %v3055 = vpop.f32.mrf.mxu0
      %v3056 = vadd.f32 %v2923, %v3055
      %v3057 = vpop.f32.mrf.mxu0
      %v3058 = vadd.f32 %v2925, %v3057
      %v3059 = vpop.f32.mrf.mxu0
      %v3060 = vadd.f32 %v2927, %v3059
      %v3061 = vpop.f32.mrf.mxu0
      %v3062 = vadd.f32 %v2929, %v3061
      %3063 = vmatprep.mubr.bf16.mxu0 %v646
      %3064 = vmatmul.mubr.bf16.gmra.mxu0 %v644
      %v3065 = vpop.f32.mrf.mxu0
      %v3066 = vadd.f32 %v2933, %v3065
      %v3067 = vpop.f32.mrf.mxu0
      %v3068 = vadd.f32 %v2935, %v3067
      %v3069 = vpop.f32.mrf.mxu0
      %v3070 = vadd.f32 %v2937, %v3069
      %v3071 = vpop.f32.mrf.mxu0
      %v3072 = vadd.f32 %v2939, %v3071
      %3073 = vmatprep.mubr.bf16.mxu0 %v650
      %3074 = vmatmul.mubr.bf16.gmra.mxu0 %v648
      %v3075 = vpop.f32.mrf.mxu0
      %v3076 = vadd.f32 %v2943, %v3075
      %v3077 = vpop.f32.mrf.mxu0
      %v3078 = vadd.f32 %v2945, %v3077
      %v3079 = vpop.f32.mrf.mxu0
      %v3080 = vadd.f32 %v2947, %v3079
      %v3081 = vpop.f32.mrf.mxu0
      %v3082 = vadd.f32 %v2949, %v3081
      %3083 = vmatprep.mubr.bf16.mxu0 %v654
      %3084 = vmatmul.mubr.bf16.gmra.mxu0 %v652
      %v3085 = vpop.f32.mrf.mxu0
      %v3086 = vadd.f32 %v2953, %v3085
      %v3087 = vpop.f32.mrf.mxu0
      %v3088 = vadd.f32 %v2955, %v3087
      %v3089 = vpop.f32.mrf.mxu0
      %v3090 = vadd.f32 %v2957, %v3089
      %v3091 = vpop.f32.mrf.mxu0
      %v3092 = vadd.f32 %v2959, %v3091
      %3093 = vdwg.mxu0
      %v3094 = vld [vmem:[%s251 + $0x10] sm:$0xcc]
      %v3095 = vld [vmem:[%s251 + $0x18] sm:$0xff]
      %v3096 = vld [vmem:[%s251 + $0x20] sm:$0xff]
      %v3097 = vld [vmem:[%s251 + $0x28] sm:$0xff]
      %v3098 = vld [vmem:[%s251 + $0x30] sm:$0xff]
      %v3099 = vld [vmem:[%s251 + $0x38] sm:$0xff]
      %v3100 = vld [vmem:[%s251 + $0x40] sm:$0xff]
      %v3101 = vld [vmem:[%s251 + $0x48] sm:$0xff]
      %v3102 = vld [vmem:[%s251 + $0x50] sm:$0xff]
      %v3103 = vld [vmem:[%s251 + $0x58] sm:$0xff]
      %v3104 = vld [vmem:[%s251 + $0x60] sm:$0x33]
      %v3105 = vld [vmem:[%s251 + $0x88] sm:$0xcc]
      %v3106 = vld [vmem:[%s251 + $0x90] sm:$0xff]
      %v3107 = vld [vmem:[%s251 + $0x98] sm:$0xff]
      %v3108 = vld [vmem:[%s251 + $0xa0] sm:$0xff]
      %v3109 = vld [vmem:[%s251 + $0xa8] sm:$0xff]
      %v3110 = vld [vmem:[%s251 + $0xb0] sm:$0xff]
      %v3111 = vld [vmem:[%s251 + $0xb8] sm:$0xff]
      %v3112 = vld [vmem:[%s251 + $0xc0] sm:$0xff]
      %v3113 = vld [vmem:[%s251 + $0xc8] sm:$0xff]
      %v3114 = vld [vmem:[%s251 + $0xd0] sm:$0xff]
      %v3115 = vld [vmem:[%s251 + $0xd8] sm:$0x33]
      %v3116 = vld [vmem:[%s251 + $0x60] sm:$0x77]
      %v3117 = vld [vmem:[%s251 + $0xd8] sm:$0x77]
      %v3118 = vld [vmem:[%s251 + $0x10] sm:$0x88]
      %v3119 = vld [vmem:[%s251 + $0x88] sm:$0x88]
      %v3142 = vunpack.c.l.b16 %v3094
      %v3143 = vunpack.c.h.b16 %v3094
      %v3144 = vunpack.c.l.b16 %v3095
      %v3145 = vunpack.c.h.b16 %v3095
      %v3146 = vunpack.c.l.b16 %v3096
      %v3147 = vunpack.c.h.b16 %v3096
      %v3148 = vunpack.c.l.b16 %v3097
      %v3149 = vunpack.c.h.b16 %v3097
      %v3150 = vunpack.c.l.b16 %v3098
      %v3151 = vunpack.c.h.b16 %v3098
      %v3152 = vunpack.c.l.b16 %v3099
      %v3153 = vunpack.c.h.b16 %v3099
      %v3154 = vunpack.c.l.b16 %v3100
      %v3155 = vunpack.c.h.b16 %v3100
      %v3156 = vunpack.c.l.b16 %v3101
      %v3157 = vunpack.c.h.b16 %v3101
      %v3158 = vunpack.c.l.b16 %v3102
      %v3159 = vunpack.c.h.b16 %v3102
      %v3160 = vunpack.c.l.b16 %v3103
      %v3161 = vunpack.c.h.b16 %v3103
      %v3162 = vunpack.c.l.b16 %v3104
      %v3163 = vunpack.c.h.b16 %v3104
      %v3164 = vunpack.c.l.b16 %v3105
      %v3165 = vunpack.c.h.b16 %v3105
      %v3166 = vunpack.c.l.b16 %v3106
      %v3167 = vunpack.c.h.b16 %v3106
      %v3168 = vunpack.c.l.b16 %v3107
      %v3169 = vunpack.c.h.b16 %v3107
      %v3170 = vunpack.c.l.b16 %v3108
      %v3171 = vunpack.c.h.b16 %v3108
      %v3172 = vunpack.c.l.b16 %v3109
      %v3173 = vunpack.c.h.b16 %v3109
      %v3174 = vunpack.c.l.b16 %v3110
      %v3175 = vunpack.c.h.b16 %v3110
      %v3176 = vunpack.c.l.b16 %v3111
      %v3177 = vunpack.c.h.b16 %v3111
      %v3178 = vunpack.c.l.b16 %v3112
      %v3179 = vunpack.c.h.b16 %v3112
      %v3180 = vunpack.c.l.b16 %v3113
      %v3181 = vunpack.c.h.b16 %v3113
      %v3182 = vunpack.c.l.b16 %v3114
      %v3183 = vunpack.c.h.b16 %v3114
      %v3184 = vunpack.c.l.b16 %v3115
      %v3185 = vunpack.c.h.b16 %v3115
      %v3186 = vpack.c.b16 %v3144, %v3142
      %v3187 = vpack.c.b16 %v3145, %v3143
      %v3188 = vpack.c.b16 %v3148, %v3146
      %v3189 = vpack.c.b16 %v3149, %v3147
      %v3190 = vpack.c.b16 %v3152, %v3150
      %v3191 = vpack.c.b16 %v3153, %v3151
      %v3192 = vpack.c.b16 %v3156, %v3154
      %v3193 = vpack.c.b16 %v3157, %v3155
      %v3194 = vpack.c.b16 %v3160, %v3158
      %v3195 = vpack.c.b16 %v3161, %v3159
      %v3196 = vpack.c.b16 %v3162, %v3162
      %v3197 = vpack.c.b16 %v3163, %v3163
      %v3198 = vpack.c.b16 %v3166, %v3164
      %v3199 = vpack.c.b16 %v3167, %v3165
      %v3200 = vpack.c.b16 %v3170, %v3168
      %v3201 = vpack.c.b16 %v3171, %v3169
      %v3202 = vpack.c.b16 %v3174, %v3172
      %v3203 = vpack.c.b16 %v3175, %v3173
      %v3204 = vpack.c.b16 %v3178, %v3176
      %v3205 = vpack.c.b16 %v3179, %v3177
      %v3206 = vpack.c.b16 %v3182, %v3180
      %v3207 = vpack.c.b16 %v3183, %v3181
      %v3208 = vpack.c.b16 %v3184, %v3184
      %v3209 = vpack.c.b16 %v3185, %v3185
      %v3212 = vunpack.c.l.b16 %v3116
      %v3213 = vunpack.c.h.b16 %v3116
      %v3214 = vunpack.c.l.b16 %v3117
      %v3215 = vunpack.c.h.b16 %v3117
      %v3216 = vpack.c.b16 %v3212, %v3212
      %v3217 = vpack.c.b16 %v3213, %v3213
      %v3218 = vpack.c.b16 %v3214, %v3214
      %v3219 = vpack.c.b16 %v3215, %v3215
      %v3221 = vshrl.u32 %v3186, 16
      %v3223 = vshll.u32 %v3186, 16
      %v3225 = vrot.slane %v3223, 1
      %v3226 = vor.u32 %v3221, %v3225
      %v3228 = vshll.u32 %v3188, 16
      %v3230 = vrot.slane %v3228, 1
      %v3231 = vsel %vm403, %v3226, %v3230
      %v3233 = vshrl.u32 %v3187, 16
      %v3235 = vshll.u32 %v3187, 16
      %v3237 = vrot.slane %v3235, 1
      %v3238 = vor.u32 %v3233, %v3237
      %v3240 = vshll.u32 %v3189, 16
      %v3242 = vrot.slane %v3240, 1
      %v3243 = vsel %vm403, %v3238, %v3242
      %v3244 = vshrl.u32 %v3188, 16
      %v3246 = vor.u32 %v3244, %v3230
      %v3248 = vshll.u32 %v3190, 16
      %v3250 = vrot.slane %v3248, 1
      %v3251 = vsel %vm403, %v3246, %v3250
      %v3252 = vshrl.u32 %v3189, 16
      %v3254 = vor.u32 %v3252, %v3242
      %v3256 = vshll.u32 %v3191, 16
      %v3258 = vrot.slane %v3256, 1
      %v3259 = vsel %vm403, %v3254, %v3258
      %v3260 = vshrl.u32 %v3190, 16
      %v3262 = vor.u32 %v3260, %v3250
      %v3264 = vshll.u32 %v3192, 16
      %v3266 = vrot.slane %v3264, 1
      %v3267 = vsel %vm403, %v3262, %v3266
      %v3268 = vshrl.u32 %v3191, 16
      %v3270 = vor.u32 %v3268, %v3258
      %v3272 = vshll.u32 %v3193, 16
      %v3274 = vrot.slane %v3272, 1
      %v3275 = vsel %vm403, %v3270, %v3274
      %v3276 = vshrl.u32 %v3192, 16
      %v3278 = vor.u32 %v3276, %v3266
      %v3280 = vshll.u32 %v3194, 16
      %v3282 = vrot.slane %v3280, 1
      %v3283 = vsel %vm403, %v3278, %v3282
      %v3284 = vshrl.u32 %v3193, 16
      %v3286 = vor.u32 %v3284, %v3274
      %v3288 = vshll.u32 %v3195, 16
      %v3290 = vrot.slane %v3288, 1
      %v3291 = vsel %vm403, %v3286, %v3290
      %v3292 = vshrl.u32 %v3194, 16
      %v3294 = vor.u32 %v3292, %v3282
      %v3296 = vshll.u32 %v3216, 16
      %v3298 = vrot.slane %v3296, 1
      %v3299 = vsel %vm403, %v3294, %v3298
      %v3300 = vshrl.u32 %v3195, 16
      %v3302 = vor.u32 %v3300, %v3290
      %v3304 = vshll.u32 %v3217, 16
      %v3306 = vrot.slane %v3304, 1
      %v3307 = vsel %vm403, %v3302, %v3306
      %v3308 = vshrl.u32 %v3216, 16
      %v3310 = vor.u32 %v3308, %v3298
      %v3311 = vshrl.u32 %v3217, 16
      %v3313 = vor.u32 %v3311, %v3306
      %v3315 = vshrl.u32 %v3198, 16
      %v3317 = vshll.u32 %v3198, 16
      %v3319 = vrot.slane %v3317, 1
      %v3320 = vor.u32 %v3315, %v3319
      %v3322 = vshll.u32 %v3200, 16
      %v3324 = vrot.slane %v3322, 1
      %v3325 = vsel %vm403, %v3320, %v3324
      %v3327 = vshrl.u32 %v3199, 16
      %v3329 = vshll.u32 %v3199, 16
      %v3331 = vrot.slane %v3329, 1
      %v3332 = vor.u32 %v3327, %v3331
      %v3334 = vshll.u32 %v3201, 16
      %v3336 = vrot.slane %v3334, 1
      %v3337 = vsel %vm403, %v3332, %v3336
      %v3338 = vshrl.u32 %v3200, 16
      %v3340 = vor.u32 %v3338, %v3324
      %v3342 = vshll.u32 %v3202, 16
      %v3344 = vrot.slane %v3342, 1
      %v3345 = vsel %vm403, %v3340, %v3344
      %v3346 = vshrl.u32 %v3201, 16
      %v3348 = vor.u32 %v3346, %v3336
      %v3350 = vshll.u32 %v3203, 16
      %v3352 = vrot.slane %v3350, 1
      %v3353 = vsel %vm403, %v3348, %v3352
      %v3354 = vshrl.u32 %v3202, 16
      %v3356 = vor.u32 %v3354, %v3344
      %v3358 = vshll.u32 %v3204, 16
      %v3360 = vrot.slane %v3358, 1
      %v3361 = vsel %vm403, %v3356, %v3360
      %v3362 = vshrl.u32 %v3203, 16
      %v3364 = vor.u32 %v3362, %v3352
      %v3366 = vshll.u32 %v3205, 16
      %v3368 = vrot.slane %v3366, 1
      %v3369 = vsel %vm403, %v3364, %v3368
      %v3370 = vshrl.u32 %v3204, 16
      %v3372 = vor.u32 %v3370, %v3360
      %v3374 = vshll.u32 %v3206, 16
      %v3376 = vrot.slane %v3374, 1
      %v3377 = vsel %vm403, %v3372, %v3376
      %v3378 = vshrl.u32 %v3205, 16
      %v3380 = vor.u32 %v3378, %v3368
      %v3382 = vshll.u32 %v3207, 16
      %v3384 = vrot.slane %v3382, 1
      %v3385 = vsel %vm403, %v3380, %v3384
      %v3386 = vshrl.u32 %v3206, 16
      %v3388 = vor.u32 %v3386, %v3376
      %v3390 = vshll.u32 %v3218, 16
      %v3392 = vrot.slane %v3390, 1
      %v3393 = vsel %vm403, %v3388, %v3392
      %v3394 = vshrl.u32 %v3207, 16
      %v3396 = vor.u32 %v3394, %v3384
      %v3398 = vshll.u32 %v3219, 16
      %v3400 = vrot.slane %v3398, 1
      %v3401 = vsel %vm403, %v3396, %v3400
      %v3402 = vshrl.u32 %v3218, 16
      %v3404 = vor.u32 %v3402, %v3392
      %v3405 = vshrl.u32 %v3219, 16
      %v3407 = vor.u32 %v3405, %v3400
      %v3410 = vunpack.c.l.b16 %v3118
      %v3411 = vunpack.c.h.b16 %v3118
      %v3412 = vunpack.c.l.b16 %v3119
      %v3413 = vunpack.c.h.b16 %v3119
      %v3414 = vpack.c.b16 %v3144, %v3410
      %v3415 = vpack.c.b16 %v3145, %v3411
      %v3416 = vpack.c.b16 %v3166, %v3412
      %v3417 = vpack.c.b16 %v3167, %v3413
      %v3418 = vrot.slane %v3414, 1
      %v3419 = vrot.slane %v3188, 1
      %v3420 = vsel %vm610, %v3418, %v3419
      %v3421 = vrot.slane %v3415, 1
      %v3422 = vrot.slane %v3189, 1
      %v3423 = vsel %vm610, %v3421, %v3422
      %v3424 = vrot.slane %v3190, 1
      %v3425 = vsel %vm610, %v3419, %v3424
      %v3426 = vrot.slane %v3191, 1
      %v3427 = vsel %vm610, %v3422, %v3426
      %v3428 = vrot.slane %v3192, 1
      %v3429 = vsel %vm610, %v3424, %v3428
      %v3430 = vrot.slane %v3193, 1
      %v3431 = vsel %vm610, %v3426, %v3430
      %v3432 = vrot.slane %v3194, 1
      %v3433 = vsel %vm610, %v3428, %v3432
      %v3434 = vrot.slane %v3195, 1
      %v3435 = vsel %vm610, %v3430, %v3434
      %v3436 = vrot.slane %v3216, 1
      %v3437 = vsel %vm610, %v3432, %v3436
      %v3438 = vrot.slane %v3217, 1
      %v3439 = vsel %vm610, %v3434, %v3438
      %v3440 = vrot.slane %v3416, 1
      %v3441 = vrot.slane %v3200, 1
      %v3442 = vsel %vm610, %v3440, %v3441
      %v3443 = vrot.slane %v3417, 1
      %v3444 = vrot.slane %v3201, 1
      %v3445 = vsel %vm610, %v3443, %v3444
      %v3446 = vrot.slane %v3202, 1
      %v3447 = vsel %vm610, %v3441, %v3446
      %v3448 = vrot.slane %v3203, 1
      %v3449 = vsel %vm610, %v3444, %v3448
      %v3450 = vrot.slane %v3204, 1
      %v3451 = vsel %vm610, %v3446, %v3450
      %v3452 = vrot.slane %v3205, 1
      %v3453 = vsel %vm610, %v3448, %v3452
      %v3454 = vrot.slane %v3206, 1
      %v3455 = vsel %vm610, %v3450, %v3454
      %v3456 = vrot.slane %v3207, 1
      %v3457 = vsel %vm610, %v3452, %v3456
      %v3458 = vrot.slane %v3218, 1
      %v3459 = vsel %vm610, %v3454, %v3458
      %v3460 = vrot.slane %v3219, 1
      %v3461 = vsel %vm610, %v3456, %v3460
      %vm3462 = vcmask 1045504
      %v3463 = vrot.slane %v3186, 2
      %v3464 = vrot.slane %v3188, 2
      %v3465 = vsel %vm3462, %v3463, %v3464
      %v3466 = vrot.slane %v3187, 2
      %v3467 = vrot.slane %v3189, 2
      %v3468 = vsel %vm3462, %v3466, %v3467
      %v3469 = vrot.slane %v3231, 2
      %v3470 = vrot.slane %v3251, 2
      %v3471 = vsel %vm3462, %v3469, %v3470
      %v3472 = vrot.slane %v3243, 2
      %v3473 = vrot.slane %v3259, 2
      %v3474 = vsel %vm3462, %v3472, %v3473
      %v3475 = vrot.slane %v3420, 2
      %v3476 = vrot.slane %v3425, 2
      %v3477 = vsel %vm3462, %v3475, %v3476
      %v3478 = vrot.slane %v3423, 2
      %v3479 = vrot.slane %v3427, 2
      %v3480 = vsel %vm3462, %v3478, %v3479
      %v3481 = vrot.slane %v3190, 2
      %v3482 = vsel %vm3462, %v3464, %v3481
      %v3483 = vrot.slane %v3191, 2
      %v3484 = vsel %vm3462, %v3467, %v3483
      %v3485 = vrot.slane %v3267, 2
      %v3486 = vsel %vm3462, %v3470, %v3485
      %v3487 = vrot.slane %v3275, 2
      %v3488 = vsel %vm3462, %v3473, %v3487
      %v3489 = vrot.slane %v3429, 2
      %v3490 = vsel %vm3462, %v3476, %v3489
      %v3491 = vrot.slane %v3431, 2
      %v3492 = vsel %vm3462, %v3479, %v3491
      %v3493 = vrot.slane %v3192, 2
      %v3494 = vsel %vm3462, %v3481, %v3493
      %v3495 = vrot.slane %v3193, 2
      %v3496 = vsel %vm3462, %v3483, %v3495
      %v3497 = vrot.slane %v3283, 2
      %v3498 = vsel %vm3462, %v3485, %v3497
      %v3499 = vrot.slane %v3291, 2
      %v3500 = vsel %vm3462, %v3487, %v3499
      %v3501 = vrot.slane %v3433, 2
      %v3502 = vsel %vm3462, %v3489, %v3501
      %v3503 = vrot.slane %v3435, 2
      %v3504 = vsel %vm3462, %v3491, %v3503
      %v3505 = vrot.slane %v3194, 2
      %v3506 = vsel %vm3462, %v3493, %v3505
      %v3507 = vrot.slane %v3195, 2
      %v3508 = vsel %vm3462, %v3495, %v3507
      %v3509 = vrot.slane %v3299, 2
      %v3510 = vsel %vm3462, %v3497, %v3509
      %v3511 = vrot.slane %v3307, 2
      %v3512 = vsel %vm3462, %v3499, %v3511
      %v3513 = vrot.slane %v3437, 2
      %v3514 = vsel %vm3462, %v3501, %v3513
      %v3515 = vrot.slane %v3439, 2
      %v3516 = vsel %vm3462, %v3503, %v3515
      %v3517 = vrot.slane %v3196, 2
      %v3518 = vsel %vm3462, %v3505, %v3517
      %v3519 = vrot.slane %v3197, 2
      %v3520 = vsel %vm3462, %v3507, %v3519
      %v3521 = vrot.slane %v3310, 2
      %v3522 = vsel %vm3462, %v3509, %v3521
      %v3523 = vrot.slane %v3313, 2
      %v3524 = vsel %vm3462, %v3511, %v3523
      %v3525 = vrot.slane %v3436, 2
      %v3526 = vsel %vm3462, %v3513, %v3525
      %v3527 = vrot.slane %v3438, 2
      %v3528 = vsel %vm3462, %v3515, %v3527
      %v3529 = vrot.slane %v3198, 2
      %v3530 = vrot.slane %v3200, 2
      %v3531 = vsel %vm3462, %v3529, %v3530
      %v3532 = vrot.slane %v3199, 2
      %v3533 = vrot.slane %v3201, 2
      %v3534 = vsel %vm3462, %v3532, %v3533
      %v3535 = vrot.slane %v3325, 2
      %v3536 = vrot.slane %v3345, 2
      %v3537 = vsel %vm3462, %v3535, %v3536
      %v3538 = vrot.slane %v3337, 2
      %v3539 = vrot.slane %v3353, 2
      %v3540 = vsel %vm3462, %v3538, %v3539
      %v3541 = vrot.slane %v3442, 2
      %v3542 = vrot.slane %v3447, 2
      %v3543 = vsel %vm3462, %v3541, %v3542
      %v3544 = vrot.slane %v3445, 2
      %v3545 = vrot.slane %v3449, 2
      %v3546 = vsel %vm3462, %v3544, %v3545
      %v3547 = vrot.slane %v3202, 2
      %v3548 = vsel %vm3462, %v3530, %v3547
      %v3549 = vrot.slane %v3203, 2
      %v3550 = vsel %vm3462, %v3533, %v3549
      %v3551 = vrot.slane %v3361, 2
      %v3552 = vsel %vm3462, %v3536, %v3551
      %v3553 = vrot.slane %v3369, 2
      %v3554 = vsel %vm3462, %v3539, %v3553
      %v3555 = vrot.slane %v3451, 2
      %v3556 = vsel %vm3462, %v3542, %v3555
      %v3557 = vrot.slane %v3453, 2
      %v3558 = vsel %vm3462, %v3545, %v3557
      %v3559 = vrot.slane %v3204, 2
      %v3560 = vsel %vm3462, %v3547, %v3559
      %v3561 = vrot.slane %v3205, 2
      %v3562 = vsel %vm3462, %v3549, %v3561
      %v3563 = vrot.slane %v3377, 2
      %v3564 = vsel %vm3462, %v3551, %v3563
      %v3565 = vrot.slane %v3385, 2
      %v3566 = vsel %vm3462, %v3553, %v3565
      %v3567 = vrot.slane %v3455, 2
      %v3568 = vsel %vm3462, %v3555, %v3567
      %v3569 = vrot.slane %v3457, 2
      %v3570 = vsel %vm3462, %v3557, %v3569
      %v3571 = vrot.slane %v3206, 2
      %v3572 = vsel %vm3462, %v3559, %v3571
      %v3573 = vrot.slane %v3207, 2
      %v3574 = vsel %vm3462, %v3561, %v3573
      %v3575 = vrot.slane %v3393, 2
      %v3576 = vsel %vm3462, %v3563, %v3575
      %v3577 = vrot.slane %v3401, 2
      %v3578 = vsel %vm3462, %v3565, %v3577
      %v3579 = vrot.slane %v3459, 2
      %v3580 = vsel %vm3462, %v3567, %v3579
      %v3581 = vrot.slane %v3461, 2
      %v3582 = vsel %vm3462, %v3569, %v3581
      %v3583 = vrot.slane %v3208, 2
      %v3584 = vsel %vm3462, %v3571, %v3583
      %v3585 = vrot.slane %v3209, 2
      %v3586 = vsel %vm3462, %v3573, %v3585
      %v3587 = vrot.slane %v3404, 2
      %v3588 = vsel %vm3462, %v3575, %v3587
      %v3589 = vrot.slane %v3407, 2
      %v3590 = vsel %vm3462, %v3577, %v3589
      %v3591 = vrot.slane %v3458, 2
      %v3592 = vsel %vm3462, %v3579, %v3591
      %v3593 = vrot.slane %v3460, 2
      %v3594 = vsel %vm3462, %v3581, %v3593
      %s3655 = scalar_lea.vmem %s1, 1536
      %v3656 = vld [vmem:[%s3655] sm:$0xff]
      %v3657 = vld [vmem:[%s3655 + $0x8] sm:$0xff]
      %v3658 = vld [vmem:[%s3655 + $0x10] sm:$0xff]
      %v3659 = vld [vmem:[%s3655 + $0x18] sm:$0xff]
      %v3660 = vld [vmem:[%s3655 + $0x20] sm:$0xff]
      %v3661 = vld [vmem:[%s3655 + $0x28] sm:$0xff]
      %v3662 = vld [vmem:[%s3655 + $0x30] sm:$0xff]
      %v3663 = vld [vmem:[%s3655 + $0x38] sm:$0xff]
      %v3664 = vld [vmem:[%s3655 + $0x40] sm:$0xff]
      %v3665 = vld [vmem:[%s3655 + $0x48] sm:$0xff]
      %v3666 = vld [vmem:[%s3655 + $0x50] sm:$0xff]
      %v3667 = vld [vmem:[%s3655 + $0x58] sm:$0xff]
      %v3668 = vld [vmem:[%s3655 + $0x60] sm:$0xff]
      %v3669 = vld [vmem:[%s3655 + $0x68] sm:$0xff]
      %v3670 = vld [vmem:[%s3655 + $0x70] sm:$0xff]
      %v3671 = vld [vmem:[%s3655 + $0x78] sm:$0xff]
      %v3672 = vld [vmem:[%s3655 + $0x80] sm:$0xff]
      %v3673 = vld [vmem:[%s3655 + $0x88] sm:$0xff]
      %v3674 = vld [vmem:[%s3655 + $0x90] sm:$0xff]
      %v3675 = vld [vmem:[%s3655 + $0x98] sm:$0xff]
      %v3676 = vld [vmem:[%s3655 + $0xa0] sm:$0xff]
      %v3677 = vld [vmem:[%s3655 + $0xa8] sm:$0xff]
      %v3678 = vld [vmem:[%s3655 + $0xb0] sm:$0xff]
      %v3679 = vld [vmem:[%s3655 + $0xb8] sm:$0xff]
      %v3680 = vld [vmem:[%s3655 + $0xc0] sm:$0xff]
      %v3681 = vld [vmem:[%s3655 + $0xc8] sm:$0xff]
      %v3682 = vld [vmem:[%s3655 + $0xd0] sm:$0xff]
      %v3683 = vld [vmem:[%s3655 + $0xd8] sm:$0xff]
      %v3684 = vld [vmem:[%s3655 + $0xe0] sm:$0xff]
      %v3685 = vld [vmem:[%s3655 + $0xe8] sm:$0xff]
      %v3686 = vld [vmem:[%s3655 + $0xf0] sm:$0xff]
      %v3687 = vld [vmem:[%s3655 + $0xf8] sm:$0xff]
      %v3688 = vld [vmem:[%s3655 + $0x100] sm:$0xff]
      %v3689 = vld [vmem:[%s3655 + $0x108] sm:$0xff]
      %v3690 = vld [vmem:[%s3655 + $0x110] sm:$0xff]
      %v3691 = vld [vmem:[%s3655 + $0x118] sm:$0xff]
      %v3692 = vld [vmem:[%s3655 + $0x120] sm:$0xff]
      %v3693 = vld [vmem:[%s3655 + $0x128] sm:$0xff]
      %v3694 = vld [vmem:[%s3655 + $0x130] sm:$0xff]
      %v3695 = vld [vmem:[%s3655 + $0x138] sm:$0xff]
      %v3696 = vld [vmem:[%s3655 + $0x140] sm:$0xff]
      %v3697 = vld [vmem:[%s3655 + $0x148] sm:$0xff]
      %v3698 = vld [vmem:[%s3655 + $0x150] sm:$0xff]
      %v3699 = vld [vmem:[%s3655 + $0x158] sm:$0xff]
      %v3700 = vld [vmem:[%s3655 + $0x160] sm:$0xff]
      %v3701 = vld [vmem:[%s3655 + $0x168] sm:$0xff]
      %v3702 = vld [vmem:[%s3655 + $0x170] sm:$0xff]
      %v3703 = vld [vmem:[%s3655 + $0x178] sm:$0xff]
      %v3704 = vld [vmem:[%s3655 + $0x180] sm:$0xff]
      %v3705 = vld [vmem:[%s3655 + $0x188] sm:$0xff]
      %v3706 = vld [vmem:[%s3655 + $0x190] sm:$0xff]
      %v3707 = vld [vmem:[%s3655 + $0x198] sm:$0xff]
      %v3708 = vld [vmem:[%s3655 + $0x1a0] sm:$0xff]
      %v3709 = vld [vmem:[%s3655 + $0x1a8] sm:$0xff]
      %v3710 = vld [vmem:[%s3655 + $0x1b0] sm:$0xff]
      %v3711 = vld [vmem:[%s3655 + $0x1b8] sm:$0xff]
      %v3712 = vld [vmem:[%s3655 + $0x1c0] sm:$0xff]
      %v3713 = vld [vmem:[%s3655 + $0x1c8] sm:$0xff]
      %v3714 = vld [vmem:[%s3655 + $0x1d0] sm:$0xff]
      %v3715 = vld [vmem:[%s3655 + $0x1d8] sm:$0xff]
      %v3716 = vld [vmem:[%s3655 + $0x1e0] sm:$0xff]
      %v3717 = vld [vmem:[%s3655 + $0x1e8] sm:$0xff]
      %v3718 = vld [vmem:[%s3655 + $0x1f0] sm:$0xff]
      %v3719 = vld [vmem:[%s3655 + $0x1f8] sm:$0xff]
      %v3720 = vld [vmem:[%s3655 + $0x200] sm:$0xff]
      %v3721 = vld [vmem:[%s3655 + $0x208] sm:$0xff]
      %v3722 = vld [vmem:[%s3655 + $0x210] sm:$0xff]
      %v3723 = vld [vmem:[%s3655 + $0x218] sm:$0xff]
      %v3724 = vld [vmem:[%s3655 + $0x220] sm:$0xff]
      %v3725 = vld [vmem:[%s3655 + $0x228] sm:$0xff]
      %v3726 = vld [vmem:[%s3655 + $0x230] sm:$0xff]
      %v3727 = vld [vmem:[%s3655 + $0x238] sm:$0xff]
      %v3728 = vld [vmem:[%s3655 + $0x240] sm:$0xff]
      %v3729 = vld [vmem:[%s3655 + $0x248] sm:$0xff]
      %v3730 = vld [vmem:[%s3655 + $0x250] sm:$0xff]
      %v3731 = vld [vmem:[%s3655 + $0x258] sm:$0xff]
      %v3732 = vld [vmem:[%s3655 + $0x260] sm:$0xff]
      %v3733 = vld [vmem:[%s3655 + $0x268] sm:$0xff]
      %v3734 = vld [vmem:[%s3655 + $0x270] sm:$0xff]
      %v3735 = vld [vmem:[%s3655 + $0x278] sm:$0xff]
      %v3736 = vld [vmem:[%s3655 + $0x280] sm:$0xff]
      %v3737 = vld [vmem:[%s3655 + $0x288] sm:$0xff]
      %v3738 = vld [vmem:[%s3655 + $0x290] sm:$0xff]
      %v3739 = vld [vmem:[%s3655 + $0x298] sm:$0xff]
      %v3740 = vld [vmem:[%s3655 + $0x2a0] sm:$0xff]
      %v3741 = vld [vmem:[%s3655 + $0x2a8] sm:$0xff]
      %v3742 = vld [vmem:[%s3655 + $0x2b0] sm:$0xff]
      %v3743 = vld [vmem:[%s3655 + $0x2b8] sm:$0xff]
      %v3744 = vld [vmem:[%s3655 + $0x2c0] sm:$0xff]
      %v3745 = vld [vmem:[%s3655 + $0x2c8] sm:$0xff]
      %v3746 = vld [vmem:[%s3655 + $0x2d0] sm:$0xff]
      %v3747 = vld [vmem:[%s3655 + $0x2d8] sm:$0xff]
      %v3748 = vld [vmem:[%s3655 + $0x2e0] sm:$0xff]
      %v3749 = vld [vmem:[%s3655 + $0x2e8] sm:$0xff]
      %v3750 = vld [vmem:[%s3655 + $0x2f0] sm:$0xff]
      %v3751 = vld [vmem:[%s3655 + $0x2f8] sm:$0xff]
      %v3848 = vunpack.c.l.b16 %v3656
      %v3849 = vunpack.c.h.b16 %v3656
      %v3850 = vunpack.c.l.b16 %v3657
      %v3851 = vunpack.c.h.b16 %v3657
      %v3852 = vunpack.c.l.b16 %v3658
      %v3853 = vunpack.c.h.b16 %v3658
      %v3854 = vunpack.c.l.b16 %v3659
      %v3855 = vunpack.c.h.b16 %v3659
      %v3856 = vunpack.c.l.b16 %v3660
      %v3857 = vunpack.c.h.b16 %v3660
      %v3858 = vunpack.c.l.b16 %v3661
      %v3859 = vunpack.c.h.b16 %v3661
      %v3860 = vunpack.c.l.b16 %v3662
      %v3861 = vunpack.c.h.b16 %v3662
      %v3862 = vunpack.c.l.b16 %v3663
      %v3863 = vunpack.c.h.b16 %v3663
      %v3864 = vunpack.c.l.b16 %v3664
      %v3865 = vunpack.c.h.b16 %v3664
      %v3866 = vunpack.c.l.b16 %v3665
      %v3867 = vunpack.c.h.b16 %v3665
      %v3868 = vunpack.c.l.b16 %v3666
      %v3869 = vunpack.c.h.b16 %v3666
      %v3870 = vunpack.c.l.b16 %v3667
      %v3871 = vunpack.c.h.b16 %v3667
      %v3872 = vunpack.c.l.b16 %v3668
      %v3873 = vunpack.c.h.b16 %v3668
      %v3874 = vunpack.c.l.b16 %v3669
      %v3875 = vunpack.c.h.b16 %v3669
      %v3876 = vunpack.c.l.b16 %v3670
      %v3877 = vunpack.c.h.b16 %v3670
      %v3878 = vunpack.c.l.b16 %v3671
      %v3879 = vunpack.c.h.b16 %v3671
      %v3880 = vunpack.c.l.b16 %v3672
      %v3881 = vunpack.c.h.b16 %v3672
      %v3882 = vunpack.c.l.b16 %v3673
      %v3883 = vunpack.c.h.b16 %v3673
      %v3884 = vunpack.c.l.b16 %v3674
      %v3885 = vunpack.c.h.b16 %v3674
      %v3886 = vunpack.c.l.b16 %v3675
      %v3887 = vunpack.c.h.b16 %v3675
      %v3888 = vunpack.c.l.b16 %v3676
      %v3889 = vunpack.c.h.b16 %v3676
      %v3890 = vunpack.c.l.b16 %v3677
      %v3891 = vunpack.c.h.b16 %v3677
      %v3892 = vunpack.c.l.b16 %v3678
      %v3893 = vunpack.c.h.b16 %v3678
      %v3894 = vunpack.c.l.b16 %v3679
      %v3895 = vunpack.c.h.b16 %v3679
      %v3896 = vunpack.c.l.b16 %v3680
      %v3897 = vunpack.c.h.b16 %v3680
      %v3898 = vunpack.c.l.b16 %v3681
      %v3899 = vunpack.c.h.b16 %v3681
      %v3900 = vunpack.c.l.b16 %v3682
      %v3901 = vunpack.c.h.b16 %v3682
      %v3902 = vunpack.c.l.b16 %v3683
      %v3903 = vunpack.c.h.b16 %v3683
      %v3904 = vunpack.c.l.b16 %v3684
      %v3905 = vunpack.c.h.b16 %v3684
      %v3906 = vunpack.c.l.b16 %v3685
      %v3907 = vunpack.c.h.b16 %v3685
      %v3908 = vunpack.c.l.b16 %v3686
      %v3909 = vunpack.c.h.b16 %v3686
      %v3910 = vunpack.c.l.b16 %v3687
      %v3911 = vunpack.c.h.b16 %v3687
      %v3912 = vunpack.c.l.b16 %v3688
      %v3913 = vunpack.c.h.b16 %v3688
      %v3914 = vunpack.c.l.b16 %v3689
      %v3915 = vunpack.c.h.b16 %v3689
      %v3916 = vunpack.c.l.b16 %v3690
      %v3917 = vunpack.c.h.b16 %v3690
      %v3918 = vunpack.c.l.b16 %v3691
      %v3919 = vunpack.c.h.b16 %v3691
      %v3920 = vunpack.c.l.b16 %v3692
      %v3921 = vunpack.c.h.b16 %v3692
      %v3922 = vunpack.c.l.b16 %v3693
      %v3923 = vunpack.c.h.b16 %v3693
      %v3924 = vunpack.c.l.b16 %v3694
      %v3925 = vunpack.c.h.b16 %v3694
      %v3926 = vunpack.c.l.b16 %v3695
      %v3927 = vunpack.c.h.b16 %v3695
      %v3928 = vunpack.c.l.b16 %v3696
      %v3929 = vunpack.c.h.b16 %v3696
      %v3930 = vunpack.c.l.b16 %v3697
      %v3931 = vunpack.c.h.b16 %v3697
      %v3932 = vunpack.c.l.b16 %v3698
      %v3933 = vunpack.c.h.b16 %v3698
      %v3934 = vunpack.c.l.b16 %v3699
      %v3935 = vunpack.c.h.b16 %v3699
      %v3936 = vunpack.c.l.b16 %v3700
      %v3937 = vunpack.c.h.b16 %v3700
      %v3938 = vunpack.c.l.b16 %v3701
      %v3939 = vunpack.c.h.b16 %v3701
      %v3940 = vunpack.c.l.b16 %v3702
      %v3941 = vunpack.c.h.b16 %v3702
      %v3942 = vunpack.c.l.b16 %v3703
      %v3943 = vunpack.c.h.b16 %v3703
      %v3944 = vunpack.c.l.b16 %v3704
      %v3945 = vunpack.c.h.b16 %v3704
      %v3946 = vunpack.c.l.b16 %v3705
      %v3947 = vunpack.c.h.b16 %v3705
      %v3948 = vunpack.c.l.b16 %v3706
      %v3949 = vunpack.c.h.b16 %v3706
      %v3950 = vunpack.c.l.b16 %v3707
      %v3951 = vunpack.c.h.b16 %v3707
      %v3952 = vunpack.c.l.b16 %v3708
      %v3953 = vunpack.c.h.b16 %v3708
      %v3954 = vunpack.c.l.b16 %v3709
      %v3955 = vunpack.c.h.b16 %v3709
      %v3956 = vunpack.c.l.b16 %v3710
      %v3957 = vunpack.c.h.b16 %v3710
      %v3958 = vunpack.c.l.b16 %v3711
      %v3959 = vunpack.c.h.b16 %v3711
      %v3960 = vunpack.c.l.b16 %v3712
      %v3961 = vunpack.c.h.b16 %v3712
      %v3962 = vunpack.c.l.b16 %v3713
      %v3963 = vunpack.c.h.b16 %v3713
      %v3964 = vunpack.c.l.b16 %v3714
      %v3965 = vunpack.c.h.b16 %v3714
      %v3966 = vunpack.c.l.b16 %v3715
      %v3967 = vunpack.c.h.b16 %v3715
      %v3968 = vunpack.c.l.b16 %v3716
      %v3969 = vunpack.c.h.b16 %v3716
      %v3970 = vunpack.c.l.b16 %v3717
      %v3971 = vunpack.c.h.b16 %v3717
      %v3972 = vunpack.c.l.b16 %v3718
      %v3973 = vunpack.c.h.b16 %v3718
      %v3974 = vunpack.c.l.b16 %v3719
      %v3975 = vunpack.c.h.b16 %v3719
      %v3976 = vunpack.c.l.b16 %v3720
      %v3977 = vunpack.c.h.b16 %v3720
      %v3978 = vunpack.c.l.b16 %v3721
      %v3979 = vunpack.c.h.b16 %v3721
      %v3980 = vunpack.c.l.b16 %v3722
      %v3981 = vunpack.c.h.b16 %v3722
      %v3982 = vunpack.c.l.b16 %v3723
      %v3983 = vunpack.c.h.b16 %v3723
      %v3984 = vunpack.c.l.b16 %v3724
      %v3985 = vunpack.c.h.b16 %v3724
      %v3986 = vunpack.c.l.b16 %v3725
      %v3987 = vunpack.c.h.b16 %v3725
      %v3988 = vunpack.c.l.b16 %v3726
      %v3989 = vunpack.c.h.b16 %v3726
      %v3990 = vunpack.c.l.b16 %v3727
      %v3991 = vunpack.c.h.b16 %v3727
      %v3992 = vunpack.c.l.b16 %v3728
      %v3993 = vunpack.c.h.b16 %v3728
      %v3994 = vunpack.c.l.b16 %v3729
      %v3995 = vunpack.c.h.b16 %v3729
      %v3996 = vunpack.c.l.b16 %v3730
      %v3997 = vunpack.c.h.b16 %v3730
      %v3998 = vunpack.c.l.b16 %v3731
      %v3999 = vunpack.c.h.b16 %v3731
      %v4000 = vunpack.c.l.b16 %v3732
      %v4001 = vunpack.c.h.b16 %v3732
      %v4002 = vunpack.c.l.b16 %v3733
      %v4003 = vunpack.c.h.b16 %v3733
      %v4004 = vunpack.c.l.b16 %v3734
      %v4005 = vunpack.c.h.b16 %v3734
      %v4006 = vunpack.c.l.b16 %v3735
      %v4007 = vunpack.c.h.b16 %v3735
      %v4008 = vunpack.c.l.b16 %v3736
      %v4009 = vunpack.c.h.b16 %v3736
      %v4010 = vunpack.c.l.b16 %v3737
      %v4011 = vunpack.c.h.b16 %v3737
      %v4012 = vunpack.c.l.b16 %v3738
      %v4013 = vunpack.c.h.b16 %v3738
      %v4014 = vunpack.c.l.b16 %v3739
      %v4015 = vunpack.c.h.b16 %v3739
      %v4016 = vunpack.c.l.b16 %v3740
      %v4017 = vunpack.c.h.b16 %v3740
      %v4018 = vunpack.c.l.b16 %v3741
      %v4019 = vunpack.c.h.b16 %v3741
      %v4020 = vunpack.c.l.b16 %v3742
      %v4021 = vunpack.c.h.b16 %v3742
      %v4022 = vunpack.c.l.b16 %v3743
      %v4023 = vunpack.c.h.b16 %v3743
      %v4024 = vunpack.c.l.b16 %v3744
      %v4025 = vunpack.c.h.b16 %v3744
      %v4026 = vunpack.c.l.b16 %v3745
      %v4027 = vunpack.c.h.b16 %v3745
      %v4028 = vunpack.c.l.b16 %v3746
      %v4029 = vunpack.c.h.b16 %v3746
      %v4030 = vunpack.c.l.b16 %v3747
      %v4031 = vunpack.c.h.b16 %v3747
      %v4032 = vunpack.c.l.b16 %v3748
      %v4033 = vunpack.c.h.b16 %v3748
      %v4034 = vunpack.c.l.b16 %v3749
      %v4035 = vunpack.c.h.b16 %v3749
      %v4036 = vunpack.c.l.b16 %v3750
      %v4037 = vunpack.c.h.b16 %v3750
      %v4038 = vunpack.c.l.b16 %v3751
      %v4039 = vunpack.c.h.b16 %v3751
      %v4040 = vpack.c.b16 %v3850, %v3848
      %v4041 = vpack.c.b16 %v3851, %v3849
      %v4042 = vpack.c.b16 %v3854, %v3852
      %v4043 = vpack.c.b16 %v3855, %v3853
      %v4044 = vpack.c.b16 %v3858, %v3856
      %v4045 = vpack.c.b16 %v3859, %v3857
      %v4046 = vpack.c.b16 %v3862, %v3860
      %v4047 = vpack.c.b16 %v3863, %v3861
      %v4048 = vpack.c.b16 %v3866, %v3864
      %v4049 = vpack.c.b16 %v3867, %v3865
      %v4050 = vpack.c.b16 %v3870, %v3868
      %v4051 = vpack.c.b16 %v3871, %v3869
      %v4052 = vpack.c.b16 %v3874, %v3872
      %v4053 = vpack.c.b16 %v3875, %v3873
      %v4054 = vpack.c.b16 %v3878, %v3876
      %v4055 = vpack.c.b16 %v3879, %v3877
      %v4056 = vpack.c.b16 %v3882, %v3880
      %v4057 = vpack.c.b16 %v3883, %v3881
      %v4058 = vpack.c.b16 %v3886, %v3884
      %v4059 = vpack.c.b16 %v3887, %v3885
      %v4060 = vpack.c.b16 %v3890, %v3888
      %v4061 = vpack.c.b16 %v3891, %v3889
      %v4062 = vpack.c.b16 %v3894, %v3892
      %v4063 = vpack.c.b16 %v3895, %v3893
      %v4064 = vpack.c.b16 %v3898, %v3896
      %v4065 = vpack.c.b16 %v3899, %v3897
      %v4066 = vpack.c.b16 %v3902, %v3900
      %v4067 = vpack.c.b16 %v3903, %v3901
      %v4068 = vpack.c.b16 %v3906, %v3904
      %v4069 = vpack.c.b16 %v3907, %v3905
      %v4070 = vpack.c.b16 %v3910, %v3908
      %v4071 = vpack.c.b16 %v3911, %v3909
      %v4072 = vpack.c.b16 %v3914, %v3912
      %v4073 = vpack.c.b16 %v3915, %v3913
      %v4074 = vpack.c.b16 %v3918, %v3916
      %v4075 = vpack.c.b16 %v3919, %v3917
      %v4076 = vpack.c.b16 %v3922, %v3920
      %v4077 = vpack.c.b16 %v3923, %v3921
      %v4078 = vpack.c.b16 %v3926, %v3924
      %v4079 = vpack.c.b16 %v3927, %v3925
      %v4080 = vpack.c.b16 %v3930, %v3928
      %v4081 = vpack.c.b16 %v3931, %v3929
      %v4082 = vpack.c.b16 %v3934, %v3932
      %v4083 = vpack.c.b16 %v3935, %v3933
      %v4084 = vpack.c.b16 %v3938, %v3936
      %v4085 = vpack.c.b16 %v3939, %v3937
      %v4086 = vpack.c.b16 %v3942, %v3940
      %v4087 = vpack.c.b16 %v3943, %v3941
      %v4088 = vpack.c.b16 %v3946, %v3944
      %v4089 = vpack.c.b16 %v3947, %v3945
      %v4090 = vpack.c.b16 %v3950, %v3948
      %v4091 = vpack.c.b16 %v3951, %v3949
      %v4092 = vpack.c.b16 %v3954, %v3952
      %v4093 = vpack.c.b16 %v3955, %v3953
      %v4094 = vpack.c.b16 %v3958, %v3956
      %v4095 = vpack.c.b16 %v3959, %v3957
      %v4096 = vpack.c.b16 %v3962, %v3960
      %v4097 = vpack.c.b16 %v3963, %v3961
      %v4098 = vpack.c.b16 %v3966, %v3964
      %v4099 = vpack.c.b16 %v3967, %v3965
      %v4100 = vpack.c.b16 %v3970, %v3968
      %v4101 = vpack.c.b16 %v3971, %v3969
      %v4102 = vpack.c.b16 %v3974, %v3972
      %v4103 = vpack.c.b16 %v3975, %v3973
      %v4104 = vpack.c.b16 %v3978, %v3976
      %v4105 = vpack.c.b16 %v3979, %v3977
      %v4106 = vpack.c.b16 %v3982, %v3980
      %v4107 = vpack.c.b16 %v3983, %v3981
      %v4108 = vpack.c.b16 %v3986, %v3984
      %v4109 = vpack.c.b16 %v3987, %v3985
      %v4110 = vpack.c.b16 %v3990, %v3988
      %v4111 = vpack.c.b16 %v3991, %v3989
      %v4112 = vpack.c.b16 %v3994, %v3992
      %v4113 = vpack.c.b16 %v3995, %v3993
      %v4114 = vpack.c.b16 %v3998, %v3996
      %v4115 = vpack.c.b16 %v3999, %v3997
      %v4116 = vpack.c.b16 %v4002, %v4000
      %v4117 = vpack.c.b16 %v4003, %v4001
      %v4118 = vpack.c.b16 %v4006, %v4004
      %v4119 = vpack.c.b16 %v4007, %v4005
      %v4120 = vpack.c.b16 %v4010, %v4008
      %v4121 = vpack.c.b16 %v4011, %v4009
      %v4122 = vpack.c.b16 %v4014, %v4012
      %v4123 = vpack.c.b16 %v4015, %v4013
      %v4124 = vpack.c.b16 %v4018, %v4016
      %v4125 = vpack.c.b16 %v4019, %v4017
      %v4126 = vpack.c.b16 %v4022, %v4020
      %v4127 = vpack.c.b16 %v4023, %v4021
      %v4128 = vpack.c.b16 %v4026, %v4024
      %v4129 = vpack.c.b16 %v4027, %v4025
      %v4130 = vpack.c.b16 %v4030, %v4028
      %v4131 = vpack.c.b16 %v4031, %v4029
      %v4132 = vpack.c.b16 %v4034, %v4032
      %v4133 = vpack.c.b16 %v4035, %v4033
      %v4134 = vpack.c.b16 %v4038, %v4036
      %v4135 = vpack.c.b16 %v4039, %v4037
      %4232 = vmatprep.subr.bf16.mxu0 %v4055
      %4233 = vmatpush1.bf16.msra.mxu0 %v4054
      %4234 = vmatprep.subr.bf16.mxu0 %v4053
      %4235 = vmatpush1.bf16.msra.mxu0 %v4052
      %4236 = vmatprep.subr.bf16.mxu0 %v4051
      %4237 = vmatpush1.bf16.msra.mxu0 %v4050
      %4238 = vmatprep.subr.bf16.mxu0 %v4049
      %4239 = vmatpush1.bf16.msra.mxu0 %v4048
      %4240 = vmatprep.subr.bf16.mxu0 %v4047
      %4241 = vmatpush1.bf16.msra.mxu0 %v4046
      %4242 = vmatprep.subr.bf16.mxu0 %v4045
      %4243 = vmatpush1.bf16.msra.mxu0 %v4044
      %4244 = vmatprep.subr.bf16.mxu0 %v4043
      %4245 = vmatpush1.bf16.msra.mxu0 %v4042
      %4246 = vmatprep.subr.bf16.mxu0 %v4041
      %4247 = vmatpush1.bf16.msra.mxu0 %v4040
      %4248 = vmatprep.subr.bf16.mxu0 %v4071
      %4249 = vmatpush2.bf16.msra.mxu0 %v4070
      %4250 = vmatprep.subr.bf16.mxu0 %v4069
      %4251 = vmatpush2.bf16.msra.mxu0 %v4068
      %4252 = vmatprep.subr.bf16.mxu0 %v4067
      %4253 = vmatpush2.bf16.msra.mxu0 %v4066
      %4254 = vmatprep.subr.bf16.mxu0 %v4065
      %4255 = vmatpush2.bf16.msra.mxu0 %v4064
      %4256 = vmatprep.subr.bf16.mxu0 %v4063
      %4257 = vmatpush2.bf16.msra.mxu0 %v4062
      %4258 = vmatprep.subr.bf16.mxu0 %v4061
      %4259 = vmatpush2.bf16.msra.mxu0 %v4060
      %4260 = vmatprep.subr.bf16.mxu0 %v4059
      %4261 = vmatpush2.bf16.msra.mxu0 %v4058
      %4262 = vmatprep.subr.bf16.mxu0 %v4057
      %4263 = vmatpush2.bf16.msra.mxu0 %v4056
      %4264 = vmatprep.mubr.bf16.mxu0 %v3468
      %4265 = vmatmul.mubr.bf16.gmra.mxu0 %v3465
      %v4266 = vpop.f32.mrf.mxu0
      %v4267 = vadd.f32 0.0, %v4266
      %v4268 = vpop.f32.mrf.mxu0
      %v4269 = vadd.f32 0.0, %v4268
      %v4270 = vpop.f32.mrf.mxu0
      %v4271 = vadd.f32 0.0, %v4270
      %v4272 = vpop.f32.mrf.mxu0
      %v4273 = vadd.f32 0.0, %v4272
      %4274 = vmatprep.mubr.bf16.mxu0 %v3484
      %4275 = vmatmul.mubr.bf16.gmra.mxu0 %v3482
      %v4276 = vpop.f32.mrf.mxu0
      %v4277 = vadd.f32 0.0, %v4276
      %v4278 = vpop.f32.mrf.mxu0
      %v4279 = vadd.f32 0.0, %v4278
      %v4280 = vpop.f32.mrf.mxu0
      %v4281 = vadd.f32 0.0, %v4280
      %v4282 = vpop.f32.mrf.mxu0
      %v4283 = vadd.f32 0.0, %v4282
      %4284 = vmatprep.mubr.bf16.mxu0 %v3496
      %4285 = vmatmul.mubr.bf16.gmra.mxu0 %v3494
      %v4286 = vpop.f32.mrf.mxu0
      %v4287 = vadd.f32 0.0, %v4286
      %v4288 = vpop.f32.mrf.mxu0
      %v4289 = vadd.f32 0.0, %v4288
      %v4290 = vpop.f32.mrf.mxu0
      %v4291 = vadd.f32 0.0, %v4290
      %v4292 = vpop.f32.mrf.mxu0
      %v4293 = vadd.f32 0.0, %v4292
      %4294 = vmatprep.mubr.bf16.mxu0 %v3508
      %4295 = vmatmul.mubr.bf16.gmra.mxu0 %v3506
      %v4296 = vpop.f32.mrf.mxu0
      %v4297 = vadd.f32 0.0, %v4296
      %v4298 = vpop.f32.mrf.mxu0
      %v4299 = vadd.f32 0.0, %v4298
      %v4300 = vpop.f32.mrf.mxu0
      %v4301 = vadd.f32 0.0, %v4300
      %v4302 = vpop.f32.mrf.mxu0
      %v4303 = vadd.f32 0.0, %v4302
      %4304 = vmatprep.mubr.bf16.mxu0 %v3520
      %4305 = vmatmul.mubr.bf16.gmra.mxu0 %v3518
      %v4306 = vpop.f32.mrf.mxu0
      %v4307 = vadd.f32 0.0, %v4306
      %v4308 = vpop.f32.mrf.mxu0
      %v4309 = vadd.f32 0.0, %v4308
      %v4310 = vpop.f32.mrf.mxu0
      %v4311 = vadd.f32 0.0, %v4310
      %v4312 = vpop.f32.mrf.mxu0
      %v4313 = vadd.f32 0.0, %v4312
      %4314 = vmatprep.mubr.bf16.mxu0 %v3534
      %4315 = vmatmul.mubr.bf16.gmra.mxu0 %v3531
      %v4316 = vpop.f32.mrf.mxu0
      %v4317 = vadd.f32 0.0, %v4316
      %v4318 = vpop.f32.mrf.mxu0
      %v4319 = vadd.f32 0.0, %v4318
      %v4320 = vpop.f32.mrf.mxu0
      %v4321 = vadd.f32 0.0, %v4320
      %v4322 = vpop.f32.mrf.mxu0
      %v4323 = vadd.f32 0.0, %v4322
      %4324 = vmatprep.mubr.bf16.mxu0 %v3550
      %4325 = vmatmul.mubr.bf16.gmra.mxu0 %v3548
      %v4326 = vpop.f32.mrf.mxu0
      %v4327 = vadd.f32 0.0, %v4326
      %v4328 = vpop.f32.mrf.mxu0
      %v4329 = vadd.f32 0.0, %v4328
      %v4330 = vpop.f32.mrf.mxu0
      %v4331 = vadd.f32 0.0, %v4330
      %v4332 = vpop.f32.mrf.mxu0
      %v4333 = vadd.f32 0.0, %v4332
      %4334 = vmatprep.mubr.bf16.mxu0 %v3562
      %4335 = vmatmul.mubr.bf16.gmra.mxu0 %v3560
      %v4336 = vpop.f32.mrf.mxu0
      %v4337 = vadd.f32 0.0, %v4336
      %v4338 = vpop.f32.mrf.mxu0
      %v4339 = vadd.f32 0.0, %v4338
      %v4340 = vpop.f32.mrf.mxu0
      %v4341 = vadd.f32 0.0, %v4340
      %v4342 = vpop.f32.mrf.mxu0
      %v4343 = vadd.f32 0.0, %v4342
      %4344 = vmatprep.mubr.bf16.mxu0 %v3574
      %4345 = vmatmul.mubr.bf16.gmra.mxu0 %v3572
      %v4346 = vpop.f32.mrf.mxu0
      %v4347 = vadd.f32 0.0, %v4346
      %v4348 = vpop.f32.mrf.mxu0
      %v4349 = vadd.f32 0.0, %v4348
      %v4350 = vpop.f32.mrf.mxu0
      %v4351 = vadd.f32 0.0, %v4350
      %v4352 = vpop.f32.mrf.mxu0
      %v4353 = vadd.f32 0.0, %v4352
      %4354 = vmatprep.mubr.bf16.mxu0 %v3586
      %4355 = vmatmul.mubr.bf16.gmra.mxu0 %v3584
      %v4356 = vpop.f32.mrf.mxu0
      %v4357 = vadd.f32 0.0, %v4356
      %v4358 = vpop.f32.mrf.mxu0
      %v4359 = vadd.f32 0.0, %v4358
      %v4360 = vpop.f32.mrf.mxu0
      %v4361 = vadd.f32 0.0, %v4360
      %v4362 = vpop.f32.mrf.mxu0
      %v4363 = vadd.f32 0.0, %v4362
      %4364 = vdwg.mxu0
      %4365 = vmatprep.subr.bf16.mxu0 %v4087
      %4366 = vmatpush1.bf16.msra.mxu0 %v4086
      %4367 = vmatprep.subr.bf16.mxu0 %v4085
      %4368 = vmatpush1.bf16.msra.mxu0 %v4084
      %4369 = vmatprep.subr.bf16.mxu0 %v4083
      %4370 = vmatpush1.bf16.msra.mxu0 %v4082
      %4371 = vmatprep.subr.bf16.mxu0 %v4081
      %4372 = vmatpush1.bf16.msra.mxu0 %v4080
      %4373 = vmatprep.subr.bf16.mxu0 %v4079
      %4374 = vmatpush1.bf16.msra.mxu0 %v4078
      %4375 = vmatprep.subr.bf16.mxu0 %v4077
      %4376 = vmatpush1.bf16.msra.mxu0 %v4076
      %4377 = vmatprep.subr.bf16.mxu0 %v4075
      %4378 = vmatpush1.bf16.msra.mxu0 %v4074
      %4379 = vmatprep.subr.bf16.mxu0 %v4073
      %4380 = vmatpush1.bf16.msra.mxu0 %v4072
      %4381 = vmatprep.subr.bf16.mxu0 %v4103
      %4382 = vmatpush2.bf16.msra.mxu0 %v4102
      %4383 = vmatprep.subr.bf16.mxu0 %v4101
      %4384 = vmatpush2.bf16.msra.mxu0 %v4100
      %4385 = vmatprep.subr.bf16.mxu0 %v4099
      %4386 = vmatpush2.bf16.msra.mxu0 %v4098
      %4387 = vmatprep.subr.bf16.mxu0 %v4097
      %4388 = vmatpush2.bf16.msra.mxu0 %v4096
      %4389 = vmatprep.subr.bf16.mxu0 %v4095
      %4390 = vmatpush2.bf16.msra.mxu0 %v4094
      %4391 = vmatprep.subr.bf16.mxu0 %v4093
      %4392 = vmatpush2.bf16.msra.mxu0 %v4092
      %4393 = vmatprep.subr.bf16.mxu0 %v4091
      %4394 = vmatpush2.bf16.msra.mxu0 %v4090
      %4395 = vmatprep.subr.bf16.mxu0 %v4089
      %4396 = vmatpush2.bf16.msra.mxu0 %v4088
      %4397 = vmatprep.mubr.bf16.mxu0 %v3474
      %4398 = vmatmul.mubr.bf16.gmra.mxu0 %v3471
      %v4399 = vpop.f32.mrf.mxu0
      %v4400 = vadd.f32 %v4267, %v4399
      %v4401 = vpop.f32.mrf.mxu0
      %v4402 = vadd.f32 %v4269, %v4401
      %v4403 = vpop.f32.mrf.mxu0
      %v4404 = vadd.f32 %v4271, %v4403
      %v4405 = vpop.f32.mrf.mxu0
      %v4406 = vadd.f32 %v4273, %v4405
      %4407 = vmatprep.mubr.bf16.mxu0 %v3488
      %4408 = vmatmul.mubr.bf16.gmra.mxu0 %v3486
      %v4409 = vpop.f32.mrf.mxu0
      %v4410 = vadd.f32 %v4277, %v4409
      %v4411 = vpop.f32.mrf.mxu0
      %v4412 = vadd.f32 %v4279, %v4411
      %v4413 = vpop.f32.mrf.mxu0
      %v4414 = vadd.f32 %v4281, %v4413
      %v4415 = vpop.f32.mrf.mxu0
      %v4416 = vadd.f32 %v4283, %v4415
      %4417 = vmatprep.mubr.bf16.mxu0 %v3500
      %4418 = vmatmul.mubr.bf16.gmra.mxu0 %v3498
      %v4419 = vpop.f32.mrf.mxu0
      %v4420 = vadd.f32 %v4287, %v4419
      %v4421 = vpop.f32.mrf.mxu0
      %v4422 = vadd.f32 %v4289, %v4421
      %v4423 = vpop.f32.mrf.mxu0
      %v4424 = vadd.f32 %v4291, %v4423
      %v4425 = vpop.f32.mrf.mxu0
      %v4426 = vadd.f32 %v4293, %v4425
      %4427 = vmatprep.mubr.bf16.mxu0 %v3512
      %4428 = vmatmul.mubr.bf16.gmra.mxu0 %v3510
      %v4429 = vpop.f32.mrf.mxu0
      %v4430 = vadd.f32 %v4297, %v4429
      %v4431 = vpop.f32.mrf.mxu0
      %v4432 = vadd.f32 %v4299, %v4431
      %v4433 = vpop.f32.mrf.mxu0
      %v4434 = vadd.f32 %v4301, %v4433
      %v4435 = vpop.f32.mrf.mxu0
      %v4436 = vadd.f32 %v4303, %v4435
      %4437 = vmatprep.mubr.bf16.mxu0 %v3524
      %4438 = vmatmul.mubr.bf16.gmra.mxu0 %v3522
      %v4439 = vpop.f32.mrf.mxu0
      %v4440 = vadd.f32 %v4307, %v4439
      %v4441 = vpop.f32.mrf.mxu0
      %v4442 = vadd.f32 %v4309, %v4441
      %v4443 = vpop.f32.mrf.mxu0
      %v4444 = vadd.f32 %v4311, %v4443
      %v4445 = vpop.f32.mrf.mxu0
      %v4446 = vadd.f32 %v4313, %v4445
      %4447 = vmatprep.mubr.bf16.mxu0 %v3540
      %4448 = vmatmul.mubr.bf16.gmra.mxu0 %v3537
      %v4449 = vpop.f32.mrf.mxu0
      %v4450 = vadd.f32 %v4317, %v4449
      %v4451 = vpop.f32.mrf.mxu0
      %v4452 = vadd.f32 %v4319, %v4451
      %v4453 = vpop.f32.mrf.mxu0
      %v4454 = vadd.f32 %v4321, %v4453
      %v4455 = vpop.f32.mrf.mxu0
      %v4456 = vadd.f32 %v4323, %v4455
      %4457 = vmatprep.mubr.bf16.mxu0 %v3554
      %4458 = vmatmul.mubr.bf16.gmra.mxu0 %v3552
      %v4459 = vpop.f32.mrf.mxu0
      %v4460 = vadd.f32 %v4327, %v4459
      %v4461 = vpop.f32.mrf.mxu0
      %v4462 = vadd.f32 %v4329, %v4461
      %v4463 = vpop.f32.mrf.mxu0
      %v4464 = vadd.f32 %v4331, %v4463
      %v4465 = vpop.f32.mrf.mxu0
      %v4466 = vadd.f32 %v4333, %v4465
      %4467 = vmatprep.mubr.bf16.mxu0 %v3566
      %4468 = vmatmul.mubr.bf16.gmra.mxu0 %v3564
      %v4469 = vpop.f32.mrf.mxu0
      %v4470 = vadd.f32 %v4337, %v4469
      %v4471 = vpop.f32.mrf.mxu0
      %v4472 = vadd.f32 %v4339, %v4471
      %v4473 = vpop.f32.mrf.mxu0
      %v4474 = vadd.f32 %v4341, %v4473
      %v4475 = vpop.f32.mrf.mxu0
      %v4476 = vadd.f32 %v4343, %v4475
      %4477 = vmatprep.mubr.bf16.mxu0 %v3578
      %4478 = vmatmul.mubr.bf16.gmra.mxu0 %v3576
      %v4479 = vpop.f32.mrf.mxu0
      %v4480 = vadd.f32 %v4347, %v4479
      %v4481 = vpop.f32.mrf.mxu0
      %v4482 = vadd.f32 %v4349, %v4481
      %v4483 = vpop.f32.mrf.mxu0
      %v4484 = vadd.f32 %v4351, %v4483
      %v4485 = vpop.f32.mrf.mxu0
      %v4486 = vadd.f32 %v4353, %v4485
      %4487 = vmatprep.mubr.bf16.mxu0 %v3590
      %4488 = vmatmul.mubr.bf16.gmra.mxu0 %v3588
      %v4489 = vpop.f32.mrf.mxu0
      %v4490 = vadd.f32 %v4357, %v4489
      %v4491 = vpop.f32.mrf.mxu0
      %v4492 = vadd.f32 %v4359, %v4491
      %v4493 = vpop.f32.mrf.mxu0
      %v4494 = vadd.f32 %v4361, %v4493
      %v4495 = vpop.f32.mrf.mxu0
      %v4496 = vadd.f32 %v4363, %v4495
      %4497 = vdwg.mxu0
      %4498 = vmatprep.subr.bf16.mxu0 %v4119
      %4499 = vmatpush1.bf16.msra.mxu0 %v4118
      %4500 = vmatprep.subr.bf16.mxu0 %v4117
      %4501 = vmatpush1.bf16.msra.mxu0 %v4116
      %4502 = vmatprep.subr.bf16.mxu0 %v4115
      %4503 = vmatpush1.bf16.msra.mxu0 %v4114
      %4504 = vmatprep.subr.bf16.mxu0 %v4113
      %4505 = vmatpush1.bf16.msra.mxu0 %v4112
      %4506 = vmatprep.subr.bf16.mxu0 %v4111
      %4507 = vmatpush1.bf16.msra.mxu0 %v4110
      %4508 = vmatprep.subr.bf16.mxu0 %v4109
      %4509 = vmatpush1.bf16.msra.mxu0 %v4108
      %4510 = vmatprep.subr.bf16.mxu0 %v4107
      %4511 = vmatpush1.bf16.msra.mxu0 %v4106
      %4512 = vmatprep.subr.bf16.mxu0 %v4105
      %4513 = vmatpush1.bf16.msra.mxu0 %v4104
      %4514 = vmatprep.subr.bf16.mxu0 %v4135
      %4515 = vmatpush2.bf16.msra.mxu0 %v4134
      %4516 = vmatprep.subr.bf16.mxu0 %v4133
      %4517 = vmatpush2.bf16.msra.mxu0 %v4132
      %4518 = vmatprep.subr.bf16.mxu0 %v4131
      %4519 = vmatpush2.bf16.msra.mxu0 %v4130
      %4520 = vmatprep.subr.bf16.mxu0 %v4129
      %4521 = vmatpush2.bf16.msra.mxu0 %v4128
      %4522 = vmatprep.subr.bf16.mxu0 %v4127
      %4523 = vmatpush2.bf16.msra.mxu0 %v4126
      %4524 = vmatprep.subr.bf16.mxu0 %v4125
      %4525 = vmatpush2.bf16.msra.mxu0 %v4124
      %4526 = vmatprep.subr.bf16.mxu0 %v4123
      %4527 = vmatpush2.bf16.msra.mxu0 %v4122
      %4528 = vmatprep.subr.bf16.mxu0 %v4121
      %4529 = vmatpush2.bf16.msra.mxu0 %v4120
      %4530 = vmatprep.mubr.bf16.mxu0 %v3480
      %4531 = vmatmul.mubr.bf16.gmra.mxu0 %v3477
      %v4532 = vpop.f32.mrf.mxu0
      %v4533 = vadd.f32 %v4400, %v4532
      %v4534 = vpop.f32.mrf.mxu0
      %v4535 = vadd.f32 %v4402, %v4534
      %v4536 = vpop.f32.mrf.mxu0
      %v4537 = vadd.f32 %v4404, %v4536
      %v4538 = vpop.f32.mrf.mxu0
      %v4539 = vadd.f32 %v4406, %v4538
      %4540 = vmatprep.mubr.bf16.mxu0 %v3492
      %4541 = vmatmul.mubr.bf16.gmra.mxu0 %v3490
      %v4542 = vpop.f32.mrf.mxu0
      %v4543 = vadd.f32 %v4410, %v4542
      %v4544 = vpop.f32.mrf.mxu0
      %v4545 = vadd.f32 %v4412, %v4544
      %v4546 = vpop.f32.mrf.mxu0
      %v4547 = vadd.f32 %v4414, %v4546
      %v4548 = vpop.f32.mrf.mxu0
      %v4549 = vadd.f32 %v4416, %v4548
      %4550 = vmatprep.mubr.bf16.mxu0 %v3504
      %4551 = vmatmul.mubr.bf16.gmra.mxu0 %v3502
      %v4552 = vpop.f32.mrf.mxu0
      %v4553 = vadd.f32 %v4420, %v4552
      %v4554 = vpop.f32.mrf.mxu0
      %v4555 = vadd.f32 %v4422, %v4554
      %v4556 = vpop.f32.mrf.mxu0
      %v4557 = vadd.f32 %v4424, %v4556
      %v4558 = vpop.f32.mrf.mxu0
      %v4559 = vadd.f32 %v4426, %v4558
      %4560 = vmatprep.mubr.bf16.mxu0 %v3516
      %4561 = vmatmul.mubr.bf16.gmra.mxu0 %v3514
      %v4562 = vpop.f32.mrf.mxu0
      %v4563 = vadd.f32 %v4430, %v4562
      %v4564 = vpop.f32.mrf.mxu0
      %v4565 = vadd.f32 %v4432, %v4564
      %v4566 = vpop.f32.mrf.mxu0
      %v4567 = vadd.f32 %v4434, %v4566
      %v4568 = vpop.f32.mrf.mxu0
      %v4569 = vadd.f32 %v4436, %v4568
      %4570 = vmatprep.mubr.bf16.mxu0 %v3528
      %4571 = vmatmul.mubr.bf16.gmra.mxu0 %v3526
      %v4572 = vpop.f32.mrf.mxu0
      %v4573 = vadd.f32 %v4440, %v4572
      %v4574 = vpop.f32.mrf.mxu0
      %v4575 = vadd.f32 %v4442, %v4574
      %v4576 = vpop.f32.mrf.mxu0
      %v4577 = vadd.f32 %v4444, %v4576
      %v4578 = vpop.f32.mrf.mxu0
      %v4579 = vadd.f32 %v4446, %v4578
      %4580 = vmatprep.mubr.bf16.mxu0 %v3546
      %4581 = vmatmul.mubr.bf16.gmra.mxu0 %v3543
      %v4582 = vpop.f32.mrf.mxu0
      %v4583 = vadd.f32 %v4450, %v4582
      %v4584 = vpop.f32.mrf.mxu0
      %v4585 = vadd.f32 %v4452, %v4584
      %v4586 = vpop.f32.mrf.mxu0
      %v4587 = vadd.f32 %v4454, %v4586
      %v4588 = vpop.f32.mrf.mxu0
      %v4589 = vadd.f32 %v4456, %v4588
      %4590 = vmatprep.mubr.bf16.mxu0 %v3558
      %4591 = vmatmul.mubr.bf16.gmra.mxu0 %v3556
      %v4592 = vpop.f32.mrf.mxu0
      %v4593 = vadd.f32 %v4460, %v4592
      %v4594 = vpop.f32.mrf.mxu0
      %v4595 = vadd.f32 %v4462, %v4594
      %v4596 = vpop.f32.mrf.mxu0
      %v4597 = vadd.f32 %v4464, %v4596
      %v4598 = vpop.f32.mrf.mxu0
      %v4599 = vadd.f32 %v4466, %v4598
      %4600 = vmatprep.mubr.bf16.mxu0 %v3570
      %4601 = vmatmul.mubr.bf16.gmra.mxu0 %v3568
      %v4602 = vpop.f32.mrf.mxu0
      %v4603 = vadd.f32 %v4470, %v4602
      %v4604 = vpop.f32.mrf.mxu0
      %v4605 = vadd.f32 %v4472, %v4604
      %v4606 = vpop.f32.mrf.mxu0
      %v4607 = vadd.f32 %v4474, %v4606
      %v4608 = vpop.f32.mrf.mxu0
      %v4609 = vadd.f32 %v4476, %v4608
      %4610 = vmatprep.mubr.bf16.mxu0 %v3582
      %4611 = vmatmul.mubr.bf16.gmra.mxu0 %v3580
      %v4612 = vpop.f32.mrf.mxu0
      %v4613 = vadd.f32 %v4480, %v4612
      %v4614 = vpop.f32.mrf.mxu0
      %v4615 = vadd.f32 %v4482, %v4614
      %v4616 = vpop.f32.mrf.mxu0
      %v4617 = vadd.f32 %v4484, %v4616
      %v4618 = vpop.f32.mrf.mxu0
      %v4619 = vadd.f32 %v4486, %v4618
      %4620 = vmatprep.mubr.bf16.mxu0 %v3594
      %4621 = vmatmul.mubr.bf16.gmra.mxu0 %v3592
      %v4622 = vpop.f32.mrf.mxu0
      %v4623 = vadd.f32 %v4490, %v4622
      %v4624 = vpop.f32.mrf.mxu0
      %v4625 = vadd.f32 %v4492, %v4624
      %v4626 = vpop.f32.mrf.mxu0
      %v4627 = vadd.f32 %v4494, %v4626
      %v4628 = vpop.f32.mrf.mxu0
      %v4629 = vadd.f32 %v4496, %v4628
      %4630 = vdwg.mxu0
      %v4631 = vadd.f32 %v2996, %v4533
      %v4632 = vadd.f32 %v2998, %v4535
      %v4633 = vadd.f32 %v3000, %v4537
      %v4634 = vadd.f32 %v3002, %v4539
      %v4635 = vadd.f32 %v3006, %v4543
      %v4636 = vadd.f32 %v3008, %v4545
      %v4637 = vadd.f32 %v3010, %v4547
      %v4638 = vadd.f32 %v3012, %v4549
      %v4639 = vadd.f32 %v3016, %v4553
      %v4640 = vadd.f32 %v3018, %v4555
      %v4641 = vadd.f32 %v3020, %v4557
      %v4642 = vadd.f32 %v3022, %v4559
      %v4643 = vadd.f32 %v3026, %v4563
      %v4644 = vadd.f32 %v3028, %v4565
      %v4645 = vadd.f32 %v3030, %v4567
      %v4646 = vadd.f32 %v3032, %v4569
      %v4647 = vadd.f32 %v3036, %v4573
      %v4648 = vadd.f32 %v3038, %v4575
      %v4649 = vadd.f32 %v3040, %v4577
      %v4650 = vadd.f32 %v3042, %v4579
      %v4651 = vadd.f32 %v3046, %v4583
      %v4652 = vadd.f32 %v3048, %v4585
      %v4653 = vadd.f32 %v3050, %v4587
      %v4654 = vadd.f32 %v3052, %v4589
      %v4655 = vadd.f32 %v3056, %v4593
      %v4656 = vadd.f32 %v3058, %v4595
      %v4657 = vadd.f32 %v3060, %v4597
      %v4658 = vadd.f32 %v3062, %v4599
      %v4659 = vadd.f32 %v3066, %v4603
      %v4660 = vadd.f32 %v3068, %v4605
      %v4661 = vadd.f32 %v3070, %v4607
      %v4662 = vadd.f32 %v3072, %v4609
      %v4663 = vadd.f32 %v3076, %v4613
      %v4664 = vadd.f32 %v3078, %v4615
      %v4665 = vadd.f32 %v3080, %v4617
      %v4666 = vadd.f32 %v3082, %v4619
      %v4667 = vadd.f32 %v3086, %v4623
      %v4668 = vadd.f32 %v3088, %v4625
      %v4669 = vadd.f32 %v3090, %v4627
      %v4670 = vadd.f32 %v3092, %v4629
      %v4671 = vld [vmem:[%s2] sm:$0x3]
      %v4673 = vlaneseq
      %v4674 = vshrl.u32 %v4673, 7
      %v4675 = vsub.s32 0, %v4674
      %v4676 = vrot.slane %v4671, %v4675
      %v4677 = vlaneseq
      %v4678 = vshrl.u32 %v4677, 7
      %v4679 = vsub.s32 1, %v4678
      %v4680 = vrot.slane %v4671, %v4679
      %v4683 = vadd.f32 %v4631, %v4676
      %v4684 = vadd.f32 %v4632, %v4680
      %v4685 = vadd.f32 %v4633, %v4676
      %v4686 = vadd.f32 %v4634, %v4680
      %v4687 = vadd.f32 %v4635, %v4676
      %v4688 = vadd.f32 %v4636, %v4680
      %v4689 = vadd.f32 %v4637, %v4676
      %v4690 = vadd.f32 %v4638, %v4680
      %v4691 = vadd.f32 %v4639, %v4676
      %v4692 = vadd.f32 %v4640, %v4680
      %v4693 = vadd.f32 %v4641, %v4676
      %v4694 = vadd.f32 %v4642, %v4680
      %v4695 = vadd.f32 %v4643, %v4676
      %v4696 = vadd.f32 %v4644, %v4680
      %v4697 = vadd.f32 %v4645, %v4676
      %v4698 = vadd.f32 %v4646, %v4680
      %v4699 = vadd.f32 %v4647, %v4676
      %v4700 = vadd.f32 %v4648, %v4680
      %v4701 = vadd.f32 %v4649, %v4676
      %v4702 = vadd.f32 %v4650, %v4680
      %v4703 = vadd.f32 %v4651, %v4676
      %v4704 = vadd.f32 %v4652, %v4680
      %v4705 = vadd.f32 %v4653, %v4676
      %v4706 = vadd.f32 %v4654, %v4680
      %v4707 = vadd.f32 %v4655, %v4676
      %v4708 = vadd.f32 %v4656, %v4680
      %v4709 = vadd.f32 %v4657, %v4676
      %v4710 = vadd.f32 %v4658, %v4680
      %v4711 = vadd.f32 %v4659, %v4676
      %v4712 = vadd.f32 %v4660, %v4680
      %v4713 = vadd.f32 %v4661, %v4676
      %v4714 = vadd.f32 %v4662, %v4680
      %v4715 = vadd.f32 %v4663, %v4676
      %v4716 = vadd.f32 %v4664, %v4680
      %v4717 = vadd.f32 %v4665, %v4676
      %v4718 = vadd.f32 %v4666, %v4680
      %v4719 = vadd.f32 %v4667, %v4676
      %v4720 = vadd.f32 %v4668, %v4680
      %v4721 = vadd.f32 %v4669, %v4676
      %v4722 = vadd.f32 %v4670, %v4680
      %v4723 = vmax.f32 %v4683, 0.0
      %v4724 = vmax.f32 %v4684, 0.0
      %v4725 = vmax.f32 %v4685, 0.0
      %v4726 = vmax.f32 %v4686, 0.0
      %v4727 = vmax.f32 %v4687, 0.0
      %v4728 = vmax.f32 %v4688, 0.0
      %v4729 = vmax.f32 %v4689, 0.0
      %v4730 = vmax.f32 %v4690, 0.0
      %v4731 = vmax.f32 %v4691, 0.0
      %v4732 = vmax.f32 %v4692, 0.0
      %v4733 = vmax.f32 %v4693, 0.0
      %v4734 = vmax.f32 %v4694, 0.0
      %v4735 = vmax.f32 %v4695, 0.0
      %v4736 = vmax.f32 %v4696, 0.0
      %v4737 = vmax.f32 %v4697, 0.0
      %v4738 = vmax.f32 %v4698, 0.0
      %v4739 = vmax.f32 %v4699, 0.0
      %v4740 = vmax.f32 %v4700, 0.0
      %v4741 = vmax.f32 %v4701, 0.0
      %v4742 = vmax.f32 %v4702, 0.0
      %v4743 = vmax.f32 %v4703, 0.0
      %v4744 = vmax.f32 %v4704, 0.0
      %v4745 = vmax.f32 %v4705, 0.0
      %v4746 = vmax.f32 %v4706, 0.0
      %v4747 = vmax.f32 %v4707, 0.0
      %v4748 = vmax.f32 %v4708, 0.0
      %v4749 = vmax.f32 %v4709, 0.0
      %v4750 = vmax.f32 %v4710, 0.0
      %v4751 = vmax.f32 %v4711, 0.0
      %v4752 = vmax.f32 %v4712, 0.0
      %v4753 = vmax.f32 %v4713, 0.0
      %v4754 = vmax.f32 %v4714, 0.0
      %v4755 = vmax.f32 %v4715, 0.0
      %v4756 = vmax.f32 %v4716, 0.0
      %v4757 = vmax.f32 %v4717, 0.0
      %v4758 = vmax.f32 %v4718, 0.0
      %v4759 = vmax.f32 %v4719, 0.0
      %v4760 = vmax.f32 %v4720, 0.0
      %v4761 = vmax.f32 %v4721, 0.0
      %v4762 = vmax.f32 %v4722, 0.0
      %v4763 = vld [vmem:[%s5] sm:$0xff]
      %v4764 = vld [vmem:[%s5 + $0x8] sm:$0xff]
      %v4765 = vld [vmem:[%s5 + $0x10] sm:$0xff]
      %v4766 = vld [vmem:[%s5 + $0x18] sm:$0xff]
      %v4767 = vld [vmem:[%s5 + $0x20] sm:$0xff]
      %v4768 = vld [vmem:[%s5 + $0x28] sm:$0xff]
      %v4769 = vld [vmem:[%s5 + $0x30] sm:$0xff]
      %v4770 = vld [vmem:[%s5 + $0x38] sm:$0xff]
      %v4771 = vld [vmem:[%s5 + $0x40] sm:$0xff]
      %v4772 = vld [vmem:[%s5 + $0x48] sm:$0xff]
      %v4773 = vld [vmem:[%s5 + $0x50] sm:$0xff]
      %v4774 = vld [vmem:[%s5 + $0x58] sm:$0xff]
      %v4775 = vld [vmem:[%s5 + $0x60] sm:$0xff]
      %v4776 = vld [vmem:[%s5 + $0x68] sm:$0xff]
      %v4777 = vld [vmem:[%s5 + $0x70] sm:$0xff]
      %v4778 = vld [vmem:[%s5 + $0x78] sm:$0xff]
      %v4779 = vld [vmem:[%s5 + $0x80] sm:$0xff]
      %v4780 = vld [vmem:[%s5 + $0x88] sm:$0xff]
      %v4781 = vld [vmem:[%s5 + $0x90] sm:$0xff]
      %v4782 = vld [vmem:[%s5 + $0x98] sm:$0xff]
      %4784 = vset.pattern.permute.xlu0 0
      %4785 = vperm.xlu0 %4784, %v4763
      %v4786 = vpop.permute.xlu0 %4785
      %4789 = vset.pattern.permute.xlu0 0
      %4790 = vperm.xlu0 %4789, %v4764
      %v4791 = vpop.permute.xlu0 %4790
      %4794 = vset.pattern.permute.xlu0 0
      %4795 = vperm.xlu0 %4794, %v4765
      %v4796 = vpop.permute.xlu0 %4795
      %4799 = vset.pattern.permute.xlu0 0
      %4800 = vperm.xlu0 %4799, %v4766
      %v4801 = vpop.permute.xlu0 %4800
      %4804 = vset.pattern.permute.xlu0 0
      %4805 = vperm.xlu0 %4804, %v4767
      %v4806 = vpop.permute.xlu0 %4805
      %4809 = vset.pattern.permute.xlu0 0
      %4810 = vperm.xlu0 %4809, %v4768
      %v4811 = vpop.permute.xlu0 %4810
      %4814 = vset.pattern.permute.xlu0 0
      %4815 = vperm.xlu0 %4814, %v4769
      %v4816 = vpop.permute.xlu0 %4815
      %4819 = vset.pattern.permute.xlu0 0
      %4820 = vperm.xlu0 %4819, %v4770
      %v4821 = vpop.permute.xlu0 %4820
      %4824 = vset.pattern.permute.xlu0 0
      %4825 = vperm.xlu0 %4824, %v4771
      %v4826 = vpop.permute.xlu0 %4825
      %4829 = vset.pattern.permute.xlu0 0
      %4830 = vperm.xlu0 %4829, %v4772
      %v4831 = vpop.permute.xlu0 %4830
      %4834 = vset.pattern.permute.xlu0 0
      %4835 = vperm.xlu0 %4834, %v4773
      %v4836 = vpop.permute.xlu0 %4835
      %4839 = vset.pattern.permute.xlu0 0
      %4840 = vperm.xlu0 %4839, %v4774
      %v4841 = vpop.permute.xlu0 %4840
      %4844 = vset.pattern.permute.xlu0 0
      %4845 = vperm.xlu0 %4844, %v4775
      %v4846 = vpop.permute.xlu0 %4845
      %4849 = vset.pattern.permute.xlu0 0
      %4850 = vperm.xlu0 %4849, %v4776
      %v4851 = vpop.permute.xlu0 %4850
      %4854 = vset.pattern.permute.xlu0 0
      %4855 = vperm.xlu0 %4854, %v4777
      %v4856 = vpop.permute.xlu0 %4855
      %4859 = vset.pattern.permute.xlu0 0
      %4860 = vperm.xlu0 %4859, %v4778
      %v4861 = vpop.permute.xlu0 %4860
      %4864 = vset.pattern.permute.xlu0 0
      %4865 = vperm.xlu0 %4864, %v4779
      %v4866 = vpop.permute.xlu0 %4865
      %4869 = vset.pattern.permute.xlu0 0
      %4870 = vperm.xlu0 %4869, %v4780
      %v4871 = vpop.permute.xlu0 %4870
      %4874 = vset.pattern.permute.xlu0 0
      %4875 = vperm.xlu0 %4874, %v4781
      %v4876 = vpop.permute.xlu0 %4875
      %4879 = vset.pattern.permute.xlu0 0
      %4880 = vperm.xlu0 %4879, %v4782
      %v4881 = vpop.permute.xlu0 %4880
      %v4883 = vmul.f32 %v4723, %v4786
      %v4884 = vmul.f32 %v4724, %v4786
      %v4885 = vmul.f32 %v4725, %v4791
      %v4886 = vmul.f32 %v4726, %v4791
      %v4887 = vmul.f32 %v4727, %v4796
      %v4888 = vmul.f32 %v4728, %v4796
      %v4889 = vmul.f32 %v4729, %v4801
      %v4890 = vmul.f32 %v4730, %v4801
      %v4891 = vmul.f32 %v4731, %v4806
      %v4892 = vmul.f32 %v4732, %v4806
      %v4893 = vmul.f32 %v4733, %v4811
      %v4894 = vmul.f32 %v4734, %v4811
      %v4895 = vmul.f32 %v4735, %v4816
      %v4896 = vmul.f32 %v4736, %v4816
      %v4897 = vmul.f32 %v4737, %v4821
      %v4898 = vmul.f32 %v4738, %v4821
      %v4899 = vmul.f32 %v4739, %v4826
      %v4900 = vmul.f32 %v4740, %v4826
      %v4901 = vmul.f32 %v4741, %v4831
      %v4902 = vmul.f32 %v4742, %v4831
      %v4903 = vmul.f32 %v4743, %v4836
      %v4904 = vmul.f32 %v4744, %v4836
      %v4905 = vmul.f32 %v4745, %v4841
      %v4906 = vmul.f32 %v4746, %v4841
      %v4907 = vmul.f32 %v4747, %v4846
      %v4908 = vmul.f32 %v4748, %v4846
      %v4909 = vmul.f32 %v4749, %v4851
      %v4910 = vmul.f32 %v4750, %v4851
      %v4911 = vmul.f32 %v4751, %v4856
      %v4912 = vmul.f32 %v4752, %v4856
      %v4913 = vmul.f32 %v4753, %v4861
      %v4914 = vmul.f32 %v4754, %v4861
      %v4915 = vmul.f32 %v4755, %v4866
      %v4916 = vmul.f32 %v4756, %v4866
      %v4917 = vmul.f32 %v4757, %v4871
      %v4918 = vmul.f32 %v4758, %v4871
      %v4919 = vmul.f32 %v4759, %v4876
      %v4920 = vmul.f32 %v4760, %v4876
      %v4921 = vmul.f32 %v4761, %v4881
      %v4922 = vmul.f32 %v4762, %v4881
      %v4923 = vpack.c.bf16 %v4885, %v4883
      %v4924 = vpack.c.bf16 %v4886, %v4884
      %v4925 = vpack.c.bf16 %v4889, %v4887
      %v4926 = vpack.c.bf16 %v4890, %v4888
      %v4927 = vpack.c.bf16 %v4893, %v4891
      %v4928 = vpack.c.bf16 %v4894, %v4892
      %v4929 = vpack.c.bf16 %v4897, %v4895
      %v4930 = vpack.c.bf16 %v4898, %v4896
      %v4931 = vpack.c.bf16 %v4901, %v4899
      %v4932 = vpack.c.bf16 %v4902, %v4900
      %v4933 = vpack.c.bf16 %v4905, %v4903
      %v4934 = vpack.c.bf16 %v4906, %v4904
      %v4935 = vpack.c.bf16 %v4909, %v4907
      %v4936 = vpack.c.bf16 %v4910, %v4908
      %v4937 = vpack.c.bf16 %v4913, %v4911
      %v4938 = vpack.c.bf16 %v4914, %v4912
      %v4939 = vpack.c.bf16 %v4917, %v4915
      %v4940 = vpack.c.bf16 %v4918, %v4916
      %v4941 = vpack.c.bf16 %v4921, %v4919
      %v4942 = vpack.c.bf16 %v4922, %v4920
      %v4963 = vunpack.c.l.b16 %v4923
      %v4964 = vunpack.c.l.b16 %v4924
      %v4965 = vunpack.c.h.b16 %v4923
      %v4966 = vunpack.c.h.b16 %v4924
      %v4967 = vunpack.c.l.b16 %v4925
      %v4968 = vunpack.c.l.b16 %v4926
      %v4969 = vunpack.c.h.b16 %v4925
      %v4970 = vunpack.c.h.b16 %v4926
      %v4971 = vunpack.c.l.b16 %v4927
      %v4972 = vunpack.c.l.b16 %v4928
      %v4973 = vunpack.c.h.b16 %v4927
      %v4974 = vunpack.c.h.b16 %v4928
      %v4975 = vunpack.c.l.b16 %v4929
      %v4976 = vunpack.c.l.b16 %v4930
      %v4977 = vunpack.c.h.b16 %v4929
      %v4978 = vunpack.c.h.b16 %v4930
      %v4979 = vunpack.c.l.b16 %v4931
      %v4980 = vunpack.c.l.b16 %v4932
      %v4981 = vunpack.c.h.b16 %v4931
      %v4982 = vunpack.c.h.b16 %v4932
      %v4983 = vunpack.c.l.b16 %v4933
      %v4984 = vunpack.c.l.b16 %v4934
      %v4985 = vunpack.c.h.b16 %v4933
      %v4986 = vunpack.c.h.b16 %v4934
      %v4987 = vunpack.c.l.b16 %v4935
      %v4988 = vunpack.c.l.b16 %v4936
      %v4989 = vunpack.c.h.b16 %v4935
      %v4990 = vunpack.c.h.b16 %v4936
      %v4991 = vunpack.c.l.b16 %v4937
      %v4992 = vunpack.c.l.b16 %v4938
      %v4993 = vunpack.c.h.b16 %v4937
      %v4994 = vunpack.c.h.b16 %v4938
      %v4995 = vunpack.c.l.b16 %v4939
      %v4996 = vunpack.c.l.b16 %v4940
      %v4997 = vunpack.c.h.b16 %v4939
      %v4998 = vunpack.c.h.b16 %v4940
      %v4999 = vunpack.c.l.b16 %v4941
      %v5000 = vunpack.c.l.b16 %v4942
      %v5001 = vunpack.c.h.b16 %v4941
      %v5002 = vunpack.c.h.b16 %v4942
      %v5003 = vpack.c.b16 %v4964, %v4963
      %v5004 = vpack.c.b16 %v4966, %v4965
      %v5005 = vpack.c.b16 %v4968, %v4967
      %v5006 = vpack.c.b16 %v4970, %v4969
      %v5007 = vpack.c.b16 %v4972, %v4971
      %v5008 = vpack.c.b16 %v4974, %v4973
      %v5009 = vpack.c.b16 %v4976, %v4975
      %v5010 = vpack.c.b16 %v4978, %v4977
      %v5011 = vpack.c.b16 %v4980, %v4979
      %v5012 = vpack.c.b16 %v4982, %v4981
      %v5013 = vpack.c.b16 %v4984, %v4983
      %v5014 = vpack.c.b16 %v4986, %v4985
      %v5015 = vpack.c.b16 %v4988, %v4987
      %v5016 = vpack.c.b16 %v4990, %v4989
      %v5017 = vpack.c.b16 %v4992, %v4991
      %v5018 = vpack.c.b16 %v4994, %v4993
      %v5019 = vpack.c.b16 %v4996, %v4995
      %v5020 = vpack.c.b16 %v4998, %v4997
      %v5021 = vpack.c.b16 %v5000, %v4999
      %v5022 = vpack.c.b16 %v5002, %v5001
      %5043 = vst [vmem:[#allocation2 + $0x10] sm:$0xff] %v5003
      %5044 = vst [vmem:[#allocation2 + $0x18] sm:$0xff] %v5004
      %5045 = vst [vmem:[#allocation2 + $0x20] sm:$0xff] %v5005
      %5046 = vst [vmem:[#allocation2 + $0x28] sm:$0xff] %v5006
      %5047 = vst [vmem:[#allocation2 + $0x30] sm:$0xff] %v5007
      %5048 = vst [vmem:[#allocation2 + $0x38] sm:$0xff] %v5008
      %5049 = vst [vmem:[#allocation2 + $0x40] sm:$0xff] %v5009
      %5050 = vst [vmem:[#allocation2 + $0x48] sm:$0xff] %v5010
      %5051 = vst [vmem:[#allocation2 + $0x50] sm:$0xff] %v5011
      %5052 = vst [vmem:[#allocation2 + $0x58] sm:$0xff] %v5012
      %5053 = vst [vmem:[#allocation2 + $0x80] sm:$0xff] %v5013
      %5054 = vst [vmem:[#allocation2 + $0x88] sm:$0xff] %v5014
      %5055 = vst [vmem:[#allocation2 + $0x90] sm:$0xff] %v5015
      %5056 = vst [vmem:[#allocation2 + $0x98] sm:$0xff] %v5016
      %5057 = vst [vmem:[#allocation2 + $0xa0] sm:$0xff] %v5017
      %5058 = vst [vmem:[#allocation2 + $0xa8] sm:$0xff] %v5018
      %5059 = vst [vmem:[#allocation2 + $0xb0] sm:$0xff] %v5019
      %5060 = vst [vmem:[#allocation2 + $0xb8] sm:$0xff] %v5020
      %5061 = vst [vmem:[#allocation2 + $0xc0] sm:$0xff] %v5021
      %5062 = vst [vmem:[#allocation2 + $0xc8] sm:$0xff] %v5022
      %v5063 = vld [vmem:[#allocation2] sm:$0xcc]
      %v5064 = vld [vmem:[#allocation2 + $0x8] sm:$0xff]
      %v5065 = vld [vmem:[#allocation2 + $0x10] sm:$0xff]
      %v5066 = vld [vmem:[#allocation2 + $0x18] sm:$0xff]
      %v5067 = vld [vmem:[#allocation2 + $0x20] sm:$0xff]
      %v5068 = vld [vmem:[#allocation2 + $0x28] sm:$0xff]
      %v5069 = vld [vmem:[#allocation2 + $0x30] sm:$0xff]
      %v5070 = vld [vmem:[#allocation2 + $0x38] sm:$0xff]
      %v5071 = vld [vmem:[#allocation2 + $0x40] sm:$0xff]
      %v5072 = vld [vmem:[#allocation2 + $0x48] sm:$0xff]
      %v5073 = vld [vmem:[#allocation2 + $0x50] sm:$0x77]
      %v5074 = vld [vmem:[#allocation2 + $0x70] sm:$0xcc]
      %v5075 = vld [vmem:[#allocation2 + $0x78] sm:$0xff]
      %v5076 = vld [vmem:[#allocation2 + $0x80] sm:$0xff]
      %v5077 = vld [vmem:[#allocation2 + $0x88] sm:$0xff]
      %v5078 = vld [vmem:[#allocation2 + $0x90] sm:$0xff]
      %v5079 = vld [vmem:[#allocation2 + $0x98] sm:$0xff]
      %v5080 = vld [vmem:[#allocation2 + $0xa0] sm:$0xff]
      %v5081 = vld [vmem:[#allocation2 + $0xa8] sm:$0xff]
      %v5082 = vld [vmem:[#allocation2 + $0xb0] sm:$0xff]
      %v5083 = vld [vmem:[#allocation2 + $0xb8] sm:$0xff]
      %v5084 = vld [vmem:[#allocation2 + $0xc0] sm:$0x77]
      %v5085 = vld [vmem:[#allocation2] sm:$0x88]
      %v5086 = vld [vmem:[#allocation2 + $0x70] sm:$0x88]
      %v5087 = vld [vmem:[#allocation2 + $0x50] sm:$0xff]
      %v5088 = vld [vmem:[#allocation2 + $0xc0] sm:$0xff]
      %v5111 = vunpack.c.l.b16 %v5063
      %v5112 = vunpack.c.h.b16 %v5063
      %v5113 = vunpack.c.l.b16 %v5064
      %v5114 = vunpack.c.h.b16 %v5064
      %v5115 = vunpack.c.l.b16 %v5065
      %v5116 = vunpack.c.h.b16 %v5065
      %v5117 = vunpack.c.l.b16 %v5066
      %v5118 = vunpack.c.h.b16 %v5066
      %v5119 = vunpack.c.l.b16 %v5067
      %v5120 = vunpack.c.h.b16 %v5067
      %v5121 = vunpack.c.l.b16 %v5068
      %v5122 = vunpack.c.h.b16 %v5068
      %v5123 = vunpack.c.l.b16 %v5069
      %v5124 = vunpack.c.h.b16 %v5069
      %v5125 = vunpack.c.l.b16 %v5070
      %v5126 = vunpack.c.h.b16 %v5070
      %v5127 = vunpack.c.l.b16 %v5071
      %v5128 = vunpack.c.h.b16 %v5071
      %v5129 = vunpack.c.l.b16 %v5072
      %v5130 = vunpack.c.h.b16 %v5072
      %v5131 = vunpack.c.l.b16 %v5073
      %v5132 = vunpack.c.h.b16 %v5073
      %v5133 = vunpack.c.l.b16 %v5074
      %v5134 = vunpack.c.h.b16 %v5074
      %v5135 = vunpack.c.l.b16 %v5075
      %v5136 = vunpack.c.h.b16 %v5075
      %v5137 = vunpack.c.l.b16 %v5076
      %v5138 = vunpack.c.h.b16 %v5076
      %v5139 = vunpack.c.l.b16 %v5077
      %v5140 = vunpack.c.h.b16 %v5077
      %v5141 = vunpack.c.l.b16 %v5078
      %v5142 = vunpack.c.h.b16 %v5078
      %v5143 = vunpack.c.l.b16 %v5079
      %v5144 = vunpack.c.h.b16 %v5079
      %v5145 = vunpack.c.l.b16 %v5080
      %v5146 = vunpack.c.h.b16 %v5080
      %v5147 = vunpack.c.l.b16 %v5081
      %v5148 = vunpack.c.h.b16 %v5081
      %v5149 = vunpack.c.l.b16 %v5082
      %v5150 = vunpack.c.h.b16 %v5082
      %v5151 = vunpack.c.l.b16 %v5083
      %v5152 = vunpack.c.h.b16 %v5083
      %v5153 = vunpack.c.l.b16 %v5084
      %v5154 = vunpack.c.h.b16 %v5084
      %v5155 = vpack.c.b16 %v5113, %v5111
      %v5156 = vpack.c.b16 %v5114, %v5112
      %v5157 = vpack.c.b16 %v5117, %v5115
      %v5158 = vpack.c.b16 %v5118, %v5116
      %v5159 = vpack.c.b16 %v5121, %v5119
      %v5160 = vpack.c.b16 %v5122, %v5120
      %v5161 = vpack.c.b16 %v5125, %v5123
      %v5162 = vpack.c.b16 %v5126, %v5124
      %v5163 = vpack.c.b16 %v5129, %v5127
      %v5164 = vpack.c.b16 %v5130, %v5128
      %v5165 = vpack.c.b16 %v5131, %v5131
      %v5166 = vpack.c.b16 %v5132, %v5132
      %v5167 = vpack.c.b16 %v5135, %v5133
      %v5168 = vpack.c.b16 %v5136, %v5134
      %v5169 = vpack.c.b16 %v5139, %v5137
      %v5170 = vpack.c.b16 %v5140, %v5138
      %v5171 = vpack.c.b16 %v5143, %v5141
      %v5172 = vpack.c.b16 %v5144, %v5142
      %v5173 = vpack.c.b16 %v5147, %v5145
      %v5174 = vpack.c.b16 %v5148, %v5146
      %v5175 = vpack.c.b16 %v5151, %v5149
      %v5176 = vpack.c.b16 %v5152, %v5150
      %v5177 = vpack.c.b16 %v5153, %v5153
      %v5178 = vpack.c.b16 %v5154, %v5154
      %v5181 = vunpack.c.l.b16 %v5085
      %v5182 = vunpack.c.h.b16 %v5085
      %v5183 = vunpack.c.l.b16 %v5086
      %v5184 = vunpack.c.h.b16 %v5086
      %v5185 = vpack.c.b16 %v5113, %v5181
      %v5186 = vpack.c.b16 %v5114, %v5182
      %v5187 = vpack.c.b16 %v5135, %v5183
      %v5188 = vpack.c.b16 %v5136, %v5184
      %v5190 = vshrl.u32 %v5185, 16
      %v5192 = vshll.u32 %v5185, 16
      %v5194 = vrot.slane %v5192, 1
      %v5195 = vor.u32 %v5190, %v5194
      %v5197 = vshll.u32 %v5157, 16
      %v5199 = vrot.slane %v5197, 1
      %v5200 = vsel %vm403, %v5195, %v5199
      %v5202 = vshrl.u32 %v5186, 16
      %v5204 = vshll.u32 %v5186, 16
      %v5206 = vrot.slane %v5204, 1
      %v5207 = vor.u32 %v5202, %v5206
      %v5209 = vshll.u32 %v5158, 16
      %v5211 = vrot.slane %v5209, 1
      %v5212 = vsel %vm403, %v5207, %v5211
      %v5213 = vshrl.u32 %v5157, 16
      %v5215 = vor.u32 %v5213, %v5199
      %v5217 = vshll.u32 %v5159, 16
      %v5219 = vrot.slane %v5217, 1
      %v5220 = vsel %vm403, %v5215, %v5219
      %v5221 = vshrl.u32 %v5158, 16
      %v5223 = vor.u32 %v5221, %v5211
      %v5225 = vshll.u32 %v5160, 16
      %v5227 = vrot.slane %v5225, 1
      %v5228 = vsel %vm403, %v5223, %v5227
      %v5229 = vshrl.u32 %v5159, 16
      %v5231 = vor.u32 %v5229, %v5219
      %v5233 = vshll.u32 %v5161, 16
      %v5235 = vrot.slane %v5233, 1
      %v5236 = vsel %vm403, %v5231, %v5235
      %v5237 = vshrl.u32 %v5160, 16
      %v5239 = vor.u32 %v5237, %v5227
      %v5241 = vshll.u32 %v5162, 16
      %v5243 = vrot.slane %v5241, 1
      %v5244 = vsel %vm403, %v5239, %v5243
      %v5245 = vshrl.u32 %v5161, 16
      %v5247 = vor.u32 %v5245, %v5235
      %v5249 = vshll.u32 %v5163, 16
      %v5251 = vrot.slane %v5249, 1
      %v5252 = vsel %vm403, %v5247, %v5251
      %v5253 = vshrl.u32 %v5162, 16
      %v5255 = vor.u32 %v5253, %v5243
      %v5257 = vshll.u32 %v5164, 16
      %v5259 = vrot.slane %v5257, 1
      %v5260 = vsel %vm403, %v5255, %v5259
      %v5261 = vshrl.u32 %v5163, 16
      %v5263 = vor.u32 %v5261, %v5251
      %v5265 = vshll.u32 %v5165, 16
      %v5267 = vrot.slane %v5265, 1
      %v5268 = vsel %vm403, %v5263, %v5267
      %v5269 = vshrl.u32 %v5164, 16
      %v5271 = vor.u32 %v5269, %v5259
      %v5273 = vshll.u32 %v5166, 16
      %v5275 = vrot.slane %v5273, 1
      %v5276 = vsel %vm403, %v5271, %v5275
      %v5277 = vshrl.u32 %v5165, 16
      %v5279 = vor.u32 %v5277, %v5267
      %v5280 = vshrl.u32 %v5166, 16
      %v5282 = vor.u32 %v5280, %v5275
      %v5284 = vshrl.u32 %v5187, 16
      %v5286 = vshll.u32 %v5187, 16
      %v5288 = vrot.slane %v5286, 1
      %v5289 = vor.u32 %v5284, %v5288
      %v5291 = vshll.u32 %v5169, 16
      %v5293 = vrot.slane %v5291, 1
      %v5294 = vsel %vm403, %v5289, %v5293
      %v5296 = vshrl.u32 %v5188, 16
      %v5298 = vshll.u32 %v5188, 16
      %v5300 = vrot.slane %v5298, 1
      %v5301 = vor.u32 %v5296, %v5300
      %v5303 = vshll.u32 %v5170, 16
      %v5305 = vrot.slane %v5303, 1
      %v5306 = vsel %vm403, %v5301, %v5305
      %v5307 = vshrl.u32 %v5169, 16
      %v5309 = vor.u32 %v5307, %v5293
      %v5311 = vshll.u32 %v5171, 16
      %v5313 = vrot.slane %v5311, 1
      %v5314 = vsel %vm403, %v5309, %v5313
      %v5315 = vshrl.u32 %v5170, 16
      %v5317 = vor.u32 %v5315, %v5305
      %v5319 = vshll.u32 %v5172, 16
      %v5321 = vrot.slane %v5319, 1
      %v5322 = vsel %vm403, %v5317, %v5321
      %v5323 = vshrl.u32 %v5171, 16
      %v5325 = vor.u32 %v5323, %v5313
      %v5327 = vshll.u32 %v5173, 16
      %v5329 = vrot.slane %v5327, 1
      %v5330 = vsel %vm403, %v5325, %v5329
      %v5331 = vshrl.u32 %v5172, 16
      %v5333 = vor.u32 %v5331, %v5321
      %v5335 = vshll.u32 %v5174, 16
      %v5337 = vrot.slane %v5335, 1
      %v5338 = vsel %vm403, %v5333, %v5337
      %v5339 = vshrl.u32 %v5173, 16
      %v5341 = vor.u32 %v5339, %v5329
      %v5343 = vshll.u32 %v5175, 16
      %v5345 = vrot.slane %v5343, 1
      %v5346 = vsel %vm403, %v5341, %v5345
      %v5347 = vshrl.u32 %v5174, 16
      %v5349 = vor.u32 %v5347, %v5337
      %v5351 = vshll.u32 %v5176, 16
      %v5353 = vrot.slane %v5351, 1
      %v5354 = vsel %vm403, %v5349, %v5353
      %v5355 = vshrl.u32 %v5175, 16
      %v5357 = vor.u32 %v5355, %v5345
      %v5359 = vshll.u32 %v5177, 16
      %v5361 = vrot.slane %v5359, 1
      %v5362 = vsel %vm403, %v5357, %v5361
      %v5363 = vshrl.u32 %v5176, 16
      %v5365 = vor.u32 %v5363, %v5353
      %v5367 = vshll.u32 %v5178, 16
      %v5369 = vrot.slane %v5367, 1
      %v5370 = vsel %vm403, %v5365, %v5369
      %v5371 = vshrl.u32 %v5177, 16
      %v5373 = vor.u32 %v5371, %v5361
      %v5374 = vshrl.u32 %v5178, 16
      %v5376 = vor.u32 %v5374, %v5369
      %v5379 = vunpack.c.l.b16 %v5087
      %v5380 = vunpack.c.h.b16 %v5087
      %v5381 = vunpack.c.l.b16 %v5088
      %v5382 = vunpack.c.h.b16 %v5088
      %v5383 = vpack.c.b16 %v5379, %v5379
      %v5384 = vpack.c.b16 %v5380, %v5380
      %v5385 = vpack.c.b16 %v5381, %v5381
      %v5386 = vpack.c.b16 %v5382, %v5382
      %v5387 = vrot.slane %v5185, 1
      %v5388 = vrot.slane %v5157, 1
      %v5389 = vsel %vm610, %v5387, %v5388
      %v5390 = vrot.slane %v5186, 1
      %v5391 = vrot.slane %v5158, 1
      %v5392 = vsel %vm610, %v5390, %v5391
      %v5393 = vrot.slane %v5159, 1
      %v5394 = vsel %vm610, %v5388, %v5393
      %v5395 = vrot.slane %v5160, 1
      %v5396 = vsel %vm610, %v5391, %v5395
      %v5397 = vrot.slane %v5161, 1
      %v5398 = vsel %vm610, %v5393, %v5397
      %v5399 = vrot.slane %v5162, 1
      %v5400 = vsel %vm610, %v5395, %v5399
      %v5401 = vrot.slane %v5163, 1
      %v5402 = vsel %vm610, %v5397, %v5401
      %v5403 = vrot.slane %v5164, 1
      %v5404 = vsel %vm610, %v5399, %v5403
      %v5405 = vrot.slane %v5383, 1
      %v5406 = vsel %vm610, %v5401, %v5405
      %v5407 = vrot.slane %v5384, 1
      %v5408 = vsel %vm610, %v5403, %v5407
      %v5409 = vrot.slane %v5187, 1
      %v5410 = vrot.slane %v5169, 1
      %v5411 = vsel %vm610, %v5409, %v5410
      %v5412 = vrot.slane %v5188, 1
      %v5413 = vrot.slane %v5170, 1
      %v5414 = vsel %vm610, %v5412, %v5413
      %v5415 = vrot.slane %v5171, 1
      %v5416 = vsel %vm610, %v5410, %v5415
      %v5417 = vrot.slane %v5172, 1
      %v5418 = vsel %vm610, %v5413, %v5417
      %v5419 = vrot.slane %v5173, 1
      %v5420 = vsel %vm610, %v5415, %v5419
      %v5421 = vrot.slane %v5174, 1
      %v5422 = vsel %vm610, %v5417, %v5421
      %v5423 = vrot.slane %v5175, 1
      %v5424 = vsel %vm610, %v5419, %v5423
      %v5425 = vrot.slane %v5176, 1
      %v5426 = vsel %vm610, %v5421, %v5425
      %v5427 = vrot.slane %v5385, 1
      %v5428 = vsel %vm610, %v5423, %v5427
      %v5429 = vrot.slane %v5386, 1
      %v5430 = vsel %vm610, %v5425, %v5429
      %vm5431 = vsmask.f32 5376
      %v5433 = vshrl.u32 %v5155, 16
      %v5435 = vrot.slane %v5433, 2
      %v5436 = vshll.u32 %v5155, 16
      %v5438 = vrot.slane %v5436, 3
      %v5439 = vor.u32 %v5435, %v5438
      %v5440 = vrot.slane %v5213, 2
      %v5441 = vrot.slane %v5197, 3
      %v5442 = vor.u32 %v5440, %v5441
      %v5443 = vsel %vm5431, %v5439, %v5442
      %v5445 = vshrl.u32 %v5156, 16
      %v5447 = vrot.slane %v5445, 2
      %v5448 = vshll.u32 %v5156, 16
      %v5450 = vrot.slane %v5448, 3
      %v5451 = vor.u32 %v5447, %v5450
      %v5452 = vrot.slane %v5221, 2
      %v5453 = vrot.slane %v5209, 3
      %v5454 = vor.u32 %v5452, %v5453
      %v5455 = vsel %vm5431, %v5451, %v5454
      %v5457 = vshrl.u32 %v5200, 16
      %v5459 = vrot.slane %v5457, 2
      %v5460 = vshll.u32 %v5200, 16
      %v5462 = vrot.slane %v5460, 3
      %v5463 = vor.u32 %v5459, %v5462
      %v5465 = vshrl.u32 %v5220, 16
      %v5467 = vrot.slane %v5465, 2
      %v5468 = vshll.u32 %v5220, 16
      %v5470 = vrot.slane %v5468, 3
      %v5471 = vor.u32 %v5467, %v5470
      %v5472 = vsel %vm5431, %v5463, %v5471
      %v5474 = vshrl.u32 %v5212, 16
      %v5476 = vrot.slane %v5474, 2
      %v5477 = vshll.u32 %v5212, 16
      %v5479 = vrot.slane %v5477, 3
      %v5480 = vor.u32 %v5476, %v5479
      %v5482 = vshrl.u32 %v5228, 16
      %v5484 = vrot.slane %v5482, 2
      %v5485 = vshll.u32 %v5228, 16
      %v5487 = vrot.slane %v5485, 3
      %v5488 = vor.u32 %v5484, %v5487
      %v5489 = vsel %vm5431, %v5480, %v5488
      %v5491 = vshrl.u32 %v5389, 16
      %v5493 = vrot.slane %v5491, 2
      %v5494 = vshll.u32 %v5389, 16
      %v5496 = vrot.slane %v5494, 3
      %v5497 = vor.u32 %v5493, %v5496
      %v5499 = vshrl.u32 %v5394, 16
      %v5501 = vrot.slane %v5499, 2
      %v5502 = vshll.u32 %v5394, 16
      %v5504 = vrot.slane %v5502, 3
      %v5505 = vor.u32 %v5501, %v5504
      %v5506 = vsel %vm5431, %v5497, %v5505
      %v5508 = vshrl.u32 %v5392, 16
      %v5510 = vrot.slane %v5508, 2
      %v5511 = vshll.u32 %v5392, 16
      %v5513 = vrot.slane %v5511, 3
      %v5514 = vor.u32 %v5510, %v5513
      %v5516 = vshrl.u32 %v5396, 16
      %v5518 = vrot.slane %v5516, 2
      %v5519 = vshll.u32 %v5396, 16
      %v5521 = vrot.slane %v5519, 3
      %v5522 = vor.u32 %v5518, %v5521
      %v5523 = vsel %vm5431, %v5514, %v5522
      %v5524 = vrot.slane %v5229, 2
      %v5525 = vrot.slane %v5217, 3
      %v5526 = vor.u32 %v5524, %v5525
      %v5527 = vsel %vm5431, %v5442, %v5526
      %v5528 = vrot.slane %v5237, 2
      %v5529 = vrot.slane %v5225, 3
      %v5530 = vor.u32 %v5528, %v5529
      %v5531 = vsel %vm5431, %v5454, %v5530
      %v5533 = vshrl.u32 %v5236, 16
      %v5535 = vrot.slane %v5533, 2
      %v5536 = vshll.u32 %v5236, 16
      %v5538 = vrot.slane %v5536, 3
      %v5539 = vor.u32 %v5535, %v5538
      %v5540 = vsel %vm5431, %v5471, %v5539
      %v5542 = vshrl.u32 %v5244, 16
      %v5544 = vrot.slane %v5542, 2
      %v5545 = vshll.u32 %v5244, 16
      %v5547 = vrot.slane %v5545, 3
      %v5548 = vor.u32 %v5544, %v5547
      %v5549 = vsel %vm5431, %v5488, %v5548
      %v5551 = vshrl.u32 %v5398, 16
      %v5553 = vrot.slane %v5551, 2
      %v5554 = vshll.u32 %v5398, 16
      %v5556 = vrot.slane %v5554, 3
      %v5557 = vor.u32 %v5553, %v5556
      %v5558 = vsel %vm5431, %v5505, %v5557
      %v5560 = vshrl.u32 %v5400, 16
      %v5562 = vrot.slane %v5560, 2
      %v5563 = vshll.u32 %v5400, 16
      %v5565 = vrot.slane %v5563, 3
      %v5566 = vor.u32 %v5562, %v5565
      %v5567 = vsel %vm5431, %v5522, %v5566
      %v5568 = vrot.slane %v5245, 2
      %v5569 = vrot.slane %v5233, 3
      %v5570 = vor.u32 %v5568, %v5569
      %v5571 = vsel %vm5431, %v5526, %v5570
      %v5572 = vrot.slane %v5253, 2
      %v5573 = vrot.slane %v5241, 3
      %v5574 = vor.u32 %v5572, %v5573
      %v5575 = vsel %vm5431, %v5530, %v5574
      %v5577 = vshrl.u32 %v5252, 16
      %v5579 = vrot.slane %v5577, 2
      %v5580 = vshll.u32 %v5252, 16
      %v5582 = vrot.slane %v5580, 3
      %v5583 = vor.u32 %v5579, %v5582
      %v5584 = vsel %vm5431, %v5539, %v5583
      %v5586 = vshrl.u32 %v5260, 16
      %v5588 = vrot.slane %v5586, 2
      %v5589 = vshll.u32 %v5260, 16
      %v5591 = vrot.slane %v5589, 3
      %v5592 = vor.u32 %v5588, %v5591
      %v5593 = vsel %vm5431, %v5548, %v5592
      %v5595 = vshrl.u32 %v5402, 16
      %v5597 = vrot.slane %v5595, 2
      %v5598 = vshll.u32 %v5402, 16
      %v5600 = vrot.slane %v5598, 3
      %v5601 = vor.u32 %v5597, %v5600
      %v5602 = vsel %vm5431, %v5557, %v5601
      %v5604 = vshrl.u32 %v5404, 16
      %v5606 = vrot.slane %v5604, 2
      %v5607 = vshll.u32 %v5404, 16
      %v5609 = vrot.slane %v5607, 3
      %v5610 = vor.u32 %v5606, %v5609
      %v5611 = vsel %vm5431, %v5566, %v5610
      %v5612 = vrot.slane %v5261, 2
      %v5613 = vrot.slane %v5249, 3
      %v5614 = vor.u32 %v5612, %v5613
      %v5615 = vsel %vm5431, %v5570, %v5614
      %v5616 = vrot.slane %v5269, 2
      %v5617 = vrot.slane %v5257, 3
      %v5618 = vor.u32 %v5616, %v5617
      %v5619 = vsel %vm5431, %v5574, %v5618
      %v5621 = vshrl.u32 %v5268, 16
      %v5623 = vrot.slane %v5621, 2
      %v5624 = vshll.u32 %v5268, 16
      %v5626 = vrot.slane %v5624, 3
      %v5627 = vor.u32 %v5623, %v5626
      %v5628 = vsel %vm5431, %v5583, %v5627
      %v5630 = vshrl.u32 %v5276, 16
      %v5632 = vrot.slane %v5630, 2
      %v5633 = vshll.u32 %v5276, 16
      %v5635 = vrot.slane %v5633, 3
      %v5636 = vor.u32 %v5632, %v5635
      %v5637 = vsel %vm5431, %v5592, %v5636
      %v5639 = vshrl.u32 %v5406, 16
      %v5641 = vrot.slane %v5639, 2
      %v5642 = vshll.u32 %v5406, 16
      %v5644 = vrot.slane %v5642, 3
      %v5645 = vor.u32 %v5641, %v5644
      %v5646 = vsel %vm5431, %v5601, %v5645
      %v5648 = vshrl.u32 %v5408, 16
      %v5650 = vrot.slane %v5648, 2
      %v5651 = vshll.u32 %v5408, 16
      %v5653 = vrot.slane %v5651, 3
      %v5654 = vor.u32 %v5650, %v5653
      %v5655 = vsel %vm5431, %v5610, %v5654
      %v5656 = vrot.slane %v5277, 2
      %v5657 = vrot.slane %v5265, 3
      %v5658 = vor.u32 %v5656, %v5657
      %v5659 = vsel %vm5431, %v5614, %v5658
      %v5660 = vrot.slane %v5280, 2
      %v5661 = vrot.slane %v5273, 3
      %v5662 = vor.u32 %v5660, %v5661
      %v5663 = vsel %vm5431, %v5618, %v5662
      %v5665 = vshrl.u32 %v5279, 16
      %v5667 = vrot.slane %v5665, 2
      %v5668 = vshll.u32 %v5279, 16
      %v5670 = vrot.slane %v5668, 3
      %v5671 = vor.u32 %v5667, %v5670
      %v5672 = vsel %vm5431, %v5627, %v5671
      %v5674 = vshrl.u32 %v5282, 16
      %v5676 = vrot.slane %v5674, 2
      %v5677 = vshll.u32 %v5282, 16
      %v5679 = vrot.slane %v5677, 3
      %v5680 = vor.u32 %v5676, %v5679
      %v5681 = vsel %vm5431, %v5636, %v5680
      %v5683 = vshrl.u32 %v5405, 16
      %v5685 = vrot.slane %v5683, 2
      %v5686 = vshll.u32 %v5405, 16
      %v5688 = vrot.slane %v5686, 3
      %v5689 = vor.u32 %v5685, %v5688
      %v5690 = vsel %vm5431, %v5645, %v5689
      %v5692 = vshrl.u32 %v5407, 16
      %v5694 = vrot.slane %v5692, 2
      %v5695 = vshll.u32 %v5407, 16
      %v5697 = vrot.slane %v5695, 3
      %v5698 = vor.u32 %v5694, %v5697
      %v5699 = vsel %vm5431, %v5654, %v5698
      %v5701 = vshrl.u32 %v5167, 16
      %v5703 = vrot.slane %v5701, 2
      %v5704 = vshll.u32 %v5167, 16
      %v5706 = vrot.slane %v5704, 3
      %v5707 = vor.u32 %v5703, %v5706
      %v5708 = vrot.slane %v5307, 2
      %v5709 = vrot.slane %v5291, 3
      %v5710 = vor.u32 %v5708, %v5709
      %v5711 = vsel %vm5431, %v5707, %v5710
      %v5713 = vshrl.u32 %v5168, 16
      %v5715 = vrot.slane %v5713, 2
      %v5716 = vshll.u32 %v5168, 16
      %v5718 = vrot.slane %v5716, 3
      %v5719 = vor.u32 %v5715, %v5718
      %v5720 = vrot.slane %v5315, 2
      %v5721 = vrot.slane %v5303, 3
      %v5722 = vor.u32 %v5720, %v5721
      %v5723 = vsel %vm5431, %v5719, %v5722
      %v5725 = vshrl.u32 %v5294, 16
      %v5727 = vrot.slane %v5725, 2
      %v5728 = vshll.u32 %v5294, 16
      %v5730 = vrot.slane %v5728, 3
      %v5731 = vor.u32 %v5727, %v5730
      %v5733 = vshrl.u32 %v5314, 16
      %v5735 = vrot.slane %v5733, 2
      %v5736 = vshll.u32 %v5314, 16
      %v5738 = vrot.slane %v5736, 3
      %v5739 = vor.u32 %v5735, %v5738
      %v5740 = vsel %vm5431, %v5731, %v5739
      %v5742 = vshrl.u32 %v5306, 16
      %v5744 = vrot.slane %v5742, 2
      %v5745 = vshll.u32 %v5306, 16
      %v5747 = vrot.slane %v5745, 3
      %v5748 = vor.u32 %v5744, %v5747
      %v5750 = vshrl.u32 %v5322, 16
      %v5752 = vrot.slane %v5750, 2
      %v5753 = vshll.u32 %v5322, 16
      %v5755 = vrot.slane %v5753, 3
      %v5756 = vor.u32 %v5752, %v5755
      %v5757 = vsel %vm5431, %v5748, %v5756
      %v5759 = vshrl.u32 %v5411, 16
      %v5761 = vrot.slane %v5759, 2
      %v5762 = vshll.u32 %v5411, 16
      %v5764 = vrot.slane %v5762, 3
      %v5765 = vor.u32 %v5761, %v5764
      %v5767 = vshrl.u32 %v5416, 16
      %v5769 = vrot.slane %v5767, 2
      %v5770 = vshll.u32 %v5416, 16
      %v5772 = vrot.slane %v5770, 3
      %v5773 = vor.u32 %v5769, %v5772
      %v5774 = vsel %vm5431, %v5765, %v5773
      %v5776 = vshrl.u32 %v5414, 16
      %v5778 = vrot.slane %v5776, 2
      %v5779 = vshll.u32 %v5414, 16
      %v5781 = vrot.slane %v5779, 3
      %v5782 = vor.u32 %v5778, %v5781
      %v5784 = vshrl.u32 %v5418, 16
      %v5786 = vrot.slane %v5784, 2
      %v5787 = vshll.u32 %v5418, 16
      %v5789 = vrot.slane %v5787, 3
      %v5790 = vor.u32 %v5786, %v5789
      %v5791 = vsel %vm5431, %v5782, %v5790
      %v5792 = vrot.slane %v5323, 2
      %v5793 = vrot.slane %v5311, 3
      %v5794 = vor.u32 %v5792, %v5793
      %v5795 = vsel %vm5431, %v5710, %v5794
      %v5796 = vrot.slane %v5331, 2
      %v5797 = vrot.slane %v5319, 3
      %v5798 = vor.u32 %v5796, %v5797
      %v5799 = vsel %vm5431, %v5722, %v5798
      %v5801 = vshrl.u32 %v5330, 16
      %v5803 = vrot.slane %v5801, 2
      %v5804 = vshll.u32 %v5330, 16
      %v5806 = vrot.slane %v5804, 3
      %v5807 = vor.u32 %v5803, %v5806
      %v5808 = vsel %vm5431, %v5739, %v5807
      %v5810 = vshrl.u32 %v5338, 16
      %v5812 = vrot.slane %v5810, 2
      %v5813 = vshll.u32 %v5338, 16
      %v5815 = vrot.slane %v5813, 3
      %v5816 = vor.u32 %v5812, %v5815
      %v5817 = vsel %vm5431, %v5756, %v5816
      %v5819 = vshrl.u32 %v5420, 16
      %v5821 = vrot.slane %v5819, 2
      %v5822 = vshll.u32 %v5420, 16
      %v5824 = vrot.slane %v5822, 3
      %v5825 = vor.u32 %v5821, %v5824
      %v5826 = vsel %vm5431, %v5773, %v5825
      %v5828 = vshrl.u32 %v5422, 16
      %v5830 = vrot.slane %v5828, 2
      %v5831 = vshll.u32 %v5422, 16
      %v5833 = vrot.slane %v5831, 3
      %v5834 = vor.u32 %v5830, %v5833
      %v5835 = vsel %vm5431, %v5790, %v5834
      %v5836 = vrot.slane %v5339, 2
      %v5837 = vrot.slane %v5327, 3
      %v5838 = vor.u32 %v5836, %v5837
      %v5839 = vsel %vm5431, %v5794, %v5838
      %v5840 = vrot.slane %v5347, 2
      %v5841 = vrot.slane %v5335, 3
      %v5842 = vor.u32 %v5840, %v5841
      %v5843 = vsel %vm5431, %v5798, %v5842
      %v5845 = vshrl.u32 %v5346, 16
      %v5847 = vrot.slane %v5845, 2
      %v5848 = vshll.u32 %v5346, 16
      %v5850 = vrot.slane %v5848, 3
      %v5851 = vor.u32 %v5847, %v5850
      %v5852 = vsel %vm5431, %v5807, %v5851
      %v5854 = vshrl.u32 %v5354, 16
      %v5856 = vrot.slane %v5854, 2
      %v5857 = vshll.u32 %v5354, 16
      %v5859 = vrot.slane %v5857, 3
      %v5860 = vor.u32 %v5856, %v5859
      %v5861 = vsel %vm5431, %v5816, %v5860
      %v5863 = vshrl.u32 %v5424, 16
      %v5865 = vrot.slane %v5863, 2
      %v5866 = vshll.u32 %v5424, 16
      %v5868 = vrot.slane %v5866, 3
      %v5869 = vor.u32 %v5865, %v5868
      %v5870 = vsel %vm5431, %v5825, %v5869
      %v5872 = vshrl.u32 %v5426, 16
      %v5874 = vrot.slane %v5872, 2
      %v5875 = vshll.u32 %v5426, 16
      %v5877 = vrot.slane %v5875, 3
      %v5878 = vor.u32 %v5874, %v5877
      %v5879 = vsel %vm5431, %v5834, %v5878
      %v5880 = vrot.slane %v5355, 2
      %v5881 = vrot.slane %v5343, 3
      %v5882 = vor.u32 %v5880, %v5881
      %v5883 = vsel %vm5431, %v5838, %v5882
      %v5884 = vrot.slane %v5363, 2
      %v5885 = vrot.slane %v5351, 3
      %v5886 = vor.u32 %v5884, %v5885
      %v5887 = vsel %vm5431, %v5842, %v5886
      %v5889 = vshrl.u32 %v5362, 16
      %v5891 = vrot.slane %v5889, 2
      %v5892 = vshll.u32 %v5362, 16
      %v5894 = vrot.slane %v5892, 3
      %v5895 = vor.u32 %v5891, %v5894
      %v5896 = vsel %vm5431, %v5851, %v5895
      %v5898 = vshrl.u32 %v5370, 16
      %v5900 = vrot.slane %v5898, 2
      %v5901 = vshll.u32 %v5370, 16
      %v5903 = vrot.slane %v5901, 3
      %v5904 = vor.u32 %v5900, %v5903
      %v5905 = vsel %vm5431, %v5860, %v5904
      %v5907 = vshrl.u32 %v5428, 16
      %v5909 = vrot.slane %v5907, 2
      %v5910 = vshll.u32 %v5428, 16
      %v5912 = vrot.slane %v5910, 3
      %v5913 = vor.u32 %v5909, %v5912
      %v5914 = vsel %vm5431, %v5869, %v5913
      %v5916 = vshrl.u32 %v5430, 16
      %v5918 = vrot.slane %v5916, 2
      %v5919 = vshll.u32 %v5430, 16
      %v5921 = vrot.slane %v5919, 3
      %v5922 = vor.u32 %v5918, %v5921
      %v5923 = vsel %vm5431, %v5878, %v5922
      %v5924 = vrot.slane %v5371, 2
      %v5925 = vrot.slane %v5359, 3
      %v5926 = vor.u32 %v5924, %v5925
      %v5927 = vsel %vm5431, %v5882, %v5926
      %v5928 = vrot.slane %v5374, 2
      %v5929 = vrot.slane %v5367, 3
      %v5930 = vor.u32 %v5928, %v5929
      %v5931 = vsel %vm5431, %v5886, %v5930
      %v5933 = vshrl.u32 %v5373, 16
      %v5935 = vrot.slane %v5933, 2
      %v5936 = vshll.u32 %v5373, 16
      %v5938 = vrot.slane %v5936, 3
      %v5939 = vor.u32 %v5935, %v5938
      %v5940 = vsel %vm5431, %v5895, %v5939
      %v5942 = vshrl.u32 %v5376, 16
      %v5944 = vrot.slane %v5942, 2
      %v5945 = vshll.u32 %v5376, 16
      %v5947 = vrot.slane %v5945, 3
      %v5948 = vor.u32 %v5944, %v5947
      %v5949 = vsel %vm5431, %v5904, %v5948
      %v5951 = vshrl.u32 %v5427, 16
      %v5953 = vrot.slane %v5951, 2
      %v5954 = vshll.u32 %v5427, 16
      %v5956 = vrot.slane %v5954, 3
      %v5957 = vor.u32 %v5953, %v5956
      %v5958 = vsel %vm5431, %v5913, %v5957
      %v5960 = vshrl.u32 %v5429, 16
      %v5962 = vrot.slane %v5960, 2
      %v5963 = vshll.u32 %v5429, 16
      %v5965 = vrot.slane %v5963, 3
      %v5966 = vor.u32 %v5962, %v5965
      %v5967 = vsel %vm5431, %v5922, %v5966
      %v6028 = vld [vmem:[%s3] sm:$0xff]
      %v6029 = vld [vmem:[%s3 + $0x8] sm:$0xff]
      %v6030 = vld [vmem:[%s3 + $0x10] sm:$0xff]
      %v6031 = vld [vmem:[%s3 + $0x18] sm:$0xff]
      %v6032 = vld [vmem:[%s3 + $0x20] sm:$0xff]
      %v6033 = vld [vmem:[%s3 + $0x28] sm:$0xff]
      %v6034 = vld [vmem:[%s3 + $0x30] sm:$0xff]
      %v6035 = vld [vmem:[%s3 + $0x38] sm:$0xff]
      %v6036 = vld [vmem:[%s3 + $0x40] sm:$0xff]
      %v6037 = vld [vmem:[%s3 + $0x48] sm:$0xff]
      %v6038 = vld [vmem:[%s3 + $0x50] sm:$0xff]
      %v6039 = vld [vmem:[%s3 + $0x58] sm:$0xff]
      %v6040 = vld [vmem:[%s3 + $0x60] sm:$0xff]
      %v6041 = vld [vmem:[%s3 + $0x68] sm:$0xff]
      %v6042 = vld [vmem:[%s3 + $0x70] sm:$0xff]
      %v6043 = vld [vmem:[%s3 + $0x78] sm:$0xff]
      %v6044 = vld [vmem:[%s3 + $0x80] sm:$0xff]
      %v6045 = vld [vmem:[%s3 + $0x88] sm:$0xff]
      %v6046 = vld [vmem:[%s3 + $0x90] sm:$0xff]
      %v6047 = vld [vmem:[%s3 + $0x98] sm:$0xff]
      %v6048 = vld [vmem:[%s3 + $0xa0] sm:$0xff]
      %v6049 = vld [vmem:[%s3 + $0xa8] sm:$0xff]
      %v6050 = vld [vmem:[%s3 + $0xb0] sm:$0xff]
      %v6051 = vld [vmem:[%s3 + $0xb8] sm:$0xff]
      %v6052 = vld [vmem:[%s3 + $0xc0] sm:$0xff]
      %v6053 = vld [vmem:[%s3 + $0xc8] sm:$0xff]
      %v6054 = vld [vmem:[%s3 + $0xd0] sm:$0xff]
      %v6055 = vld [vmem:[%s3 + $0xd8] sm:$0xff]
      %v6056 = vld [vmem:[%s3 + $0xe0] sm:$0xff]
      %v6057 = vld [vmem:[%s3 + $0xe8] sm:$0xff]
      %v6058 = vld [vmem:[%s3 + $0xf0] sm:$0xff]
      %v6059 = vld [vmem:[%s3 + $0xf8] sm:$0xff]
      %v6060 = vld [vmem:[%s3 + $0x100] sm:$0xff]
      %v6061 = vld [vmem:[%s3 + $0x108] sm:$0xff]
      %v6062 = vld [vmem:[%s3 + $0x110] sm:$0xff]
      %v6063 = vld [vmem:[%s3 + $0x118] sm:$0xff]
      %v6064 = vld [vmem:[%s3 + $0x120] sm:$0xff]
      %v6065 = vld [vmem:[%s3 + $0x128] sm:$0xff]
      %v6066 = vld [vmem:[%s3 + $0x130] sm:$0xff]
      %v6067 = vld [vmem:[%s3 + $0x138] sm:$0xff]
      %v6068 = vld [vmem:[%s3 + $0x140] sm:$0xff]
      %v6069 = vld [vmem:[%s3 + $0x148] sm:$0xff]
      %v6070 = vld [vmem:[%s3 + $0x150] sm:$0xff]
      %v6071 = vld [vmem:[%s3 + $0x158] sm:$0xff]
      %v6072 = vld [vmem:[%s3 + $0x160] sm:$0xff]
      %v6073 = vld [vmem:[%s3 + $0x168] sm:$0xff]
      %v6074 = vld [vmem:[%s3 + $0x170] sm:$0xff]
      %v6075 = vld [vmem:[%s3 + $0x178] sm:$0xff]
      %v6076 = vld [vmem:[%s3 + $0x180] sm:$0xff]
      %v6077 = vld [vmem:[%s3 + $0x188] sm:$0xff]
      %v6078 = vld [vmem:[%s3 + $0x190] sm:$0xff]
      %v6079 = vld [vmem:[%s3 + $0x198] sm:$0xff]
      %v6080 = vld [vmem:[%s3 + $0x1a0] sm:$0xff]
      %v6081 = vld [vmem:[%s3 + $0x1a8] sm:$0xff]
      %v6082 = vld [vmem:[%s3 + $0x1b0] sm:$0xff]
      %v6083 = vld [vmem:[%s3 + $0x1b8] sm:$0xff]
      %v6084 = vld [vmem:[%s3 + $0x1c0] sm:$0xff]
      %v6085 = vld [vmem:[%s3 + $0x1c8] sm:$0xff]
      %v6086 = vld [vmem:[%s3 + $0x1d0] sm:$0xff]
      %v6087 = vld [vmem:[%s3 + $0x1d8] sm:$0xff]
      %v6088 = vld [vmem:[%s3 + $0x1e0] sm:$0xff]
      %v6089 = vld [vmem:[%s3 + $0x1e8] sm:$0xff]
      %v6090 = vld [vmem:[%s3 + $0x1f0] sm:$0xff]
      %v6091 = vld [vmem:[%s3 + $0x1f8] sm:$0xff]
      %v6092 = vld [vmem:[%s3 + $0x200] sm:$0xff]
      %v6093 = vld [vmem:[%s3 + $0x208] sm:$0xff]
      %v6094 = vld [vmem:[%s3 + $0x210] sm:$0xff]
      %v6095 = vld [vmem:[%s3 + $0x218] sm:$0xff]
      %v6096 = vld [vmem:[%s3 + $0x220] sm:$0xff]
      %v6097 = vld [vmem:[%s3 + $0x228] sm:$0xff]
      %v6098 = vld [vmem:[%s3 + $0x230] sm:$0xff]
      %v6099 = vld [vmem:[%s3 + $0x238] sm:$0xff]
      %v6100 = vld [vmem:[%s3 + $0x240] sm:$0xff]
      %v6101 = vld [vmem:[%s3 + $0x248] sm:$0xff]
      %v6102 = vld [vmem:[%s3 + $0x250] sm:$0xff]
      %v6103 = vld [vmem:[%s3 + $0x258] sm:$0xff]
      %v6104 = vld [vmem:[%s3 + $0x260] sm:$0xff]
      %v6105 = vld [vmem:[%s3 + $0x268] sm:$0xff]
      %v6106 = vld [vmem:[%s3 + $0x270] sm:$0xff]
      %v6107 = vld [vmem:[%s3 + $0x278] sm:$0xff]
      %v6108 = vld [vmem:[%s3 + $0x280] sm:$0xff]
      %v6109 = vld [vmem:[%s3 + $0x288] sm:$0xff]
      %v6110 = vld [vmem:[%s3 + $0x290] sm:$0xff]
      %v6111 = vld [vmem:[%s3 + $0x298] sm:$0xff]
      %v6112 = vld [vmem:[%s3 + $0x2a0] sm:$0xff]
      %v6113 = vld [vmem:[%s3 + $0x2a8] sm:$0xff]
      %v6114 = vld [vmem:[%s3 + $0x2b0] sm:$0xff]
      %v6115 = vld [vmem:[%s3 + $0x2b8] sm:$0xff]
      %v6116 = vld [vmem:[%s3 + $0x2c0] sm:$0xff]
      %v6117 = vld [vmem:[%s3 + $0x2c8] sm:$0xff]
      %v6118 = vld [vmem:[%s3 + $0x2d0] sm:$0xff]
      %v6119 = vld [vmem:[%s3 + $0x2d8] sm:$0xff]
      %v6120 = vld [vmem:[%s3 + $0x2e0] sm:$0xff]
      %v6121 = vld [vmem:[%s3 + $0x2e8] sm:$0xff]
      %v6122 = vld [vmem:[%s3 + $0x2f0] sm:$0xff]
      %v6123 = vld [vmem:[%s3 + $0x2f8] sm:$0xff]
      %v6124 = vld [vmem:[#allocation2 + $0x8] sm:$0x88]
      %v6125 = vld [vmem:[#allocation2 + $0x58] sm:$0xff]
      %v6126 = vld [vmem:[#allocation2 + $0x78] sm:$0x88]
      %v6127 = vld [vmem:[#allocation2 + $0xc8] sm:$0xff]
      %v6128 = vld [vmem:[#allocation2 + $0x60] sm:$0x11]
      %v6129 = vld [vmem:[#allocation2 + $0xd0] sm:$0x11]
      %v6134 = vunpack.c.l.b16 %v6124
      %v6135 = vunpack.c.h.b16 %v6124
      %v6136 = vunpack.c.l.b16 %v6125
      %v6137 = vunpack.c.h.b16 %v6125
      %v6138 = vunpack.c.l.b16 %v6126
      %v6139 = vunpack.c.h.b16 %v6126
      %v6140 = vunpack.c.l.b16 %v6127
      %v6141 = vunpack.c.h.b16 %v6127
      %v6142 = vpack.c.b16 %v5115, %v6134
      %v6143 = vpack.c.b16 %v5116, %v6135
      %v6144 = vpack.c.b16 %v5119, %v5117
      %v6145 = vpack.c.b16 %v5120, %v5118
      %v6146 = vpack.c.b16 %v5123, %v5121
      %v6147 = vpack.c.b16 %v5124, %v5122
      %v6148 = vpack.c.b16 %v5127, %v5125
      %v6149 = vpack.c.b16 %v5128, %v5126
      %v6150 = vpack.c.b16 %v5379, %v5129
      %v6151 = vpack.c.b16 %v5380, %v5130
      %v6152 = vpack.c.b16 %v6136, %v6136
      %v6153 = vpack.c.b16 %v6137, %v6137
      %v6154 = vpack.c.b16 %v5137, %v6138
      %v6155 = vpack.c.b16 %v5138, %v6139
      %v6156 = vpack.c.b16 %v5141, %v5139
      %v6157 = vpack.c.b16 %v5142, %v5140
      %v6158 = vpack.c.b16 %v5145, %v5143
      %v6159 = vpack.c.b16 %v5146, %v5144
      %v6160 = vpack.c.b16 %v5149, %v5147
      %v6161 = vpack.c.b16 %v5150, %v5148
      %v6162 = vpack.c.b16 %v5381, %v5151
      %v6163 = vpack.c.b16 %v5382, %v5152
      %v6164 = vpack.c.b16 %v6140, %v6140
      %v6165 = vpack.c.b16 %v6141, %v6141
      %v6166 = vpack.c.b16 %v6136, %v5379
      %v6167 = vpack.c.b16 %v6137, %v5380
      %v6168 = vpack.c.b16 %v6140, %v5381
      %v6169 = vpack.c.b16 %v6141, %v5382
      %vm6170 = vsmask.f32 3328
      %v6171 = vrot.slane %v5213, 4
      %v6172 = vrot.slane %v5197, 5
      %v6173 = vor.u32 %v6171, %v6172
      %v6174 = vrot.slane %v5221, 4
      %v6175 = vrot.slane %v5209, 5
      %v6176 = vor.u32 %v6174, %v6175
      %v6177 = vrot.slane %v5229, 4
      %v6178 = vrot.slane %v5217, 5
      %v6179 = vor.u32 %v6177, %v6178
      %v6180 = vsel %vm6170, %v6173, %v6179
      %v6181 = vrot.slane %v5237, 4
      %v6182 = vrot.slane %v5225, 5
      %v6183 = vor.u32 %v6181, %v6182
      %v6184 = vsel %vm6170, %v6176, %v6183
      %v6185 = vrot.slane %v5245, 4
      %v6186 = vrot.slane %v5233, 5
      %v6187 = vor.u32 %v6185, %v6186
      %v6188 = vsel %vm6170, %v6179, %v6187
      %v6189 = vrot.slane %v5253, 4
      %v6190 = vrot.slane %v5241, 5
      %v6191 = vor.u32 %v6189, %v6190
      %v6192 = vsel %vm6170, %v6183, %v6191
      %v6193 = vrot.slane %v5261, 4
      %v6194 = vrot.slane %v5249, 5
      %v6195 = vor.u32 %v6193, %v6194
      %v6196 = vsel %vm6170, %v6187, %v6195
      %v6197 = vrot.slane %v5269, 4
      %v6198 = vrot.slane %v5257, 5
      %v6199 = vor.u32 %v6197, %v6198
      %v6200 = vsel %vm6170, %v6191, %v6199
      %v6202 = vshrl.u32 %v6166, 16
      %v6204 = vrot.slane %v6202, 4
      %v6205 = vshll.u32 %v6166, 16
      %v6207 = vrot.slane %v6205, 5
      %v6208 = vor.u32 %v6204, %v6207
      %v6209 = vsel %vm6170, %v6195, %v6208
      %v6211 = vshrl.u32 %v6167, 16
      %v6213 = vrot.slane %v6211, 4
      %v6214 = vshll.u32 %v6167, 16
      %v6216 = vrot.slane %v6214, 5
      %v6217 = vor.u32 %v6213, %v6216
      %v6218 = vsel %vm6170, %v6199, %v6217
      %v6219 = vrot.slane %v5307, 4
      %v6220 = vrot.slane %v5291, 5
      %v6221 = vor.u32 %v6219, %v6220
      %v6222 = vrot.slane %v5315, 4
      %v6223 = vrot.slane %v5303, 5
      %v6224 = vor.u32 %v6222, %v6223
      %v6225 = vrot.slane %v5323, 4
      %v6226 = vrot.slane %v5311, 5
      %v6227 = vor.u32 %v6225, %v6226
      %v6228 = vsel %vm6170, %v6221, %v6227
      %v6229 = vrot.slane %v5331, 4
      %v6230 = vrot.slane %v5319, 5
      %v6231 = vor.u32 %v6229, %v6230
      %v6232 = vsel %vm6170, %v6224, %v6231
      %v6233 = vrot.slane %v5339, 4
      %v6234 = vrot.slane %v5327, 5
      %v6235 = vor.u32 %v6233, %v6234
      %v6236 = vsel %vm6170, %v6227, %v6235
      %v6237 = vrot.slane %v5347, 4
      %v6238 = vrot.slane %v5335, 5
      %v6239 = vor.u32 %v6237, %v6238
      %v6240 = vsel %vm6170, %v6231, %v6239
      %v6241 = vrot.slane %v5355, 4
      %v6242 = vrot.slane %v5343, 5
      %v6243 = vor.u32 %v6241, %v6242
      %v6244 = vsel %vm6170, %v6235, %v6243
      %v6245 = vrot.slane %v5363, 4
      %v6246 = vrot.slane %v5351, 5
      %v6247 = vor.u32 %v6245, %v6246
      %v6248 = vsel %vm6170, %v6239, %v6247
      %v6250 = vshrl.u32 %v6168, 16
      %v6252 = vrot.slane %v6250, 4
      %v6253 = vshll.u32 %v6168, 16
      %v6255 = vrot.slane %v6253, 5
      %v6256 = vor.u32 %v6252, %v6255
      %v6257 = vsel %vm6170, %v6243, %v6256
      %v6259 = vshrl.u32 %v6169, 16
      %v6261 = vrot.slane %v6259, 4
      %v6262 = vshll.u32 %v6169, 16
      %v6264 = vrot.slane %v6262, 5
      %v6265 = vor.u32 %v6261, %v6264
      %v6266 = vsel %vm6170, %v6247, %v6265
      %v6269 = vunpack.c.l.b16 %v6128
      %v6270 = vunpack.c.h.b16 %v6128
      %v6271 = vunpack.c.l.b16 %v6129
      %v6272 = vunpack.c.h.b16 %v6129
      %v6273 = vpack.c.b16 %v6269, %v6269
      %v6274 = vpack.c.b16 %v6270, %v6270
      %v6275 = vpack.c.b16 %v6271, %v6271
      %v6276 = vpack.c.b16 %v6272, %v6272
      %vm6277 = vcmask 1042432
      %v6278 = vrot.slane %v5157, 5
      %v6279 = vrot.slane %v5158, 5
      %v6280 = vrot.slane %v5159, 5
      %v6281 = vsel %vm6277, %v6278, %v6280
      %v6282 = vrot.slane %v5160, 5
      %v6283 = vsel %vm6277, %v6279, %v6282
      %v6284 = vrot.slane %v5161, 5
      %v6285 = vsel %vm6277, %v6280, %v6284
      %v6286 = vrot.slane %v5162, 5
      %v6287 = vsel %vm6277, %v6282, %v6286
      %v6288 = vrot.slane %v5163, 5
      %v6289 = vsel %vm6277, %v6284, %v6288
      %v6290 = vrot.slane %v5164, 5
      %v6291 = vsel %vm6277, %v6286, %v6290
      %v6292 = vrot.slane %v6166, 5
      %v6293 = vsel %vm6277, %v6288, %v6292
      %v6294 = vrot.slane %v6167, 5
      %v6295 = vsel %vm6277, %v6290, %v6294
      %v6296 = vrot.slane %v6273, 5
      %v6297 = vsel %vm6277, %v6292, %v6296
      %v6298 = vrot.slane %v6274, 5
      %v6299 = vsel %vm6277, %v6294, %v6298
      %v6300 = vrot.slane %v5169, 5
      %v6301 = vrot.slane %v5170, 5
      %v6302 = vrot.slane %v5171, 5
      %v6303 = vsel %vm6277, %v6300, %v6302
      %v6304 = vrot.slane %v5172, 5
      %v6305 = vsel %vm6277, %v6301, %v6304
      %v6306 = vrot.slane %v5173, 5
      %v6307 = vsel %vm6277, %v6302, %v6306
      %v6308 = vrot.slane %v5174, 5
      %v6309 = vsel %vm6277, %v6304, %v6308
      %v6310 = vrot.slane %v5175, 5
      %v6311 = vsel %vm6277, %v6306, %v6310
      %v6312 = vrot.slane %v5176, 5
      %v6313 = vsel %vm6277, %v6308, %v6312
      %v6314 = vrot.slane %v6168, 5
      %v6315 = vsel %vm6277, %v6310, %v6314
      %v6316 = vrot.slane %v6169, 5
      %v6317 = vsel %vm6277, %v6312, %v6316
      %v6318 = vrot.slane %v6275, 5
      %v6319 = vsel %vm6277, %v6314, %v6318
      %v6320 = vrot.slane %v6276, 5
      %v6321 = vsel %vm6277, %v6316, %v6320
      %vm6322 = vsmask.f32 4352
      %v6324 = vshrl.u32 %v6142, 16
      %v6326 = vrot.slane %v6324, 3
      %v6327 = vshll.u32 %v6142, 16
      %v6329 = vrot.slane %v6327, 4
      %v6330 = vor.u32 %v6326, %v6329
      %v6332 = vshrl.u32 %v6144, 16
      %v6334 = vrot.slane %v6332, 3
      %v6335 = vshll.u32 %v6144, 16
      %v6337 = vrot.slane %v6335, 4
      %v6338 = vor.u32 %v6334, %v6337
      %v6339 = vsel %vm6322, %v6330, %v6338
      %v6341 = vshrl.u32 %v6143, 16
      %v6343 = vrot.slane %v6341, 3
      %v6344 = vshll.u32 %v6143, 16
      %v6346 = vrot.slane %v6344, 4
      %v6347 = vor.u32 %v6343, %v6346
      %v6349 = vshrl.u32 %v6145, 16
      %v6351 = vrot.slane %v6349, 3
      %v6352 = vshll.u32 %v6145, 16
      %v6354 = vrot.slane %v6352, 4
      %v6355 = vor.u32 %v6351, %v6354
      %v6356 = vsel %vm6322, %v6347, %v6355
      %v6358 = vshrl.u32 %v6173, 16
      %v6360 = vrot.slane %v6358, 3
      %v6361 = vshll.u32 %v6173, 16
      %v6363 = vrot.slane %v6361, 4
      %v6364 = vor.u32 %v6360, %v6363
      %v6366 = vshrl.u32 %v6180, 16
      %v6368 = vrot.slane %v6366, 3
      %v6369 = vshll.u32 %v6180, 16
      %v6371 = vrot.slane %v6369, 4
      %v6372 = vor.u32 %v6368, %v6371
      %v6373 = vsel %vm6322, %v6364, %v6372
      %v6375 = vshrl.u32 %v6176, 16
      %v6377 = vrot.slane %v6375, 3
      %v6378 = vshll.u32 %v6176, 16
      %v6380 = vrot.slane %v6378, 4
      %v6381 = vor.u32 %v6377, %v6380
      %v6383 = vshrl.u32 %v6184, 16
      %v6385 = vrot.slane %v6383, 3
      %v6386 = vshll.u32 %v6184, 16
      %v6388 = vrot.slane %v6386, 4
      %v6389 = vor.u32 %v6385, %v6388
      %v6390 = vsel %vm6322, %v6381, %v6389
      %v6392 = vshrl.u32 %v6278, 16
      %v6394 = vrot.slane %v6392, 3
      %v6395 = vshll.u32 %v6278, 16
      %v6397 = vrot.slane %v6395, 4
      %v6398 = vor.u32 %v6394, %v6397
      %v6400 = vshrl.u32 %v6281, 16
      %v6402 = vrot.slane %v6400, 3
      %v6403 = vshll.u32 %v6281, 16
      %v6405 = vrot.slane %v6403, 4
      %v6406 = vor.u32 %v6402, %v6405
      %v6407 = vsel %vm6322, %v6398, %v6406
      %v6409 = vshrl.u32 %v6279, 16
      %v6411 = vrot.slane %v6409, 3
      %v6412 = vshll.u32 %v6279, 16
      %v6414 = vrot.slane %v6412, 4
      %v6415 = vor.u32 %v6411, %v6414
      %v6417 = vshrl.u32 %v6283, 16
      %v6419 = vrot.slane %v6417, 3
      %v6420 = vshll.u32 %v6283, 16
      %v6422 = vrot.slane %v6420, 4
      %v6423 = vor.u32 %v6419, %v6422
      %v6424 = vsel %vm6322, %v6415, %v6423
      %v6426 = vshrl.u32 %v6146, 16
      %v6428 = vrot.slane %v6426, 3
      %v6429 = vshll.u32 %v6146, 16
      %v6431 = vrot.slane %v6429, 4
      %v6432 = vor.u32 %v6428, %v6431
      %v6433 = vsel %vm6322, %v6338, %v6432
      %v6435 = vshrl.u32 %v6147, 16
      %v6437 = vrot.slane %v6435, 3
      %v6438 = vshll.u32 %v6147, 16
      %v6440 = vrot.slane %v6438, 4
      %v6441 = vor.u32 %v6437, %v6440
      %v6442 = vsel %vm6322, %v6355, %v6441
      %v6444 = vshrl.u32 %v6188, 16
      %v6446 = vrot.slane %v6444, 3
      %v6447 = vshll.u32 %v6188, 16
      %v6449 = vrot.slane %v6447, 4
      %v6450 = vor.u32 %v6446, %v6449
      %v6451 = vsel %vm6322, %v6372, %v6450
      %v6453 = vshrl.u32 %v6192, 16
      %v6455 = vrot.slane %v6453, 3
      %v6456 = vshll.u32 %v6192, 16
      %v6458 = vrot.slane %v6456, 4
      %v6459 = vor.u32 %v6455, %v6458
      %v6460 = vsel %vm6322, %v6389, %v6459
      %v6462 = vshrl.u32 %v6285, 16
      %v6464 = vrot.slane %v6462, 3
      %v6465 = vshll.u32 %v6285, 16
      %v6467 = vrot.slane %v6465, 4
      %v6468 = vor.u32 %v6464, %v6467
      %v6469 = vsel %vm6322, %v6406, %v6468
      %v6471 = vshrl.u32 %v6287, 16
      %v6473 = vrot.slane %v6471, 3
      %v6474 = vshll.u32 %v6287, 16
      %v6476 = vrot.slane %v6474, 4
      %v6477 = vor.u32 %v6473, %v6476
      %v6478 = vsel %vm6322, %v6423, %v6477
      %v6480 = vshrl.u32 %v6148, 16
      %v6482 = vrot.slane %v6480, 3
      %v6483 = vshll.u32 %v6148, 16
      %v6485 = vrot.slane %v6483, 4
      %v6486 = vor.u32 %v6482, %v6485
      %v6487 = vsel %vm6322, %v6432, %v6486
      %v6489 = vshrl.u32 %v6149, 16
      %v6491 = vrot.slane %v6489, 3
      %v6492 = vshll.u32 %v6149, 16
      %v6494 = vrot.slane %v6492, 4
      %v6495 = vor.u32 %v6491, %v6494
      %v6496 = vsel %vm6322, %v6441, %v6495
      %v6498 = vshrl.u32 %v6196, 16
      %v6500 = vrot.slane %v6498, 3
      %v6501 = vshll.u32 %v6196, 16
      %v6503 = vrot.slane %v6501, 4
      %v6504 = vor.u32 %v6500, %v6503
      %v6505 = vsel %vm6322, %v6450, %v6504
      %v6507 = vshrl.u32 %v6200, 16
      %v6509 = vrot.slane %v6507, 3
      %v6510 = vshll.u32 %v6200, 16
      %v6512 = vrot.slane %v6510, 4
      %v6513 = vor.u32 %v6509, %v6512
      %v6514 = vsel %vm6322, %v6459, %v6513
      %v6516 = vshrl.u32 %v6289, 16
      %v6518 = vrot.slane %v6516, 3
      %v6519 = vshll.u32 %v6289, 16
      %v6521 = vrot.slane %v6519, 4
      %v6522 = vor.u32 %v6518, %v6521
      %v6523 = vsel %vm6322, %v6468, %v6522
      %v6525 = vshrl.u32 %v6291, 16
      %v6527 = vrot.slane %v6525, 3
      %v6528 = vshll.u32 %v6291, 16
      %v6530 = vrot.slane %v6528, 4
      %v6531 = vor.u32 %v6527, %v6530
      %v6532 = vsel %vm6322, %v6477, %v6531
      %v6534 = vshrl.u32 %v6150, 16
      %v6536 = vrot.slane %v6534, 3
      %v6537 = vshll.u32 %v6150, 16
      %v6539 = vrot.slane %v6537, 4
      %v6540 = vor.u32 %v6536, %v6539
      %v6541 = vsel %vm6322, %v6486, %v6540
      %v6543 = vshrl.u32 %v6151, 16
      %v6545 = vrot.slane %v6543, 3
      %v6546 = vshll.u32 %v6151, 16
      %v6548 = vrot.slane %v6546, 4
      %v6549 = vor.u32 %v6545, %v6548
      %v6550 = vsel %vm6322, %v6495, %v6549
      %v6552 = vshrl.u32 %v6209, 16
      %v6554 = vrot.slane %v6552, 3
      %v6555 = vshll.u32 %v6209, 16
      %v6557 = vrot.slane %v6555, 4
      %v6558 = vor.u32 %v6554, %v6557
      %v6559 = vsel %vm6322, %v6504, %v6558
      %v6561 = vshrl.u32 %v6218, 16
      %v6563 = vrot.slane %v6561, 3
      %v6564 = vshll.u32 %v6218, 16
      %v6566 = vrot.slane %v6564, 4
      %v6567 = vor.u32 %v6563, %v6566
      %v6568 = vsel %vm6322, %v6513, %v6567
      %v6570 = vshrl.u32 %v6293, 16
      %v6572 = vrot.slane %v6570, 3
      %v6573 = vshll.u32 %v6293, 16
      %v6575 = vrot.slane %v6573, 4
      %v6576 = vor.u32 %v6572, %v6575
      %v6577 = vsel %vm6322, %v6522, %v6576
      %v6579 = vshrl.u32 %v6295, 16
      %v6581 = vrot.slane %v6579, 3
      %v6582 = vshll.u32 %v6295, 16
      %v6584 = vrot.slane %v6582, 4
      %v6585 = vor.u32 %v6581, %v6584
      %v6586 = vsel %vm6322, %v6531, %v6585
      %v6588 = vshrl.u32 %v6152, 16
      %v6590 = vrot.slane %v6588, 3
      %v6591 = vshll.u32 %v6152, 16
      %v6593 = vrot.slane %v6591, 4
      %v6594 = vor.u32 %v6590, %v6593
      %v6595 = vsel %vm6322, %v6540, %v6594
      %v6597 = vshrl.u32 %v6153, 16
      %v6599 = vrot.slane %v6597, 3
      %v6600 = vshll.u32 %v6153, 16
      %v6602 = vrot.slane %v6600, 4
      %v6603 = vor.u32 %v6599, %v6602
      %v6604 = vsel %vm6322, %v6549, %v6603
      %v6606 = vshrl.u32 %v6208, 16
      %v6608 = vrot.slane %v6606, 3
      %v6609 = vshll.u32 %v6208, 16
      %v6611 = vrot.slane %v6609, 4
      %v6612 = vor.u32 %v6608, %v6611
      %v6613 = vsel %vm6322, %v6558, %v6612
      %v6615 = vshrl.u32 %v6217, 16
      %v6617 = vrot.slane %v6615, 3
      %v6618 = vshll.u32 %v6217, 16
      %v6620 = vrot.slane %v6618, 4
      %v6621 = vor.u32 %v6617, %v6620
      %v6622 = vsel %vm6322, %v6567, %v6621
      %v6624 = vshrl.u32 %v6297, 16
      %v6626 = vrot.slane %v6624, 3
      %v6627 = vshll.u32 %v6297, 16
      %v6629 = vrot.slane %v6627, 4
      %v6630 = vor.u32 %v6626, %v6629
      %v6631 = vsel %vm6322, %v6576, %v6630
      %v6633 = vshrl.u32 %v6299, 16
      %v6635 = vrot.slane %v6633, 3
      %v6636 = vshll.u32 %v6299, 16
      %v6638 = vrot.slane %v6636, 4
      %v6639 = vor.u32 %v6635, %v6638
      %v6640 = vsel %vm6322, %v6585, %v6639
      %v6642 = vshrl.u32 %v6154, 16
      %v6644 = vrot.slane %v6642, 3
      %v6645 = vshll.u32 %v6154, 16
      %v6647 = vrot.slane %v6645, 4
      %v6648 = vor.u32 %v6644, %v6647
      %v6650 = vshrl.u32 %v6156, 16
      %v6652 = vrot.slane %v6650, 3
      %v6653 = vshll.u32 %v6156, 16
      %v6655 = vrot.slane %v6653, 4
      %v6656 = vor.u32 %v6652, %v6655
      %v6657 = vsel %vm6322, %v6648, %v6656
      %v6659 = vshrl.u32 %v6155, 16
      %v6661 = vrot.slane %v6659, 3
      %v6662 = vshll.u32 %v6155, 16
      %v6664 = vrot.slane %v6662, 4
      %v6665 = vor.u32 %v6661, %v6664
      %v6667 = vshrl.u32 %v6157, 16
      %v6669 = vrot.slane %v6667, 3
      %v6670 = vshll.u32 %v6157, 16
      %v6672 = vrot.slane %v6670, 4
      %v6673 = vor.u32 %v6669, %v6672
      %v6674 = vsel %vm6322, %v6665, %v6673
      %v6676 = vshrl.u32 %v6221, 16
      %v6678 = vrot.slane %v6676, 3
      %v6679 = vshll.u32 %v6221, 16
      %v6681 = vrot.slane %v6679, 4
      %v6682 = vor.u32 %v6678, %v6681
      %v6684 = vshrl.u32 %v6228, 16
      %v6686 = vrot.slane %v6684, 3
      %v6687 = vshll.u32 %v6228, 16
      %v6689 = vrot.slane %v6687, 4
      %v6690 = vor.u32 %v6686, %v6689
      %v6691 = vsel %vm6322, %v6682, %v6690
      %v6693 = vshrl.u32 %v6224, 16
      %v6695 = vrot.slane %v6693, 3
      %v6696 = vshll.u32 %v6224, 16
      %v6698 = vrot.slane %v6696, 4
      %v6699 = vor.u32 %v6695, %v6698
      %v6701 = vshrl.u32 %v6232, 16
      %v6703 = vrot.slane %v6701, 3
      %v6704 = vshll.u32 %v6232, 16
      %v6706 = vrot.slane %v6704, 4
      %v6707 = vor.u32 %v6703, %v6706
      %v6708 = vsel %vm6322, %v6699, %v6707
      %v6710 = vshrl.u32 %v6300, 16
      %v6712 = vrot.slane %v6710, 3
      %v6713 = vshll.u32 %v6300, 16
      %v6715 = vrot.slane %v6713, 4
      %v6716 = vor.u32 %v6712, %v6715
      %v6718 = vshrl.u32 %v6303, 16
      %v6720 = vrot.slane %v6718, 3
      %v6721 = vshll.u32 %v6303, 16
      %v6723 = vrot.slane %v6721, 4
      %v6724 = vor.u32 %v6720, %v6723
      %v6725 = vsel %vm6322, %v6716, %v6724
      %v6727 = vshrl.u32 %v6301, 16
      %v6729 = vrot.slane %v6727, 3
      %v6730 = vshll.u32 %v6301, 16
      %v6732 = vrot.slane %v6730, 4
      %v6733 = vor.u32 %v6729, %v6732
      %v6735 = vshrl.u32 %v6305, 16
      %v6737 = vrot.slane %v6735, 3
      %v6738 = vshll.u32 %v6305, 16
      %v6740 = vrot.slane %v6738, 4
      %v6741 = vor.u32 %v6737, %v6740
      %v6742 = vsel %vm6322, %v6733, %v6741
      %v6744 = vshrl.u32 %v6158, 16
      %v6746 = vrot.slane %v6744, 3
      %v6747 = vshll.u32 %v6158, 16
      %v6749 = vrot.slane %v6747, 4
      %v6750 = vor.u32 %v6746, %v6749
      %v6751 = vsel %vm6322, %v6656, %v6750
      %v6753 = vshrl.u32 %v6159, 16
      %v6755 = vrot.slane %v6753, 3
      %v6756 = vshll.u32 %v6159, 16
      %v6758 = vrot.slane %v6756, 4
      %v6759 = vor.u32 %v6755, %v6758
      %v6760 = vsel %vm6322, %v6673, %v6759
      %v6762 = vshrl.u32 %v6236, 16
      %v6764 = vrot.slane %v6762, 3
      %v6765 = vshll.u32 %v6236, 16
      %v6767 = vrot.slane %v6765, 4
      %v6768 = vor.u32 %v6764, %v6767
      %v6769 = vsel %vm6322, %v6690, %v6768
      %v6771 = vshrl.u32 %v6240, 16
      %v6773 = vrot.slane %v6771, 3
      %v6774 = vshll.u32 %v6240, 16
      %v6776 = vrot.slane %v6774, 4
      %v6777 = vor.u32 %v6773, %v6776
      %v6778 = vsel %vm6322, %v6707, %v6777
      %v6780 = vshrl.u32 %v6307, 16
      %v6782 = vrot.slane %v6780, 3
      %v6783 = vshll.u32 %v6307, 16
      %v6785 = vrot.slane %v6783, 4
      %v6786 = vor.u32 %v6782, %v6785
      %v6787 = vsel %vm6322, %v6724, %v6786
      %v6789 = vshrl.u32 %v6309, 16
      %v6791 = vrot.slane %v6789, 3
      %v6792 = vshll.u32 %v6309, 16
      %v6794 = vrot.slane %v6792, 4
      %v6795 = vor.u32 %v6791, %v6794
      %v6796 = vsel %vm6322, %v6741, %v6795
      %v6798 = vshrl.u32 %v6160, 16
      %v6800 = vrot.slane %v6798, 3
      %v6801 = vshll.u32 %v6160, 16
      %v6803 = vrot.slane %v6801, 4
      %v6804 = vor.u32 %v6800, %v6803
      %v6805 = vsel %vm6322, %v6750, %v6804
      %v6807 = vshrl.u32 %v6161, 16
      %v6809 = vrot.slane %v6807, 3
      %v6810 = vshll.u32 %v6161, 16
      %v6812 = vrot.slane %v6810, 4
      %v6813 = vor.u32 %v6809, %v6812
      %v6814 = vsel %vm6322, %v6759, %v6813
      %v6816 = vshrl.u32 %v6244, 16
      %v6818 = vrot.slane %v6816, 3
      %v6819 = vshll.u32 %v6244, 16
      %v6821 = vrot.slane %v6819, 4
      %v6822 = vor.u32 %v6818, %v6821
      %v6823 = vsel %vm6322, %v6768, %v6822
      %v6825 = vshrl.u32 %v6248, 16
      %v6827 = vrot.slane %v6825, 3
      %v6828 = vshll.u32 %v6248, 16
      %v6830 = vrot.slane %v6828, 4
      %v6831 = vor.u32 %v6827, %v6830
      %v6832 = vsel %vm6322, %v6777, %v6831
      %v6834 = vshrl.u32 %v6311, 16
      %v6836 = vrot.slane %v6834, 3
      %v6837 = vshll.u32 %v6311, 16
      %v6839 = vrot.slane %v6837, 4
      %v6840 = vor.u32 %v6836, %v6839
      %v6841 = vsel %vm6322, %v6786, %v6840
      %v6843 = vshrl.u32 %v6313, 16
      %v6845 = vrot.slane %v6843, 3
      %v6846 = vshll.u32 %v6313, 16
      %v6848 = vrot.slane %v6846, 4
      %v6849 = vor.u32 %v6845, %v6848
      %v6850 = vsel %vm6322, %v6795, %v6849
      %v6852 = vshrl.u32 %v6162, 16
      %v6854 = vrot.slane %v6852, 3
      %v6855 = vshll.u32 %v6162, 16
      %v6857 = vrot.slane %v6855, 4
      %v6858 = vor.u32 %v6854, %v6857
      %v6859 = vsel %vm6322, %v6804, %v6858
      %v6861 = vshrl.u32 %v6163, 16
      %v6863 = vrot.slane %v6861, 3
      %v6864 = vshll.u32 %v6163, 16
      %v6866 = vrot.slane %v6864, 4
      %v6867 = vor.u32 %v6863, %v6866
      %v6868 = vsel %vm6322, %v6813, %v6867
      %v6870 = vshrl.u32 %v6257, 16
      %v6872 = vrot.slane %v6870, 3
      %v6873 = vshll.u32 %v6257, 16
      %v6875 = vrot.slane %v6873, 4
      %v6876 = vor.u32 %v6872, %v6875
      %v6877 = vsel %vm6322, %v6822, %v6876
      %v6879 = vshrl.u32 %v6266, 16
      %v6881 = vrot.slane %v6879, 3
      %v6882 = vshll.u32 %v6266, 16
      %v6884 = vrot.slane %v6882, 4
      %v6885 = vor.u32 %v6881, %v6884
      %v6886 = vsel %vm6322, %v6831, %v6885
      %v6888 = vshrl.u32 %v6315, 16
      %v6890 = vrot.slane %v6888, 3
      %v6891 = vshll.u32 %v6315, 16
      %v6893 = vrot.slane %v6891, 4
      %v6894 = vor.u32 %v6890, %v6893
      %v6895 = vsel %vm6322, %v6840, %v6894
      %v6897 = vshrl.u32 %v6317, 16
      %v6899 = vrot.slane %v6897, 3
      %v6900 = vshll.u32 %v6317, 16
      %v6902 = vrot.slane %v6900, 4
      %v6903 = vor.u32 %v6899, %v6902
      %v6904 = vsel %vm6322, %v6849, %v6903
      %v6906 = vshrl.u32 %v6164, 16
      %v6908 = vrot.slane %v6906, 3
      %v6909 = vshll.u32 %v6164, 16
      %v6911 = vrot.slane %v6909, 4
      %v6912 = vor.u32 %v6908, %v6911
      %v6913 = vsel %vm6322, %v6858, %v6912
      %v6915 = vshrl.u32 %v6165, 16
      %v6917 = vrot.slane %v6915, 3
      %v6918 = vshll.u32 %v6165, 16
      %v6920 = vrot.slane %v6918, 4
      %v6921 = vor.u32 %v6917, %v6920
      %v6922 = vsel %vm6322, %v6867, %v6921
      %v6924 = vshrl.u32 %v6256, 16
      %v6926 = vrot.slane %v6924, 3
      %v6927 = vshll.u32 %v6256, 16
      %v6929 = vrot.slane %v6927, 4
      %v6930 = vor.u32 %v6926, %v6929
      %v6931 = vsel %vm6322, %v6876, %v6930
      %v6933 = vshrl.u32 %v6265, 16
      %v6935 = vrot.slane %v6933, 3
      %v6936 = vshll.u32 %v6265, 16
      %v6938 = vrot.slane %v6936, 4
      %v6939 = vor.u32 %v6935, %v6938
      %v6940 = vsel %vm6322, %v6885, %v6939
      %v6942 = vshrl.u32 %v6319, 16
      %v6944 = vrot.slane %v6942, 3
      %v6945 = vshll.u32 %v6319, 16
      %v6947 = vrot.slane %v6945, 4
      %v6948 = vor.u32 %v6944, %v6947
      %v6949 = vsel %vm6322, %v6894, %v6948
      %v6951 = vshrl.u32 %v6321, 16
      %v6953 = vrot.slane %v6951, 3
      %v6954 = vshll.u32 %v6321, 16
      %v6956 = vrot.slane %v6954, 4
      %v6957 = vor.u32 %v6953, %v6956
      %v6958 = vsel %vm6322, %v6903, %v6957
      %s7019 = scalar_lea.vmem %s3, 768
      %v7020 = vld [vmem:[%s7019] sm:$0xff]
      %v7021 = vld [vmem:[%s7019 + $0x8] sm:$0xff]
      %v7022 = vld [vmem:[%s7019 + $0x10] sm:$0xff]
      %v7023 = vld [vmem:[%s7019 + $0x18] sm:$0xff]
      %v7024 = vld [vmem:[%s7019 + $0x20] sm:$0xff]
      %v7025 = vld [vmem:[%s7019 + $0x28] sm:$0xff]
      %v7026 = vld [vmem:[%s7019 + $0x30] sm:$0xff]
      %v7027 = vld [vmem:[%s7019 + $0x38] sm:$0xff]
      %v7028 = vld [vmem:[%s7019 + $0x40] sm:$0xff]
      %v7029 = vld [vmem:[%s7019 + $0x48] sm:$0xff]
      %v7030 = vld [vmem:[%s7019 + $0x50] sm:$0xff]
      %v7031 = vld [vmem:[%s7019 + $0x58] sm:$0xff]
      %v7032 = vld [vmem:[%s7019 + $0x60] sm:$0xff]
      %v7033 = vld [vmem:[%s7019 + $0x68] sm:$0xff]
      %v7034 = vld [vmem:[%s7019 + $0x70] sm:$0xff]
      %v7035 = vld [vmem:[%s7019 + $0x78] sm:$0xff]
      %v7036 = vld [vmem:[%s7019 + $0x80] sm:$0xff]
      %v7037 = vld [vmem:[%s7019 + $0x88] sm:$0xff]
      %v7038 = vld [vmem:[%s7019 + $0x90] sm:$0xff]
      %v7039 = vld [vmem:[%s7019 + $0x98] sm:$0xff]
      %v7040 = vld [vmem:[%s7019 + $0xa0] sm:$0xff]
      %v7041 = vld [vmem:[%s7019 + $0xa8] sm:$0xff]
      %v7042 = vld [vmem:[%s7019 + $0xb0] sm:$0xff]
      %v7043 = vld [vmem:[%s7019 + $0xb8] sm:$0xff]
      %v7044 = vld [vmem:[%s7019 + $0xc0] sm:$0xff]
      %v7045 = vld [vmem:[%s7019 + $0xc8] sm:$0xff]
      %v7046 = vld [vmem:[%s7019 + $0xd0] sm:$0xff]
      %v7047 = vld [vmem:[%s7019 + $0xd8] sm:$0xff]
      %v7048 = vld [vmem:[%s7019 + $0xe0] sm:$0xff]
      %v7049 = vld [vmem:[%s7019 + $0xe8] sm:$0xff]
      %v7050 = vld [vmem:[%s7019 + $0xf0] sm:$0xff]
      %v7051 = vld [vmem:[%s7019 + $0xf8] sm:$0xff]
      %v7052 = vld [vmem:[%s7019 + $0x100] sm:$0xff]
      %v7053 = vld [vmem:[%s7019 + $0x108] sm:$0xff]
      %v7054 = vld [vmem:[%s7019 + $0x110] sm:$0xff]
      %v7055 = vld [vmem:[%s7019 + $0x118] sm:$0xff]
      %v7056 = vld [vmem:[%s7019 + $0x120] sm:$0xff]
      %v7057 = vld [vmem:[%s7019 + $0x128] sm:$0xff]
      %v7058 = vld [vmem:[%s7019 + $0x130] sm:$0xff]
      %v7059 = vld [vmem:[%s7019 + $0x138] sm:$0xff]
      %v7060 = vld [vmem:[%s7019 + $0x140] sm:$0xff]
      %v7061 = vld [vmem:[%s7019 + $0x148] sm:$0xff]
      %v7062 = vld [vmem:[%s7019 + $0x150] sm:$0xff]
      %v7063 = vld [vmem:[%s7019 + $0x158] sm:$0xff]
      %v7064 = vld [vmem:[%s7019 + $0x160] sm:$0xff]
      %v7065 = vld [vmem:[%s7019 + $0x168] sm:$0xff]
      %v7066 = vld [vmem:[%s7019 + $0x170] sm:$0xff]
      %v7067 = vld [vmem:[%s7019 + $0x178] sm:$0xff]
      %v7068 = vld [vmem:[%s7019 + $0x180] sm:$0xff]
      %v7069 = vld [vmem:[%s7019 + $0x188] sm:$0xff]
      %v7070 = vld [vmem:[%s7019 + $0x190] sm:$0xff]
      %v7071 = vld [vmem:[%s7019 + $0x198] sm:$0xff]
      %v7072 = vld [vmem:[%s7019 + $0x1a0] sm:$0xff]
      %v7073 = vld [vmem:[%s7019 + $0x1a8] sm:$0xff]
      %v7074 = vld [vmem:[%s7019 + $0x1b0] sm:$0xff]
      %v7075 = vld [vmem:[%s7019 + $0x1b8] sm:$0xff]
      %v7076 = vld [vmem:[%s7019 + $0x1c0] sm:$0xff]
      %v7077 = vld [vmem:[%s7019 + $0x1c8] sm:$0xff]
      %v7078 = vld [vmem:[%s7019 + $0x1d0] sm:$0xff]
      %v7079 = vld [vmem:[%s7019 + $0x1d8] sm:$0xff]
      %v7080 = vld [vmem:[%s7019 + $0x1e0] sm:$0xff]
      %v7081 = vld [vmem:[%s7019 + $0x1e8] sm:$0xff]
      %v7082 = vld [vmem:[%s7019 + $0x1f0] sm:$0xff]
      %v7083 = vld [vmem:[%s7019 + $0x1f8] sm:$0xff]
      %v7084 = vld [vmem:[%s7019 + $0x200] sm:$0xff]
      %v7085 = vld [vmem:[%s7019 + $0x208] sm:$0xff]
      %v7086 = vld [vmem:[%s7019 + $0x210] sm:$0xff]
      %v7087 = vld [vmem:[%s7019 + $0x218] sm:$0xff]
      %v7088 = vld [vmem:[%s7019 + $0x220] sm:$0xff]
      %v7089 = vld [vmem:[%s7019 + $0x228] sm:$0xff]
      %v7090 = vld [vmem:[%s7019 + $0x230] sm:$0xff]
      %v7091 = vld [vmem:[%s7019 + $0x238] sm:$0xff]
      %v7092 = vld [vmem:[%s7019 + $0x240] sm:$0xff]
      %v7093 = vld [vmem:[%s7019 + $0x248] sm:$0xff]
      %v7094 = vld [vmem:[%s7019 + $0x250] sm:$0xff]
      %v7095 = vld [vmem:[%s7019 + $0x258] sm:$0xff]
      %v7096 = vld [vmem:[%s7019 + $0x260] sm:$0xff]
      %v7097 = vld [vmem:[%s7019 + $0x268] sm:$0xff]
      %v7098 = vld [vmem:[%s7019 + $0x270] sm:$0xff]
      %v7099 = vld [vmem:[%s7019 + $0x278] sm:$0xff]
      %v7100 = vld [vmem:[%s7019 + $0x280] sm:$0xff]
      %v7101 = vld [vmem:[%s7019 + $0x288] sm:$0xff]
      %v7102 = vld [vmem:[%s7019 + $0x290] sm:$0xff]
      %v7103 = vld [vmem:[%s7019 + $0x298] sm:$0xff]
      %v7104 = vld [vmem:[%s7019 + $0x2a0] sm:$0xff]
      %v7105 = vld [vmem:[%s7019 + $0x2a8] sm:$0xff]
      %v7106 = vld [vmem:[%s7019 + $0x2b0] sm:$0xff]
      %v7107 = vld [vmem:[%s7019 + $0x2b8] sm:$0xff]
      %v7108 = vld [vmem:[%s7019 + $0x2c0] sm:$0xff]
      %v7109 = vld [vmem:[%s7019 + $0x2c8] sm:$0xff]
      %v7110 = vld [vmem:[%s7019 + $0x2d0] sm:$0xff]
      %v7111 = vld [vmem:[%s7019 + $0x2d8] sm:$0xff]
      %v7112 = vld [vmem:[%s7019 + $0x2e0] sm:$0xff]
      %v7113 = vld [vmem:[%s7019 + $0x2e8] sm:$0xff]
      %v7114 = vld [vmem:[%s7019 + $0x2f0] sm:$0xff]
      %v7115 = vld [vmem:[%s7019 + $0x2f8] sm:$0xff]
      %v7212 = vunpack.c.l.b16 %v7020
      %v7213 = vunpack.c.h.b16 %v7020
      %v7214 = vunpack.c.l.b16 %v7021
      %v7215 = vunpack.c.h.b16 %v7021
      %v7216 = vunpack.c.l.b16 %v7022
      %v7217 = vunpack.c.h.b16 %v7022
      %v7218 = vunpack.c.l.b16 %v7023
      %v7219 = vunpack.c.h.b16 %v7023
      %v7220 = vunpack.c.l.b16 %v7024
      %v7221 = vunpack.c.h.b16 %v7024
      %v7222 = vunpack.c.l.b16 %v7025
      %v7223 = vunpack.c.h.b16 %v7025
      %v7224 = vunpack.c.l.b16 %v7026
      %v7225 = vunpack.c.h.b16 %v7026
      %v7226 = vunpack.c.l.b16 %v7027
      %v7227 = vunpack.c.h.b16 %v7027
      %v7228 = vunpack.c.l.b16 %v7028
      %v7229 = vunpack.c.h.b16 %v7028
      %v7230 = vunpack.c.l.b16 %v7029
      %v7231 = vunpack.c.h.b16 %v7029
      %v7232 = vunpack.c.l.b16 %v7030
      %v7233 = vunpack.c.h.b16 %v7030
      %v7234 = vunpack.c.l.b16 %v7031
      %v7235 = vunpack.c.h.b16 %v7031
      %v7236 = vunpack.c.l.b16 %v7032
      %v7237 = vunpack.c.h.b16 %v7032
      %v7238 = vunpack.c.l.b16 %v7033
      %v7239 = vunpack.c.h.b16 %v7033
      %v7240 = vunpack.c.l.b16 %v7034
      %v7241 = vunpack.c.h.b16 %v7034
      %v7242 = vunpack.c.l.b16 %v7035
      %v7243 = vunpack.c.h.b16 %v7035
      %v7244 = vunpack.c.l.b16 %v7036
      %v7245 = vunpack.c.h.b16 %v7036
      %v7246 = vunpack.c.l.b16 %v7037
      %v7247 = vunpack.c.h.b16 %v7037
      %v7248 = vunpack.c.l.b16 %v7038
      %v7249 = vunpack.c.h.b16 %v7038
      %v7250 = vunpack.c.l.b16 %v7039
      %v7251 = vunpack.c.h.b16 %v7039
      %v7252 = vunpack.c.l.b16 %v7040
      %v7253 = vunpack.c.h.b16 %v7040
      %v7254 = vunpack.c.l.b16 %v7041
      %v7255 = vunpack.c.h.b16 %v7041
      %v7256 = vunpack.c.l.b16 %v7042
      %v7257 = vunpack.c.h.b16 %v7042
      %v7258 = vunpack.c.l.b16 %v7043
      %v7259 = vunpack.c.h.b16 %v7043
      %v7260 = vunpack.c.l.b16 %v7044
      %v7261 = vunpack.c.h.b16 %v7044
      %v7262 = vunpack.c.l.b16 %v7045
      %v7263 = vunpack.c.h.b16 %v7045
      %v7264 = vunpack.c.l.b16 %v7046
      %v7265 = vunpack.c.h.b16 %v7046
      %v7266 = vunpack.c.l.b16 %v7047
      %v7267 = vunpack.c.h.b16 %v7047
      %v7268 = vunpack.c.l.b16 %v7048
      %v7269 = vunpack.c.h.b16 %v7048
      %v7270 = vunpack.c.l.b16 %v7049
      %v7271 = vunpack.c.h.b16 %v7049
      %v7272 = vunpack.c.l.b16 %v7050
      %v7273 = vunpack.c.h.b16 %v7050
      %v7274 = vunpack.c.l.b16 %v7051
      %v7275 = vunpack.c.h.b16 %v7051
      %v7276 = vunpack.c.l.b16 %v7052
      %v7277 = vunpack.c.h.b16 %v7052
      %v7278 = vunpack.c.l.b16 %v7053
      %v7279 = vunpack.c.h.b16 %v7053
      %v7280 = vunpack.c.l.b16 %v7054
      %v7281 = vunpack.c.h.b16 %v7054
      %v7282 = vunpack.c.l.b16 %v7055
      %v7283 = vunpack.c.h.b16 %v7055
      %v7284 = vunpack.c.l.b16 %v7056
      %v7285 = vunpack.c.h.b16 %v7056
      %v7286 = vunpack.c.l.b16 %v7057
      %v7287 = vunpack.c.h.b16 %v7057
      %v7288 = vunpack.c.l.b16 %v7058
      %v7289 = vunpack.c.h.b16 %v7058
      %v7290 = vunpack.c.l.b16 %v7059
      %v7291 = vunpack.c.h.b16 %v7059
      %v7292 = vunpack.c.l.b16 %v7060
      %v7293 = vunpack.c.h.b16 %v7060
      %v7294 = vunpack.c.l.b16 %v7061
      %v7295 = vunpack.c.h.b16 %v7061
      %v7296 = vunpack.c.l.b16 %v7062
      %v7297 = vunpack.c.h.b16 %v7062
      %v7298 = vunpack.c.l.b16 %v7063
      %v7299 = vunpack.c.h.b16 %v7063
      %v7300 = vunpack.c.l.b16 %v7064
      %v7301 = vunpack.c.h.b16 %v7064
      %v7302 = vunpack.c.l.b16 %v7065
      %v7303 = vunpack.c.h.b16 %v7065
      %v7304 = vunpack.c.l.b16 %v7066
      %v7305 = vunpack.c.h.b16 %v7066
      %v7306 = vunpack.c.l.b16 %v7067
      %v7307 = vunpack.c.h.b16 %v7067
      %v7308 = vunpack.c.l.b16 %v7068
      %v7309 = vunpack.c.h.b16 %v7068
      %v7310 = vunpack.c.l.b16 %v7069
      %v7311 = vunpack.c.h.b16 %v7069
      %v7312 = vunpack.c.l.b16 %v7070
      %v7313 = vunpack.c.h.b16 %v7070
      %v7314 = vunpack.c.l.b16 %v7071
      %v7315 = vunpack.c.h.b16 %v7071
      %v7316 = vunpack.c.l.b16 %v7072
      %v7317 = vunpack.c.h.b16 %v7072
      %v7318 = vunpack.c.l.b16 %v7073
      %v7319 = vunpack.c.h.b16 %v7073
      %v7320 = vunpack.c.l.b16 %v7074
      %v7321 = vunpack.c.h.b16 %v7074
      %v7322 = vunpack.c.l.b16 %v7075
      %v7323 = vunpack.c.h.b16 %v7075
      %v7324 = vunpack.c.l.b16 %v7076
      %v7325 = vunpack.c.h.b16 %v7076
      %v7326 = vunpack.c.l.b16 %v7077
      %v7327 = vunpack.c.h.b16 %v7077
      %v7328 = vunpack.c.l.b16 %v7078
      %v7329 = vunpack.c.h.b16 %v7078
      %v7330 = vunpack.c.l.b16 %v7079
      %v7331 = vunpack.c.h.b16 %v7079
      %v7332 = vunpack.c.l.b16 %v7080
      %v7333 = vunpack.c.h.b16 %v7080
      %v7334 = vunpack.c.l.b16 %v7081
      %v7335 = vunpack.c.h.b16 %v7081
      %v7336 = vunpack.c.l.b16 %v7082
      %v7337 = vunpack.c.h.b16 %v7082
      %v7338 = vunpack.c.l.b16 %v7083
      %v7339 = vunpack.c.h.b16 %v7083
      %v7340 = vunpack.c.l.b16 %v7084
      %v7341 = vunpack.c.h.b16 %v7084
      %v7342 = vunpack.c.l.b16 %v7085
      %v7343 = vunpack.c.h.b16 %v7085
      %v7344 = vunpack.c.l.b16 %v7086
      %v7345 = vunpack.c.h.b16 %v7086
      %v7346 = vunpack.c.l.b16 %v7087
      %v7347 = vunpack.c.h.b16 %v7087
      %v7348 = vunpack.c.l.b16 %v7088
      %v7349 = vunpack.c.h.b16 %v7088
      %v7350 = vunpack.c.l.b16 %v7089
      %v7351 = vunpack.c.h.b16 %v7089
      %v7352 = vunpack.c.l.b16 %v7090
      %v7353 = vunpack.c.h.b16 %v7090
      %v7354 = vunpack.c.l.b16 %v7091
      %v7355 = vunpack.c.h.b16 %v7091
      %v7356 = vunpack.c.l.b16 %v7092
      %v7357 = vunpack.c.h.b16 %v7092
      %v7358 = vunpack.c.l.b16 %v7093
      %v7359 = vunpack.c.h.b16 %v7093
      %v7360 = vunpack.c.l.b16 %v7094
      %v7361 = vunpack.c.h.b16 %v7094
      %v7362 = vunpack.c.l.b16 %v7095
      %v7363 = vunpack.c.h.b16 %v7095
      %v7364 = vunpack.c.l.b16 %v7096
      %v7365 = vunpack.c.h.b16 %v7096
      %v7366 = vunpack.c.l.b16 %v7097
      %v7367 = vunpack.c.h.b16 %v7097
      %v7368 = vunpack.c.l.b16 %v7098
      %v7369 = vunpack.c.h.b16 %v7098
      %v7370 = vunpack.c.l.b16 %v7099
      %v7371 = vunpack.c.h.b16 %v7099
      %v7372 = vunpack.c.l.b16 %v7100
      %v7373 = vunpack.c.h.b16 %v7100
      %v7374 = vunpack.c.l.b16 %v7101
      %v7375 = vunpack.c.h.b16 %v7101
      %v7376 = vunpack.c.l.b16 %v7102
      %v7377 = vunpack.c.h.b16 %v7102
      %v7378 = vunpack.c.l.b16 %v7103
      %v7379 = vunpack.c.h.b16 %v7103
      %v7380 = vunpack.c.l.b16 %v7104
      %v7381 = vunpack.c.h.b16 %v7104
      %v7382 = vunpack.c.l.b16 %v7105
      %v7383 = vunpack.c.h.b16 %v7105
      %v7384 = vunpack.c.l.b16 %v7106
      %v7385 = vunpack.c.h.b16 %v7106
      %v7386 = vunpack.c.l.b16 %v7107
      %v7387 = vunpack.c.h.b16 %v7107
      %v7388 = vunpack.c.l.b16 %v7108
      %v7389 = vunpack.c.h.b16 %v7108
      %v7390 = vunpack.c.l.b16 %v7109
      %v7391 = vunpack.c.h.b16 %v7109
      %v7392 = vunpack.c.l.b16 %v7110
      %v7393 = vunpack.c.h.b16 %v7110
      %v7394 = vunpack.c.l.b16 %v7111
      %v7395 = vunpack.c.h.b16 %v7111
      %v7396 = vunpack.c.l.b16 %v7112
      %v7397 = vunpack.c.h.b16 %v7112
      %v7398 = vunpack.c.l.b16 %v7113
      %v7399 = vunpack.c.h.b16 %v7113
      %v7400 = vunpack.c.l.b16 %v7114
      %v7401 = vunpack.c.h.b16 %v7114
      %v7402 = vunpack.c.l.b16 %v7115
      %v7403 = vunpack.c.h.b16 %v7115
      %v7404 = vpack.c.b16 %v7214, %v7212
      %v7405 = vpack.c.b16 %v7215, %v7213
      %v7406 = vpack.c.b16 %v7218, %v7216
      %v7407 = vpack.c.b16 %v7219, %v7217
      %v7408 = vpack.c.b16 %v7222, %v7220
      %v7409 = vpack.c.b16 %v7223, %v7221
      %v7410 = vpack.c.b16 %v7226, %v7224
      %v7411 = vpack.c.b16 %v7227, %v7225
      %v7412 = vpack.c.b16 %v7230, %v7228
      %v7413 = vpack.c.b16 %v7231, %v7229
      %v7414 = vpack.c.b16 %v7234, %v7232
      %v7415 = vpack.c.b16 %v7235, %v7233
      %v7416 = vpack.c.b16 %v7238, %v7236
      %v7417 = vpack.c.b16 %v7239, %v7237
      %v7418 = vpack.c.b16 %v7242, %v7240
      %v7419 = vpack.c.b16 %v7243, %v7241
      %v7420 = vpack.c.b16 %v7246, %v7244
      %v7421 = vpack.c.b16 %v7247, %v7245
      %v7422 = vpack.c.b16 %v7250, %v7248
      %v7423 = vpack.c.b16 %v7251, %v7249
      %v7424 = vpack.c.b16 %v7254, %v7252
      %v7425 = vpack.c.b16 %v7255, %v7253
      %v7426 = vpack.c.b16 %v7258, %v7256
      %v7427 = vpack.c.b16 %v7259, %v7257
      %v7428 = vpack.c.b16 %v7262, %v7260
      %v7429 = vpack.c.b16 %v7263, %v7261
      %v7430 = vpack.c.b16 %v7266, %v7264
      %v7431 = vpack.c.b16 %v7267, %v7265
      %v7432 = vpack.c.b16 %v7270, %v7268
      %v7433 = vpack.c.b16 %v7271, %v7269
      %v7434 = vpack.c.b16 %v7274, %v7272
      %v7435 = vpack.c.b16 %v7275, %v7273
      %v7436 = vpack.c.b16 %v7278, %v7276
      %v7437 = vpack.c.b16 %v7279, %v7277
      %v7438 = vpack.c.b16 %v7282, %v7280
      %v7439 = vpack.c.b16 %v7283, %v7281
      %v7440 = vpack.c.b16 %v7286, %v7284
      %v7441 = vpack.c.b16 %v7287, %v7285
      %v7442 = vpack.c.b16 %v7290, %v7288
      %v7443 = vpack.c.b16 %v7291, %v7289
      %v7444 = vpack.c.b16 %v7294, %v7292
      %v7445 = vpack.c.b16 %v7295, %v7293
      %v7446 = vpack.c.b16 %v7298, %v7296
      %v7447 = vpack.c.b16 %v7299, %v7297
      %v7448 = vpack.c.b16 %v7302, %v7300
      %v7449 = vpack.c.b16 %v7303, %v7301
      %v7450 = vpack.c.b16 %v7306, %v7304
      %v7451 = vpack.c.b16 %v7307, %v7305
      %v7452 = vpack.c.b16 %v7310, %v7308
      %v7453 = vpack.c.b16 %v7311, %v7309
      %v7454 = vpack.c.b16 %v7314, %v7312
      %v7455 = vpack.c.b16 %v7315, %v7313
      %v7456 = vpack.c.b16 %v7318, %v7316
      %v7457 = vpack.c.b16 %v7319, %v7317
      %v7458 = vpack.c.b16 %v7322, %v7320
      %v7459 = vpack.c.b16 %v7323, %v7321
      %v7460 = vpack.c.b16 %v7326, %v7324
      %v7461 = vpack.c.b16 %v7327, %v7325
      %v7462 = vpack.c.b16 %v7330, %v7328
      %v7463 = vpack.c.b16 %v7331, %v7329
      %v7464 = vpack.c.b16 %v7334, %v7332
      %v7465 = vpack.c.b16 %v7335, %v7333
      %v7466 = vpack.c.b16 %v7338, %v7336
      %v7467 = vpack.c.b16 %v7339, %v7337
      %v7468 = vpack.c.b16 %v7342, %v7340
      %v7469 = vpack.c.b16 %v7343, %v7341
      %v7470 = vpack.c.b16 %v7346, %v7344
      %v7471 = vpack.c.b16 %v7347, %v7345
      %v7472 = vpack.c.b16 %v7350, %v7348
      %v7473 = vpack.c.b16 %v7351, %v7349
      %v7474 = vpack.c.b16 %v7354, %v7352
      %v7475 = vpack.c.b16 %v7355, %v7353
      %v7476 = vpack.c.b16 %v7358, %v7356
      %v7477 = vpack.c.b16 %v7359, %v7357
      %v7478 = vpack.c.b16 %v7362, %v7360
      %v7479 = vpack.c.b16 %v7363, %v7361
      %v7480 = vpack.c.b16 %v7366, %v7364
      %v7481 = vpack.c.b16 %v7367, %v7365
      %v7482 = vpack.c.b16 %v7370, %v7368
      %v7483 = vpack.c.b16 %v7371, %v7369
      %v7484 = vpack.c.b16 %v7374, %v7372
      %v7485 = vpack.c.b16 %v7375, %v7373
      %v7486 = vpack.c.b16 %v7378, %v7376
      %v7487 = vpack.c.b16 %v7379, %v7377
      %v7488 = vpack.c.b16 %v7382, %v7380
      %v7489 = vpack.c.b16 %v7383, %v7381
      %v7490 = vpack.c.b16 %v7386, %v7384
      %v7491 = vpack.c.b16 %v7387, %v7385
      %v7492 = vpack.c.b16 %v7390, %v7388
      %v7493 = vpack.c.b16 %v7391, %v7389
      %v7494 = vpack.c.b16 %v7394, %v7392
      %v7495 = vpack.c.b16 %v7395, %v7393
      %v7496 = vpack.c.b16 %v7398, %v7396
      %v7497 = vpack.c.b16 %v7399, %v7397
      %v7498 = vpack.c.b16 %v7402, %v7400
      %v7499 = vpack.c.b16 %v7403, %v7401
      %7596 = vmatprep.subr.bf16.mxu0 %v7419
      %7597 = vmatpush1.bf16.msra.mxu0 %v7418
      %7598 = vmatprep.subr.bf16.mxu0 %v7417
      %7599 = vmatpush1.bf16.msra.mxu0 %v7416
      %7600 = vmatprep.subr.bf16.mxu0 %v7415
      %7601 = vmatpush1.bf16.msra.mxu0 %v7414
      %7602 = vmatprep.subr.bf16.mxu0 %v7413
      %7603 = vmatpush1.bf16.msra.mxu0 %v7412
      %7604 = vmatprep.subr.bf16.mxu0 %v7411
      %7605 = vmatpush1.bf16.msra.mxu0 %v7410
      %7606 = vmatprep.subr.bf16.mxu0 %v7409
      %7607 = vmatpush1.bf16.msra.mxu0 %v7408
      %7608 = vmatprep.subr.bf16.mxu0 %v7407
      %7609 = vmatpush1.bf16.msra.mxu0 %v7406
      %7610 = vmatprep.subr.bf16.mxu0 %v7405
      %7611 = vmatpush1.bf16.msra.mxu0 %v7404
      %7612 = vmatprep.subr.bf16.mxu0 %v7435
      %7613 = vmatpush2.bf16.msra.mxu0 %v7434
      %7614 = vmatprep.subr.bf16.mxu0 %v7433
      %7615 = vmatpush2.bf16.msra.mxu0 %v7432
      %7616 = vmatprep.subr.bf16.mxu0 %v7431
      %7617 = vmatpush2.bf16.msra.mxu0 %v7430
      %7618 = vmatprep.subr.bf16.mxu0 %v7429
      %7619 = vmatpush2.bf16.msra.mxu0 %v7428
      %7620 = vmatprep.subr.bf16.mxu0 %v7427
      %7621 = vmatpush2.bf16.msra.mxu0 %v7426
      %7622 = vmatprep.subr.bf16.mxu0 %v7425
      %7623 = vmatpush2.bf16.msra.mxu0 %v7424
      %7624 = vmatprep.subr.bf16.mxu0 %v7423
      %7625 = vmatpush2.bf16.msra.mxu0 %v7422
      %7626 = vmatprep.subr.bf16.mxu0 %v7421
      %7627 = vmatpush2.bf16.msra.mxu0 %v7420
      %7628 = vmatprep.mubr.bf16.mxu0 %v6356
      %7629 = vmatmul.mubr.bf16.gmra.mxu0 %v6339
      %v7630 = vpop.f32.mrf.mxu0
      %v7631 = vadd.f32 0.0, %v7630
      %v7632 = vpop.f32.mrf.mxu0
      %v7633 = vadd.f32 0.0, %v7632
      %v7634 = vpop.f32.mrf.mxu0
      %v7635 = vadd.f32 0.0, %v7634
      %v7636 = vpop.f32.mrf.mxu0
      %v7637 = vadd.f32 0.0, %v7636
      %7638 = vmatprep.mubr.bf16.mxu0 %v6442
      %7639 = vmatmul.mubr.bf16.gmra.mxu0 %v6433
      %v7640 = vpop.f32.mrf.mxu0
      %v7641 = vadd.f32 0.0, %v7640
      %v7642 = vpop.f32.mrf.mxu0
      %v7643 = vadd.f32 0.0, %v7642
      %v7644 = vpop.f32.mrf.mxu0
      %v7645 = vadd.f32 0.0, %v7644
      %v7646 = vpop.f32.mrf.mxu0
      %v7647 = vadd.f32 0.0, %v7646
      %7648 = vmatprep.mubr.bf16.mxu0 %v6496
      %7649 = vmatmul.mubr.bf16.gmra.mxu0 %v6487
      %v7650 = vpop.f32.mrf.mxu0
      %v7651 = vadd.f32 0.0, %v7650
      %v7652 = vpop.f32.mrf.mxu0
      %v7653 = vadd.f32 0.0, %v7652
      %v7654 = vpop.f32.mrf.mxu0
      %v7655 = vadd.f32 0.0, %v7654
      %v7656 = vpop.f32.mrf.mxu0
      %v7657 = vadd.f32 0.0, %v7656
      %7658 = vmatprep.mubr.bf16.mxu0 %v6550
      %7659 = vmatmul.mubr.bf16.gmra.mxu0 %v6541
      %v7660 = vpop.f32.mrf.mxu0
      %v7661 = vadd.f32 0.0, %v7660
      %v7662 = vpop.f32.mrf.mxu0
      %v7663 = vadd.f32 0.0, %v7662
      %v7664 = vpop.f32.mrf.mxu0
      %v7665 = vadd.f32 0.0, %v7664
      %v7666 = vpop.f32.mrf.mxu0
      %v7667 = vadd.f32 0.0, %v7666
      %7668 = vmatprep.mubr.bf16.mxu0 %v6604
      %7669 = vmatmul.mubr.bf16.gmra.mxu0 %v6595
      %v7670 = vpop.f32.mrf.mxu0
      %v7671 = vadd.f32 0.0, %v7670
      %v7672 = vpop.f32.mrf.mxu0
      %v7673 = vadd.f32 0.0, %v7672
      %v7674 = vpop.f32.mrf.mxu0
      %v7675 = vadd.f32 0.0, %v7674
      %v7676 = vpop.f32.mrf.mxu0
      %v7677 = vadd.f32 0.0, %v7676
      %7678 = vmatprep.mubr.bf16.mxu0 %v6674
      %7679 = vmatmul.mubr.bf16.gmra.mxu0 %v6657
      %v7680 = vpop.f32.mrf.mxu0
      %v7681 = vadd.f32 0.0, %v7680
      %v7682 = vpop.f32.mrf.mxu0
      %v7683 = vadd.f32 0.0, %v7682
      %v7684 = vpop.f32.mrf.mxu0
      %v7685 = vadd.f32 0.0, %v7684
      %v7686 = vpop.f32.mrf.mxu0
      %v7687 = vadd.f32 0.0, %v7686
      %7688 = vmatprep.mubr.bf16.mxu0 %v6760
      %7689 = vmatmul.mubr.bf16.gmra.mxu0 %v6751
      %v7690 = vpop.f32.mrf.mxu0
      %v7691 = vadd.f32 0.0, %v7690
      %v7692 = vpop.f32.mrf.mxu0
      %v7693 = vadd.f32 0.0, %v7692
      %v7694 = vpop.f32.mrf.mxu0
      %v7695 = vadd.f32 0.0, %v7694
      %v7696 = vpop.f32.mrf.mxu0
      %v7697 = vadd.f32 0.0, %v7696
      %7698 = vmatprep.mubr.bf16.mxu0 %v6814
      %7699 = vmatmul.mubr.bf16.gmra.mxu0 %v6805
      %v7700 = vpop.f32.mrf.mxu0
      %v7701 = vadd.f32 0.0, %v7700
      %v7702 = vpop.f32.mrf.mxu0
      %v7703 = vadd.f32 0.0, %v7702
      %v7704 = vpop.f32.mrf.mxu0
      %v7705 = vadd.f32 0.0, %v7704
      %v7706 = vpop.f32.mrf.mxu0
      %v7707 = vadd.f32 0.0, %v7706
      %7708 = vmatprep.mubr.bf16.mxu0 %v6868
      %7709 = vmatmul.mubr.bf16.gmra.mxu0 %v6859
      %v7710 = vpop.f32.mrf.mxu0
      %v7711 = vadd.f32 0.0, %v7710
      %v7712 = vpop.f32.mrf.mxu0
      %v7713 = vadd.f32 0.0, %v7712
      %v7714 = vpop.f32.mrf.mxu0
      %v7715 = vadd.f32 0.0, %v7714
      %v7716 = vpop.f32.mrf.mxu0
      %v7717 = vadd.f32 0.0, %v7716
      %7718 = vmatprep.mubr.bf16.mxu0 %v6922
      %7719 = vmatmul.mubr.bf16.gmra.mxu0 %v6913
      %v7720 = vpop.f32.mrf.mxu0
      %v7721 = vadd.f32 0.0, %v7720
      %v7722 = vpop.f32.mrf.mxu0
      %v7723 = vadd.f32 0.0, %v7722
      %v7724 = vpop.f32.mrf.mxu0
      %v7725 = vadd.f32 0.0, %v7724
      %v7726 = vpop.f32.mrf.mxu0
      %v7727 = vadd.f32 0.0, %v7726
      %7728 = vdwg.mxu0
      %7729 = vmatprep.subr.bf16.mxu0 %v7451
      %7730 = vmatpush1.bf16.msra.mxu0 %v7450
      %7731 = vmatprep.subr.bf16.mxu0 %v7449
      %7732 = vmatpush1.bf16.msra.mxu0 %v7448
      %7733 = vmatprep.subr.bf16.mxu0 %v7447
      %7734 = vmatpush1.bf16.msra.mxu0 %v7446
      %7735 = vmatprep.subr.bf16.mxu0 %v7445
      %7736 = vmatpush1.bf16.msra.mxu0 %v7444
      %7737 = vmatprep.subr.bf16.mxu0 %v7443
      %7738 = vmatpush1.bf16.msra.mxu0 %v7442
      %7739 = vmatprep.subr.bf16.mxu0 %v7441
      %7740 = vmatpush1.bf16.msra.mxu0 %v7440
      %7741 = vmatprep.subr.bf16.mxu0 %v7439
      %7742 = vmatpush1.bf16.msra.mxu0 %v7438
      %7743 = vmatprep.subr.bf16.mxu0 %v7437
      %7744 = vmatpush1.bf16.msra.mxu0 %v7436
      %7745 = vmatprep.subr.bf16.mxu0 %v7467
      %7746 = vmatpush2.bf16.msra.mxu0 %v7466
      %7747 = vmatprep.subr.bf16.mxu0 %v7465
      %7748 = vmatpush2.bf16.msra.mxu0 %v7464
      %7749 = vmatprep.subr.bf16.mxu0 %v7463
      %7750 = vmatpush2.bf16.msra.mxu0 %v7462
      %7751 = vmatprep.subr.bf16.mxu0 %v7461
      %7752 = vmatpush2.bf16.msra.mxu0 %v7460
      %7753 = vmatprep.subr.bf16.mxu0 %v7459
      %7754 = vmatpush2.bf16.msra.mxu0 %v7458
      %7755 = vmatprep.subr.bf16.mxu0 %v7457
      %7756 = vmatpush2.bf16.msra.mxu0 %v7456
      %7757 = vmatprep.subr.bf16.mxu0 %v7455
      %7758 = vmatpush2.bf16.msra.mxu0 %v7454
      %7759 = vmatprep.subr.bf16.mxu0 %v7453
      %7760 = vmatpush2.bf16.msra.mxu0 %v7452
      %7761 = vmatprep.mubr.bf16.mxu0 %v6390
      %7762 = vmatmul.mubr.bf16.gmra.mxu0 %v6373
      %v7763 = vpop.f32.mrf.mxu0
      %v7764 = vadd.f32 %v7631, %v7763
      %v7765 = vpop.f32.mrf.mxu0
      %v7766 = vadd.f32 %v7633, %v7765
      %v7767 = vpop.f32.mrf.mxu0
      %v7768 = vadd.f32 %v7635, %v7767
      %v7769 = vpop.f32.mrf.mxu0
      %v7770 = vadd.f32 %v7637, %v7769
      %7771 = vmatprep.mubr.bf16.mxu0 %v6460
      %7772 = vmatmul.mubr.bf16.gmra.mxu0 %v6451
      %v7773 = vpop.f32.mrf.mxu0
      %v7774 = vadd.f32 %v7641, %v7773
      %v7775 = vpop.f32.mrf.mxu0
      %v7776 = vadd.f32 %v7643, %v7775
      %v7777 = vpop.f32.mrf.mxu0
      %v7778 = vadd.f32 %v7645, %v7777
      %v7779 = vpop.f32.mrf.mxu0
      %v7780 = vadd.f32 %v7647, %v7779
      %7781 = vmatprep.mubr.bf16.mxu0 %v6514
      %7782 = vmatmul.mubr.bf16.gmra.mxu0 %v6505
      %v7783 = vpop.f32.mrf.mxu0
      %v7784 = vadd.f32 %v7651, %v7783
      %v7785 = vpop.f32.mrf.mxu0
      %v7786 = vadd.f32 %v7653, %v7785
      %v7787 = vpop.f32.mrf.mxu0
      %v7788 = vadd.f32 %v7655, %v7787
      %v7789 = vpop.f32.mrf.mxu0
      %v7790 = vadd.f32 %v7657, %v7789
      %7791 = vmatprep.mubr.bf16.mxu0 %v6568
      %7792 = vmatmul.mubr.bf16.gmra.mxu0 %v6559
      %v7793 = vpop.f32.mrf.mxu0
      %v7794 = vadd.f32 %v7661, %v7793
      %v7795 = vpop.f32.mrf.mxu0
      %v7796 = vadd.f32 %v7663, %v7795
      %v7797 = vpop.f32.mrf.mxu0
      %v7798 = vadd.f32 %v7665, %v7797
      %v7799 = vpop.f32.mrf.mxu0
      %v7800 = vadd.f32 %v7667, %v7799
      %7801 = vmatprep.mubr.bf16.mxu0 %v6622
      %7802 = vmatmul.mubr.bf16.gmra.mxu0 %v6613
      %v7803 = vpop.f32.mrf.mxu0
      %v7804 = vadd.f32 %v7671, %v7803
      %v7805 = vpop.f32.mrf.mxu0
      %v7806 = vadd.f32 %v7673, %v7805
      %v7807 = vpop.f32.mrf.mxu0
      %v7808 = vadd.f32 %v7675, %v7807
      %v7809 = vpop.f32.mrf.mxu0
      %v7810 = vadd.f32 %v7677, %v7809
      %7811 = vmatprep.mubr.bf16.mxu0 %v6708
      %7812 = vmatmul.mubr.bf16.gmra.mxu0 %v6691
      %v7813 = vpop.f32.mrf.mxu0
      %v7814 = vadd.f32 %v7681, %v7813
      %v7815 = vpop.f32.mrf.mxu0
      %v7816 = vadd.f32 %v7683, %v7815
      %v7817 = vpop.f32.mrf.mxu0
      %v7818 = vadd.f32 %v7685, %v7817
      %v7819 = vpop.f32.mrf.mxu0
      %v7820 = vadd.f32 %v7687, %v7819
      %7821 = vmatprep.mubr.bf16.mxu0 %v6778
      %7822 = vmatmul.mubr.bf16.gmra.mxu0 %v6769
      %v7823 = vpop.f32.mrf.mxu0
      %v7824 = vadd.f32 %v7691, %v7823
      %v7825 = vpop.f32.mrf.mxu0
      %v7826 = vadd.f32 %v7693, %v7825
      %v7827 = vpop.f32.mrf.mxu0
      %v7828 = vadd.f32 %v7695, %v7827
      %v7829 = vpop.f32.mrf.mxu0
      %v7830 = vadd.f32 %v7697, %v7829
      %7831 = vmatprep.mubr.bf16.mxu0 %v6832
      %7832 = vmatmul.mubr.bf16.gmra.mxu0 %v6823
      %v7833 = vpop.f32.mrf.mxu0
      %v7834 = vadd.f32 %v7701, %v7833
      %v7835 = vpop.f32.mrf.mxu0
      %v7836 = vadd.f32 %v7703, %v7835
      %v7837 = vpop.f32.mrf.mxu0
      %v7838 = vadd.f32 %v7705, %v7837
      %v7839 = vpop.f32.mrf.mxu0
      %v7840 = vadd.f32 %v7707, %v7839
      %7841 = vmatprep.mubr.bf16.mxu0 %v6886
      %7842 = vmatmul.mubr.bf16.gmra.mxu0 %v6877
      %v7843 = vpop.f32.mrf.mxu0
      %v7844 = vadd.f32 %v7711, %v7843
      %v7845 = vpop.f32.mrf.mxu0
      %v7846 = vadd.f32 %v7713, %v7845
      %v7847 = vpop.f32.mrf.mxu0
      %v7848 = vadd.f32 %v7715, %v7847
      %v7849 = vpop.f32.mrf.mxu0
      %v7850 = vadd.f32 %v7717, %v7849
      %7851 = vmatprep.mubr.bf16.mxu0 %v6940
      %7852 = vmatmul.mubr.bf16.gmra.mxu0 %v6931
      %v7853 = vpop.f32.mrf.mxu0
      %v7854 = vadd.f32 %v7721, %v7853
      %v7855 = vpop.f32.mrf.mxu0
      %v7856 = vadd.f32 %v7723, %v7855
      %v7857 = vpop.f32.mrf.mxu0
      %v7858 = vadd.f32 %v7725, %v7857
      %v7859 = vpop.f32.mrf.mxu0
      %v7860 = vadd.f32 %v7727, %v7859
      %7861 = vdwg.mxu0
      %7862 = vmatprep.subr.bf16.mxu0 %v7483
      %7863 = vmatpush1.bf16.msra.mxu0 %v7482
      %7864 = vmatprep.subr.bf16.mxu0 %v7481
      %7865 = vmatpush1.bf16.msra.mxu0 %v7480
      %7866 = vmatprep.subr.bf16.mxu0 %v7479
      %7867 = vmatpush1.bf16.msra.mxu0 %v7478
      %7868 = vmatprep.subr.bf16.mxu0 %v7477
      %7869 = vmatpush1.bf16.msra.mxu0 %v7476
      %7870 = vmatprep.subr.bf16.mxu0 %v7475
      %7871 = vmatpush1.bf16.msra.mxu0 %v7474
      %7872 = vmatprep.subr.bf16.mxu0 %v7473
      %7873 = vmatpush1.bf16.msra.mxu0 %v7472
      %7874 = vmatprep.subr.bf16.mxu0 %v7471
      %7875 = vmatpush1.bf16.msra.mxu0 %v7470
      %7876 = vmatprep.subr.bf16.mxu0 %v7469
      %7877 = vmatpush1.bf16.msra.mxu0 %v7468
      %7878 = vmatprep.subr.bf16.mxu0 %v7499
      %7879 = vmatpush2.bf16.msra.mxu0 %v7498
      %7880 = vmatprep.subr.bf16.mxu0 %v7497
      %7881 = vmatpush2.bf16.msra.mxu0 %v7496
      %7882 = vmatprep.subr.bf16.mxu0 %v7495
      %7883 = vmatpush2.bf16.msra.mxu0 %v7494
      %7884 = vmatprep.subr.bf16.mxu0 %v7493
      %7885 = vmatpush2.bf16.msra.mxu0 %v7492
      %7886 = vmatprep.subr.bf16.mxu0 %v7491
      %7887 = vmatpush2.bf16.msra.mxu0 %v7490
      %7888 = vmatprep.subr.bf16.mxu0 %v7489
      %7889 = vmatpush2.bf16.msra.mxu0 %v7488
      %7890 = vmatprep.subr.bf16.mxu0 %v7487
      %7891 = vmatpush2.bf16.msra.mxu0 %v7486
      %7892 = vmatprep.subr.bf16.mxu0 %v7485
      %7893 = vmatpush2.bf16.msra.mxu0 %v7484
      %7894 = vmatprep.mubr.bf16.mxu0 %v6424
      %7895 = vmatmul.mubr.bf16.gmra.mxu0 %v6407
      %v7896 = vpop.f32.mrf.mxu0
      %v7897 = vadd.f32 %v7764, %v7896
      %v7898 = vpop.f32.mrf.mxu0
      %v7899 = vadd.f32 %v7766, %v7898
      %v7900 = vpop.f32.mrf.mxu0
      %v7901 = vadd.f32 %v7768, %v7900
      %v7902 = vpop.f32.mrf.mxu0
      %v7903 = vadd.f32 %v7770, %v7902
      %7904 = vmatprep.mubr.bf16.mxu0 %v6478
      %7905 = vmatmul.mubr.bf16.gmra.mxu0 %v6469
      %v7906 = vpop.f32.mrf.mxu0
      %v7907 = vadd.f32 %v7774, %v7906
      %v7908 = vpop.f32.mrf.mxu0
      %v7909 = vadd.f32 %v7776, %v7908
      %v7910 = vpop.f32.mrf.mxu0
      %v7911 = vadd.f32 %v7778, %v7910
      %v7912 = vpop.f32.mrf.mxu0
      %v7913 = vadd.f32 %v7780, %v7912
      %7914 = vmatprep.mubr.bf16.mxu0 %v6532
      %7915 = vmatmul.mubr.bf16.gmra.mxu0 %v6523
      %v7916 = vpop.f32.mrf.mxu0
      %v7917 = vadd.f32 %v7784, %v7916
      %v7918 = vpop.f32.mrf.mxu0
      %v7919 = vadd.f32 %v7786, %v7918
      %v7920 = vpop.f32.mrf.mxu0
      %v7921 = vadd.f32 %v7788, %v7920
      %v7922 = vpop.f32.mrf.mxu0
      %v7923 = vadd.f32 %v7790, %v7922
      %7924 = vmatprep.mubr.bf16.mxu0 %v6586
      %7925 = vmatmul.mubr.bf16.gmra.mxu0 %v6577
      %v7926 = vpop.f32.mrf.mxu0
      %v7927 = vadd.f32 %v7794, %v7926
      %v7928 = vpop.f32.mrf.mxu0
      %v7929 = vadd.f32 %v7796, %v7928
      %v7930 = vpop.f32.mrf.mxu0
      %v7931 = vadd.f32 %v7798, %v7930
      %v7932 = vpop.f32.mrf.mxu0
      %v7933 = vadd.f32 %v7800, %v7932
      %7934 = vmatprep.mubr.bf16.mxu0 %v6640
      %7935 = vmatmul.mubr.bf16.gmra.mxu0 %v6631
      %v7936 = vpop.f32.mrf.mxu0
      %v7937 = vadd.f32 %v7804, %v7936
      %v7938 = vpop.f32.mrf.mxu0
      %v7939 = vadd.f32 %v7806, %v7938
      %v7940 = vpop.f32.mrf.mxu0
      %v7941 = vadd.f32 %v7808, %v7940
      %v7942 = vpop.f32.mrf.mxu0
      %v7943 = vadd.f32 %v7810, %v7942
      %7944 = vmatprep.mubr.bf16.mxu0 %v6742
      %7945 = vmatmul.mubr.bf16.gmra.mxu0 %v6725
      %v7946 = vpop.f32.mrf.mxu0
      %v7947 = vadd.f32 %v7814, %v7946
      %v7948 = vpop.f32.mrf.mxu0
      %v7949 = vadd.f32 %v7816, %v7948
      %v7950 = vpop.f32.mrf.mxu0
      %v7951 = vadd.f32 %v7818, %v7950
      %v7952 = vpop.f32.mrf.mxu0
      %v7953 = vadd.f32 %v7820, %v7952
      %7954 = vmatprep.mubr.bf16.mxu0 %v6796
      %7955 = vmatmul.mubr.bf16.gmra.mxu0 %v6787
      %v7956 = vpop.f32.mrf.mxu0
      %v7957 = vadd.f32 %v7824, %v7956
      %v7958 = vpop.f32.mrf.mxu0
      %v7959 = vadd.f32 %v7826, %v7958
      %v7960 = vpop.f32.mrf.mxu0
      %v7961 = vadd.f32 %v7828, %v7960
      %v7962 = vpop.f32.mrf.mxu0
      %v7963 = vadd.f32 %v7830, %v7962
      %7964 = vmatprep.mubr.bf16.mxu0 %v6850
      %7965 = vmatmul.mubr.bf16.gmra.mxu0 %v6841
      %v7966 = vpop.f32.mrf.mxu0
      %v7967 = vadd.f32 %v7834, %v7966
      %v7968 = vpop.f32.mrf.mxu0
      %v7969 = vadd.f32 %v7836, %v7968
      %v7970 = vpop.f32.mrf.mxu0
      %v7971 = vadd.f32 %v7838, %v7970
      %v7972 = vpop.f32.mrf.mxu0
      %v7973 = vadd.f32 %v7840, %v7972
      %7974 = vmatprep.mubr.bf16.mxu0 %v6904
      %7975 = vmatmul.mubr.bf16.gmra.mxu0 %v6895
      %v7976 = vpop.f32.mrf.mxu0
      %v7977 = vadd.f32 %v7844, %v7976
      %v7978 = vpop.f32.mrf.mxu0
      %v7979 = vadd.f32 %v7846, %v7978
      %v7980 = vpop.f32.mrf.mxu0
      %v7981 = vadd.f32 %v7848, %v7980
      %v7982 = vpop.f32.mrf.mxu0
      %v7983 = vadd.f32 %v7850, %v7982
      %7984 = vmatprep.mubr.bf16.mxu0 %v6958
      %7985 = vmatmul.mubr.bf16.gmra.mxu0 %v6949
      %v7986 = vpop.f32.mrf.mxu0
      %v7987 = vadd.f32 %v7854, %v7986
      %v7988 = vpop.f32.mrf.mxu0
      %v7989 = vadd.f32 %v7856, %v7988
      %v7990 = vpop.f32.mrf.mxu0
      %v7991 = vadd.f32 %v7858, %v7990
      %v7992 = vpop.f32.mrf.mxu0
      %v7993 = vadd.f32 %v7860, %v7992
      %7994 = vdwg.mxu0
      %v8091 = vunpack.c.l.b16 %v6028
      %v8092 = vunpack.c.h.b16 %v6028
      %v8093 = vunpack.c.l.b16 %v6029
      %v8094 = vunpack.c.h.b16 %v6029
      %v8095 = vunpack.c.l.b16 %v6030
      %v8096 = vunpack.c.h.b16 %v6030
      %v8097 = vunpack.c.l.b16 %v6031
      %v8098 = vunpack.c.h.b16 %v6031
      %v8099 = vunpack.c.l.b16 %v6032
      %v8100 = vunpack.c.h.b16 %v6032
      %v8101 = vunpack.c.l.b16 %v6033
      %v8102 = vunpack.c.h.b16 %v6033
      %v8103 = vunpack.c.l.b16 %v6034
      %v8104 = vunpack.c.h.b16 %v6034
      %v8105 = vunpack.c.l.b16 %v6035
      %v8106 = vunpack.c.h.b16 %v6035
      %v8107 = vunpack.c.l.b16 %v6036
      %v8108 = vunpack.c.h.b16 %v6036
      %v8109 = vunpack.c.l.b16 %v6037
      %v8110 = vunpack.c.h.b16 %v6037
      %v8111 = vunpack.c.l.b16 %v6038
      %v8112 = vunpack.c.h.b16 %v6038
      %v8113 = vunpack.c.l.b16 %v6039
      %v8114 = vunpack.c.h.b16 %v6039
      %v8115 = vunpack.c.l.b16 %v6040
      %v8116 = vunpack.c.h.b16 %v6040
      %v8117 = vunpack.c.l.b16 %v6041
      %v8118 = vunpack.c.h.b16 %v6041
      %v8119 = vunpack.c.l.b16 %v6042
      %v8120 = vunpack.c.h.b16 %v6042
      %v8121 = vunpack.c.l.b16 %v6043
      %v8122 = vunpack.c.h.b16 %v6043
      %v8123 = vunpack.c.l.b16 %v6044
      %v8124 = vunpack.c.h.b16 %v6044
      %v8125 = vunpack.c.l.b16 %v6045
      %v8126 = vunpack.c.h.b16 %v6045
      %v8127 = vunpack.c.l.b16 %v6046
      %v8128 = vunpack.c.h.b16 %v6046
      %v8129 = vunpack.c.l.b16 %v6047
      %v8130 = vunpack.c.h.b16 %v6047
      %v8131 = vunpack.c.l.b16 %v6048
      %v8132 = vunpack.c.h.b16 %v6048
      %v8133 = vunpack.c.l.b16 %v6049
      %v8134 = vunpack.c.h.b16 %v6049
      %v8135 = vunpack.c.l.b16 %v6050
      %v8136 = vunpack.c.h.b16 %v6050
      %v8137 = vunpack.c.l.b16 %v6051
      %v8138 = vunpack.c.h.b16 %v6051
      %v8139 = vunpack.c.l.b16 %v6052
      %v8140 = vunpack.c.h.b16 %v6052
      %v8141 = vunpack.c.l.b16 %v6053
      %v8142 = vunpack.c.h.b16 %v6053
      %v8143 = vunpack.c.l.b16 %v6054
      %v8144 = vunpack.c.h.b16 %v6054
      %v8145 = vunpack.c.l.b16 %v6055
      %v8146 = vunpack.c.h.b16 %v6055
      %v8147 = vunpack.c.l.b16 %v6056
      %v8148 = vunpack.c.h.b16 %v6056
      %v8149 = vunpack.c.l.b16 %v6057
      %v8150 = vunpack.c.h.b16 %v6057
      %v8151 = vunpack.c.l.b16 %v6058
      %v8152 = vunpack.c.h.b16 %v6058
      %v8153 = vunpack.c.l.b16 %v6059
      %v8154 = vunpack.c.h.b16 %v6059
      %v8155 = vunpack.c.l.b16 %v6060
      %v8156 = vunpack.c.h.b16 %v6060
      %v8157 = vunpack.c.l.b16 %v6061
      %v8158 = vunpack.c.h.b16 %v6061
      %v8159 = vunpack.c.l.b16 %v6062
      %v8160 = vunpack.c.h.b16 %v6062
      %v8161 = vunpack.c.l.b16 %v6063
      %v8162 = vunpack.c.h.b16 %v6063
      %v8163 = vunpack.c.l.b16 %v6064
      %v8164 = vunpack.c.h.b16 %v6064
      %v8165 = vunpack.c.l.b16 %v6065
      %v8166 = vunpack.c.h.b16 %v6065
      %v8167 = vunpack.c.l.b16 %v6066
      %v8168 = vunpack.c.h.b16 %v6066
      %v8169 = vunpack.c.l.b16 %v6067
      %v8170 = vunpack.c.h.b16 %v6067
      %v8171 = vunpack.c.l.b16 %v6068
      %v8172 = vunpack.c.h.b16 %v6068
      %v8173 = vunpack.c.l.b16 %v6069
      %v8174 = vunpack.c.h.b16 %v6069
      %v8175 = vunpack.c.l.b16 %v6070
      %v8176 = vunpack.c.h.b16 %v6070
      %v8177 = vunpack.c.l.b16 %v6071
      %v8178 = vunpack.c.h.b16 %v6071
      %v8179 = vunpack.c.l.b16 %v6072
      %v8180 = vunpack.c.h.b16 %v6072
      %v8181 = vunpack.c.l.b16 %v6073
      %v8182 = vunpack.c.h.b16 %v6073
      %v8183 = vunpack.c.l.b16 %v6074
      %v8184 = vunpack.c.h.b16 %v6074
      %v8185 = vunpack.c.l.b16 %v6075
      %v8186 = vunpack.c.h.b16 %v6075
      %v8187 = vunpack.c.l.b16 %v6076
      %v8188 = vunpack.c.h.b16 %v6076
      %v8189 = vunpack.c.l.b16 %v6077
      %v8190 = vunpack.c.h.b16 %v6077
      %v8191 = vunpack.c.l.b16 %v6078
      %v8192 = vunpack.c.h.b16 %v6078
      %v8193 = vunpack.c.l.b16 %v6079
      %v8194 = vunpack.c.h.b16 %v6079
      %v8195 = vunpack.c.l.b16 %v6080
      %v8196 = vunpack.c.h.b16 %v6080
      %v8197 = vunpack.c.l.b16 %v6081
      %v8198 = vunpack.c.h.b16 %v6081
      %v8199 = vunpack.c.l.b16 %v6082
      %v8200 = vunpack.c.h.b16 %v6082
      %v8201 = vunpack.c.l.b16 %v6083
      %v8202 = vunpack.c.h.b16 %v6083
      %v8203 = vunpack.c.l.b16 %v6084
      %v8204 = vunpack.c.h.b16 %v6084
      %v8205 = vunpack.c.l.b16 %v6085
      %v8206 = vunpack.c.h.b16 %v6085
      %v8207 = vunpack.c.l.b16 %v6086
      %v8208 = vunpack.c.h.b16 %v6086
      %v8209 = vunpack.c.l.b16 %v6087
      %v8210 = vunpack.c.h.b16 %v6087
      %v8211 = vunpack.c.l.b16 %v6088
      %v8212 = vunpack.c.h.b16 %v6088
      %v8213 = vunpack.c.l.b16 %v6089
      %v8214 = vunpack.c.h.b16 %v6089
      %v8215 = vunpack.c.l.b16 %v6090
      %v8216 = vunpack.c.h.b16 %v6090
      %v8217 = vunpack.c.l.b16 %v6091
      %v8218 = vunpack.c.h.b16 %v6091
      %v8219 = vunpack.c.l.b16 %v6092
      %v8220 = vunpack.c.h.b16 %v6092
      %v8221 = vunpack.c.l.b16 %v6093
      %v8222 = vunpack.c.h.b16 %v6093
      %v8223 = vunpack.c.l.b16 %v6094
      %v8224 = vunpack.c.h.b16 %v6094
      %v8225 = vunpack.c.l.b16 %v6095
      %v8226 = vunpack.c.h.b16 %v6095
      %v8227 = vunpack.c.l.b16 %v6096
      %v8228 = vunpack.c.h.b16 %v6096
      %v8229 = vunpack.c.l.b16 %v6097
      %v8230 = vunpack.c.h.b16 %v6097
      %v8231 = vunpack.c.l.b16 %v6098
      %v8232 = vunpack.c.h.b16 %v6098
      %v8233 = vunpack.c.l.b16 %v6099
      %v8234 = vunpack.c.h.b16 %v6099
      %v8235 = vunpack.c.l.b16 %v6100
      %v8236 = vunpack.c.h.b16 %v6100
      %v8237 = vunpack.c.l.b16 %v6101
      %v8238 = vunpack.c.h.b16 %v6101
      %v8239 = vunpack.c.l.b16 %v6102
      %v8240 = vunpack.c.h.b16 %v6102
      %v8241 = vunpack.c.l.b16 %v6103
      %v8242 = vunpack.c.h.b16 %v6103
      %v8243 = vunpack.c.l.b16 %v6104
      %v8244 = vunpack.c.h.b16 %v6104
      %v8245 = vunpack.c.l.b16 %v6105
      %v8246 = vunpack.c.h.b16 %v6105
      %v8247 = vunpack.c.l.b16 %v6106
      %v8248 = vunpack.c.h.b16 %v6106
      %v8249 = vunpack.c.l.b16 %v6107
      %v8250 = vunpack.c.h.b16 %v6107
      %v8251 = vunpack.c.l.b16 %v6108
      %v8252 = vunpack.c.h.b16 %v6108
      %v8253 = vunpack.c.l.b16 %v6109
      %v8254 = vunpack.c.h.b16 %v6109
      %v8255 = vunpack.c.l.b16 %v6110
      %v8256 = vunpack.c.h.b16 %v6110
      %v8257 = vunpack.c.l.b16 %v6111
      %v8258 = vunpack.c.h.b16 %v6111
      %v8259 = vunpack.c.l.b16 %v6112
      %v8260 = vunpack.c.h.b16 %v6112
      %v8261 = vunpack.c.l.b16 %v6113
      %v8262 = vunpack.c.h.b16 %v6113
      %v8263 = vunpack.c.l.b16 %v6114
      %v8264 = vunpack.c.h.b16 %v6114
      %v8265 = vunpack.c.l.b16 %v6115
      %v8266 = vunpack.c.h.b16 %v6115
      %v8267 = vunpack.c.l.b16 %v6116
      %v8268 = vunpack.c.h.b16 %v6116
      %v8269 = vunpack.c.l.b16 %v6117
      %v8270 = vunpack.c.h.b16 %v6117
      %v8271 = vunpack.c.l.b16 %v6118
      %v8272 = vunpack.c.h.b16 %v6118
      %v8273 = vunpack.c.l.b16 %v6119
      %v8274 = vunpack.c.h.b16 %v6119
      %v8275 = vunpack.c.l.b16 %v6120
      %v8276 = vunpack.c.h.b16 %v6120
      %v8277 = vunpack.c.l.b16 %v6121
      %v8278 = vunpack.c.h.b16 %v6121
      %v8279 = vunpack.c.l.b16 %v6122
      %v8280 = vunpack.c.h.b16 %v6122
      %v8281 = vunpack.c.l.b16 %v6123
      %v8282 = vunpack.c.h.b16 %v6123
      %v8283 = vpack.c.b16 %v8093, %v8091
      %v8284 = vpack.c.b16 %v8094, %v8092
      %v8285 = vpack.c.b16 %v8097, %v8095
      %v8286 = vpack.c.b16 %v8098, %v8096
      %v8287 = vpack.c.b16 %v8101, %v8099
      %v8288 = vpack.c.b16 %v8102, %v8100
      %v8289 = vpack.c.b16 %v8105, %v8103
      %v8290 = vpack.c.b16 %v8106, %v8104
      %v8291 = vpack.c.b16 %v8109, %v8107
      %v8292 = vpack.c.b16 %v8110, %v8108
      %v8293 = vpack.c.b16 %v8113, %v8111
      %v8294 = vpack.c.b16 %v8114, %v8112
      %v8295 = vpack.c.b16 %v8117, %v8115
      %v8296 = vpack.c.b16 %v8118, %v8116
      %v8297 = vpack.c.b16 %v8121, %v8119
      %v8298 = vpack.c.b16 %v8122, %v8120
      %v8299 = vpack.c.b16 %v8125, %v8123
      %v8300 = vpack.c.b16 %v8126, %v8124
      %v8301 = vpack.c.b16 %v8129, %v8127
      %v8302 = vpack.c.b16 %v8130, %v8128
      %v8303 = vpack.c.b16 %v8133, %v8131
      %v8304 = vpack.c.b16 %v8134, %v8132
      %v8305 = vpack.c.b16 %v8137, %v8135
      %v8306 = vpack.c.b16 %v8138, %v8136
      %v8307 = vpack.c.b16 %v8141, %v8139
      %v8308 = vpack.c.b16 %v8142, %v8140
      %v8309 = vpack.c.b16 %v8145, %v8143
      %v8310 = vpack.c.b16 %v8146, %v8144
      %v8311 = vpack.c.b16 %v8149, %v8147
      %v8312 = vpack.c.b16 %v8150, %v8148
      %v8313 = vpack.c.b16 %v8153, %v8151
      %v8314 = vpack.c.b16 %v8154, %v8152
      %v8315 = vpack.c.b16 %v8157, %v8155
      %v8316 = vpack.c.b16 %v8158, %v8156
      %v8317 = vpack.c.b16 %v8161, %v8159
      %v8318 = vpack.c.b16 %v8162, %v8160
      %v8319 = vpack.c.b16 %v8165, %v8163
      %v8320 = vpack.c.b16 %v8166, %v8164
      %v8321 = vpack.c.b16 %v8169, %v8167
      %v8322 = vpack.c.b16 %v8170, %v8168
      %v8323 = vpack.c.b16 %v8173, %v8171
      %v8324 = vpack.c.b16 %v8174, %v8172
      %v8325 = vpack.c.b16 %v8177, %v8175
      %v8326 = vpack.c.b16 %v8178, %v8176
      %v8327 = vpack.c.b16 %v8181, %v8179
      %v8328 = vpack.c.b16 %v8182, %v8180
      %v8329 = vpack.c.b16 %v8185, %v8183
      %v8330 = vpack.c.b16 %v8186, %v8184
      %v8331 = vpack.c.b16 %v8189, %v8187
      %v8332 = vpack.c.b16 %v8190, %v8188
      %v8333 = vpack.c.b16 %v8193, %v8191
      %v8334 = vpack.c.b16 %v8194, %v8192
      %v8335 = vpack.c.b16 %v8197, %v8195
      %v8336 = vpack.c.b16 %v8198, %v8196
      %v8337 = vpack.c.b16 %v8201, %v8199
      %v8338 = vpack.c.b16 %v8202, %v8200
      %v8339 = vpack.c.b16 %v8205, %v8203
      %v8340 = vpack.c.b16 %v8206, %v8204
      %v8341 = vpack.c.b16 %v8209, %v8207
      %v8342 = vpack.c.b16 %v8210, %v8208
      %v8343 = vpack.c.b16 %v8213, %v8211
      %v8344 = vpack.c.b16 %v8214, %v8212
      %v8345 = vpack.c.b16 %v8217, %v8215
      %v8346 = vpack.c.b16 %v8218, %v8216
      %v8347 = vpack.c.b16 %v8221, %v8219
      %v8348 = vpack.c.b16 %v8222, %v8220
      %v8349 = vpack.c.b16 %v8225, %v8223
      %v8350 = vpack.c.b16 %v8226, %v8224
      %v8351 = vpack.c.b16 %v8229, %v8227
      %v8352 = vpack.c.b16 %v8230, %v8228
      %v8353 = vpack.c.b16 %v8233, %v8231
      %v8354 = vpack.c.b16 %v8234, %v8232
      %v8355 = vpack.c.b16 %v8237, %v8235
      %v8356 = vpack.c.b16 %v8238, %v8236
      %v8357 = vpack.c.b16 %v8241, %v8239
      %v8358 = vpack.c.b16 %v8242, %v8240
      %v8359 = vpack.c.b16 %v8245, %v8243
      %v8360 = vpack.c.b16 %v8246, %v8244
      %v8361 = vpack.c.b16 %v8249, %v8247
      %v8362 = vpack.c.b16 %v8250, %v8248
      %v8363 = vpack.c.b16 %v8253, %v8251
      %v8364 = vpack.c.b16 %v8254, %v8252
      %v8365 = vpack.c.b16 %v8257, %v8255
      %v8366 = vpack.c.b16 %v8258, %v8256
      %v8367 = vpack.c.b16 %v8261, %v8259
      %v8368 = vpack.c.b16 %v8262, %v8260
      %v8369 = vpack.c.b16 %v8265, %v8263
      %v8370 = vpack.c.b16 %v8266, %v8264
      %v8371 = vpack.c.b16 %v8269, %v8267
      %v8372 = vpack.c.b16 %v8270, %v8268
      %v8373 = vpack.c.b16 %v8273, %v8271
      %v8374 = vpack.c.b16 %v8274, %v8272
      %v8375 = vpack.c.b16 %v8277, %v8275
      %v8376 = vpack.c.b16 %v8278, %v8276
      %v8377 = vpack.c.b16 %v8281, %v8279
      %v8378 = vpack.c.b16 %v8282, %v8280
      %8475 = vmatprep.subr.bf16.mxu0 %v8298
      %8476 = vmatpush1.bf16.msra.mxu0 %v8297
      %8477 = vmatprep.subr.bf16.mxu0 %v8296
      %8478 = vmatpush1.bf16.msra.mxu0 %v8295
      %8479 = vmatprep.subr.bf16.mxu0 %v8294
      %8480 = vmatpush1.bf16.msra.mxu0 %v8293
      %8481 = vmatprep.subr.bf16.mxu0 %v8292
      %8482 = vmatpush1.bf16.msra.mxu0 %v8291
      %8483 = vmatprep.subr.bf16.mxu0 %v8290
      %8484 = vmatpush1.bf16.msra.mxu0 %v8289
      %8485 = vmatprep.subr.bf16.mxu0 %v8288
      %8486 = vmatpush1.bf16.msra.mxu0 %v8287
      %8487 = vmatprep.subr.bf16.mxu0 %v8286
      %8488 = vmatpush1.bf16.msra.mxu0 %v8285
      %8489 = vmatprep.subr.bf16.mxu0 %v8284
      %8490 = vmatpush1.bf16.msra.mxu0 %v8283
      %8491 = vmatprep.subr.bf16.mxu0 %v8314
      %8492 = vmatpush2.bf16.msra.mxu0 %v8313
      %8493 = vmatprep.subr.bf16.mxu0 %v8312
      %8494 = vmatpush2.bf16.msra.mxu0 %v8311
      %8495 = vmatprep.subr.bf16.mxu0 %v8310
      %8496 = vmatpush2.bf16.msra.mxu0 %v8309
      %8497 = vmatprep.subr.bf16.mxu0 %v8308
      %8498 = vmatpush2.bf16.msra.mxu0 %v8307
      %8499 = vmatprep.subr.bf16.mxu0 %v8306
      %8500 = vmatpush2.bf16.msra.mxu0 %v8305
      %8501 = vmatprep.subr.bf16.mxu0 %v8304
      %8502 = vmatpush2.bf16.msra.mxu0 %v8303
      %8503 = vmatprep.subr.bf16.mxu0 %v8302
      %8504 = vmatpush2.bf16.msra.mxu0 %v8301
      %8505 = vmatprep.subr.bf16.mxu0 %v8300
      %8506 = vmatpush2.bf16.msra.mxu0 %v8299
      %8507 = vmatprep.mubr.bf16.mxu0 %v5455
      %8508 = vmatmul.mubr.bf16.gmra.mxu0 %v5443
      %v8509 = vpop.f32.mrf.mxu0
      %v8510 = vadd.f32 %v7897, %v8509
      %v8511 = vpop.f32.mrf.mxu0
      %v8512 = vadd.f32 %v7899, %v8511
      %v8513 = vpop.f32.mrf.mxu0
      %v8514 = vadd.f32 %v7901, %v8513
      %v8515 = vpop.f32.mrf.mxu0
      %v8516 = vadd.f32 %v7903, %v8515
      %8517 = vmatprep.mubr.bf16.mxu0 %v5531
      %8518 = vmatmul.mubr.bf16.gmra.mxu0 %v5527
      %v8519 = vpop.f32.mrf.mxu0
      %v8520 = vadd.f32 %v7907, %v8519
      %v8521 = vpop.f32.mrf.mxu0
      %v8522 = vadd.f32 %v7909, %v8521
      %v8523 = vpop.f32.mrf.mxu0
      %v8524 = vadd.f32 %v7911, %v8523
      %v8525 = vpop.f32.mrf.mxu0
      %v8526 = vadd.f32 %v7913, %v8525
      %8527 = vmatprep.mubr.bf16.mxu0 %v5575
      %8528 = vmatmul.mubr.bf16.gmra.mxu0 %v5571
      %v8529 = vpop.f32.mrf.mxu0
      %v8530 = vadd.f32 %v7917, %v8529
      %v8531 = vpop.f32.mrf.mxu0
      %v8532 = vadd.f32 %v7919, %v8531
      %v8533 = vpop.f32.mrf.mxu0
      %v8534 = vadd.f32 %v7921, %v8533
      %v8535 = vpop.f32.mrf.mxu0
      %v8536 = vadd.f32 %v7923, %v8535
      %8537 = vmatprep.mubr.bf16.mxu0 %v5619
      %8538 = vmatmul.mubr.bf16.gmra.mxu0 %v5615
      %v8539 = vpop.f32.mrf.mxu0
      %v8540 = vadd.f32 %v7927, %v8539
      %v8541 = vpop.f32.mrf.mxu0
      %v8542 = vadd.f32 %v7929, %v8541
      %v8543 = vpop.f32.mrf.mxu0
      %v8544 = vadd.f32 %v7931, %v8543
      %v8545 = vpop.f32.mrf.mxu0
      %v8546 = vadd.f32 %v7933, %v8545
      %8547 = vmatprep.mubr.bf16.mxu0 %v5663
      %8548 = vmatmul.mubr.bf16.gmra.mxu0 %v5659
      %v8549 = vpop.f32.mrf.mxu0
      %v8550 = vadd.f32 %v7937, %v8549
      %v8551 = vpop.f32.mrf.mxu0
      %v8552 = vadd.f32 %v7939, %v8551
      %v8553 = vpop.f32.mrf.mxu0
      %v8554 = vadd.f32 %v7941, %v8553
      %v8555 = vpop.f32.mrf.mxu0
      %v8556 = vadd.f32 %v7943, %v8555
      %8557 = vmatprep.mubr.bf16.mxu0 %v5723
      %8558 = vmatmul.mubr.bf16.gmra.mxu0 %v5711
      %v8559 = vpop.f32.mrf.mxu0
      %v8560 = vadd.f32 %v7947, %v8559
      %v8561 = vpop.f32.mrf.mxu0
      %v8562 = vadd.f32 %v7949, %v8561
      %v8563 = vpop.f32.mrf.mxu0
      %v8564 = vadd.f32 %v7951, %v8563
      %v8565 = vpop.f32.mrf.mxu0
      %v8566 = vadd.f32 %v7953, %v8565
      %8567 = vmatprep.mubr.bf16.mxu0 %v5799
      %8568 = vmatmul.mubr.bf16.gmra.mxu0 %v5795
      %v8569 = vpop.f32.mrf.mxu0
      %v8570 = vadd.f32 %v7957, %v8569
      %v8571 = vpop.f32.mrf.mxu0
      %v8572 = vadd.f32 %v7959, %v8571
      %v8573 = vpop.f32.mrf.mxu0
      %v8574 = vadd.f32 %v7961, %v8573
      %v8575 = vpop.f32.mrf.mxu0
      %v8576 = vadd.f32 %v7963, %v8575
      %8577 = vmatprep.mubr.bf16.mxu0 %v5843
      %8578 = vmatmul.mubr.bf16.gmra.mxu0 %v5839
      %v8579 = vpop.f32.mrf.mxu0
      %v8580 = vadd.f32 %v7967, %v8579
      %v8581 = vpop.f32.mrf.mxu0
      %v8582 = vadd.f32 %v7969, %v8581
      %v8583 = vpop.f32.mrf.mxu0
      %v8584 = vadd.f32 %v7971, %v8583
      %v8585 = vpop.f32.mrf.mxu0
      %v8586 = vadd.f32 %v7973, %v8585
      %8587 = vmatprep.mubr.bf16.mxu0 %v5887
      %8588 = vmatmul.mubr.bf16.gmra.mxu0 %v5883
      %v8589 = vpop.f32.mrf.mxu0
      %v8590 = vadd.f32 %v7977, %v8589
      %v8591 = vpop.f32.mrf.mxu0
      %v8592 = vadd.f32 %v7979, %v8591
      %v8593 = vpop.f32.mrf.mxu0
      %v8594 = vadd.f32 %v7981, %v8593
      %v8595 = vpop.f32.mrf.mxu0
      %v8596 = vadd.f32 %v7983, %v8595
      %8597 = vmatprep.mubr.bf16.mxu0 %v5931
      %8598 = vmatmul.mubr.bf16.gmra.mxu0 %v5927
      %v8599 = vpop.f32.mrf.mxu0
      %v8600 = vadd.f32 %v7987, %v8599
      %v8601 = vpop.f32.mrf.mxu0
      %v8602 = vadd.f32 %v7989, %v8601
      %v8603 = vpop.f32.mrf.mxu0
      %v8604 = vadd.f32 %v7991, %v8603
      %v8605 = vpop.f32.mrf.mxu0
      %v8606 = vadd.f32 %v7993, %v8605
      %8607 = vdwg.mxu0
      %8608 = vmatprep.subr.bf16.mxu0 %v8330
      %8609 = vmatpush1.bf16.msra.mxu0 %v8329
      %8610 = vmatprep.subr.bf16.mxu0 %v8328
      %8611 = vmatpush1.bf16.msra.mxu0 %v8327
      %8612 = vmatprep.subr.bf16.mxu0 %v8326
      %8613 = vmatpush1.bf16.msra.mxu0 %v8325
      %8614 = vmatprep.subr.bf16.mxu0 %v8324
      %8615 = vmatpush1.bf16.msra.mxu0 %v8323
      %8616 = vmatprep.subr.bf16.mxu0 %v8322
      %8617 = vmatpush1.bf16.msra.mxu0 %v8321
      %8618 = vmatprep.subr.bf16.mxu0 %v8320
      %8619 = vmatpush1.bf16.msra.mxu0 %v8319
      %8620 = vmatprep.subr.bf16.mxu0 %v8318
      %8621 = vmatpush1.bf16.msra.mxu0 %v8317
      %8622 = vmatprep.subr.bf16.mxu0 %v8316
      %8623 = vmatpush1.bf16.msra.mxu0 %v8315
      %8624 = vmatprep.subr.bf16.mxu0 %v8346
      %8625 = vmatpush2.bf16.msra.mxu0 %v8345
      %8626 = vmatprep.subr.bf16.mxu0 %v8344
      %8627 = vmatpush2.bf16.msra.mxu0 %v8343
      %8628 = vmatprep.subr.bf16.mxu0 %v8342
      %8629 = vmatpush2.bf16.msra.mxu0 %v8341
      %8630 = vmatprep.subr.bf16.mxu0 %v8340
      %8631 = vmatpush2.bf16.msra.mxu0 %v8339
      %8632 = vmatprep.subr.bf16.mxu0 %v8338
      %8633 = vmatpush2.bf16.msra.mxu0 %v8337
      %8634 = vmatprep.subr.bf16.mxu0 %v8336
      %8635 = vmatpush2.bf16.msra.mxu0 %v8335
      %8636 = vmatprep.subr.bf16.mxu0 %v8334
      %8637 = vmatpush2.bf16.msra.mxu0 %v8333
      %8638 = vmatprep.subr.bf16.mxu0 %v8332
      %8639 = vmatpush2.bf16.msra.mxu0 %v8331
      %8640 = vmatprep.mubr.bf16.mxu0 %v5489
      %8641 = vmatmul.mubr.bf16.gmra.mxu0 %v5472
      %v8642 = vpop.f32.mrf.mxu0
      %v8643 = vadd.f32 %v8510, %v8642
      %v8644 = vpop.f32.mrf.mxu0
      %v8645 = vadd.f32 %v8512, %v8644
      %v8646 = vpop.f32.mrf.mxu0
      %v8647 = vadd.f32 %v8514, %v8646
      %v8648 = vpop.f32.mrf.mxu0
      %v8649 = vadd.f32 %v8516, %v8648
      %8650 = vmatprep.mubr.bf16.mxu0 %v5549
      %8651 = vmatmul.mubr.bf16.gmra.mxu0 %v5540
      %v8652 = vpop.f32.mrf.mxu0
      %v8653 = vadd.f32 %v8520, %v8652
      %v8654 = vpop.f32.mrf.mxu0
      %v8655 = vadd.f32 %v8522, %v8654
      %v8656 = vpop.f32.mrf.mxu0
      %v8657 = vadd.f32 %v8524, %v8656
      %v8658 = vpop.f32.mrf.mxu0
      %v8659 = vadd.f32 %v8526, %v8658
      %8660 = vmatprep.mubr.bf16.mxu0 %v5593
      %8661 = vmatmul.mubr.bf16.gmra.mxu0 %v5584
      %v8662 = vpop.f32.mrf.mxu0
      %v8663 = vadd.f32 %v8530, %v8662
      %v8664 = vpop.f32.mrf.mxu0
      %v8665 = vadd.f32 %v8532, %v8664
      %v8666 = vpop.f32.mrf.mxu0
      %v8667 = vadd.f32 %v8534, %v8666
      %v8668 = vpop.f32.mrf.mxu0
      %v8669 = vadd.f32 %v8536, %v8668
      %8670 = vmatprep.mubr.bf16.mxu0 %v5637
      %8671 = vmatmul.mubr.bf16.gmra.mxu0 %v5628
      %v8672 = vpop.f32.mrf.mxu0
      %v8673 = vadd.f32 %v8540, %v8672
      %v8674 = vpop.f32.mrf.mxu0
      %v8675 = vadd.f32 %v8542, %v8674
      %v8676 = vpop.f32.mrf.mxu0
      %v8677 = vadd.f32 %v8544, %v8676
      %v8678 = vpop.f32.mrf.mxu0
      %v8679 = vadd.f32 %v8546, %v8678
      %8680 = vmatprep.mubr.bf16.mxu0 %v5681
      %8681 = vmatmul.mubr.bf16.gmra.mxu0 %v5672
      %v8682 = vpop.f32.mrf.mxu0
      %v8683 = vadd.f32 %v8550, %v8682
      %v8684 = vpop.f32.mrf.mxu0
      %v8685 = vadd.f32 %v8552, %v8684
      %v8686 = vpop.f32.mrf.mxu0
      %v8687 = vadd.f32 %v8554, %v8686
      %v8688 = vpop.f32.mrf.mxu0
      %v8689 = vadd.f32 %v8556, %v8688
      %8690 = vmatprep.mubr.bf16.mxu0 %v5757
      %8691 = vmatmul.mubr.bf16.gmra.mxu0 %v5740
      %v8692 = vpop.f32.mrf.mxu0
      %v8693 = vadd.f32 %v8560, %v8692
      %v8694 = vpop.f32.mrf.mxu0
      %v8695 = vadd.f32 %v8562, %v8694
      %v8696 = vpop.f32.mrf.mxu0
      %v8697 = vadd.f32 %v8564, %v8696
      %v8698 = vpop.f32.mrf.mxu0
      %v8699 = vadd.f32 %v8566, %v8698
      %8700 = vmatprep.mubr.bf16.mxu0 %v5817
      %8701 = vmatmul.mubr.bf16.gmra.mxu0 %v5808
      %v8702 = vpop.f32.mrf.mxu0
      %v8703 = vadd.f32 %v8570, %v8702
      %v8704 = vpop.f32.mrf.mxu0
      %v8705 = vadd.f32 %v8572, %v8704
      %v8706 = vpop.f32.mrf.mxu0
      %v8707 = vadd.f32 %v8574, %v8706
      %v8708 = vpop.f32.mrf.mxu0
      %v8709 = vadd.f32 %v8576, %v8708
      %8710 = vmatprep.mubr.bf16.mxu0 %v5861
      %8711 = vmatmul.mubr.bf16.gmra.mxu0 %v5852
      %v8712 = vpop.f32.mrf.mxu0
      %v8713 = vadd.f32 %v8580, %v8712
      %v8714 = vpop.f32.mrf.mxu0
      %v8715 = vadd.f32 %v8582, %v8714
      %v8716 = vpop.f32.mrf.mxu0
      %v8717 = vadd.f32 %v8584, %v8716
      %v8718 = vpop.f32.mrf.mxu0
      %v8719 = vadd.f32 %v8586, %v8718
      %8720 = vmatprep.mubr.bf16.mxu0 %v5905
      %8721 = vmatmul.mubr.bf16.gmra.mxu0 %v5896
      %v8722 = vpop.f32.mrf.mxu0
      %v8723 = vadd.f32 %v8590, %v8722
      %v8724 = vpop.f32.mrf.mxu0
      %v8725 = vadd.f32 %v8592, %v8724
      %v8726 = vpop.f32.mrf.mxu0
      %v8727 = vadd.f32 %v8594, %v8726
      %v8728 = vpop.f32.mrf.mxu0
      %v8729 = vadd.f32 %v8596, %v8728
      %8730 = vmatprep.mubr.bf16.mxu0 %v5949
      %8731 = vmatmul.mubr.bf16.gmra.mxu0 %v5940
      %v8732 = vpop.f32.mrf.mxu0
      %v8733 = vadd.f32 %v8600, %v8732
      %v8734 = vpop.f32.mrf.mxu0
      %v8735 = vadd.f32 %v8602, %v8734
      %v8736 = vpop.f32.mrf.mxu0
      %v8737 = vadd.f32 %v8604, %v8736
      %v8738 = vpop.f32.mrf.mxu0
      %v8739 = vadd.f32 %v8606, %v8738
      %8740 = vdwg.mxu0
      %8741 = vmatprep.subr.bf16.mxu0 %v8362
      %8742 = vmatpush1.bf16.msra.mxu0 %v8361
      %8743 = vmatprep.subr.bf16.mxu0 %v8360
      %8744 = vmatpush1.bf16.msra.mxu0 %v8359
      %8745 = vmatprep.subr.bf16.mxu0 %v8358
      %8746 = vmatpush1.bf16.msra.mxu0 %v8357
      %8747 = vmatprep.subr.bf16.mxu0 %v8356
      %8748 = vmatpush1.bf16.msra.mxu0 %v8355
      %8749 = vmatprep.subr.bf16.mxu0 %v8354
      %8750 = vmatpush1.bf16.msra.mxu0 %v8353
      %8751 = vmatprep.subr.bf16.mxu0 %v8352
      %8752 = vmatpush1.bf16.msra.mxu0 %v8351
      %8753 = vmatprep.subr.bf16.mxu0 %v8350
      %8754 = vmatpush1.bf16.msra.mxu0 %v8349
      %8755 = vmatprep.subr.bf16.mxu0 %v8348
      %8756 = vmatpush1.bf16.msra.mxu0 %v8347
      %8757 = vmatprep.subr.bf16.mxu0 %v8378
      %8758 = vmatpush2.bf16.msra.mxu0 %v8377
      %8759 = vmatprep.subr.bf16.mxu0 %v8376
      %8760 = vmatpush2.bf16.msra.mxu0 %v8375
      %8761 = vmatprep.subr.bf16.mxu0 %v8374
      %8762 = vmatpush2.bf16.msra.mxu0 %v8373
      %8763 = vmatprep.subr.bf16.mxu0 %v8372
      %8764 = vmatpush2.bf16.msra.mxu0 %v8371
      %8765 = vmatprep.subr.bf16.mxu0 %v8370
      %8766 = vmatpush2.bf16.msra.mxu0 %v8369
      %8767 = vmatprep.subr.bf16.mxu0 %v8368
      %8768 = vmatpush2.bf16.msra.mxu0 %v8367
      %8769 = vmatprep.subr.bf16.mxu0 %v8366
      %8770 = vmatpush2.bf16.msra.mxu0 %v8365
      %8771 = vmatprep.subr.bf16.mxu0 %v8364
      %8772 = vmatpush2.bf16.msra.mxu0 %v8363
      %8773 = vmatprep.mubr.bf16.mxu0 %v5523
      %8774 = vmatmul.mubr.bf16.gmra.mxu0 %v5506
      %v8775 = vpop.f32.mrf.mxu0
      %v8776 = vadd.f32 %v8643, %v8775
      %v8777 = vpop.f32.mrf.mxu0
      %v8778 = vadd.f32 %v8645, %v8777
      %v8779 = vpop.f32.mrf.mxu0
      %v8780 = vadd.f32 %v8647, %v8779
      %v8781 = vpop.f32.mrf.mxu0
      %v8782 = vadd.f32 %v8649, %v8781
      %8783 = vmatprep.mubr.bf16.mxu0 %v5567
      %8784 = vmatmul.mubr.bf16.gmra.mxu0 %v5558
      %v8785 = vpop.f32.mrf.mxu0
      %v8786 = vadd.f32 %v8653, %v8785
      %v8787 = vpop.f32.mrf.mxu0
      %v8788 = vadd.f32 %v8655, %v8787
      %v8789 = vpop.f32.mrf.mxu0
      %v8790 = vadd.f32 %v8657, %v8789
      %v8791 = vpop.f32.mrf.mxu0
      %v8792 = vadd.f32 %v8659, %v8791
      %8793 = vmatprep.mubr.bf16.mxu0 %v5611
      %8794 = vmatmul.mubr.bf16.gmra.mxu0 %v5602
      %v8795 = vpop.f32.mrf.mxu0
      %v8796 = vadd.f32 %v8663, %v8795
      %v8797 = vpop.f32.mrf.mxu0
      %v8798 = vadd.f32 %v8665, %v8797
      %v8799 = vpop.f32.mrf.mxu0
      %v8800 = vadd.f32 %v8667, %v8799
      %v8801 = vpop.f32.mrf.mxu0
      %v8802 = vadd.f32 %v8669, %v8801
      %8803 = vmatprep.mubr.bf16.mxu0 %v5655
      %8804 = vmatmul.mubr.bf16.gmra.mxu0 %v5646
      %v8805 = vpop.f32.mrf.mxu0
      %v8806 = vadd.f32 %v8673, %v8805
      %v8807 = vpop.f32.mrf.mxu0
      %v8808 = vadd.f32 %v8675, %v8807
      %v8809 = vpop.f32.mrf.mxu0
      %v8810 = vadd.f32 %v8677, %v8809
      %v8811 = vpop.f32.mrf.mxu0
      %v8812 = vadd.f32 %v8679, %v8811
      %8813 = vmatprep.mubr.bf16.mxu0 %v5699
      %8814 = vmatmul.mubr.bf16.gmra.mxu0 %v5690
      %v8815 = vpop.f32.mrf.mxu0
      %v8816 = vadd.f32 %v8683, %v8815
      %v8817 = vpop.f32.mrf.mxu0
      %v8818 = vadd.f32 %v8685, %v8817
      %v8819 = vpop.f32.mrf.mxu0
      %v8820 = vadd.f32 %v8687, %v8819
      %v8821 = vpop.f32.mrf.mxu0
      %v8822 = vadd.f32 %v8689, %v8821
      %8823 = vmatprep.mubr.bf16.mxu0 %v5791
      %8824 = vmatmul.mubr.bf16.gmra.mxu0 %v5774
      %v8825 = vpop.f32.mrf.mxu0
      %v8826 = vadd.f32 %v8693, %v8825
      %v8827 = vpop.f32.mrf.mxu0
      %v8828 = vadd.f32 %v8695, %v8827
      %v8829 = vpop.f32.mrf.mxu0
      %v8830 = vadd.f32 %v8697, %v8829
      %v8831 = vpop.f32.mrf.mxu0
      %v8832 = vadd.f32 %v8699, %v8831
      %8833 = vmatprep.mubr.bf16.mxu0 %v5835
      %8834 = vmatmul.mubr.bf16.gmra.mxu0 %v5826
      %v8835 = vpop.f32.mrf.mxu0
      %v8836 = vadd.f32 %v8703, %v8835
      %v8837 = vpop.f32.mrf.mxu0
      %v8838 = vadd.f32 %v8705, %v8837
      %v8839 = vpop.f32.mrf.mxu0
      %v8840 = vadd.f32 %v8707, %v8839
      %v8841 = vpop.f32.mrf.mxu0
      %v8842 = vadd.f32 %v8709, %v8841
      %8843 = vmatprep.mubr.bf16.mxu0 %v5879
      %8844 = vmatmul.mubr.bf16.gmra.mxu0 %v5870
      %v8845 = vpop.f32.mrf.mxu0
      %v8846 = vadd.f32 %v8713, %v8845
      %v8847 = vpop.f32.mrf.mxu0
      %v8848 = vadd.f32 %v8715, %v8847
      %v8849 = vpop.f32.mrf.mxu0
      %v8850 = vadd.f32 %v8717, %v8849
      %v8851 = vpop.f32.mrf.mxu0
      %v8852 = vadd.f32 %v8719, %v8851
      %8853 = vmatprep.mubr.bf16.mxu0 %v5923
      %8854 = vmatmul.mubr.bf16.gmra.mxu0 %v5914
      %v8855 = vpop.f32.mrf.mxu0
      %v8856 = vadd.f32 %v8723, %v8855
      %v8857 = vpop.f32.mrf.mxu0
      %v8858 = vadd.f32 %v8725, %v8857
      %v8859 = vpop.f32.mrf.mxu0
      %v8860 = vadd.f32 %v8727, %v8859
      %v8861 = vpop.f32.mrf.mxu0
      %v8862 = vadd.f32 %v8729, %v8861
      %8863 = vmatprep.mubr.bf16.mxu0 %v5967
      %8864 = vmatmul.mubr.bf16.gmra.mxu0 %v5958
      %v8865 = vpop.f32.mrf.mxu0
      %v8866 = vadd.f32 %v8733, %v8865
      %v8867 = vpop.f32.mrf.mxu0
      %v8868 = vadd.f32 %v8735, %v8867
      %v8869 = vpop.f32.mrf.mxu0
      %v8870 = vadd.f32 %v8737, %v8869
      %v8871 = vpop.f32.mrf.mxu0
      %v8872 = vadd.f32 %v8739, %v8871
      %8873 = vdwg.mxu0
      %v8874 = vld [vmem:[#allocation2 + $0x18] sm:$0xff]
      %v8875 = vld [vmem:[#allocation2 + $0x20] sm:$0xff]
      %v8876 = vld [vmem:[#allocation2 + $0x28] sm:$0xff]
      %v8877 = vld [vmem:[#allocation2 + $0x30] sm:$0xff]
      %v8878 = vld [vmem:[#allocation2 + $0x38] sm:$0xff]
      %v8879 = vld [vmem:[#allocation2 + $0x40] sm:$0xff]
      %v8880 = vld [vmem:[#allocation2 + $0x48] sm:$0xff]
      %v8881 = vld [vmem:[#allocation2 + $0x50] sm:$0xff]
      %v8882 = vld [vmem:[#allocation2 + $0x58] sm:$0xff]
      %v8883 = vld [vmem:[#allocation2 + $0x60] sm:$0xff]
      %v8884 = vld [vmem:[#allocation2 + $0x68] sm:$0x11]
      %v8885 = vld [vmem:[#allocation2 + $0x88] sm:$0xff]
      %v8886 = vld [vmem:[#allocation2 + $0x90] sm:$0xff]
      %v8887 = vld [vmem:[#allocation2 + $0x98] sm:$0xff]
      %v8888 = vld [vmem:[#allocation2 + $0xa0] sm:$0xff]
      %v8889 = vld [vmem:[#allocation2 + $0xa8] sm:$0xff]
      %v8890 = vld [vmem:[#allocation2 + $0xb0] sm:$0xff]
      %v8891 = vld [vmem:[#allocation2 + $0xb8] sm:$0xff]
      %v8892 = vld [vmem:[#allocation2 + $0xc0] sm:$0xff]
      %v8893 = vld [vmem:[#allocation2 + $0xc8] sm:$0xff]
      %v8894 = vld [vmem:[#allocation2 + $0xd0] sm:$0xff]
      %v8895 = vld [vmem:[#allocation2 + $0xd8] sm:$0x11]
      %v8896 = vld [vmem:[#allocation2 + $0x18] sm:$0xee]
      %v8897 = vld [vmem:[#allocation2 + $0x88] sm:$0xee]
      %v8898 = vld [vmem:[#allocation2 + $0x68] sm:$0x33]
      %v8899 = vld [vmem:[#allocation2 + $0xd8] sm:$0x33]
      %v8922 = vunpack.c.l.b16 %v8874
      %v8923 = vunpack.c.h.b16 %v8874
      %v8924 = vunpack.c.l.b16 %v8875
      %v8925 = vunpack.c.h.b16 %v8875
      %v8926 = vunpack.c.l.b16 %v8876
      %v8927 = vunpack.c.h.b16 %v8876
      %v8928 = vunpack.c.l.b16 %v8877
      %v8929 = vunpack.c.h.b16 %v8877
      %v8930 = vunpack.c.l.b16 %v8878
      %v8931 = vunpack.c.h.b16 %v8878
      %v8932 = vunpack.c.l.b16 %v8879
      %v8933 = vunpack.c.h.b16 %v8879
      %v8934 = vunpack.c.l.b16 %v8880
      %v8935 = vunpack.c.h.b16 %v8880
      %v8936 = vunpack.c.l.b16 %v8881
      %v8937 = vunpack.c.h.b16 %v8881
      %v8938 = vunpack.c.l.b16 %v8882
      %v8939 = vunpack.c.h.b16 %v8882
      %v8940 = vunpack.c.l.b16 %v8883
      %v8941 = vunpack.c.h.b16 %v8883
      %v8942 = vunpack.c.l.b16 %v8884
      %v8943 = vunpack.c.h.b16 %v8884
      %v8944 = vunpack.c.l.b16 %v8885
      %v8945 = vunpack.c.h.b16 %v8885
      %v8946 = vunpack.c.l.b16 %v8886
      %v8947 = vunpack.c.h.b16 %v8886
      %v8948 = vunpack.c.l.b16 %v8887
      %v8949 = vunpack.c.h.b16 %v8887
      %v8950 = vunpack.c.l.b16 %v8888
      %v8951 = vunpack.c.h.b16 %v8888
      %v8952 = vunpack.c.l.b16 %v8889
      %v8953 = vunpack.c.h.b16 %v8889
      %v8954 = vunpack.c.l.b16 %v8890
      %v8955 = vunpack.c.h.b16 %v8890
      %v8956 = vunpack.c.l.b16 %v8891
      %v8957 = vunpack.c.h.b16 %v8891
      %v8958 = vunpack.c.l.b16 %v8892
      %v8959 = vunpack.c.h.b16 %v8892
      %v8960 = vunpack.c.l.b16 %v8893
      %v8961 = vunpack.c.h.b16 %v8893
      %v8962 = vunpack.c.l.b16 %v8894
      %v8963 = vunpack.c.h.b16 %v8894
      %v8964 = vunpack.c.l.b16 %v8895
      %v8965 = vunpack.c.h.b16 %v8895
      %v8966 = vpack.c.b16 %v8924, %v8922
      %v8967 = vpack.c.b16 %v8925, %v8923
      %v8968 = vpack.c.b16 %v8928, %v8926
      %v8969 = vpack.c.b16 %v8929, %v8927
      %v8970 = vpack.c.b16 %v8932, %v8930
      %v8971 = vpack.c.b16 %v8933, %v8931
      %v8972 = vpack.c.b16 %v8936, %v8934
      %v8973 = vpack.c.b16 %v8937, %v8935
      %v8974 = vpack.c.b16 %v8940, %v8938
      %v8975 = vpack.c.b16 %v8941, %v8939
      %v8976 = vpack.c.b16 %v8942, %v8942
      %v8977 = vpack.c.b16 %v8943, %v8943
      %v8978 = vpack.c.b16 %v8946, %v8944
      %v8979 = vpack.c.b16 %v8947, %v8945
      %v8980 = vpack.c.b16 %v8950, %v8948
      %v8981 = vpack.c.b16 %v8951, %v8949
      %v8982 = vpack.c.b16 %v8954, %v8952
      %v8983 = vpack.c.b16 %v8955, %v8953
      %v8984 = vpack.c.b16 %v8958, %v8956
      %v8985 = vpack.c.b16 %v8959, %v8957
      %v8986 = vpack.c.b16 %v8962, %v8960
      %v8987 = vpack.c.b16 %v8963, %v8961
      %v8988 = vpack.c.b16 %v8964, %v8964
      %v8989 = vpack.c.b16 %v8965, %v8965
      %v8992 = vunpack.c.l.b16 %v8896
      %v8993 = vunpack.c.h.b16 %v8896
      %v8994 = vunpack.c.l.b16 %v8897
      %v8995 = vunpack.c.h.b16 %v8897
      %v8996 = vpack.c.b16 %v8924, %v8992
      %v8997 = vpack.c.b16 %v8925, %v8993
      %v8998 = vpack.c.b16 %v8946, %v8994
      %v8999 = vpack.c.b16 %v8947, %v8995
      %v9001 = vshrl.u32 %v8996, 16
      %v9003 = vshll.u32 %v8996, 16
      %v9005 = vrot.slane %v9003, 1
      %v9006 = vor.u32 %v9001, %v9005
      %v9008 = vshll.u32 %v8968, 16
      %v9010 = vrot.slane %v9008, 1
      %v9011 = vsel %vm403, %v9006, %v9010
      %v9013 = vshrl.u32 %v8997, 16
      %v9015 = vshll.u32 %v8997, 16
      %v9017 = vrot.slane %v9015, 1
      %v9018 = vor.u32 %v9013, %v9017
      %v9020 = vshll.u32 %v8969, 16
      %v9022 = vrot.slane %v9020, 1
      %v9023 = vsel %vm403, %v9018, %v9022
      %v9024 = vshrl.u32 %v8968, 16
      %v9026 = vor.u32 %v9024, %v9010
      %v9028 = vshll.u32 %v8970, 16
      %v9030 = vrot.slane %v9028, 1
      %v9031 = vsel %vm403, %v9026, %v9030
      %v9032 = vshrl.u32 %v8969, 16
      %v9034 = vor.u32 %v9032, %v9022
      %v9036 = vshll.u32 %v8971, 16
      %v9038 = vrot.slane %v9036, 1
      %v9039 = vsel %vm403, %v9034, %v9038
      %v9040 = vshrl.u32 %v8970, 16
      %v9042 = vor.u32 %v9040, %v9030
      %v9044 = vshll.u32 %v8972, 16
      %v9046 = vrot.slane %v9044, 1
      %v9047 = vsel %vm403, %v9042, %v9046
      %v9048 = vshrl.u32 %v8971, 16
      %v9050 = vor.u32 %v9048, %v9038
      %v9052 = vshll.u32 %v8973, 16
      %v9054 = vrot.slane %v9052, 1
      %v9055 = vsel %vm403, %v9050, %v9054
      %v9056 = vshrl.u32 %v8972, 16
      %v9058 = vor.u32 %v9056, %v9046
      %v9060 = vshll.u32 %v8974, 16
      %v9062 = vrot.slane %v9060, 1
      %v9063 = vsel %vm403, %v9058, %v9062
      %v9064 = vshrl.u32 %v8973, 16
      %v9066 = vor.u32 %v9064, %v9054
      %v9068 = vshll.u32 %v8975, 16
      %v9070 = vrot.slane %v9068, 1
      %v9071 = vsel %vm403, %v9066, %v9070
      %v9072 = vshrl.u32 %v8974, 16
      %v9074 = vor.u32 %v9072, %v9062
      %v9076 = vshll.u32 %v8976, 16
      %v9078 = vrot.slane %v9076, 1
      %v9079 = vsel %vm403, %v9074, %v9078
      %v9080 = vshrl.u32 %v8975, 16
      %v9082 = vor.u32 %v9080, %v9070
      %v9084 = vshll.u32 %v8977, 16
      %v9086 = vrot.slane %v9084, 1
      %v9087 = vsel %vm403, %v9082, %v9086
      %v9088 = vshrl.u32 %v8976, 16
      %v9090 = vshrl.u32 %v8977, 16
      %v9093 = vshrl.u32 %v8998, 16
      %v9095 = vshll.u32 %v8998, 16
      %v9097 = vrot.slane %v9095, 1
      %v9098 = vor.u32 %v9093, %v9097
      %v9100 = vshll.u32 %v8980, 16
      %v9102 = vrot.slane %v9100, 1
      %v9103 = vsel %vm403, %v9098, %v9102
      %v9105 = vshrl.u32 %v8999, 16
      %v9107 = vshll.u32 %v8999, 16
      %v9109 = vrot.slane %v9107, 1
      %v9110 = vor.u32 %v9105, %v9109
      %v9112 = vshll.u32 %v8981, 16
      %v9114 = vrot.slane %v9112, 1
      %v9115 = vsel %vm403, %v9110, %v9114
      %v9116 = vshrl.u32 %v8980, 16
      %v9118 = vor.u32 %v9116, %v9102
      %v9120 = vshll.u32 %v8982, 16
      %v9122 = vrot.slane %v9120, 1
      %v9123 = vsel %vm403, %v9118, %v9122
      %v9124 = vshrl.u32 %v8981, 16
      %v9126 = vor.u32 %v9124, %v9114
      %v9128 = vshll.u32 %v8983, 16
      %v9130 = vrot.slane %v9128, 1
      %v9131 = vsel %vm403, %v9126, %v9130
      %v9132 = vshrl.u32 %v8982, 16
      %v9134 = vor.u32 %v9132, %v9122
      %v9136 = vshll.u32 %v8984, 16
      %v9138 = vrot.slane %v9136, 1
      %v9139 = vsel %vm403, %v9134, %v9138
      %v9140 = vshrl.u32 %v8983, 16
      %v9142 = vor.u32 %v9140, %v9130
      %v9144 = vshll.u32 %v8985, 16
      %v9146 = vrot.slane %v9144, 1
      %v9147 = vsel %vm403, %v9142, %v9146
      %v9148 = vshrl.u32 %v8984, 16
      %v9150 = vor.u32 %v9148, %v9138
      %v9152 = vshll.u32 %v8986, 16
      %v9154 = vrot.slane %v9152, 1
      %v9155 = vsel %vm403, %v9150, %v9154
      %v9156 = vshrl.u32 %v8985, 16
      %v9158 = vor.u32 %v9156, %v9146
      %v9160 = vshll.u32 %v8987, 16
      %v9162 = vrot.slane %v9160, 1
      %v9163 = vsel %vm403, %v9158, %v9162
      %v9164 = vshrl.u32 %v8986, 16
      %v9166 = vor.u32 %v9164, %v9154
      %v9168 = vshll.u32 %v8988, 16
      %v9170 = vrot.slane %v9168, 1
      %v9171 = vsel %vm403, %v9166, %v9170
      %v9172 = vshrl.u32 %v8987, 16
      %v9174 = vor.u32 %v9172, %v9162
      %v9176 = vshll.u32 %v8989, 16
      %v9178 = vrot.slane %v9176, 1
      %v9179 = vsel %vm403, %v9174, %v9178
      %v9180 = vshrl.u32 %v8988, 16
      %v9182 = vshrl.u32 %v8989, 16
      %v9186 = vunpack.c.l.b16 %v8898
      %v9187 = vunpack.c.h.b16 %v8898
      %v9188 = vunpack.c.l.b16 %v8899
      %v9189 = vunpack.c.h.b16 %v8899
      %v9190 = vpack.c.b16 %v9186, %v9186
      %v9191 = vpack.c.b16 %v9187, %v9187
      %v9192 = vpack.c.b16 %v9188, %v9188
      %v9193 = vpack.c.b16 %v9189, %v9189
      %v9194 = vrot.slane %v8996, 1
      %v9195 = vrot.slane %v8968, 1
      %v9196 = vsel %vm610, %v9194, %v9195
      %v9197 = vrot.slane %v8997, 1
      %v9198 = vrot.slane %v8969, 1
      %v9199 = vsel %vm610, %v9197, %v9198
      %v9200 = vrot.slane %v8970, 1
      %v9201 = vsel %vm610, %v9195, %v9200
      %v9202 = vrot.slane %v8971, 1
      %v9203 = vsel %vm610, %v9198, %v9202
      %v9204 = vrot.slane %v8972, 1
      %v9205 = vsel %vm610, %v9200, %v9204
      %v9206 = vrot.slane %v8973, 1
      %v9207 = vsel %vm610, %v9202, %v9206
      %v9208 = vrot.slane %v8974, 1
      %v9209 = vsel %vm610, %v9204, %v9208
      %v9210 = vrot.slane %v8975, 1
      %v9211 = vsel %vm610, %v9206, %v9210
      %v9212 = vrot.slane %v9190, 1
      %v9213 = vsel %vm610, %v9208, %v9212
      %v9214 = vrot.slane %v9191, 1
      %v9215 = vsel %vm610, %v9210, %v9214
      %v9216 = vrot.slane %v8998, 1
      %v9217 = vrot.slane %v8980, 1
      %v9218 = vsel %vm610, %v9216, %v9217
      %v9219 = vrot.slane %v8999, 1
      %v9220 = vrot.slane %v8981, 1
      %v9221 = vsel %vm610, %v9219, %v9220
      %v9222 = vrot.slane %v8982, 1
      %v9223 = vsel %vm610, %v9217, %v9222
      %v9224 = vrot.slane %v8983, 1
      %v9225 = vsel %vm610, %v9220, %v9224
      %v9226 = vrot.slane %v8984, 1
      %v9227 = vsel %vm610, %v9222, %v9226
      %v9228 = vrot.slane %v8985, 1
      %v9229 = vsel %vm610, %v9224, %v9228
      %v9230 = vrot.slane %v8986, 1
      %v9231 = vsel %vm610, %v9226, %v9230
      %v9232 = vrot.slane %v8987, 1
      %v9233 = vsel %vm610, %v9228, %v9232
      %v9234 = vrot.slane %v9192, 1
      %v9235 = vsel %vm610, %v9230, %v9234
      %v9236 = vrot.slane %v9193, 1
      %v9237 = vsel %vm610, %v9232, %v9236
      %v9239 = vshrl.u32 %v8966, 16
      %v9241 = vshll.u32 %v8966, 16
      %v9243 = vrot.slane %v9241, 1
      %v9244 = vor.u32 %v9239, %v9243
      %v9245 = vsel %vm403, %v9244, %v9010
      %v9247 = vshrl.u32 %v8967, 16
      %v9249 = vshll.u32 %v8967, 16
      %v9251 = vrot.slane %v9249, 1
      %v9252 = vor.u32 %v9247, %v9251
      %v9253 = vsel %vm403, %v9252, %v9022
      %v9255 = vshrl.u32 %v9011, 16
      %v9257 = vshll.u32 %v9011, 16
      %v9259 = vrot.slane %v9257, 1
      %v9260 = vor.u32 %v9255, %v9259
      %v9262 = vshll.u32 %v9031, 16
      %v9264 = vrot.slane %v9262, 1
      %v9265 = vsel %vm403, %v9260, %v9264
      %v9267 = vshrl.u32 %v9023, 16
      %v9269 = vshll.u32 %v9023, 16
      %v9271 = vrot.slane %v9269, 1
      %v9272 = vor.u32 %v9267, %v9271
      %v9274 = vshll.u32 %v9039, 16
      %v9276 = vrot.slane %v9274, 1
      %v9277 = vsel %vm403, %v9272, %v9276
      %v9279 = vshrl.u32 %v9196, 16
      %v9281 = vshll.u32 %v9196, 16
      %v9283 = vrot.slane %v9281, 1
      %v9284 = vor.u32 %v9279, %v9283
      %v9286 = vshll.u32 %v9201, 16
      %v9288 = vrot.slane %v9286, 1
      %v9289 = vsel %vm403, %v9284, %v9288
      %v9291 = vshrl.u32 %v9199, 16
      %v9293 = vshll.u32 %v9199, 16
      %v9295 = vrot.slane %v9293, 1
      %v9296 = vor.u32 %v9291, %v9295
      %v9298 = vshll.u32 %v9203, 16
      %v9300 = vrot.slane %v9298, 1
      %v9301 = vsel %vm403, %v9296, %v9300
      %v9302 = vshrl.u32 %v9031, 16
      %v9304 = vor.u32 %v9302, %v9264
      %v9306 = vshll.u32 %v9047, 16
      %v9308 = vrot.slane %v9306, 1
      %v9309 = vsel %vm403, %v9304, %v9308
      %v9310 = vshrl.u32 %v9039, 16
      %v9312 = vor.u32 %v9310, %v9276
      %v9314 = vshll.u32 %v9055, 16
      %v9316 = vrot.slane %v9314, 1
      %v9317 = vsel %vm403, %v9312, %v9316
      %v9318 = vshrl.u32 %v9201, 16
      %v9320 = vor.u32 %v9318, %v9288
      %v9322 = vshll.u32 %v9205, 16
      %v9324 = vrot.slane %v9322, 1
      %v9325 = vsel %vm403, %v9320, %v9324
      %v9326 = vshrl.u32 %v9203, 16
      %v9328 = vor.u32 %v9326, %v9300
      %v9330 = vshll.u32 %v9207, 16
      %v9332 = vrot.slane %v9330, 1
      %v9333 = vsel %vm403, %v9328, %v9332
      %v9334 = vshrl.u32 %v9047, 16
      %v9336 = vor.u32 %v9334, %v9308
      %v9338 = vshll.u32 %v9063, 16
      %v9340 = vrot.slane %v9338, 1
      %v9341 = vsel %vm403, %v9336, %v9340
      %v9342 = vshrl.u32 %v9055, 16
      %v9344 = vor.u32 %v9342, %v9316
      %v9346 = vshll.u32 %v9071, 16
      %v9348 = vrot.slane %v9346, 1
      %v9349 = vsel %vm403, %v9344, %v9348
      %v9350 = vshrl.u32 %v9205, 16
      %v9352 = vor.u32 %v9350, %v9324
      %v9354 = vshll.u32 %v9209, 16
      %v9356 = vrot.slane %v9354, 1
      %v9357 = vsel %vm403, %v9352, %v9356
      %v9358 = vshrl.u32 %v9207, 16
      %v9360 = vor.u32 %v9358, %v9332
      %v9362 = vshll.u32 %v9211, 16
      %v9364 = vrot.slane %v9362, 1
      %v9365 = vsel %vm403, %v9360, %v9364
      %v9366 = vshrl.u32 %v9063, 16
      %v9368 = vor.u32 %v9366, %v9340
      %v9370 = vshll.u32 %v9079, 16
      %v9372 = vrot.slane %v9370, 1
      %v9373 = vsel %vm403, %v9368, %v9372
      %v9374 = vshrl.u32 %v9071, 16
      %v9376 = vor.u32 %v9374, %v9348
      %v9378 = vshll.u32 %v9087, 16
      %v9380 = vrot.slane %v9378, 1
      %v9381 = vsel %vm403, %v9376, %v9380
      %v9382 = vshrl.u32 %v9209, 16
      %v9384 = vor.u32 %v9382, %v9356
      %v9386 = vshll.u32 %v9213, 16
      %v9388 = vrot.slane %v9386, 1
      %v9389 = vsel %vm403, %v9384, %v9388
      %v9390 = vshrl.u32 %v9211, 16
      %v9392 = vor.u32 %v9390, %v9364
      %v9394 = vshll.u32 %v9215, 16
      %v9396 = vrot.slane %v9394, 1
      %v9397 = vsel %vm403, %v9392, %v9396
      %v9398 = vshrl.u32 %v9079, 16
      %v9400 = vor.u32 %v9398, %v9372
      %v9402 = vshll.u32 %v9088, 16
      %v9404 = vrot.slane %v9402, 1
      %v9405 = vsel %vm403, %v9400, %v9404
      %v9406 = vshrl.u32 %v9087, 16
      %v9408 = vor.u32 %v9406, %v9380
      %v9410 = vshll.u32 %v9090, 16
      %v9412 = vrot.slane %v9410, 1
      %v9413 = vsel %vm403, %v9408, %v9412
      %v9414 = vshrl.u32 %v9213, 16
      %v9416 = vor.u32 %v9414, %v9388
      %v9418 = vshll.u32 %v9212, 16
      %v9420 = vrot.slane %v9418, 1
      %v9421 = vsel %vm403, %v9416, %v9420
      %v9422 = vshrl.u32 %v9215, 16
      %v9424 = vor.u32 %v9422, %v9396
      %v9426 = vshll.u32 %v9214, 16
      %v9428 = vrot.slane %v9426, 1
      %v9429 = vsel %vm403, %v9424, %v9428
      %v9431 = vshrl.u32 %v8978, 16
      %v9433 = vshll.u32 %v8978, 16
      %v9435 = vrot.slane %v9433, 1
      %v9436 = vor.u32 %v9431, %v9435
      %v9437 = vsel %vm403, %v9436, %v9102
      %v9439 = vshrl.u32 %v8979, 16
      %v9441 = vshll.u32 %v8979, 16
      %v9443 = vrot.slane %v9441, 1
      %v9444 = vor.u32 %v9439, %v9443
      %v9445 = vsel %vm403, %v9444, %v9114
      %v9447 = vshrl.u32 %v9103, 16
      %v9449 = vshll.u32 %v9103, 16
      %v9451 = vrot.slane %v9449, 1
      %v9452 = vor.u32 %v9447, %v9451
      %v9454 = vshll.u32 %v9123, 16
      %v9456 = vrot.slane %v9454, 1
      %v9457 = vsel %vm403, %v9452, %v9456
      %v9459 = vshrl.u32 %v9115, 16
      %v9461 = vshll.u32 %v9115, 16
      %v9463 = vrot.slane %v9461, 1
      %v9464 = vor.u32 %v9459, %v9463
      %v9466 = vshll.u32 %v9131, 16
      %v9468 = vrot.slane %v9466, 1
      %v9469 = vsel %vm403, %v9464, %v9468
      %v9471 = vshrl.u32 %v9218, 16
      %v9473 = vshll.u32 %v9218, 16
      %v9475 = vrot.slane %v9473, 1
      %v9476 = vor.u32 %v9471, %v9475
      %v9478 = vshll.u32 %v9223, 16
      %v9480 = vrot.slane %v9478, 1
      %v9481 = vsel %vm403, %v9476, %v9480
      %v9483 = vshrl.u32 %v9221, 16
      %v9485 = vshll.u32 %v9221, 16
      %v9487 = vrot.slane %v9485, 1
      %v9488 = vor.u32 %v9483, %v9487
      %v9490 = vshll.u32 %v9225, 16
      %v9492 = vrot.slane %v9490, 1
      %v9493 = vsel %vm403, %v9488, %v9492
      %v9494 = vshrl.u32 %v9123, 16
      %v9496 = vor.u32 %v9494, %v9456
      %v9498 = vshll.u32 %v9139, 16
      %v9500 = vrot.slane %v9498, 1
      %v9501 = vsel %vm403, %v9496, %v9500
      %v9502 = vshrl.u32 %v9131, 16
      %v9504 = vor.u32 %v9502, %v9468
      %v9506 = vshll.u32 %v9147, 16
      %v9508 = vrot.slane %v9506, 1
      %v9509 = vsel %vm403, %v9504, %v9508
      %v9510 = vshrl.u32 %v9223, 16
      %v9512 = vor.u32 %v9510, %v9480
      %v9514 = vshll.u32 %v9227, 16
      %v9516 = vrot.slane %v9514, 1
      %v9517 = vsel %vm403, %v9512, %v9516
      %v9518 = vshrl.u32 %v9225, 16
      %v9520 = vor.u32 %v9518, %v9492
      %v9522 = vshll.u32 %v9229, 16
      %v9524 = vrot.slane %v9522, 1
      %v9525 = vsel %vm403, %v9520, %v9524
      %v9526 = vshrl.u32 %v9139, 16
      %v9528 = vor.u32 %v9526, %v9500
      %v9530 = vshll.u32 %v9155, 16
      %v9532 = vrot.slane %v9530, 1
      %v9533 = vsel %vm403, %v9528, %v9532
      %v9534 = vshrl.u32 %v9147, 16
      %v9536 = vor.u32 %v9534, %v9508
      %v9538 = vshll.u32 %v9163, 16
      %v9540 = vrot.slane %v9538, 1
      %v9541 = vsel %vm403, %v9536, %v9540
      %v9542 = vshrl.u32 %v9227, 16
      %v9544 = vor.u32 %v9542, %v9516
      %v9546 = vshll.u32 %v9231, 16
      %v9548 = vrot.slane %v9546, 1
      %v9549 = vsel %vm403, %v9544, %v9548
      %v9550 = vshrl.u32 %v9229, 16
      %v9552 = vor.u32 %v9550, %v9524
      %v9554 = vshll.u32 %v9233, 16
      %v9556 = vrot.slane %v9554, 1
      %v9557 = vsel %vm403, %v9552, %v9556
      %v9558 = vshrl.u32 %v9155, 16
      %v9560 = vor.u32 %v9558, %v9532
      %v9562 = vshll.u32 %v9171, 16
      %v9564 = vrot.slane %v9562, 1
      %v9565 = vsel %vm403, %v9560, %v9564
      %v9566 = vshrl.u32 %v9163, 16
      %v9568 = vor.u32 %v9566, %v9540
      %v9570 = vshll.u32 %v9179, 16
      %v9572 = vrot.slane %v9570, 1
      %v9573 = vsel %vm403, %v9568, %v9572
      %v9574 = vshrl.u32 %v9231, 16
      %v9576 = vor.u32 %v9574, %v9548
      %v9578 = vshll.u32 %v9235, 16
      %v9580 = vrot.slane %v9578, 1
      %v9581 = vsel %vm403, %v9576, %v9580
      %v9582 = vshrl.u32 %v9233, 16
      %v9584 = vor.u32 %v9582, %v9556
      %v9586 = vshll.u32 %v9237, 16
      %v9588 = vrot.slane %v9586, 1
      %v9589 = vsel %vm403, %v9584, %v9588
      %v9590 = vshrl.u32 %v9171, 16
      %v9592 = vor.u32 %v9590, %v9564
      %v9594 = vshll.u32 %v9180, 16
      %v9596 = vrot.slane %v9594, 1
      %v9597 = vsel %vm403, %v9592, %v9596
      %v9598 = vshrl.u32 %v9179, 16
      %v9600 = vor.u32 %v9598, %v9572
      %v9602 = vshll.u32 %v9182, 16
      %v9604 = vrot.slane %v9602, 1
      %v9605 = vsel %vm403, %v9600, %v9604
      %v9606 = vshrl.u32 %v9235, 16
      %v9608 = vor.u32 %v9606, %v9580
      %v9610 = vshll.u32 %v9234, 16
      %v9612 = vrot.slane %v9610, 1
      %v9613 = vsel %vm403, %v9608, %v9612
      %v9614 = vshrl.u32 %v9237, 16
      %v9616 = vor.u32 %v9614, %v9588
      %v9618 = vshll.u32 %v9236, 16
      %v9620 = vrot.slane %v9618, 1
      %v9621 = vsel %vm403, %v9616, %v9620
      %s9682 = scalar_lea.vmem %s3, 1536
      %v9683 = vld [vmem:[%s9682] sm:$0xff]
      %v9684 = vld [vmem:[%s9682 + $0x8] sm:$0xff]
      %v9685 = vld [vmem:[%s9682 + $0x10] sm:$0xff]
      %v9686 = vld [vmem:[%s9682 + $0x18] sm:$0xff]
      %v9687 = vld [vmem:[%s9682 + $0x20] sm:$0xff]
      %v9688 = vld [vmem:[%s9682 + $0x28] sm:$0xff]
      %v9689 = vld [vmem:[%s9682 + $0x30] sm:$0xff]
      %v9690 = vld [vmem:[%s9682 + $0x38] sm:$0xff]
      %v9691 = vld [vmem:[%s9682 + $0x40] sm:$0xff]
      %v9692 = vld [vmem:[%s9682 + $0x48] sm:$0xff]
      %v9693 = vld [vmem:[%s9682 + $0x50] sm:$0xff]
      %v9694 = vld [vmem:[%s9682 + $0x58] sm:$0xff]
      %v9695 = vld [vmem:[%s9682 + $0x60] sm:$0xff]
      %v9696 = vld [vmem:[%s9682 + $0x68] sm:$0xff]
      %v9697 = vld [vmem:[%s9682 + $0x70] sm:$0xff]
      %v9698 = vld [vmem:[%s9682 + $0x78] sm:$0xff]
      %v9699 = vld [vmem:[%s9682 + $0x80] sm:$0xff]
      %v9700 = vld [vmem:[%s9682 + $0x88] sm:$0xff]
      %v9701 = vld [vmem:[%s9682 + $0x90] sm:$0xff]
      %v9702 = vld [vmem:[%s9682 + $0x98] sm:$0xff]
      %v9703 = vld [vmem:[%s9682 + $0xa0] sm:$0xff]
      %v9704 = vld [vmem:[%s9682 + $0xa8] sm:$0xff]
      %v9705 = vld [vmem:[%s9682 + $0xb0] sm:$0xff]
      %v9706 = vld [vmem:[%s9682 + $0xb8] sm:$0xff]
      %v9707 = vld [vmem:[%s9682 + $0xc0] sm:$0xff]
      %v9708 = vld [vmem:[%s9682 + $0xc8] sm:$0xff]
      %v9709 = vld [vmem:[%s9682 + $0xd0] sm:$0xff]
      %v9710 = vld [vmem:[%s9682 + $0xd8] sm:$0xff]
      %v9711 = vld [vmem:[%s9682 + $0xe0] sm:$0xff]
      %v9712 = vld [vmem:[%s9682 + $0xe8] sm:$0xff]
      %v9713 = vld [vmem:[%s9682 + $0xf0] sm:$0xff]
      %v9714 = vld [vmem:[%s9682 + $0xf8] sm:$0xff]
      %v9715 = vld [vmem:[%s9682 + $0x100] sm:$0xff]
      %v9716 = vld [vmem:[%s9682 + $0x108] sm:$0xff]
      %v9717 = vld [vmem:[%s9682 + $0x110] sm:$0xff]
      %v9718 = vld [vmem:[%s9682 + $0x118] sm:$0xff]
      %v9719 = vld [vmem:[%s9682 + $0x120] sm:$0xff]
      %v9720 = vld [vmem:[%s9682 + $0x128] sm:$0xff]
      %v9721 = vld [vmem:[%s9682 + $0x130] sm:$0xff]
      %v9722 = vld [vmem:[%s9682 + $0x138] sm:$0xff]
      %v9723 = vld [vmem:[%s9682 + $0x140] sm:$0xff]
      %v9724 = vld [vmem:[%s9682 + $0x148] sm:$0xff]
      %v9725 = vld [vmem:[%s9682 + $0x150] sm:$0xff]
      %v9726 = vld [vmem:[%s9682 + $0x158] sm:$0xff]
      %v9727 = vld [vmem:[%s9682 + $0x160] sm:$0xff]
      %v9728 = vld [vmem:[%s9682 + $0x168] sm:$0xff]
      %v9729 = vld [vmem:[%s9682 + $0x170] sm:$0xff]
      %v9730 = vld [vmem:[%s9682 + $0x178] sm:$0xff]
      %v9731 = vld [vmem:[%s9682 + $0x180] sm:$0xff]
      %v9732 = vld [vmem:[%s9682 + $0x188] sm:$0xff]
      %v9733 = vld [vmem:[%s9682 + $0x190] sm:$0xff]
      %v9734 = vld [vmem:[%s9682 + $0x198] sm:$0xff]
      %v9735 = vld [vmem:[%s9682 + $0x1a0] sm:$0xff]
      %v9736 = vld [vmem:[%s9682 + $0x1a8] sm:$0xff]
      %v9737 = vld [vmem:[%s9682 + $0x1b0] sm:$0xff]
      %v9738 = vld [vmem:[%s9682 + $0x1b8] sm:$0xff]
      %v9739 = vld [vmem:[%s9682 + $0x1c0] sm:$0xff]
      %v9740 = vld [vmem:[%s9682 + $0x1c8] sm:$0xff]
      %v9741 = vld [vmem:[%s9682 + $0x1d0] sm:$0xff]
      %v9742 = vld [vmem:[%s9682 + $0x1d8] sm:$0xff]
      %v9743 = vld [vmem:[%s9682 + $0x1e0] sm:$0xff]
      %v9744 = vld [vmem:[%s9682 + $0x1e8] sm:$0xff]
      %v9745 = vld [vmem:[%s9682 + $0x1f0] sm:$0xff]
      %v9746 = vld [vmem:[%s9682 + $0x1f8] sm:$0xff]
      %v9747 = vld [vmem:[%s9682 + $0x200] sm:$0xff]
      %v9748 = vld [vmem:[%s9682 + $0x208] sm:$0xff]
      %v9749 = vld [vmem:[%s9682 + $0x210] sm:$0xff]
      %v9750 = vld [vmem:[%s9682 + $0x218] sm:$0xff]
      %v9751 = vld [vmem:[%s9682 + $0x220] sm:$0xff]
      %v9752 = vld [vmem:[%s9682 + $0x228] sm:$0xff]
      %v9753 = vld [vmem:[%s9682 + $0x230] sm:$0xff]
      %v9754 = vld [vmem:[%s9682 + $0x238] sm:$0xff]
      %v9755 = vld [vmem:[%s9682 + $0x240] sm:$0xff]
      %v9756 = vld [vmem:[%s9682 + $0x248] sm:$0xff]
      %v9757 = vld [vmem:[%s9682 + $0x250] sm:$0xff]
      %v9758 = vld [vmem:[%s9682 + $0x258] sm:$0xff]
      %v9759 = vld [vmem:[%s9682 + $0x260] sm:$0xff]
      %v9760 = vld [vmem:[%s9682 + $0x268] sm:$0xff]
      %v9761 = vld [vmem:[%s9682 + $0x270] sm:$0xff]
      %v9762 = vld [vmem:[%s9682 + $0x278] sm:$0xff]
      %v9763 = vld [vmem:[%s9682 + $0x280] sm:$0xff]
      %v9764 = vld [vmem:[%s9682 + $0x288] sm:$0xff]
      %v9765 = vld [vmem:[%s9682 + $0x290] sm:$0xff]
      %v9766 = vld [vmem:[%s9682 + $0x298] sm:$0xff]
      %v9767 = vld [vmem:[%s9682 + $0x2a0] sm:$0xff]
      %v9768 = vld [vmem:[%s9682 + $0x2a8] sm:$0xff]
      %v9769 = vld [vmem:[%s9682 + $0x2b0] sm:$0xff]
      %v9770 = vld [vmem:[%s9682 + $0x2b8] sm:$0xff]
      %v9771 = vld [vmem:[%s9682 + $0x2c0] sm:$0xff]
      %v9772 = vld [vmem:[%s9682 + $0x2c8] sm:$0xff]
      %v9773 = vld [vmem:[%s9682 + $0x2d0] sm:$0xff]
      %v9774 = vld [vmem:[%s9682 + $0x2d8] sm:$0xff]
      %v9775 = vld [vmem:[%s9682 + $0x2e0] sm:$0xff]
      %v9776 = vld [vmem:[%s9682 + $0x2e8] sm:$0xff]
      %v9777 = vld [vmem:[%s9682 + $0x2f0] sm:$0xff]
      %v9778 = vld [vmem:[%s9682 + $0x2f8] sm:$0xff]
      %v9875 = vunpack.c.l.b16 %v9683
      %v9876 = vunpack.c.h.b16 %v9683
      %v9877 = vunpack.c.l.b16 %v9684
      %v9878 = vunpack.c.h.b16 %v9684
      %v9879 = vunpack.c.l.b16 %v9685
      %v9880 = vunpack.c.h.b16 %v9685
      %v9881 = vunpack.c.l.b16 %v9686
      %v9882 = vunpack.c.h.b16 %v9686
      %v9883 = vunpack.c.l.b16 %v9687
      %v9884 = vunpack.c.h.b16 %v9687
      %v9885 = vunpack.c.l.b16 %v9688
      %v9886 = vunpack.c.h.b16 %v9688
      %v9887 = vunpack.c.l.b16 %v9689
      %v9888 = vunpack.c.h.b16 %v9689
      %v9889 = vunpack.c.l.b16 %v9690
      %v9890 = vunpack.c.h.b16 %v9690
      %v9891 = vunpack.c.l.b16 %v9691
      %v9892 = vunpack.c.h.b16 %v9691
      %v9893 = vunpack.c.l.b16 %v9692
      %v9894 = vunpack.c.h.b16 %v9692
      %v9895 = vunpack.c.l.b16 %v9693
      %v9896 = vunpack.c.h.b16 %v9693
      %v9897 = vunpack.c.l.b16 %v9694
      %v9898 = vunpack.c.h.b16 %v9694
      %v9899 = vunpack.c.l.b16 %v9695
      %v9900 = vunpack.c.h.b16 %v9695
      %v9901 = vunpack.c.l.b16 %v9696
      %v9902 = vunpack.c.h.b16 %v9696
      %v9903 = vunpack.c.l.b16 %v9697
      %v9904 = vunpack.c.h.b16 %v9697
      %v9905 = vunpack.c.l.b16 %v9698
      %v9906 = vunpack.c.h.b16 %v9698
      %v9907 = vunpack.c.l.b16 %v9699
      %v9908 = vunpack.c.h.b16 %v9699
      %v9909 = vunpack.c.l.b16 %v9700
      %v9910 = vunpack.c.h.b16 %v9700
      %v9911 = vunpack.c.l.b16 %v9701
      %v9912 = vunpack.c.h.b16 %v9701
      %v9913 = vunpack.c.l.b16 %v9702
      %v9914 = vunpack.c.h.b16 %v9702
      %v9915 = vunpack.c.l.b16 %v9703
      %v9916 = vunpack.c.h.b16 %v9703
      %v9917 = vunpack.c.l.b16 %v9704
      %v9918 = vunpack.c.h.b16 %v9704
      %v9919 = vunpack.c.l.b16 %v9705
      %v9920 = vunpack.c.h.b16 %v9705
      %v9921 = vunpack.c.l.b16 %v9706
      %v9922 = vunpack.c.h.b16 %v9706
      %v9923 = vunpack.c.l.b16 %v9707
      %v9924 = vunpack.c.h.b16 %v9707
      %v9925 = vunpack.c.l.b16 %v9708
      %v9926 = vunpack.c.h.b16 %v9708
      %v9927 = vunpack.c.l.b16 %v9709
      %v9928 = vunpack.c.h.b16 %v9709
      %v9929 = vunpack.c.l.b16 %v9710
      %v9930 = vunpack.c.h.b16 %v9710
      %v9931 = vunpack.c.l.b16 %v9711
      %v9932 = vunpack.c.h.b16 %v9711
      %v9933 = vunpack.c.l.b16 %v9712
      %v9934 = vunpack.c.h.b16 %v9712
      %v9935 = vunpack.c.l.b16 %v9713
      %v9936 = vunpack.c.h.b16 %v9713
      %v9937 = vunpack.c.l.b16 %v9714
      %v9938 = vunpack.c.h.b16 %v9714
      %v9939 = vunpack.c.l.b16 %v9715
      %v9940 = vunpack.c.h.b16 %v9715
      %v9941 = vunpack.c.l.b16 %v9716
      %v9942 = vunpack.c.h.b16 %v9716
      %v9943 = vunpack.c.l.b16 %v9717
      %v9944 = vunpack.c.h.b16 %v9717
      %v9945 = vunpack.c.l.b16 %v9718
      %v9946 = vunpack.c.h.b16 %v9718
      %v9947 = vunpack.c.l.b16 %v9719
      %v9948 = vunpack.c.h.b16 %v9719
      %v9949 = vunpack.c.l.b16 %v9720
      %v9950 = vunpack.c.h.b16 %v9720
      %v9951 = vunpack.c.l.b16 %v9721
      %v9952 = vunpack.c.h.b16 %v9721
      %v9953 = vunpack.c.l.b16 %v9722
      %v9954 = vunpack.c.h.b16 %v9722
      %v9955 = vunpack.c.l.b16 %v9723
      %v9956 = vunpack.c.h.b16 %v9723
      %v9957 = vunpack.c.l.b16 %v9724
      %v9958 = vunpack.c.h.b16 %v9724
      %v9959 = vunpack.c.l.b16 %v9725
      %v9960 = vunpack.c.h.b16 %v9725
      %v9961 = vunpack.c.l.b16 %v9726
      %v9962 = vunpack.c.h.b16 %v9726
      %v9963 = vunpack.c.l.b16 %v9727
      %v9964 = vunpack.c.h.b16 %v9727
      %v9965 = vunpack.c.l.b16 %v9728
      %v9966 = vunpack.c.h.b16 %v9728
      %v9967 = vunpack.c.l.b16 %v9729
      %v9968 = vunpack.c.h.b16 %v9729
      %v9969 = vunpack.c.l.b16 %v9730
      %v9970 = vunpack.c.h.b16 %v9730
      %v9971 = vunpack.c.l.b16 %v9731
      %v9972 = vunpack.c.h.b16 %v9731
      %v9973 = vunpack.c.l.b16 %v9732
      %v9974 = vunpack.c.h.b16 %v9732
      %v9975 = vunpack.c.l.b16 %v9733
      %v9976 = vunpack.c.h.b16 %v9733
      %v9977 = vunpack.c.l.b16 %v9734
      %v9978 = vunpack.c.h.b16 %v9734
      %v9979 = vunpack.c.l.b16 %v9735
      %v9980 = vunpack.c.h.b16 %v9735
      %v9981 = vunpack.c.l.b16 %v9736
      %v9982 = vunpack.c.h.b16 %v9736
      %v9983 = vunpack.c.l.b16 %v9737
      %v9984 = vunpack.c.h.b16 %v9737
      %v9985 = vunpack.c.l.b16 %v9738
      %v9986 = vunpack.c.h.b16 %v9738
      %v9987 = vunpack.c.l.b16 %v9739
      %v9988 = vunpack.c.h.b16 %v9739
      %v9989 = vunpack.c.l.b16 %v9740
      %v9990 = vunpack.c.h.b16 %v9740
      %v9991 = vunpack.c.l.b16 %v9741
      %v9992 = vunpack.c.h.b16 %v9741
      %v9993 = vunpack.c.l.b16 %v9742
      %v9994 = vunpack.c.h.b16 %v9742
      %v9995 = vunpack.c.l.b16 %v9743
      %v9996 = vunpack.c.h.b16 %v9743
      %v9997 = vunpack.c.l.b16 %v9744
      %v9998 = vunpack.c.h.b16 %v9744
      %v9999 = vunpack.c.l.b16 %v9745
      %v10000 = vunpack.c.h.b16 %v9745
      %v10001 = vunpack.c.l.b16 %v9746
      %v10002 = vunpack.c.h.b16 %v9746
      %v10003 = vunpack.c.l.b16 %v9747
      %v10004 = vunpack.c.h.b16 %v9747
      %v10005 = vunpack.c.l.b16 %v9748
      %v10006 = vunpack.c.h.b16 %v9748
      %v10007 = vunpack.c.l.b16 %v9749
      %v10008 = vunpack.c.h.b16 %v9749
      %v10009 = vunpack.c.l.b16 %v9750
      %v10010 = vunpack.c.h.b16 %v9750
      %v10011 = vunpack.c.l.b16 %v9751
      %v10012 = vunpack.c.h.b16 %v9751
      %v10013 = vunpack.c.l.b16 %v9752
      %v10014 = vunpack.c.h.b16 %v9752
      %v10015 = vunpack.c.l.b16 %v9753
      %v10016 = vunpack.c.h.b16 %v9753
      %v10017 = vunpack.c.l.b16 %v9754
      %v10018 = vunpack.c.h.b16 %v9754
      %v10019 = vunpack.c.l.b16 %v9755
      %v10020 = vunpack.c.h.b16 %v9755
      %v10021 = vunpack.c.l.b16 %v9756
      %v10022 = vunpack.c.h.b16 %v9756
      %v10023 = vunpack.c.l.b16 %v9757
      %v10024 = vunpack.c.h.b16 %v9757
      %v10025 = vunpack.c.l.b16 %v9758
      %v10026 = vunpack.c.h.b16 %v9758
      %v10027 = vunpack.c.l.b16 %v9759
      %v10028 = vunpack.c.h.b16 %v9759
      %v10029 = vunpack.c.l.b16 %v9760
      %v10030 = vunpack.c.h.b16 %v9760
      %v10031 = vunpack.c.l.b16 %v9761
      %v10032 = vunpack.c.h.b16 %v9761
      %v10033 = vunpack.c.l.b16 %v9762
      %v10034 = vunpack.c.h.b16 %v9762
      %v10035 = vunpack.c.l.b16 %v9763
      %v10036 = vunpack.c.h.b16 %v9763
      %v10037 = vunpack.c.l.b16 %v9764
      %v10038 = vunpack.c.h.b16 %v9764
      %v10039 = vunpack.c.l.b16 %v9765
      %v10040 = vunpack.c.h.b16 %v9765
      %v10041 = vunpack.c.l.b16 %v9766
      %v10042 = vunpack.c.h.b16 %v9766
      %v10043 = vunpack.c.l.b16 %v9767
      %v10044 = vunpack.c.h.b16 %v9767
      %v10045 = vunpack.c.l.b16 %v9768
      %v10046 = vunpack.c.h.b16 %v9768
      %v10047 = vunpack.c.l.b16 %v9769
      %v10048 = vunpack.c.h.b16 %v9769
      %v10049 = vunpack.c.l.b16 %v9770
      %v10050 = vunpack.c.h.b16 %v9770
      %v10051 = vunpack.c.l.b16 %v9771
      %v10052 = vunpack.c.h.b16 %v9771
      %v10053 = vunpack.c.l.b16 %v9772
      %v10054 = vunpack.c.h.b16 %v9772
      %v10055 = vunpack.c.l.b16 %v9773
      %v10056 = vunpack.c.h.b16 %v9773
      %v10057 = vunpack.c.l.b16 %v9774
      %v10058 = vunpack.c.h.b16 %v9774
      %v10059 = vunpack.c.l.b16 %v9775
      %v10060 = vunpack.c.h.b16 %v9775
      %v10061 = vunpack.c.l.b16 %v9776
      %v10062 = vunpack.c.h.b16 %v9776
      %v10063 = vunpack.c.l.b16 %v9777
      %v10064 = vunpack.c.h.b16 %v9777
      %v10065 = vunpack.c.l.b16 %v9778
      %v10066 = vunpack.c.h.b16 %v9778
      %v10067 = vpack.c.b16 %v9877, %v9875
      %v10068 = vpack.c.b16 %v9878, %v9876
      %v10069 = vpack.c.b16 %v9881, %v9879
      %v10070 = vpack.c.b16 %v9882, %v9880
      %v10071 = vpack.c.b16 %v9885, %v9883
      %v10072 = vpack.c.b16 %v9886, %v9884
      %v10073 = vpack.c.b16 %v9889, %v9887
      %v10074 = vpack.c.b16 %v9890, %v9888
      %v10075 = vpack.c.b16 %v9893, %v9891
      %v10076 = vpack.c.b16 %v9894, %v9892
      %v10077 = vpack.c.b16 %v9897, %v9895
      %v10078 = vpack.c.b16 %v9898, %v9896
      %v10079 = vpack.c.b16 %v9901, %v9899
      %v10080 = vpack.c.b16 %v9902, %v9900
      %v10081 = vpack.c.b16 %v9905, %v9903
      %v10082 = vpack.c.b16 %v9906, %v9904
      %v10083 = vpack.c.b16 %v9909, %v9907
      %v10084 = vpack.c.b16 %v9910, %v9908
      %v10085 = vpack.c.b16 %v9913, %v9911
      %v10086 = vpack.c.b16 %v9914, %v9912
      %v10087 = vpack.c.b16 %v9917, %v9915
      %v10088 = vpack.c.b16 %v9918, %v9916
      %v10089 = vpack.c.b16 %v9921, %v9919
      %v10090 = vpack.c.b16 %v9922, %v9920
      %v10091 = vpack.c.b16 %v9925, %v9923
      %v10092 = vpack.c.b16 %v9926, %v9924
      %v10093 = vpack.c.b16 %v9929, %v9927
      %v10094 = vpack.c.b16 %v9930, %v9928
      %v10095 = vpack.c.b16 %v9933, %v9931
      %v10096 = vpack.c.b16 %v9934, %v9932
      %v10097 = vpack.c.b16 %v9937, %v9935
      %v10098 = vpack.c.b16 %v9938, %v9936
      %v10099 = vpack.c.b16 %v9941, %v9939
      %v10100 = vpack.c.b16 %v9942, %v9940
      %v10101 = vpack.c.b16 %v9945, %v9943
      %v10102 = vpack.c.b16 %v9946, %v9944
      %v10103 = vpack.c.b16 %v9949, %v9947
      %v10104 = vpack.c.b16 %v9950, %v9948
      %v10105 = vpack.c.b16 %v9953, %v9951
      %v10106 = vpack.c.b16 %v9954, %v9952
      %v10107 = vpack.c.b16 %v9957, %v9955
      %v10108 = vpack.c.b16 %v9958, %v9956
      %v10109 = vpack.c.b16 %v9961, %v9959
      %v10110 = vpack.c.b16 %v9962, %v9960
      %v10111 = vpack.c.b16 %v9965, %v9963
      %v10112 = vpack.c.b16 %v9966, %v9964
      %v10113 = vpack.c.b16 %v9969, %v9967
      %v10114 = vpack.c.b16 %v9970, %v9968
      %v10115 = vpack.c.b16 %v9973, %v9971
      %v10116 = vpack.c.b16 %v9974, %v9972
      %v10117 = vpack.c.b16 %v9977, %v9975
      %v10118 = vpack.c.b16 %v9978, %v9976
      %v10119 = vpack.c.b16 %v9981, %v9979
      %v10120 = vpack.c.b16 %v9982, %v9980
      %v10121 = vpack.c.b16 %v9985, %v9983
      %v10122 = vpack.c.b16 %v9986, %v9984
      %v10123 = vpack.c.b16 %v9989, %v9987
      %v10124 = vpack.c.b16 %v9990, %v9988
      %v10125 = vpack.c.b16 %v9993, %v9991
      %v10126 = vpack.c.b16 %v9994, %v9992
      %v10127 = vpack.c.b16 %v9997, %v9995
      %v10128 = vpack.c.b16 %v9998, %v9996
      %v10129 = vpack.c.b16 %v10001, %v9999
      %v10130 = vpack.c.b16 %v10002, %v10000
      %v10131 = vpack.c.b16 %v10005, %v10003
      %v10132 = vpack.c.b16 %v10006, %v10004
      %v10133 = vpack.c.b16 %v10009, %v10007
      %v10134 = vpack.c.b16 %v10010, %v10008
      %v10135 = vpack.c.b16 %v10013, %v10011
      %v10136 = vpack.c.b16 %v10014, %v10012
      %v10137 = vpack.c.b16 %v10017, %v10015
      %v10138 = vpack.c.b16 %v10018, %v10016
      %v10139 = vpack.c.b16 %v10021, %v10019
      %v10140 = vpack.c.b16 %v10022, %v10020
      %v10141 = vpack.c.b16 %v10025, %v10023
      %v10142 = vpack.c.b16 %v10026, %v10024
      %v10143 = vpack.c.b16 %v10029, %v10027
      %v10144 = vpack.c.b16 %v10030, %v10028
      %v10145 = vpack.c.b16 %v10033, %v10031
      %v10146 = vpack.c.b16 %v10034, %v10032
      %v10147 = vpack.c.b16 %v10037, %v10035
      %v10148 = vpack.c.b16 %v10038, %v10036
      %v10149 = vpack.c.b16 %v10041, %v10039
      %v10150 = vpack.c.b16 %v10042, %v10040
      %v10151 = vpack.c.b16 %v10045, %v10043
      %v10152 = vpack.c.b16 %v10046, %v10044
      %v10153 = vpack.c.b16 %v10049, %v10047
      %v10154 = vpack.c.b16 %v10050, %v10048
      %v10155 = vpack.c.b16 %v10053, %v10051
      %v10156 = vpack.c.b16 %v10054, %v10052
      %v10157 = vpack.c.b16 %v10057, %v10055
      %v10158 = vpack.c.b16 %v10058, %v10056
      %v10159 = vpack.c.b16 %v10061, %v10059
      %v10160 = vpack.c.b16 %v10062, %v10060
      %v10161 = vpack.c.b16 %v10065, %v10063
      %v10162 = vpack.c.b16 %v10066, %v10064
      %10259 = vmatprep.subr.bf16.mxu0 %v10082
      %10260 = vmatpush1.bf16.msra.mxu0 %v10081
      %10261 = vmatprep.subr.bf16.mxu0 %v10080
      %10262 = vmatpush1.bf16.msra.mxu0 %v10079
      %10263 = vmatprep.subr.bf16.mxu0 %v10078
      %10264 = vmatpush1.bf16.msra.mxu0 %v10077
      %10265 = vmatprep.subr.bf16.mxu0 %v10076
      %10266 = vmatpush1.bf16.msra.mxu0 %v10075
      %10267 = vmatprep.subr.bf16.mxu0 %v10074
      %10268 = vmatpush1.bf16.msra.mxu0 %v10073
      %10269 = vmatprep.subr.bf16.mxu0 %v10072
      %10270 = vmatpush1.bf16.msra.mxu0 %v10071
      %10271 = vmatprep.subr.bf16.mxu0 %v10070
      %10272 = vmatpush1.bf16.msra.mxu0 %v10069
      %10273 = vmatprep.subr.bf16.mxu0 %v10068
      %10274 = vmatpush1.bf16.msra.mxu0 %v10067
      %10275 = vmatprep.subr.bf16.mxu0 %v10098
      %10276 = vmatpush2.bf16.msra.mxu0 %v10097
      %10277 = vmatprep.subr.bf16.mxu0 %v10096
      %10278 = vmatpush2.bf16.msra.mxu0 %v10095
      %10279 = vmatprep.subr.bf16.mxu0 %v10094
      %10280 = vmatpush2.bf16.msra.mxu0 %v10093
      %10281 = vmatprep.subr.bf16.mxu0 %v10092
      %10282 = vmatpush2.bf16.msra.mxu0 %v10091
      %10283 = vmatprep.subr.bf16.mxu0 %v10090
      %10284 = vmatpush2.bf16.msra.mxu0 %v10089
      %10285 = vmatprep.subr.bf16.mxu0 %v10088
      %10286 = vmatpush2.bf16.msra.mxu0 %v10087
      %10287 = vmatprep.subr.bf16.mxu0 %v10086
      %10288 = vmatpush2.bf16.msra.mxu0 %v10085
      %10289 = vmatprep.subr.bf16.mxu0 %v10084
      %10290 = vmatpush2.bf16.msra.mxu0 %v10083
      %10291 = vmatprep.mubr.bf16.mxu0 %v9253
      %10292 = vmatmul.mubr.bf16.gmra.mxu0 %v9245
      %v10293 = vpop.f32.mrf.mxu0
      %v10294 = vadd.f32 0.0, %v10293
      %v10295 = vpop.f32.mrf.mxu0
      %v10296 = vadd.f32 0.0, %v10295
      %v10297 = vpop.f32.mrf.mxu0
      %v10298 = vadd.f32 0.0, %v10297
      %v10299 = vpop.f32.mrf.mxu0
      %v10300 = vadd.f32 0.0, %v10299
      %10301 = vmatprep.mubr.bf16.mxu0 %v9039
      %10302 = vmatmul.mubr.bf16.gmra.mxu0 %v9031
      %v10303 = vpop.f32.mrf.mxu0
      %v10304 = vadd.f32 0.0, %v10303
      %v10305 = vpop.f32.mrf.mxu0
      %v10306 = vadd.f32 0.0, %v10305
      %v10307 = vpop.f32.mrf.mxu0
      %v10308 = vadd.f32 0.0, %v10307
      %v10309 = vpop.f32.mrf.mxu0
      %v10310 = vadd.f32 0.0, %v10309
      %10311 = vmatprep.mubr.bf16.mxu0 %v9055
      %10312 = vmatmul.mubr.bf16.gmra.mxu0 %v9047
      %v10313 = vpop.f32.mrf.mxu0
      %v10314 = vadd.f32 0.0, %v10313
      %v10315 = vpop.f32.mrf.mxu0
      %v10316 = vadd.f32 0.0, %v10315
      %v10317 = vpop.f32.mrf.mxu0
      %v10318 = vadd.f32 0.0, %v10317
      %v10319 = vpop.f32.mrf.mxu0
      %v10320 = vadd.f32 0.0, %v10319
      %10321 = vmatprep.mubr.bf16.mxu0 %v9071
      %10322 = vmatmul.mubr.bf16.gmra.mxu0 %v9063
      %v10323 = vpop.f32.mrf.mxu0
      %v10324 = vadd.f32 0.0, %v10323
      %v10325 = vpop.f32.mrf.mxu0
      %v10326 = vadd.f32 0.0, %v10325
      %v10327 = vpop.f32.mrf.mxu0
      %v10328 = vadd.f32 0.0, %v10327
      %v10329 = vpop.f32.mrf.mxu0
      %v10330 = vadd.f32 0.0, %v10329
      %10331 = vmatprep.mubr.bf16.mxu0 %v9087
      %10332 = vmatmul.mubr.bf16.gmra.mxu0 %v9079
      %v10333 = vpop.f32.mrf.mxu0
      %v10334 = vadd.f32 0.0, %v10333
      %v10335 = vpop.f32.mrf.mxu0
      %v10336 = vadd.f32 0.0, %v10335
      %v10337 = vpop.f32.mrf.mxu0
      %v10338 = vadd.f32 0.0, %v10337
      %v10339 = vpop.f32.mrf.mxu0
      %v10340 = vadd.f32 0.0, %v10339
      %10341 = vmatprep.mubr.bf16.mxu0 %v9445
      %10342 = vmatmul.mubr.bf16.gmra.mxu0 %v9437
      %v10343 = vpop.f32.mrf.mxu0
      %v10344 = vadd.f32 0.0, %v10343
      %v10345 = vpop.f32.mrf.mxu0
      %v10346 = vadd.f32 0.0, %v10345
      %v10347 = vpop.f32.mrf.mxu0
      %v10348 = vadd.f32 0.0, %v10347
      %v10349 = vpop.f32.mrf.mxu0
      %v10350 = vadd.f32 0.0, %v10349
      %10351 = vmatprep.mubr.bf16.mxu0 %v9131
      %10352 = vmatmul.mubr.bf16.gmra.mxu0 %v9123
      %v10353 = vpop.f32.mrf.mxu0
      %v10354 = vadd.f32 0.0, %v10353
      %v10355 = vpop.f32.mrf.mxu0
      %v10356 = vadd.f32 0.0, %v10355
      %v10357 = vpop.f32.mrf.mxu0
      %v10358 = vadd.f32 0.0, %v10357
      %v10359 = vpop.f32.mrf.mxu0
      %v10360 = vadd.f32 0.0, %v10359
      %10361 = vmatprep.mubr.bf16.mxu0 %v9147
      %10362 = vmatmul.mubr.bf16.gmra.mxu0 %v9139
      %v10363 = vpop.f32.mrf.mxu0
      %v10364 = vadd.f32 0.0, %v10363
      %v10365 = vpop.f32.mrf.mxu0
      %v10366 = vadd.f32 0.0, %v10365
      %v10367 = vpop.f32.mrf.mxu0
      %v10368 = vadd.f32 0.0, %v10367
      %v10369 = vpop.f32.mrf.mxu0
      %v10370 = vadd.f32 0.0, %v10369
      %10371 = vmatprep.mubr.bf16.mxu0 %v9163
      %10372 = vmatmul.mubr.bf16.gmra.mxu0 %v9155
      %v10373 = vpop.f32.mrf.mxu0
      %v10374 = vadd.f32 0.0, %v10373
      %v10375 = vpop.f32.mrf.mxu0
      %v10376 = vadd.f32 0.0, %v10375
      %v10377 = vpop.f32.mrf.mxu0
      %v10378 = vadd.f32 0.0, %v10377
      %v10379 = vpop.f32.mrf.mxu0
      %v10380 = vadd.f32 0.0, %v10379
      %10381 = vmatprep.mubr.bf16.mxu0 %v9179
      %10382 = vmatmul.mubr.bf16.gmra.mxu0 %v9171
      %v10383 = vpop.f32.mrf.mxu0
      %v10384 = vadd.f32 0.0, %v10383
      %v10385 = vpop.f32.mrf.mxu0
      %v10386 = vadd.f32 0.0, %v10385
      %v10387 = vpop.f32.mrf.mxu0
      %v10388 = vadd.f32 0.0, %v10387
      %v10389 = vpop.f32.mrf.mxu0
      %v10390 = vadd.f32 0.0, %v10389
      %10391 = vdwg.mxu0
      %10392 = vmatprep.subr.bf16.mxu0 %v10114
      %10393 = vmatpush1.bf16.msra.mxu0 %v10113
      %10394 = vmatprep.subr.bf16.mxu0 %v10112
      %10395 = vmatpush1.bf16.msra.mxu0 %v10111
      %10396 = vmatprep.subr.bf16.mxu0 %v10110
      %10397 = vmatpush1.bf16.msra.mxu0 %v10109
      %10398 = vmatprep.subr.bf16.mxu0 %v10108
      %10399 = vmatpush1.bf16.msra.mxu0 %v10107
      %10400 = vmatprep.subr.bf16.mxu0 %v10106
      %10401 = vmatpush1.bf16.msra.mxu0 %v10105
      %10402 = vmatprep.subr.bf16.mxu0 %v10104
      %10403 = vmatpush1.bf16.msra.mxu0 %v10103
      %10404 = vmatprep.subr.bf16.mxu0 %v10102
      %10405 = vmatpush1.bf16.msra.mxu0 %v10101
      %10406 = vmatprep.subr.bf16.mxu0 %v10100
      %10407 = vmatpush1.bf16.msra.mxu0 %v10099
      %10408 = vmatprep.subr.bf16.mxu0 %v10130
      %10409 = vmatpush2.bf16.msra.mxu0 %v10129
      %10410 = vmatprep.subr.bf16.mxu0 %v10128
      %10411 = vmatpush2.bf16.msra.mxu0 %v10127
      %10412 = vmatprep.subr.bf16.mxu0 %v10126
      %10413 = vmatpush2.bf16.msra.mxu0 %v10125
      %10414 = vmatprep.subr.bf16.mxu0 %v10124
      %10415 = vmatpush2.bf16.msra.mxu0 %v10123
      %10416 = vmatprep.subr.bf16.mxu0 %v10122
      %10417 = vmatpush2.bf16.msra.mxu0 %v10121
      %10418 = vmatprep.subr.bf16.mxu0 %v10120
      %10419 = vmatpush2.bf16.msra.mxu0 %v10119
      %10420 = vmatprep.subr.bf16.mxu0 %v10118
      %10421 = vmatpush2.bf16.msra.mxu0 %v10117
      %10422 = vmatprep.subr.bf16.mxu0 %v10116
      %10423 = vmatpush2.bf16.msra.mxu0 %v10115
      %10424 = vmatprep.mubr.bf16.mxu0 %v9277
      %10425 = vmatmul.mubr.bf16.gmra.mxu0 %v9265
      %v10426 = vpop.f32.mrf.mxu0
      %v10427 = vadd.f32 %v10294, %v10426
      %v10428 = vpop.f32.mrf.mxu0
      %v10429 = vadd.f32 %v10296, %v10428
      %v10430 = vpop.f32.mrf.mxu0
      %v10431 = vadd.f32 %v10298, %v10430
      %v10432 = vpop.f32.mrf.mxu0
      %v10433 = vadd.f32 %v10300, %v10432
      %10434 = vmatprep.mubr.bf16.mxu0 %v9317
      %10435 = vmatmul.mubr.bf16.gmra.mxu0 %v9309
      %v10436 = vpop.f32.mrf.mxu0
      %v10437 = vadd.f32 %v10304, %v10436
      %v10438 = vpop.f32.mrf.mxu0
      %v10439 = vadd.f32 %v10306, %v10438
      %v10440 = vpop.f32.mrf.mxu0
      %v10441 = vadd.f32 %v10308, %v10440
      %v10442 = vpop.f32.mrf.mxu0
      %v10443 = vadd.f32 %v10310, %v10442
      %10444 = vmatprep.mubr.bf16.mxu0 %v9349
      %10445 = vmatmul.mubr.bf16.gmra.mxu0 %v9341
      %v10446 = vpop.f32.mrf.mxu0
      %v10447 = vadd.f32 %v10314, %v10446
      %v10448 = vpop.f32.mrf.mxu0
      %v10449 = vadd.f32 %v10316, %v10448
      %v10450 = vpop.f32.mrf.mxu0
      %v10451 = vadd.f32 %v10318, %v10450
      %v10452 = vpop.f32.mrf.mxu0
      %v10453 = vadd.f32 %v10320, %v10452
      %10454 = vmatprep.mubr.bf16.mxu0 %v9381
      %10455 = vmatmul.mubr.bf16.gmra.mxu0 %v9373
      %v10456 = vpop.f32.mrf.mxu0
      %v10457 = vadd.f32 %v10324, %v10456
      %v10458 = vpop.f32.mrf.mxu0
      %v10459 = vadd.f32 %v10326, %v10458
      %v10460 = vpop.f32.mrf.mxu0
      %v10461 = vadd.f32 %v10328, %v10460
      %v10462 = vpop.f32.mrf.mxu0
      %v10463 = vadd.f32 %v10330, %v10462
      %10464 = vmatprep.mubr.bf16.mxu0 %v9413
      %10465 = vmatmul.mubr.bf16.gmra.mxu0 %v9405
      %v10466 = vpop.f32.mrf.mxu0
      %v10467 = vadd.f32 %v10334, %v10466
      %v10468 = vpop.f32.mrf.mxu0
      %v10469 = vadd.f32 %v10336, %v10468
      %v10470 = vpop.f32.mrf.mxu0
      %v10471 = vadd.f32 %v10338, %v10470
      %v10472 = vpop.f32.mrf.mxu0
      %v10473 = vadd.f32 %v10340, %v10472
      %10474 = vmatprep.mubr.bf16.mxu0 %v9469
      %10475 = vmatmul.mubr.bf16.gmra.mxu0 %v9457
      %v10476 = vpop.f32.mrf.mxu0
      %v10477 = vadd.f32 %v10344, %v10476
      %v10478 = vpop.f32.mrf.mxu0
      %v10479 = vadd.f32 %v10346, %v10478
      %v10480 = vpop.f32.mrf.mxu0
      %v10481 = vadd.f32 %v10348, %v10480
      %v10482 = vpop.f32.mrf.mxu0
      %v10483 = vadd.f32 %v10350, %v10482
      %10484 = vmatprep.mubr.bf16.mxu0 %v9509
      %10485 = vmatmul.mubr.bf16.gmra.mxu0 %v9501
      %v10486 = vpop.f32.mrf.mxu0
      %v10487 = vadd.f32 %v10354, %v10486
      %v10488 = vpop.f32.mrf.mxu0
      %v10489 = vadd.f32 %v10356, %v10488
      %v10490 = vpop.f32.mrf.mxu0
      %v10491 = vadd.f32 %v10358, %v10490
      %v10492 = vpop.f32.mrf.mxu0
      %v10493 = vadd.f32 %v10360, %v10492
      %10494 = vmatprep.mubr.bf16.mxu0 %v9541
      %10495 = vmatmul.mubr.bf16.gmra.mxu0 %v9533
      %v10496 = vpop.f32.mrf.mxu0
      %v10497 = vadd.f32 %v10364, %v10496
      %v10498 = vpop.f32.mrf.mxu0
      %v10499 = vadd.f32 %v10366, %v10498
      %v10500 = vpop.f32.mrf.mxu0
      %v10501 = vadd.f32 %v10368, %v10500
      %v10502 = vpop.f32.mrf.mxu0
      %v10503 = vadd.f32 %v10370, %v10502
      %10504 = vmatprep.mubr.bf16.mxu0 %v9573
      %10505 = vmatmul.mubr.bf16.gmra.mxu0 %v9565
      %v10506 = vpop.f32.mrf.mxu0
      %v10507 = vadd.f32 %v10374, %v10506
      %v10508 = vpop.f32.mrf.mxu0
      %v10509 = vadd.f32 %v10376, %v10508
      %v10510 = vpop.f32.mrf.mxu0
      %v10511 = vadd.f32 %v10378, %v10510
      %v10512 = vpop.f32.mrf.mxu0
      %v10513 = vadd.f32 %v10380, %v10512
      %10514 = vmatprep.mubr.bf16.mxu0 %v9605
      %10515 = vmatmul.mubr.bf16.gmra.mxu0 %v9597
      %v10516 = vpop.f32.mrf.mxu0
      %v10517 = vadd.f32 %v10384, %v10516
      %v10518 = vpop.f32.mrf.mxu0
      %v10519 = vadd.f32 %v10386, %v10518
      %v10520 = vpop.f32.mrf.mxu0
      %v10521 = vadd.f32 %v10388, %v10520
      %v10522 = vpop.f32.mrf.mxu0
      %v10523 = vadd.f32 %v10390, %v10522
      %10524 = vdwg.mxu0
      %10525 = vmatprep.subr.bf16.mxu0 %v10146
      %10526 = vmatpush1.bf16.msra.mxu0 %v10145
      %10527 = vmatprep.subr.bf16.mxu0 %v10144
      %10528 = vmatpush1.bf16.msra.mxu0 %v10143
      %10529 = vmatprep.subr.bf16.mxu0 %v10142
      %10530 = vmatpush1.bf16.msra.mxu0 %v10141
      %10531 = vmatprep.subr.bf16.mxu0 %v10140
      %10532 = vmatpush1.bf16.msra.mxu0 %v10139
      %10533 = vmatprep.subr.bf16.mxu0 %v10138
      %10534 = vmatpush1.bf16.msra.mxu0 %v10137
      %10535 = vmatprep.subr.bf16.mxu0 %v10136
      %10536 = vmatpush1.bf16.msra.mxu0 %v10135
      %10537 = vmatprep.subr.bf16.mxu0 %v10134
      %10538 = vmatpush1.bf16.msra.mxu0 %v10133
      %10539 = vmatprep.subr.bf16.mxu0 %v10132
      %10540 = vmatpush1.bf16.msra.mxu0 %v10131
      %10541 = vmatprep.subr.bf16.mxu0 %v10162
      %10542 = vmatpush2.bf16.msra.mxu0 %v10161
      %10543 = vmatprep.subr.bf16.mxu0 %v10160
      %10544 = vmatpush2.bf16.msra.mxu0 %v10159
      %10545 = vmatprep.subr.bf16.mxu0 %v10158
      %10546 = vmatpush2.bf16.msra.mxu0 %v10157
      %10547 = vmatprep.subr.bf16.mxu0 %v10156
      %10548 = vmatpush2.bf16.msra.mxu0 %v10155
      %10549 = vmatprep.subr.bf16.mxu0 %v10154
      %10550 = vmatpush2.bf16.msra.mxu0 %v10153
      %10551 = vmatprep.subr.bf16.mxu0 %v10152
      %10552 = vmatpush2.bf16.msra.mxu0 %v10151
      %10553 = vmatprep.subr.bf16.mxu0 %v10150
      %10554 = vmatpush2.bf16.msra.mxu0 %v10149
      %10555 = vmatprep.subr.bf16.mxu0 %v10148
      %10556 = vmatpush2.bf16.msra.mxu0 %v10147
      %10557 = vmatprep.mubr.bf16.mxu0 %v9301
      %10558 = vmatmul.mubr.bf16.gmra.mxu0 %v9289
      %v10559 = vpop.f32.mrf.mxu0
      %v10560 = vadd.f32 %v10427, %v10559
      %v10561 = vpop.f32.mrf.mxu0
      %v10562 = vadd.f32 %v10429, %v10561
      %v10563 = vpop.f32.mrf.mxu0
      %v10564 = vadd.f32 %v10431, %v10563
      %v10565 = vpop.f32.mrf.mxu0
      %v10566 = vadd.f32 %v10433, %v10565
      %10567 = vmatprep.mubr.bf16.mxu0 %v9333
      %10568 = vmatmul.mubr.bf16.gmra.mxu0 %v9325
      %v10569 = vpop.f32.mrf.mxu0
      %v10570 = vadd.f32 %v10437, %v10569
      %v10571 = vpop.f32.mrf.mxu0
      %v10572 = vadd.f32 %v10439, %v10571
      %v10573 = vpop.f32.mrf.mxu0
      %v10574 = vadd.f32 %v10441, %v10573
      %v10575 = vpop.f32.mrf.mxu0
      %v10576 = vadd.f32 %v10443, %v10575
      %10577 = vmatprep.mubr.bf16.mxu0 %v9365
      %10578 = vmatmul.mubr.bf16.gmra.mxu0 %v9357
      %v10579 = vpop.f32.mrf.mxu0
      %v10580 = vadd.f32 %v10447, %v10579
      %v10581 = vpop.f32.mrf.mxu0
      %v10582 = vadd.f32 %v10449, %v10581
      %v10583 = vpop.f32.mrf.mxu0
      %v10584 = vadd.f32 %v10451, %v10583
      %v10585 = vpop.f32.mrf.mxu0
      %v10586 = vadd.f32 %v10453, %v10585
      %10587 = vmatprep.mubr.bf16.mxu0 %v9397
      %10588 = vmatmul.mubr.bf16.gmra.mxu0 %v9389
      %v10589 = vpop.f32.mrf.mxu0
      %v10590 = vadd.f32 %v10457, %v10589
      %v10591 = vpop.f32.mrf.mxu0
      %v10592 = vadd.f32 %v10459, %v10591
      %v10593 = vpop.f32.mrf.mxu0
      %v10594 = vadd.f32 %v10461, %v10593
      %v10595 = vpop.f32.mrf.mxu0
      %v10596 = vadd.f32 %v10463, %v10595
      %10597 = vmatprep.mubr.bf16.mxu0 %v9429
      %10598 = vmatmul.mubr.bf16.gmra.mxu0 %v9421
      %v10599 = vpop.f32.mrf.mxu0
      %v10600 = vadd.f32 %v10467, %v10599
      %v10601 = vpop.f32.mrf.mxu0
      %v10602 = vadd.f32 %v10469, %v10601
      %v10603 = vpop.f32.mrf.mxu0
      %v10604 = vadd.f32 %v10471, %v10603
      %v10605 = vpop.f32.mrf.mxu0
      %v10606 = vadd.f32 %v10473, %v10605
      %10607 = vmatprep.mubr.bf16.mxu0 %v9493
      %10608 = vmatmul.mubr.bf16.gmra.mxu0 %v9481
      %v10609 = vpop.f32.mrf.mxu0
      %v10610 = vadd.f32 %v10477, %v10609
      %v10611 = vpop.f32.mrf.mxu0
      %v10612 = vadd.f32 %v10479, %v10611
      %v10613 = vpop.f32.mrf.mxu0
      %v10614 = vadd.f32 %v10481, %v10613
      %v10615 = vpop.f32.mrf.mxu0
      %v10616 = vadd.f32 %v10483, %v10615
      %10617 = vmatprep.mubr.bf16.mxu0 %v9525
      %10618 = vmatmul.mubr.bf16.gmra.mxu0 %v9517
      %v10619 = vpop.f32.mrf.mxu0
      %v10620 = vadd.f32 %v10487, %v10619
      %v10621 = vpop.f32.mrf.mxu0
      %v10622 = vadd.f32 %v10489, %v10621
      %v10623 = vpop.f32.mrf.mxu0
      %v10624 = vadd.f32 %v10491, %v10623
      %v10625 = vpop.f32.mrf.mxu0
      %v10626 = vadd.f32 %v10493, %v10625
      %10627 = vmatprep.mubr.bf16.mxu0 %v9557
      %10628 = vmatmul.mubr.bf16.gmra.mxu0 %v9549
      %v10629 = vpop.f32.mrf.mxu0
      %v10630 = vadd.f32 %v10497, %v10629
      %v10631 = vpop.f32.mrf.mxu0
      %v10632 = vadd.f32 %v10499, %v10631
      %v10633 = vpop.f32.mrf.mxu0
      %v10634 = vadd.f32 %v10501, %v10633
      %v10635 = vpop.f32.mrf.mxu0
      %v10636 = vadd.f32 %v10503, %v10635
      %10637 = vmatprep.mubr.bf16.mxu0 %v9589
      %10638 = vmatmul.mubr.bf16.gmra.mxu0 %v9581
      %v10639 = vpop.f32.mrf.mxu0
      %v10640 = vadd.f32 %v10507, %v10639
      %v10641 = vpop.f32.mrf.mxu0
      %v10642 = vadd.f32 %v10509, %v10641
      %v10643 = vpop.f32.mrf.mxu0
      %v10644 = vadd.f32 %v10511, %v10643
      %v10645 = vpop.f32.mrf.mxu0
      %v10646 = vadd.f32 %v10513, %v10645
      %10647 = vmatprep.mubr.bf16.mxu0 %v9621
      %10648 = vmatmul.mubr.bf16.gmra.mxu0 %v9613
      %v10649 = vpop.f32.mrf.mxu0
      %v10650 = vadd.f32 %v10517, %v10649
      %v10651 = vpop.f32.mrf.mxu0
      %v10652 = vadd.f32 %v10519, %v10651
      %v10653 = vpop.f32.mrf.mxu0
      %v10654 = vadd.f32 %v10521, %v10653
      %v10655 = vpop.f32.mrf.mxu0
      %v10656 = vadd.f32 %v10523, %v10655
      %10657 = vdwg.mxu0
      %v10658 = vadd.f32 %v8776, %v10560
      %v10659 = vadd.f32 %v8778, %v10562
      %v10660 = vadd.f32 %v8780, %v10564
      %v10661 = vadd.f32 %v8782, %v10566
      %v10662 = vadd.f32 %v8786, %v10570
      %v10663 = vadd.f32 %v8788, %v10572
      %v10664 = vadd.f32 %v8790, %v10574
      %v10665 = vadd.f32 %v8792, %v10576
      %v10666 = vadd.f32 %v8796, %v10580
      %v10667 = vadd.f32 %v8798, %v10582
      %v10668 = vadd.f32 %v8800, %v10584
      %v10669 = vadd.f32 %v8802, %v10586
      %v10670 = vadd.f32 %v8806, %v10590
      %v10671 = vadd.f32 %v8808, %v10592
      %v10672 = vadd.f32 %v8810, %v10594
      %v10673 = vadd.f32 %v8812, %v10596
      %v10674 = vadd.f32 %v8816, %v10600
      %v10675 = vadd.f32 %v8818, %v10602
      %v10676 = vadd.f32 %v8820, %v10604
      %v10677 = vadd.f32 %v8822, %v10606
      %v10678 = vadd.f32 %v8826, %v10610
      %v10679 = vadd.f32 %v8828, %v10612
      %v10680 = vadd.f32 %v8830, %v10614
      %v10681 = vadd.f32 %v8832, %v10616
      %v10682 = vadd.f32 %v8836, %v10620
      %v10683 = vadd.f32 %v8838, %v10622
      %v10684 = vadd.f32 %v8840, %v10624
      %v10685 = vadd.f32 %v8842, %v10626
      %v10686 = vadd.f32 %v8846, %v10630
      %v10687 = vadd.f32 %v8848, %v10632
      %v10688 = vadd.f32 %v8850, %v10634
      %v10689 = vadd.f32 %v8852, %v10636
      %v10690 = vadd.f32 %v8856, %v10640
      %v10691 = vadd.f32 %v8858, %v10642
      %v10692 = vadd.f32 %v8860, %v10644
      %v10693 = vadd.f32 %v8862, %v10646
      %v10694 = vadd.f32 %v8866, %v10650
      %v10695 = vadd.f32 %v8868, %v10652
      %v10696 = vadd.f32 %v8870, %v10654
      %v10697 = vadd.f32 %v8872, %v10656
      %v10698 = vld [vmem:[%s251 + $0x8] sm:$0xee]
      %v10699 = vld [vmem:[%s251 + $0x10] sm:$0xff]
      %v10700 = vld [vmem:[%s251 + $0x18] sm:$0xff]
      %v10701 = vld [vmem:[%s251 + $0x20] sm:$0xff]
      %v10702 = vld [vmem:[%s251 + $0x28] sm:$0xff]
      %v10703 = vld [vmem:[%s251 + $0x30] sm:$0xff]
      %v10704 = vld [vmem:[%s251 + $0x38] sm:$0xff]
      %v10705 = vld [vmem:[%s251 + $0x40] sm:$0xff]
      %v10706 = vld [vmem:[%s251 + $0x48] sm:$0xff]
      %v10707 = vld [vmem:[%s251 + $0x50] sm:$0xff]
      %v10708 = vld [vmem:[%s251 + $0x58] sm:$0x33]
      %v10709 = vld [vmem:[%s251 + $0x80] sm:$0xee]
      %v10710 = vld [vmem:[%s251 + $0x88] sm:$0xff]
      %v10711 = vld [vmem:[%s251 + $0x90] sm:$0xff]
      %v10712 = vld [vmem:[%s251 + $0x98] sm:$0xff]
      %v10713 = vld [vmem:[%s251 + $0xa0] sm:$0xff]
      %v10714 = vld [vmem:[%s251 + $0xa8] sm:$0xff]
      %v10715 = vld [vmem:[%s251 + $0xb0] sm:$0xff]
      %v10716 = vld [vmem:[%s251 + $0xb8] sm:$0xff]
      %v10717 = vld [vmem:[%s251 + $0xc0] sm:$0xff]
      %v10718 = vld [vmem:[%s251 + $0xc8] sm:$0xff]
      %v10719 = vld [vmem:[%s251 + $0xd0] sm:$0x33]
      %vm10720 = vsmask.f32 2304
      %vm10721 = vsmask.f32 6416
      %vm10722 = vmor %vm10720, %vm10721
      %v10724 = vshrl.u32 %v10698, 16
      %v10726 = vrot.slane %v10724, 5
      %v10727 = vshll.u32 %v10698, 16
      %v10729 = vrot.slane %v10727, 6
      %v10730 = vor.u32 %v10726, %v10729
      %v10731 = vrot.slane %v10730, 4
      %v10733 = vshrl.u32 %v10699, 16
      %v10735 = vrot.slane %v10733, 5
      %v10736 = vshll.u32 %v10699, 16
      %v10738 = vrot.slane %v10736, 6
      %v10739 = vor.u32 %v10735, %v10738
      %v10740 = vsel %vm10722, %v10731, %v10739
      %v10741 = vrot.slane %v10739, 4
      %v10743 = vshrl.u32 %v10700, 16
      %v10745 = vrot.slane %v10743, 5
      %v10746 = vshll.u32 %v10700, 16
      %v10748 = vrot.slane %v10746, 6
      %v10749 = vor.u32 %v10745, %v10748
      %v10750 = vsel %vm10722, %v10741, %v10749
      %v10751 = vrot.slane %v10749, 4
      %v10753 = vshrl.u32 %v10701, 16
      %v10755 = vrot.slane %v10753, 5
      %v10756 = vshll.u32 %v10701, 16
      %v10758 = vrot.slane %v10756, 6
      %v10759 = vor.u32 %v10755, %v10758
      %v10760 = vsel %vm10722, %v10751, %v10759
      %v10761 = vrot.slane %v10759, 4
      %v10763 = vshrl.u32 %v10702, 16
      %v10765 = vrot.slane %v10763, 5
      %v10766 = vshll.u32 %v10702, 16
      %v10768 = vrot.slane %v10766, 6
      %v10769 = vor.u32 %v10765, %v10768
      %v10770 = vsel %vm10722, %v10761, %v10769
      %v10771 = vrot.slane %v10769, 4
      %v10773 = vshrl.u32 %v10703, 16
      %v10775 = vrot.slane %v10773, 5
      %v10776 = vshll.u32 %v10703, 16
      %v10778 = vrot.slane %v10776, 6
      %v10779 = vor.u32 %v10775, %v10778
      %v10780 = vsel %vm10722, %v10771, %v10779
      %v10781 = vrot.slane %v10779, 4
      %v10783 = vshrl.u32 %v10704, 16
      %v10785 = vrot.slane %v10783, 5
      %v10786 = vshll.u32 %v10704, 16
      %v10788 = vrot.slane %v10786, 6
      %v10789 = vor.u32 %v10785, %v10788
      %v10790 = vsel %vm10722, %v10781, %v10789
      %v10791 = vrot.slane %v10789, 4
      %v10793 = vshrl.u32 %v10705, 16
      %v10795 = vrot.slane %v10793, 5
      %v10796 = vshll.u32 %v10705, 16
      %v10798 = vrot.slane %v10796, 6
      %v10799 = vor.u32 %v10795, %v10798
      %v10800 = vsel %vm10722, %v10791, %v10799
      %v10801 = vrot.slane %v10799, 4
      %v10803 = vshrl.u32 %v10706, 16
      %v10805 = vrot.slane %v10803, 5
      %v10806 = vshll.u32 %v10706, 16
      %v10808 = vrot.slane %v10806, 6
      %v10809 = vor.u32 %v10805, %v10808
      %v10810 = vsel %vm10722, %v10801, %v10809
      %v10811 = vrot.slane %v10809, 4
      %v10813 = vshrl.u32 %v10707, 16
      %v10815 = vrot.slane %v10813, 5
      %v10816 = vshll.u32 %v10707, 16
      %v10818 = vrot.slane %v10816, 6
      %v10819 = vor.u32 %v10815, %v10818
      %v10820 = vsel %vm10722, %v10811, %v10819
      %v10821 = vrot.slane %v10819, 4
      %v10823 = vshrl.u32 %v10708, 16
      %v10825 = vrot.slane %v10823, 5
      %v10826 = vshll.u32 %v10708, 16
      %v10828 = vrot.slane %v10826, 6
      %v10829 = vor.u32 %v10825, %v10828
      %v10830 = vsel %vm10722, %v10821, %v10829
      %v10832 = vshrl.u32 %v10709, 16
      %v10834 = vrot.slane %v10832, 5
      %v10835 = vshll.u32 %v10709, 16
      %v10837 = vrot.slane %v10835, 6
      %v10838 = vor.u32 %v10834, %v10837
      %v10839 = vrot.slane %v10838, 4
      %v10841 = vshrl.u32 %v10710, 16
      %v10843 = vrot.slane %v10841, 5
      %v10844 = vshll.u32 %v10710, 16
      %v10846 = vrot.slane %v10844, 6
      %v10847 = vor.u32 %v10843, %v10846
      %v10848 = vsel %vm10722, %v10839, %v10847
      %v10849 = vrot.slane %v10847, 4
      %v10851 = vshrl.u32 %v10711, 16
      %v10853 = vrot.slane %v10851, 5
      %v10854 = vshll.u32 %v10711, 16
      %v10856 = vrot.slane %v10854, 6
      %v10857 = vor.u32 %v10853, %v10856
      %v10858 = vsel %vm10722, %v10849, %v10857
      %v10859 = vrot.slane %v10857, 4
      %v10861 = vshrl.u32 %v10712, 16
      %v10863 = vrot.slane %v10861, 5
      %v10864 = vshll.u32 %v10712, 16
      %v10866 = vrot.slane %v10864, 6
      %v10867 = vor.u32 %v10863, %v10866
      %v10868 = vsel %vm10722, %v10859, %v10867
      %v10869 = vrot.slane %v10867, 4
      %v10871 = vshrl.u32 %v10713, 16
      %v10873 = vrot.slane %v10871, 5
      %v10874 = vshll.u32 %v10713, 16
      %v10876 = vrot.slane %v10874, 6
      %v10877 = vor.u32 %v10873, %v10876
      %v10878 = vsel %vm10722, %v10869, %v10877
      %v10879 = vrot.slane %v10877, 4
      %v10881 = vshrl.u32 %v10714, 16
      %v10883 = vrot.slane %v10881, 5
      %v10884 = vshll.u32 %v10714, 16
      %v10886 = vrot.slane %v10884, 6
      %v10887 = vor.u32 %v10883, %v10886
      %v10888 = vsel %vm10722, %v10879, %v10887
      %v10889 = vrot.slane %v10887, 4
      %v10891 = vshrl.u32 %v10715, 16
      %v10893 = vrot.slane %v10891, 5
      %v10894 = vshll.u32 %v10715, 16
      %v10896 = vrot.slane %v10894, 6
      %v10897 = vor.u32 %v10893, %v10896
      %v10898 = vsel %vm10722, %v10889, %v10897
      %v10899 = vrot.slane %v10897, 4
      %v10901 = vshrl.u32 %v10716, 16
      %v10903 = vrot.slane %v10901, 5
      %v10904 = vshll.u32 %v10716, 16
      %v10906 = vrot.slane %v10904, 6
      %v10907 = vor.u32 %v10903, %v10906
      %v10908 = vsel %vm10722, %v10899, %v10907
      %v10909 = vrot.slane %v10907, 4
      %v10911 = vshrl.u32 %v10717, 16
      %v10913 = vrot.slane %v10911, 5
      %v10914 = vshll.u32 %v10717, 16
      %v10916 = vrot.slane %v10914, 6
      %v10917 = vor.u32 %v10913, %v10916
      %v10918 = vsel %vm10722, %v10909, %v10917
      %v10919 = vrot.slane %v10917, 4
      %v10921 = vshrl.u32 %v10718, 16
      %v10923 = vrot.slane %v10921, 5
      %v10924 = vshll.u32 %v10718, 16
      %v10926 = vrot.slane %v10924, 6
      %v10927 = vor.u32 %v10923, %v10926
      %v10928 = vsel %vm10722, %v10919, %v10927
      %v10929 = vrot.slane %v10927, 4
      %v10931 = vshrl.u32 %v10719, 16
      %v10933 = vrot.slane %v10931, 5
      %v10934 = vshll.u32 %v10719, 16
      %v10936 = vrot.slane %v10934, 6
      %v10937 = vor.u32 %v10933, %v10936
      %v10938 = vsel %vm10722, %v10929, %v10937
      %v10959 = vunpack.c.l.bf16 %v10740
      %v10960 = vunpack.c.h.bf16 %v10740
      %v10961 = vunpack.c.l.bf16 %v10750
      %v10962 = vunpack.c.h.bf16 %v10750
      %v10963 = vunpack.c.l.bf16 %v10760
      %v10964 = vunpack.c.h.bf16 %v10760
      %v10965 = vunpack.c.l.bf16 %v10770
      %v10966 = vunpack.c.h.bf16 %v10770
      %v10967 = vunpack.c.l.bf16 %v10780
      %v10968 = vunpack.c.h.bf16 %v10780
      %v10969 = vunpack.c.l.bf16 %v10790
      %v10970 = vunpack.c.h.bf16 %v10790
      %v10971 = vunpack.c.l.bf16 %v10800
      %v10972 = vunpack.c.h.bf16 %v10800
      %v10973 = vunpack.c.l.bf16 %v10810
      %v10974 = vunpack.c.h.bf16 %v10810
      %v10975 = vunpack.c.l.bf16 %v10820
      %v10976 = vunpack.c.h.bf16 %v10820
      %v10977 = vunpack.c.l.bf16 %v10830
      %v10978 = vunpack.c.h.bf16 %v10830
      %v10979 = vunpack.c.l.bf16 %v10848
      %v10980 = vunpack.c.h.bf16 %v10848
      %v10981 = vunpack.c.l.bf16 %v10858
      %v10982 = vunpack.c.h.bf16 %v10858
      %v10983 = vunpack.c.l.bf16 %v10868
      %v10984 = vunpack.c.h.bf16 %v10868
      %v10985 = vunpack.c.l.bf16 %v10878
      %v10986 = vunpack.c.h.bf16 %v10878
      %v10987 = vunpack.c.l.bf16 %v10888
      %v10988 = vunpack.c.h.bf16 %v10888
      %v10989 = vunpack.c.l.bf16 %v10898
      %v10990 = vunpack.c.h.bf16 %v10898
      %v10991 = vunpack.c.l.bf16 %v10908
      %v10992 = vunpack.c.h.bf16 %v10908
      %v10993 = vunpack.c.l.bf16 %v10918
      %v10994 = vunpack.c.h.bf16 %v10918
      %v10995 = vunpack.c.l.bf16 %v10928
      %v10996 = vunpack.c.h.bf16 %v10928
      %v10997 = vunpack.c.l.bf16 %v10938
      %v10998 = vunpack.c.h.bf16 %v10938
      %v10999 = vld [vmem:[%s4] sm:$0x3]
      %v11001 = vlaneseq
      %v11002 = vshrl.u32 %v11001, 7
      %v11003 = vsub.s32 0, %v11002
      %v11004 = vrot.slane %v10999, %v11003
      %v11005 = vlaneseq
      %v11006 = vshrl.u32 %v11005, 7
      %v11007 = vsub.s32 1, %v11006
      %v11008 = vrot.slane %v10999, %v11007
      %v11011 = vadd.f32 %v10658, %v11004
      %v11012 = vadd.f32 %v10659, %v11008
      %v11013 = vadd.f32 %v10660, %v11004
      %v11014 = vadd.f32 %v10661, %v11008
      %v11015 = vadd.f32 %v10662, %v11004
      %v11016 = vadd.f32 %v10663, %v11008
      %v11017 = vadd.f32 %v10664, %v11004
      %v11018 = vadd.f32 %v10665, %v11008
      %v11019 = vadd.f32 %v10666, %v11004
      %v11020 = vadd.f32 %v10667, %v11008
      %v11021 = vadd.f32 %v10668, %v11004
      %v11022 = vadd.f32 %v10669, %v11008
      %v11023 = vadd.f32 %v10670, %v11004
      %v11024 = vadd.f32 %v10671, %v11008
      %v11025 = vadd.f32 %v10672, %v11004
      %v11026 = vadd.f32 %v10673, %v11008
      %v11027 = vadd.f32 %v10674, %v11004
      %v11028 = vadd.f32 %v10675, %v11008
      %v11029 = vadd.f32 %v10676, %v11004
      %v11030 = vadd.f32 %v10677, %v11008
      %v11031 = vadd.f32 %v10678, %v11004
      %v11032 = vadd.f32 %v10679, %v11008
      %v11033 = vadd.f32 %v10680, %v11004
      %v11034 = vadd.f32 %v10681, %v11008
      %v11035 = vadd.f32 %v10682, %v11004
      %v11036 = vadd.f32 %v10683, %v11008
      %v11037 = vadd.f32 %v10684, %v11004
      %v11038 = vadd.f32 %v10685, %v11008
      %v11039 = vadd.f32 %v10686, %v11004
      %v11040 = vadd.f32 %v10687, %v11008
      %v11041 = vadd.f32 %v10688, %v11004
      %v11042 = vadd.f32 %v10689, %v11008
      %v11043 = vadd.f32 %v10690, %v11004
      %v11044 = vadd.f32 %v10691, %v11008
      %v11045 = vadd.f32 %v10692, %v11004
      %v11046 = vadd.f32 %v10693, %v11008
      %v11047 = vadd.f32 %v10694, %v11004
      %v11048 = vadd.f32 %v10695, %v11008
      %v11049 = vadd.f32 %v10696, %v11004
      %v11050 = vadd.f32 %v10697, %v11008
      %v11051 = vadd.f32 %v11011, %v10959
      %v11052 = vadd.f32 %v11012, %v10960
      %v11053 = vadd.f32 %v11013, %v10961
      %v11054 = vadd.f32 %v11014, %v10962
      %v11055 = vadd.f32 %v11015, %v10963
      %v11056 = vadd.f32 %v11016, %v10964
      %v11057 = vadd.f32 %v11017, %v10965
      %v11058 = vadd.f32 %v11018, %v10966
      %v11059 = vadd.f32 %v11019, %v10967
      %v11060 = vadd.f32 %v11020, %v10968
      %v11061 = vadd.f32 %v11021, %v10969
      %v11062 = vadd.f32 %v11022, %v10970
      %v11063 = vadd.f32 %v11023, %v10971
      %v11064 = vadd.f32 %v11024, %v10972
      %v11065 = vadd.f32 %v11025, %v10973
      %v11066 = vadd.f32 %v11026, %v10974
      %v11067 = vadd.f32 %v11027, %v10975
      %v11068 = vadd.f32 %v11028, %v10976
      %v11069 = vadd.f32 %v11029, %v10977
      %v11070 = vadd.f32 %v11030, %v10978
      %v11071 = vadd.f32 %v11031, %v10979
      %v11072 = vadd.f32 %v11032, %v10980
      %v11073 = vadd.f32 %v11033, %v10981
      %v11074 = vadd.f32 %v11034, %v10982
      %v11075 = vadd.f32 %v11035, %v10983
      %v11076 = vadd.f32 %v11036, %v10984
      %v11077 = vadd.f32 %v11037, %v10985
      %v11078 = vadd.f32 %v11038, %v10986
      %v11079 = vadd.f32 %v11039, %v10987
      %v11080 = vadd.f32 %v11040, %v10988
      %v11081 = vadd.f32 %v11041, %v10989
      %v11082 = vadd.f32 %v11042, %v10990
      %v11083 = vadd.f32 %v11043, %v10991
      %v11084 = vadd.f32 %v11044, %v10992
      %v11085 = vadd.f32 %v11045, %v10993
      %v11086 = vadd.f32 %v11046, %v10994
      %v11087 = vadd.f32 %v11047, %v10995
      %v11088 = vadd.f32 %v11048, %v10996
      %v11089 = vadd.f32 %v11049, %v10997
      %v11090 = vadd.f32 %v11050, %v10998
      %v11091 = vmax.f32 %v11051, 0.0
      %v11092 = vmax.f32 %v11052, 0.0
      %v11093 = vmax.f32 %v11053, 0.0
      %v11094 = vmax.f32 %v11054, 0.0
      %v11095 = vmax.f32 %v11055, 0.0
      %v11096 = vmax.f32 %v11056, 0.0
      %v11097 = vmax.f32 %v11057, 0.0
      %v11098 = vmax.f32 %v11058, 0.0
      %v11099 = vmax.f32 %v11059, 0.0
      %v11100 = vmax.f32 %v11060, 0.0
      %v11101 = vmax.f32 %v11061, 0.0
      %v11102 = vmax.f32 %v11062, 0.0
      %v11103 = vmax.f32 %v11063, 0.0
      %v11104 = vmax.f32 %v11064, 0.0
      %v11105 = vmax.f32 %v11065, 0.0
      %v11106 = vmax.f32 %v11066, 0.0
      %v11107 = vmax.f32 %v11067, 0.0
      %v11108 = vmax.f32 %v11068, 0.0
      %v11109 = vmax.f32 %v11069, 0.0
      %v11110 = vmax.f32 %v11070, 0.0
      %v11111 = vmax.f32 %v11071, 0.0
      %v11112 = vmax.f32 %v11072, 0.0
      %v11113 = vmax.f32 %v11073, 0.0
      %v11114 = vmax.f32 %v11074, 0.0
      %v11115 = vmax.f32 %v11075, 0.0
      %v11116 = vmax.f32 %v11076, 0.0
      %v11117 = vmax.f32 %v11077, 0.0
      %v11118 = vmax.f32 %v11078, 0.0
      %v11119 = vmax.f32 %v11079, 0.0
      %v11120 = vmax.f32 %v11080, 0.0
      %v11121 = vmax.f32 %v11081, 0.0
      %v11122 = vmax.f32 %v11082, 0.0
      %v11123 = vmax.f32 %v11083, 0.0
      %v11124 = vmax.f32 %v11084, 0.0
      %v11125 = vmax.f32 %v11085, 0.0
      %v11126 = vmax.f32 %v11086, 0.0
      %v11127 = vmax.f32 %v11087, 0.0
      %v11128 = vmax.f32 %v11088, 0.0
      %v11129 = vmax.f32 %v11089, 0.0
      %v11130 = vmax.f32 %v11090, 0.0
      %11131 = vst [vmem:[%s258] sm:$0xff] %v11091
      %11132 = vst [vmem:[%s258 + $0x8] sm:$0xff] %v11092
      %11133 = vst [vmem:[%s258 + $0x10] sm:$0xff] %v11093
      %11134 = vst [vmem:[%s258 + $0x18] sm:$0xff] %v11094
      %11135 = vst [vmem:[%s258 + $0x20] sm:$0xff] %v11095
      %11136 = vst [vmem:[%s258 + $0x28] sm:$0xff] %v11096
      %11137 = vst [vmem:[%s258 + $0x30] sm:$0xff] %v11097
      %11138 = vst [vmem:[%s258 + $0x38] sm:$0xff] %v11098
      %11139 = vst [vmem:[%s258 + $0x40] sm:$0xff] %v11099
      %11140 = vst [vmem:[%s258 + $0x48] sm:$0xff] %v11100
      %11141 = vst [vmem:[%s258 + $0x50] sm:$0xff] %v11101
      %11142 = vst [vmem:[%s258 + $0x58] sm:$0xff] %v11102
      %11143 = vst [vmem:[%s258 + $0x60] sm:$0xff] %v11103
      %11144 = vst [vmem:[%s258 + $0x68] sm:$0xff] %v11104
      %11145 = vst [vmem:[%s258 + $0x70] sm:$0xff] %v11105
      %11146 = vst [vmem:[%s258 + $0x78] sm:$0xff] %v11106
      %11147 = vst [vmem:[%s258 + $0x80] sm:$0xff] %v11107
      %11148 = vst [vmem:[%s258 + $0x88] sm:$0xff] %v11108
      %11149 = vst [vmem:[%s258 + $0x90] sm:$0xff] %v11109
      %11150 = vst [vmem:[%s258 + $0x98] sm:$0xff] %v11110
      %11151 = vst [vmem:[%s258 + $0xa0] sm:$0xff] %v11111
      %11152 = vst [vmem:[%s258 + $0xa8] sm:$0xff] %v11112
      %11153 = vst [vmem:[%s258 + $0xb0] sm:$0xff] %v11113
      %11154 = vst [vmem:[%s258 + $0xb8] sm:$0xff] %v11114
      %11155 = vst [vmem:[%s258 + $0xc0] sm:$0xff] %v11115
      %11156 = vst [vmem:[%s258 + $0xc8] sm:$0xff] %v11116
      %11157 = vst [vmem:[%s258 + $0xd0] sm:$0xff] %v11117
      %11158 = vst [vmem:[%s258 + $0xd8] sm:$0xff] %v11118
      %11159 = vst [vmem:[%s258 + $0xe0] sm:$0xff] %v11119
      %11160 = vst [vmem:[%s258 + $0xe8] sm:$0xff] %v11120
      %11161 = vst [vmem:[%s258 + $0xf0] sm:$0xff] %v11121
      %11162 = vst [vmem:[%s258 + $0xf8] sm:$0xff] %v11122
      %11163 = vst [vmem:[%s258 + $0x100] sm:$0xff] %v11123
      %11164 = vst [vmem:[%s258 + $0x108] sm:$0xff] %v11124
      %11165 = vst [vmem:[%s258 + $0x110] sm:$0xff] %v11125
      %11166 = vst [vmem:[%s258 + $0x118] sm:$0xff] %v11126
      %11167 = vst [vmem:[%s258 + $0x120] sm:$0xff] %v11127
      %11168 = vst [vmem:[%s258 + $0x128] sm:$0xff] %v11128
      %11169 = vst [vmem:[%s258 + $0x130] sm:$0xff] %v11129
      %11170 = vst [vmem:[%s258 + $0x138] sm:$0xff] %v11130
      %s11171 = smul.u32 2, %s17
      %p11172 = scmp.lt.s32.totalorder %s11171, 3
      %s11173 = scalar_select %p11172, %s11171, 3
      %s11174 = smul.addr %s11173, 20
      %s11175 = smul.addr %s11174, 8
      %s11176 = scalar_lea.vmem %s6, %s11175
      // Predicated region
      $region45: #{residual_layer.1} parent=43 // pred_check
        %p11177 = pneg %p166
      $region46: #{residual_layer.1} parent=43 // pred_check_branch
        %11179 = sbr.rel (%p11177) target = $region48
      $region47: #{residual_layer.1} parent=43 // pred_region
        %s11180 = smul.u32 2, %s17
      $region48: #{residual_layer.1} parent=43 // pred_fallthru
        _
    $region44: #{residual_layer.1} parent=5 // pred_fallthru
      _
    %p11181 = scmp.le.s32.totalorder 2, %s12
    // Predicated region
    $region49: #{residual_layer.1} parent=5 // pred_check
      %p11182 = pneg %p11181
    $region50: #{residual_layer.1} parent=5 // pred_check_branch
      %11184 = sbr.rel (%p11182) target = $region52
    $region51: #{residual_layer.1} parent=5 // pred_region
      %s11185 = ssub.s32 %s12, 2
      // Predicated region
      $region53: #{residual_layer.1} parent=51 // pred_check
        %p11186 = pneg %p172
      $region54: #{residual_layer.1} parent=51 // pred_check_branch
        %11188 = sbr.rel (%p11186) target = $region56
      $region55: #{residual_layer.1} parent=51 // pred_region
        %s11189 = smul.u32 2, %s18
        %p11190 = scmp.lt.s32.totalorder %s11189, 3
        %s11191 = scalar_select %p11190, %s11189, 3
        %s11192 = smul.addr %s11191, 20
        %s11193 = smul.addr %s11192, 8
        %s11194 = scalar_lea.vmem %s6, %s11193
      $region56: #{residual_layer.1} parent=51 // pred_fallthru
        _
    $region52: #{residual_layer.1} parent=5 // pred_fallthru
      _
  $region6: #{residual_layer.1} parent=0 // loop_footer
    %s16 = sadd.s32 1, %s12
  $region7: #{residual_layer.1} parent=0 // loop_footer_branch
    %11 = sbr.rel target = $region3
  $region8: #{residual_layer.1} parent=0 // loop_exit
    _

</llo_original>
